<compile_context>
chip_gen: v7x
topology: tpu7x:2x2x1
jax: 0.10.0
libtpu: 0.0.40
codegen_flags: <defaults>
</compile_context>

<pallas_src>
import functools

import numpy as np
import jax
import jax.numpy as jnp
from jax import lax
from jax.experimental import pallas as pl
from jax.experimental.pallas import tpu as pltpu

BN_EPS = 1e-5
LANE = 128
# MXU-native operand / intermediate-activation dtype (f32 accumulation kept).
COMPUTE_DTYPE = jnp.bfloat16
# Footprint gate for the fully-fused single-kernel path.
_FUSED_VMEM_BUDGET = 10 * 2**20


def _round_up(x, m):
    return (x + m - 1) // m * m


def _largest_divisor_leq(n, cap):
    for d in range(min(n, cap), 0, -1):
        if n % d == 0:
            return d
    return 1


def _silu(x):
    return x * (1.0 / (1.0 + jnp.exp(-x)))


# ====================== fully-fused single-kernel path ======================

def _residual_fused_kernel(x_ref, w1_ref, w2_ref, g1_ref, be1_ref, g2_ref,
                           be2_ref, o_ref, pad_ref):
    """Whole residual block, VMEM resident. x_ref: (N,H,W,Cp) f32."""
    n, h, w, cp = x_ref.shape
    m = n * h * w
    x = x_ref[...].reshape(m, cp)                                  # f32

    # ---- conv1 (1x1) as one MXU matmul (bias cancels under batch-stat BN) --
    h1 = jnp.dot(x.astype(COMPUTE_DTYPE), w1_ref[...],
                 preferred_element_type=jnp.float32)               # (m, cp) f32

    # ---- BN1 (training-mode batch stats, biased var) + SiLU -----------------
    mean1 = jnp.mean(h1, axis=0, keepdims=True)
    var1 = jnp.mean(jnp.square(h1 - mean1), axis=0, keepdims=True)
    scale1 = g1_ref[...] * lax.rsqrt(var1 + BN_EPS)
    shift1 = be1_ref[...] - mean1 * scale1
    a1 = _silu(h1 * scale1 + shift1)

    # ---- zero-padded activation for the 3x3 conv (VMEM scratch) -------------
    pad_ref[...] = jnp.zeros_like(pad_ref)
    pad_ref[:, 1:h + 1, 1:w + 1, :] = a1.reshape(n, h, w, cp).astype(pad_ref.dtype)

    # ---- conv2 (3x3) as 9 shifted matmuls, f32 accumulation -----------------
    # TODO(synk): the kw=1,2 slices are sublane-unaligned (VMEM relayout); a
    # pltpu.roll-based tap shift would move that to the XLU slot for large
    # shapes -- negligible at the fused (small) sizes this path is gated to.
    acc = jnp.zeros((m, cp), jnp.float32)
    for kh in range(3):
        for kw in range(3):
            xs = pad_ref[:, kh:kh + h, kw:kw + w, :].reshape(m, cp)
            wt = w2_ref[(kh * 3 + kw) * cp:(kh * 3 + kw + 1) * cp, :]
            acc = acc + jnp.dot(xs, wt, preferred_element_type=jnp.float32)

    # ---- BN2 + SiLU + residual ----------------------------------------------
    mean2 = jnp.mean(acc, axis=0, keepdims=True)
    var2 = jnp.mean(jnp.square(acc - mean2), axis=0, keepdims=True)
    scale2 = g2_ref[...] * lax.rsqrt(var2 + BN_EPS)
    shift2 = be2_ref[...] - mean2 * scale2
    a2 = _silu(acc * scale2 + shift2)
    o_ref[...] = (a2 + x).reshape(n, h, w, cp)


def _forward_fused(xp, w1, w2, g1, be1, g2, be2):
    N, H, W, Cp = xp.shape

    def full(shape):
        return pl.BlockSpec(shape, lambda *_: (0,) * len(shape))

    grid_spec = pltpu.PrefetchScalarGridSpec(
        num_scalar_prefetch=0,
        grid=(1,),
        in_specs=[full((N, H, W, Cp)), full((Cp, Cp)), full((9 * Cp, Cp)),
                  full((1, Cp)), full((1, Cp)), full((1, Cp)), full((1, Cp))],
        out_specs=full((N, H, W, Cp)),
        scratch_shapes=[pltpu.VMEM((N, H + 2, W + 2, Cp), COMPUTE_DTYPE)],
    )
    return pl.pallas_call(
        _residual_fused_kernel,
        out_shape=jax.ShapeDtypeStruct((N, H, W, Cp), jnp.float32),
        grid_spec=grid_spec,
    )(xp, w1, w2, g1, be1, g2, be2)


# ========================= tiled large-shape path ===========================

def _conv1x1_stats_kernel(x_ref, w_ref, o_ref, st_ref):
    # h = x @ w1 (bias dropped; it cancels under training-mode BN).  Emits the
    # pre-BN activation (bf16) plus per-tile (sum, sum_sq) partials so the
    # wrapper never re-reads the activation for BN statistics.
    h = jnp.dot(x_ref[...].astype(COMPUTE_DTYPE), w_ref[...],
                preferred_element_type=jnp.float32)
    o_ref[...] = h.astype(o_ref.dtype)
    st_ref[...] = jnp.zeros_like(st_ref)
    st_ref[0:1, :] = jnp.sum(h, axis=0, keepdims=True)
    st_ref[1:2, :] = jnp.sum(h * h, axis=0, keepdims=True)


def _conv3x3_stats_kernel(a_ref, w_ref, o_ref, st_ref):
    # a_ref: (TH+2, W+2, Cp) halo'd SiLU(BN1) tile; w_ref: (9*Cp, Cp) taps.
    # TODO(synk): pltpu.roll-based tap shifting would avoid the sublane-
    # unaligned kw=1,2 slice relayouts (perf-review item).
    # TODO(synk): for very large C, tile the 9*Cp tap/K axis as an extra
    # 'arbitrary' grid dim so the resident weight stays bounded on v7x.
    th, wd, cp = o_ref.shape
    acc = jnp.zeros((th * wd, cp), jnp.float32)
    for kh in range(3):
        for kw in range(3):
            xs = a_ref[kh:kh + th, kw:kw + wd, :].reshape(th * wd, cp)
            wt = w_ref[(kh * 3 + kw) * cp:(kh * 3 + kw + 1) * cp, :]
            acc = acc + jnp.dot(xs, wt, preferred_element_type=jnp.float32)
    o_ref[...] = acc.reshape(th, wd, cp).astype(o_ref.dtype)
    st_ref[...] = jnp.zeros_like(st_ref)
    st_ref[0:1, :] = jnp.sum(acc, axis=0, keepdims=True)
    st_ref[1:2, :] = jnp.sum(acc * acc, axis=0, keepdims=True)


def _bn_silu_res_kernel(h_ref, x_ref, scale_ref, shift_ref, o_ref):
    hn = h_ref[...].astype(jnp.float32) * scale_ref[...] + shift_ref[...]
    o_ref[...] = _silu(hn) + x_ref[...]


def _conv1x1(x2d, w1, tm):
    mp, cp = x2d.shape
    ng = mp // tm
    return pl.pallas_call(
        _conv1x1_stats_kernel,
        out_shape=(jax.ShapeDtypeStruct((mp, cp), COMPUTE_DTYPE),
                   jax.ShapeDtypeStruct((ng, 8, cp), jnp.float32)),
        grid=(ng,),
        in_specs=[pl.BlockSpec((tm, cp), lambda i: (i, 0)),
                  pl.BlockSpec((cp, cp), lambda i: (0, 0))],      # resident
        out_specs=(pl.BlockSpec((tm, cp), lambda i: (i, 0)),
                   pl.BlockSpec((None, 8, cp), lambda i: (i, 0, 0))),
        compiler_params=pltpu.CompilerParams(
            dimension_semantics=("parallel",),
            vmem_limit_bytes=64 * 2**20),
    )(x2d, w1)


def _conv3x3(tiles, w2, th, wdim, cp):
    nt = tiles.shape[0]
    return pl.pallas_call(
        _conv3x3_stats_kernel,
        out_shape=(jax.ShapeDtypeStruct((nt, th, wdim, cp), COMPUTE_DTYPE),
                   jax.ShapeDtypeStruct((nt, 8, cp), jnp.float32)),
        grid=(nt,),
        in_specs=[pl.BlockSpec((None, th + 2, wdim + 2, cp),
                               lambda i: (i, 0, 0, 0)),
                  pl.BlockSpec((9 * cp, cp), lambda i: (0, 0))],  # resident
        out_specs=(pl.BlockSpec((None, th, wdim, cp), lambda i: (i, 0, 0, 0)),
                   pl.BlockSpec((None, 8, cp), lambda i: (i, 0, 0))),
        compiler_params=pltpu.CompilerParams(
            dimension_semantics=("parallel",),
            vmem_limit_bytes=64 * 2**20),
    )(tiles, w2)


def _bn_silu_res(h4, x4, scale, shift):
    nt, th, wdim, cp = h4.shape
    return pl.pallas_call(
        _bn_silu_res_kernel,
        out_shape=jax.ShapeDtypeStruct((nt, th, wdim, cp), jnp.float32),
        grid=(nt,),
        in_specs=[pl.BlockSpec((None, th, wdim, cp), lambda i: (i, 0, 0, 0)),
                  pl.BlockSpec((None, th, wdim, cp), lambda i: (i, 0, 0, 0)),
                  pl.BlockSpec((1, cp), lambda i: (0, 0)),
                  pl.BlockSpec((1, cp), lambda i: (0, 0))],
        out_specs=pl.BlockSpec((None, th, wdim, cp), lambda i: (i, 0, 0, 0)),
        compiler_params=pltpu.CompilerParams(dimension_semantics=("parallel",)),
    )(h4, x4, scale, shift)


def _merge_bn_stats(stats, counts, total):
    """Chan-style merge of per-tile (sum, sum_sq) -> (mean, biased var), f32."""
    s = stats[:, 0, :]
    q = stats[:, 1, :]
    n = counts.reshape(-1, 1)
    mean_i = s / n
    m2_i = q - s * mean_i
    mean = jnp.sum(s, axis=0, keepdims=True) / total
    m2 = (jnp.sum(m2_i, axis=0, keepdims=True)
          + jnp.sum(n * jnp.square(mean_i - mean), axis=0, keepdims=True))
    return mean, m2 / total


# ------------------------------ forward pass -------------------------------

def init_params(key, c):
    ks = jax.random.split(key, 8)
    return {
        # conv2d_bn_silu_1: Conv2d(c, c, kernel_size=1, stride=1, padding=0)
        "w1": jax.random.normal(ks[0], (c, c, 1, 1), jnp.float32) / np.sqrt(c),
        "b1": 0.1 * jax.random.normal(ks[1], (c,), jnp.float32),
        "g1": 1.0 + 0.1 * jax.random.normal(ks[2], (c,), jnp.float32),
        "beta1": 0.1 * jax.random.normal(ks[3], (c,), jnp.float32),
        # conv2d_bn_silu_2: Conv2d(c, c, kernel_size=3, stride=1, padding=1)
        "w2": jax.random.normal(ks[4], (c, c, 3, 3), jnp.float32) / np.sqrt(9 * c),
        "b2": 0.1 * jax.random.normal(ks[5], (c,), jnp.float32),
        "g2": 1.0 + 0.1 * jax.random.normal(ks[6], (c,), jnp.float32),
        "beta2": 0.1 * jax.random.normal(ks[7], (c,), jnp.float32),
    }


def residual_forward(params, x_nchw, *, force_tiled=False):
    N, C, H, W = x_nchw.shape
    Cp = _round_up(max(C, LANE), LANE)        # lane-dense channel dim
    M = N * H * W

    # TODO(synk): NCHW<->NHWC transposes + channel padding stay as XLA glue;
    # for tiny C the Cp padding inflates streamed bytes ~LANE/C-fold (compact
    # (M,C) streaming with in-kernel lane packing would cut that).
    xp = jnp.zeros((N, H, W, Cp), jnp.float32).at[..., :C].set(
        jnp.transpose(x_nchw, (0, 2, 3, 1)))

    # Weights in bf16 (MXU-native, halves resident bytes).  Conv biases b1/b2
    # are intentionally unused: they cancel exactly under training-mode BN.
    w1 = jnp.zeros((Cp, Cp), jnp.float32).at[:C, :C].set(
        params["w1"][:, :, 0, 0].T).astype(COMPUTE_DTYPE)
    w2 = jnp.zeros((9, Cp, Cp), jnp.float32).at[:, :C, :C].set(
        jnp.transpose(params["w2"], (2, 3, 1, 0)).reshape(9, C, C))
    w2 = w2.reshape(9 * Cp, Cp).astype(COMPUTE_DTYPE)
    g1 = jnp.zeros((1, Cp), jnp.float32).at[0, :C].set(params["g1"])
    be1 = jnp.zeros((1, Cp), jnp.float32).at[0, :C].set(params["beta1"])
    g2 = jnp.zeros((1, Cp), jnp.float32).at[0, :C].set(params["g2"])
    be2 = jnp.zeros((1, Cp), jnp.float32).at[0, :C].set(params["beta2"])

    # ------------- fully-fused single-kernel path (small footprint) ----------
    fused_bytes = (6 * M * Cp * 4 + N * (H + 2) * (W + 2) * Cp * 2
                   + 10 * Cp * Cp * 2)
    if (not force_tiled) and fused_bytes <= _FUSED_VMEM_BUDGET:
        y4 = _forward_fused(xp, w1, w2, g1, be1, g2, be2)          # (N,H,W,Cp)
        return jnp.transpose(y4[..., :C], (0, 3, 1, 2))

    # ----------------------- tiled multi-kernel path -------------------------
    # Large M row tile (VMEM-capped, multiple of 8, prefer a divisor of M so
    # no row padding is needed).
    tm_cap = max(8, min(2048, (4 * 2**20) // (Cp * 4)) // 8 * 8)
    TM = _largest_divisor_leq(M, tm_cap)
    if TM % 8 != 0:
        TM = tm_cap
    Mp = _round_up(M, TM)

    x2d = xp.reshape(M, Cp)
    if Mp != M:
        x2d = jnp.pad(x2d, ((0, Mp - M), (0, 0)))

    # conv1 (1x1) + in-kernel BN1 partial sums.
    h1, st1 = _conv1x1(x2d, w1, TM)                    # (Mp,Cp) bf16, (ng,8,Cp)
    ng1 = Mp // TM
    counts1 = np.full((ng1,), float(TM), np.float32)
    counts1[-1] = float(TM - (Mp - M))
    mean1, var1 = _merge_bn_stats(st1, jnp.asarray(counts1), float(M))
    scale1 = g1 * lax.rsqrt(var1 + BN_EPS)
    shift1 = be1 - mean1 * scale1

    # SiLU(BN1) + spatial zero-pad + halo row tiles (bf16).
    # TODO(synk): still one XLA pass + (1 + 2/TH)x halo duplication; an
    # overlapping-window DMA (pl.ANY + make_async_copy) with the BN1+SiLU
    # prologue fused into the 3x3 kernel would remove this round trip.
    a1 = _silu(h1[:M].astype(jnp.float32) * scale1 + shift1)
    a1 = a1.astype(COMPUTE_DTYPE).reshape(N, H, W, Cp)

    th_cap = max(1, min(32, (4 * 2**20) // ((W + 2) * Cp * 2)))
    TH = _largest_divisor_leq(H, th_cap)
    Tn = H // TH
    a1p = jnp.pad(a1, ((0, 0), (1, 1), (1, 1), (0, 0)))
    tiles = jnp.stack([a1p[:, t * TH:t * TH + TH + 2] for t in range(Tn)], axis=1)
    tiles = tiles.reshape(N * Tn, TH + 2, W + 2, Cp)

    # conv2 (3x3, fused im2col) + in-kernel BN2 partial sums.
    h2, st2 = _conv3x3(tiles, w2, TH, W, Cp)           # (N*Tn,TH,W,Cp) bf16
    counts2 = jnp.full((N * Tn,), float(TH * W), jnp.float32)
    mean2, var2 = _merge_bn_stats(st2, counts2, float(M))
    scale2 = g2 * lax.rsqrt(var2 + BN_EPS)
    shift2 = be2 - mean2 * scale2

    # Fused BN2 + SiLU + residual (tile layout -> no Mp pad/concat needed).
    x4 = xp.reshape(N * Tn, TH, W, Cp)
    y4 = _bn_silu_res(h2, x4, scale2, shift2)          # (N*Tn,TH,W,Cp) f32
    y = y4.reshape(N, H, W, Cp)[..., :C]
    return jnp.transpose(y, (0, 3, 1, 2))              # back to NCHW


# ------------------------- pure-JAX reference check -------------------------

def _ref_forward(params, x_nchw):
    def block(x, w, b, g, beta):
        p = (w.shape[2] - 1) // 2
        y = lax.conv_general_dilated(
            x, w, window_strides=(1, 1), padding=[(p, p), (p, p)],
            dimension_numbers=("NCHW", "OIHW", "NCHW"))
        y = y + b.reshape(1, -1, 1, 1)
        mean = y.mean(axis=(0, 2, 3), keepdims=True)
        var = ((y - mean) ** 2).mean(axis=(0, 2, 3), keepdims=True)
        yn = (y - mean) / jnp.sqrt(var + BN_EPS) * g.reshape(1, -1, 1, 1) \
            + beta.reshape(1, -1, 1, 1)
        return yn * jax.nn.sigmoid(yn)

    h = block(x_nchw, params["w1"], params["b1"], params["g1"], params["beta1"])
    y = block(h, params["w2"], params["b2"], params["g2"], params["beta2"])
    return y + x_nchw


# ----------------------------------- main -----------------------------------

if __name__ == "__main__":
    key = jax.random.PRNGKey(0)
    k_x, k_p = jax.random.split(key)

    N, C, H, W = 2, 4, 16, 16
    x = jax.random.normal(k_x, (N, C, H, W), jnp.float32)
    params = init_params(k_p, C)

    ref = jax.block_until_ready(_ref_forward(params, x))

    # Fused single-kernel path (auto-selected at this footprint).
    # Tolerance 5e-2: bf16 MXU operands (f32 accumulation) per the perf review.
    out = jax.block_until_ready(jax.jit(residual_forward)(params, x))
    assert out.shape == (N, C, H, W) and out.dtype == jnp.float32
    np.testing.assert_allclose(np.asarray(out), np.asarray(ref),
                               rtol=5e-2, atol=5e-2)

    # Also exercise the tiled (large-shape) path at the same small shape.
    tiled_fn = jax.jit(functools.partial(residual_forward, force_tiled=True))
    out_t = jax.block_until_ready(tiled_fn(params, x))
    assert out_t.shape == (N, C, H, W) and out_t.dtype == jnp.float32
    np.testing.assert_allclose(np.asarray(out_t), np.asarray(ref),
                               rtol=5e-2, atol=5e-2)

    print("KERNEL_OK")
</pallas_src>

<mosaic_0001>
module attributes {stable_mosaic.version = 11 : i64} {
  func.func @_residual_fused_kernel(%arg0: i32, %arg1: memref<2x16x16x128xf32, #tpu.memory_space<vmem>>, %arg2: memref<128x128xbf16, #tpu.memory_space<vmem>>, %arg3: memref<1152x128xbf16, #tpu.memory_space<vmem>>, %arg4: memref<1x128xf32, #tpu.memory_space<vmem>>, %arg5: memref<1x128xf32, #tpu.memory_space<vmem>>, %arg6: memref<1x128xf32, #tpu.memory_space<vmem>>, %arg7: memref<1x128xf32, #tpu.memory_space<vmem>>, %arg8: memref<2x16x16x128xf32, #tpu.memory_space<vmem>>, %arg9: memref<2x18x18x128xbf16, #tpu.memory_space<vmem>>) attributes {dimension_semantics = [#tpu.dimension_semantics<arbitrary>], iteration_bounds = array<i64: 1>, scalar_prefetch = 0 : i64, scratch_operands = 1 : i64, tpu.core_type = #tpu.core_type<tc>, window_params = [{pipeline_mode = #tpu.pipeline_mode<synchronous>, transform_indices = @transform_0, window_bounds = array<i64: 2, 16, 16, 128>}, {pipeline_mode = #tpu.pipeline_mode<synchronous>, transform_indices = @transform_1, window_bounds = array<i64: 128, 128>}, {pipeline_mode = #tpu.pipeline_mode<synchronous>, transform_indices = @transform_2, window_bounds = array<i64: 1152, 128>}, {pipeline_mode = #tpu.pipeline_mode<synchronous>, transform_indices = @transform_3, window_bounds = array<i64: 1, 128>}, {pipeline_mode = #tpu.pipeline_mode<synchronous>, transform_indices = @transform_4, window_bounds = array<i64: 1, 128>}, {pipeline_mode = #tpu.pipeline_mode<synchronous>, transform_indices = @transform_5, window_bounds = array<i64: 1, 128>}, {pipeline_mode = #tpu.pipeline_mode<synchronous>, transform_indices = @transform_6, window_bounds = array<i64: 1, 128>}, {pipeline_mode = #tpu.pipeline_mode<synchronous>, transform_indices = @transform_7, window_bounds = array<i64: 2, 16, 16, 128>}]} {
    %c0 = arith.constant 0 : index
    %c0_0 = arith.constant 0 : index
    %c0_1 = arith.constant 0 : index
    %c0_2 = arith.constant 0 : index
    %0 = vector.load %arg1[%c0, %c0_0, %c0_1, %c0_2] : memref<2x16x16x128xf32, #tpu.memory_space<vmem>>, vector<2x16x16x128xf32>
    %1 = vector.shape_cast %0 : vector<2x16x16x128xf32> to vector<512x128xf32>
    %2 = arith.truncf %1 : vector<512x128xf32> to vector<512x128xbf16>
    %c0_3 = arith.constant 0 : index
    %c0_4 = arith.constant 0 : index
    %3 = vector.load %arg2[%c0_3, %c0_4] : memref<128x128xbf16, #tpu.memory_space<vmem>>, vector<128x128xbf16>
    %cst = arith.constant dense<0.000000e+00> : vector<512x128xf32>
    %4 = tpu.matmul %2, %3, %cst {dimension_numbers = #tpu.dot_dimension_numbers<[1], [0], [0], [1], [0, 0, 1, 1], [], []>} : vector<512x128xbf16>, vector<128x128xbf16>, vector<512x128xf32> -> vector<512x128xf32>
    %cst_5 = arith.constant dense<0.000000e+00> : vector<128xf32>
    %5 = vector.multi_reduction <add>, %4, %cst_5 [0] : vector<512x128xf32> to vector<128xf32>
    %6 = vector.shape_cast %5 : vector<128xf32> to vector<1x128xf32>
    %cst_6 = arith.constant 5.120000e+02 : f32
    %7 = vector.broadcast %cst_6 : f32 to vector<1x128xf32>
    %8 = arith.divf %6, %7 : vector<1x128xf32>
    %9 = vector.broadcast %8 : vector<1x128xf32> to vector<512x128xf32>
    %10 = arith.subf %4, %9 : vector<512x128xf32>
    %11 = arith.mulf %10, %10 : vector<512x128xf32>
    %cst_7 = arith.constant dense<0.000000e+00> : vector<128xf32>
    %12 = vector.multi_reduction <add>, %11, %cst_7 [0] : vector<512x128xf32> to vector<128xf32>
    %13 = vector.shape_cast %12 : vector<128xf32> to vector<1x128xf32>
    %cst_8 = arith.constant 5.120000e+02 : f32
    %14 = vector.broadcast %cst_8 : f32 to vector<1x128xf32>
    %15 = arith.divf %13, %14 : vector<1x128xf32>
    %c0_9 = arith.constant 0 : index
    %c0_10 = arith.constant 0 : index
    %16 = vector.load %arg4[%c0_9, %c0_10] : memref<1x128xf32, #tpu.memory_space<vmem>>, vector<1x128xf32>
    %cst_11 = arith.constant 9.99999974E-6 : f32
    %17 = vector.broadcast %cst_11 : f32 to vector<1x128xf32>
    %18 = arith.addf %15, %17 : vector<1x128xf32>
    %19 = math.rsqrt %18 : vector<1x128xf32>
    %20 = arith.mulf %16, %19 : vector<1x128xf32>
    %c0_12 = arith.constant 0 : index
    %c0_13 = arith.constant 0 : index
    %21 = vector.load %arg5[%c0_12, %c0_13] : memref<1x128xf32, #tpu.memory_space<vmem>>, vector<1x128xf32>
    %22 = arith.mulf %8, %20 : vector<1x128xf32>
    %23 = arith.subf %21, %22 : vector<1x128xf32>
    %24 = vector.broadcast %20 : vector<1x128xf32> to vector<512x128xf32>
    %25 = arith.mulf %4, %24 : vector<512x128xf32>
    %26 = vector.broadcast %23 : vector<1x128xf32> to vector<512x128xf32>
    %27 = arith.addf %25, %26 : vector<512x128xf32>
    %cst_14 = arith.constant 0.000000e+00 : f32
    %28 = vector.broadcast %cst_14 : f32 to vector<512x128xf32>
    %29 = arith.subf %28, %27 : vector<512x128xf32>
    %30 = math.exp %29 : vector<512x128xf32>
    %cst_15 = arith.constant 1.000000e+00 : f32
    %31 = vector.broadcast %cst_15 : f32 to vector<512x128xf32>
    %32 = arith.addf %31, %30 : vector<512x128xf32>
    %cst_16 = arith.constant 1.000000e+00 : f32
    %33 = vector.broadcast %cst_16 : f32 to vector<512x128xf32>
    %34 = arith.divf %33, %32 : vector<512x128xf32>
    %35 = arith.mulf %27, %34 : vector<512x128xf32>
    %cst_17 = arith.constant 0.000000e+00 : bf16
    %36 = vector.broadcast %cst_17 : bf16 to vector<2x18x18x128xbf16>
    %c0_18 = arith.constant 0 : index
    %c0_19 = arith.constant 0 : index
    %c0_20 = arith.constant 0 : index
    %c0_21 = arith.constant 0 : index
    %37 = vector.load %arg9[%c0_18, %c0_19, %c0_20, %c0_21] : memref<2x18x18x128xbf16, #tpu.memory_space<vmem>>, vector<2x18x18x128xbf16>
    tpu.vector_store %arg9[%c0_18, %c0_19, %c0_20, %c0_21], %36 {strides = array<i32>} : memref<2x18x18x128xbf16, #tpu.memory_space<vmem>>, vector<2x18x18x128xbf16>,
    %38 = vector.shape_cast %35 : vector<512x128xf32> to vector<2x16x16x128xf32>
    %39 = arith.truncf %38 : vector<2x16x16x128xf32> to vector<2x16x16x128xbf16>
    %c0_22 = arith.constant 0 : index
    %c1 = arith.constant 1 : index
    %c1_23 = arith.constant 1 : index
    %c0_24 = arith.constant 0 : index
    %40 = vector.load %arg9[%c0_22, %c1, %c1_23, %c0_24] : memref<2x18x18x128xbf16, #tpu.memory_space<vmem>>, vector<2x16x16x128xbf16>
    tpu.vector_store %arg9[%c0_22, %c1, %c1_23, %c0_24], %39 {strides = array<i32>} : memref<2x18x18x128xbf16, #tpu.memory_space<vmem>>, vector<2x16x16x128xbf16>,
    %cst_25 = arith.constant 0.000000e+00 : f32
    %41 = vector.broadcast %cst_25 : f32 to vector<512x128xf32>
    %c0_26 = arith.constant 0 : index
    %c0_27 = arith.constant 0 : index
    %c0_28 = arith.constant 0 : index
    %c0_29 = arith.constant 0 : index
    %42 = vector.load %arg9[%c0_26, %c0_27, %c0_28, %c0_29] : memref<2x18x18x128xbf16, #tpu.memory_space<vmem>>, vector<2x16x16x128xbf16>
    %43 = vector.shape_cast %42 : vector<2x16x16x128xbf16> to vector<512x128xbf16>
    %c0_30 = arith.constant 0 : index
    %c0_31 = arith.constant 0 : index
    %44 = vector.load %arg3[%c0_30, %c0_31] : memref<1152x128xbf16, #tpu.memory_space<vmem>>, vector<128x128xbf16>
    %cst_32 = arith.constant dense<0.000000e+00> : vector<512x128xf32>
    %45 = tpu.matmul %43, %44, %cst_32 {dimension_numbers = #tpu.dot_dimension_numbers<[1], [0], [0], [1], [0, 0, 1, 1], [], []>} : vector<512x128xbf16>, vector<128x128xbf16>, vector<512x128xf32> -> vector<512x128xf32>
    %46 = arith.addf %41, %45 : vector<512x128xf32>
    %c0_33 = arith.constant 0 : index
    %c0_34 = arith.constant 0 : index
    %c1_35 = arith.constant 1 : index
    %c0_36 = arith.constant 0 : index
    %47 = vector.load %arg9[%c0_33, %c0_34, %c1_35, %c0_36] : memref<2x18x18x128xbf16, #tpu.memory_space<vmem>>, vector<2x16x16x128xbf16>
    %48 = vector.shape_cast %47 : vector<2x16x16x128xbf16> to vector<512x128xbf16>
    %c128 = arith.constant 128 : index
    %c0_37 = arith.constant 0 : index
    %49 = vector.load %arg3[%c128, %c0_37] : memref<1152x128xbf16, #tpu.memory_space<vmem>>, vector<128x128xbf16>
    %cst_38 = arith.constant dense<0.000000e+00> : vector<512x128xf32>
    %50 = tpu.matmul %48, %49, %cst_38 {dimension_numbers = #tpu.dot_dimension_numbers<[1], [0], [0], [1], [0, 0, 1, 1], [], []>} : vector<512x128xbf16>, vector<128x128xbf16>, vector<512x128xf32> -> vector<512x128xf32>
    %51 = arith.addf %46, %50 : vector<512x128xf32>
    %c0_39 = arith.constant 0 : index
    %c0_40 = arith.constant 0 : index
    %c2 = arith.constant 2 : index
    %c0_41 = arith.constant 0 : index
    %52 = vector.load %arg9[%c0_39, %c0_40, %c2, %c0_41] : memref<2x18x18x128xbf16, #tpu.memory_space<vmem>>, vector<2x16x16x128xbf16>
    %53 = vector.shape_cast %52 : vector<2x16x16x128xbf16> to vector<512x128xbf16>
    %c256 = arith.constant 256 : index
    %c0_42 = arith.constant 0 : index
    %54 = vector.load %arg3[%c256, %c0_42] : memref<1152x128xbf16, #tpu.memory_space<vmem>>, vector<128x128xbf16>
    %cst_43 = arith.constant dense<0.000000e+00> : vector<512x128xf32>
    %55 = tpu.matmul %53, %54, %cst_43 {dimension_numbers = #tpu.dot_dimension_numbers<[1], [0], [0], [1], [0, 0, 1, 1], [], []>} : vector<512x128xbf16>, vector<128x128xbf16>, vector<512x128xf32> -> vector<512x128xf32>
    %56 = arith.addf %51, %55 : vector<512x128xf32>
    %c0_44 = arith.constant 0 : index
    %c1_45 = arith.constant 1 : index
    %c0_46 = arith.constant 0 : index
    %c0_47 = arith.constant 0 : index
    %57 = vector.load %arg9[%c0_44, %c1_45, %c0_46, %c0_47] : memref<2x18x18x128xbf16, #tpu.memory_space<vmem>>, vector<2x16x16x128xbf16>
    %58 = vector.shape_cast %57 : vector<2x16x16x128xbf16> to vector<512x128xbf16>
    %c384 = arith.constant 384 : index
    %c0_48 = arith.constant 0 : index
    %59 = vector.load %arg3[%c384, %c0_48] : memref<1152x128xbf16, #tpu.memory_space<vmem>>, vector<128x128xbf16>
    %cst_49 = arith.constant dense<0.000000e+00> : vector<512x128xf32>
    %60 = tpu.matmul %58, %59, %cst_49 {dimension_numbers = #tpu.dot_dimension_numbers<[1], [0], [0], [1], [0, 0, 1, 1], [], []>} : vector<512x128xbf16>, vector<128x128xbf16>, vector<512x128xf32> -> vector<512x128xf32>
    %61 = arith.addf %56, %60 : vector<512x128xf32>
    %c0_50 = arith.constant 0 : index
    %c1_51 = arith.constant 1 : index
    %c1_52 = arith.constant 1 : index
    %c0_53 = arith.constant 0 : index
    %62 = vector.load %arg9[%c0_50, %c1_51, %c1_52, %c0_53] : memref<2x18x18x128xbf16, #tpu.memory_space<vmem>>, vector<2x16x16x128xbf16>
    %63 = vector.shape_cast %62 : vector<2x16x16x128xbf16> to vector<512x128xbf16>
    %c512 = arith.constant 512 : index
    %c0_54 = arith.constant 0 : index
    %64 = vector.load %arg3[%c512, %c0_54] : memref<1152x128xbf16, #tpu.memory_space<vmem>>, vector<128x128xbf16>
    %cst_55 = arith.constant dense<0.000000e+00> : vector<512x128xf32>
    %65 = tpu.matmul %63, %64, %cst_55 {dimension_numbers = #tpu.dot_dimension_numbers<[1], [0], [0], [1], [0, 0, 1, 1], [], []>} : vector<512x128xbf16>, vector<128x128xbf16>, vector<512x128xf32> -> vector<512x128xf32>
    %66 = arith.addf %61, %65 : vector<512x128xf32>
    %c0_56 = arith.constant 0 : index
    %c1_57 = arith.constant 1 : index
    %c2_58 = arith.constant 2 : index
    %c0_59 = arith.constant 0 : index
    %67 = vector.load %arg9[%c0_56, %c1_57, %c2_58, %c0_59] : memref<2x18x18x128xbf16, #tpu.memory_space<vmem>>, vector<2x16x16x128xbf16>
    %68 = vector.shape_cast %67 : vector<2x16x16x128xbf16> to vector<512x128xbf16>
    %c640 = arith.constant 640 : index
    %c0_60 = arith.constant 0 : index
    %69 = vector.load %arg3[%c640, %c0_60] : memref<1152x128xbf16, #tpu.memory_space<vmem>>, vector<128x128xbf16>
    %cst_61 = arith.constant dense<0.000000e+00> : vector<512x128xf32>
    %70 = tpu.matmul %68, %69, %cst_61 {dimension_numbers = #tpu.dot_dimension_numbers<[1], [0], [0], [1], [0, 0, 1, 1], [], []>} : vector<512x128xbf16>, vector<128x128xbf16>, vector<512x128xf32> -> vector<512x128xf32>
    %71 = arith.addf %66, %70 : vector<512x128xf32>
    %c0_62 = arith.constant 0 : index
    %c2_63 = arith.constant 2 : index
    %c0_64 = arith.constant 0 : index
    %c0_65 = arith.constant 0 : index
    %72 = vector.load %arg9[%c0_62, %c2_63, %c0_64, %c0_65] : memref<2x18x18x128xbf16, #tpu.memory_space<vmem>>, vector<2x16x16x128xbf16>
    %73 = vector.shape_cast %72 : vector<2x16x16x128xbf16> to vector<512x128xbf16>
    %c768 = arith.constant 768 : index
    %c0_66 = arith.constant 0 : index
    %74 = vector.load %arg3[%c768, %c0_66] : memref<1152x128xbf16, #tpu.memory_space<vmem>>, vector<128x128xbf16>
    %cst_67 = arith.constant dense<0.000000e+00> : vector<512x128xf32>
    %75 = tpu.matmul %73, %74, %cst_67 {dimension_numbers = #tpu.dot_dimension_numbers<[1], [0], [0], [1], [0, 0, 1, 1], [], []>} : vector<512x128xbf16>, vector<128x128xbf16>, vector<512x128xf32> -> vector<512x128xf32>
    %76 = arith.addf %71, %75 : vector<512x128xf32>
    %c0_68 = arith.constant 0 : index
    %c2_69 = arith.constant 2 : index
    %c1_70 = arith.constant 1 : index
    %c0_71 = arith.constant 0 : index
    %77 = vector.load %arg9[%c0_68, %c2_69, %c1_70, %c0_71] : memref<2x18x18x128xbf16, #tpu.memory_space<vmem>>, vector<2x16x16x128xbf16>
    %78 = vector.shape_cast %77 : vector<2x16x16x128xbf16> to vector<512x128xbf16>
    %c896 = arith.constant 896 : index
    %c0_72 = arith.constant 0 : index
    %79 = vector.load %arg3[%c896, %c0_72] : memref<1152x128xbf16, #tpu.memory_space<vmem>>, vector<128x128xbf16>
    %cst_73 = arith.constant dense<0.000000e+00> : vector<512x128xf32>
    %80 = tpu.matmul %78, %79, %cst_73 {dimension_numbers = #tpu.dot_dimension_numbers<[1], [0], [0], [1], [0, 0, 1, 1], [], []>} : vector<512x128xbf16>, vector<128x128xbf16>, vector<512x128xf32> -> vector<512x128xf32>
    %81 = arith.addf %76, %80 : vector<512x128xf32>
    %c0_74 = arith.constant 0 : index
    %c2_75 = arith.constant 2 : index
    %c2_76 = arith.constant 2 : index
    %c0_77 = arith.constant 0 : index
    %82 = vector.load %arg9[%c0_74, %c2_75, %c2_76, %c0_77] : memref<2x18x18x128xbf16, #tpu.memory_space<vmem>>, vector<2x16x16x128xbf16>
    %83 = vector.shape_cast %82 : vector<2x16x16x128xbf16> to vector<512x128xbf16>
    %c1024 = arith.constant 1024 : index
    %c0_78 = arith.constant 0 : index
    %84 = vector.load %arg3[%c1024, %c0_78] : memref<1152x128xbf16, #tpu.memory_space<vmem>>, vector<128x128xbf16>
    %cst_79 = arith.constant dense<0.000000e+00> : vector<512x128xf32>
    %85 = tpu.matmul %83, %84, %cst_79 {dimension_numbers = #tpu.dot_dimension_numbers<[1], [0], [0], [1], [0, 0, 1, 1], [], []>} : vector<512x128xbf16>, vector<128x128xbf16>, vector<512x128xf32> -> vector<512x128xf32>
    %86 = arith.addf %81, %85 : vector<512x128xf32>
    %cst_80 = arith.constant dense<0.000000e+00> : vector<128xf32>
    %87 = vector.multi_reduction <add>, %86, %cst_80 [0] : vector<512x128xf32> to vector<128xf32>
    %88 = vector.shape_cast %87 : vector<128xf32> to vector<1x128xf32>
    %cst_81 = arith.constant 5.120000e+02 : f32
    %89 = vector.broadcast %cst_81 : f32 to vector<1x128xf32>
    %90 = arith.divf %88, %89 : vector<1x128xf32>
    %91 = vector.broadcast %90 : vector<1x128xf32> to vector<512x128xf32>
    %92 = arith.subf %86, %91 : vector<512x128xf32>
    %93 = arith.mulf %92, %92 : vector<512x128xf32>
    %cst_82 = arith.constant dense<0.000000e+00> : vector<128xf32>
    %94 = vector.multi_reduction <add>, %93, %cst_82 [0] : vector<512x128xf32> to vector<128xf32>
    %95 = vector.shape_cast %94 : vector<128xf32> to vector<1x128xf32>
    %cst_83 = arith.constant 5.120000e+02 : f32
    %96 = vector.broadcast %cst_83 : f32 to vector<1x128xf32>
    %97 = arith.divf %95, %96 : vector<1x128xf32>
    %c0_84 = arith.constant 0 : index
    %c0_85 = arith.constant 0 : index
    %98 = vector.load %arg6[%c0_84, %c0_85] : memref<1x128xf32, #tpu.memory_space<vmem>>, vector<1x128xf32>
    %cst_86 = arith.constant 9.99999974E-6 : f32
    %99 = vector.broadcast %cst_86 : f32 to vector<1x128xf32>
    %100 = arith.addf %97, %99 : vector<1x128xf32>
    %101 = math.rsqrt %100 : vector<1x128xf32>
    %102 = arith.mulf %98, %101 : vector<1x128xf32>
    %c0_87 = arith.constant 0 : index
    %c0_88 = arith.constant 0 : index
    %103 = vector.load %arg7[%c0_87, %c0_88] : memref<1x128xf32, #tpu.memory_space<vmem>>, vector<1x128xf32>
    %104 = arith.mulf %90, %102 : vector<1x128xf32>
    %105 = arith.subf %103, %104 : vector<1x128xf32>
    %106 = vector.broadcast %102 : vector<1x128xf32> to vector<512x128xf32>
    %107 = arith.mulf %86, %106 : vector<512x128xf32>
    %108 = vector.broadcast %105 : vector<1x128xf32> to vector<512x128xf32>
    %109 = arith.addf %107, %108 : vector<512x128xf32>
    %cst_89 = arith.constant 0.000000e+00 : f32
    %110 = vector.broadcast %cst_89 : f32 to vector<512x128xf32>
    %111 = arith.subf %110, %109 : vector<512x128xf32>
    %112 = math.exp %111 : vector<512x128xf32>
    %cst_90 = arith.constant 1.000000e+00 : f32
    %113 = vector.broadcast %cst_90 : f32 to vector<512x128xf32>
    %114 = arith.addf %113, %112 : vector<512x128xf32>
    %cst_91 = arith.constant 1.000000e+00 : f32
    %115 = vector.broadcast %cst_91 : f32 to vector<512x128xf32>
    %116 = arith.divf %115, %114 : vector<512x128xf32>
    %117 = arith.mulf %109, %116 : vector<512x128xf32>
    %118 = arith.addf %117, %1 : vector<512x128xf32>
    %119 = vector.shape_cast %118 : vector<512x128xf32> to vector<2x16x16x128xf32>
    %c0_92 = arith.constant 0 : index
    %c0_93 = arith.constant 0 : index
    %c0_94 = arith.constant 0 : index
    %c0_95 = arith.constant 0 : index
    %120 = vector.load %arg8[%c0_92, %c0_93, %c0_94, %c0_95] : memref<2x16x16x128xf32, #tpu.memory_space<vmem>>, vector<2x16x16x128xf32>
    tpu.vector_store %arg8[%c0_92, %c0_93, %c0_94, %c0_95], %119 {strides = array<i32>} : memref<2x16x16x128xf32, #tpu.memory_space<vmem>>, vector<2x16x16x128xf32>,
    return
  }
  func.func @transform_0(%arg0: i32) -> (i32, i32, i32, i32) {
    %c0_i32 = arith.constant 0 : i32
    %c0_i32_0 = arith.constant 0 : i32
    %c0_i32_1 = arith.constant 0 : i32
    %c0_i32_2 = arith.constant 0 : i32
    %c0_i32_3 = arith.constant 0 : i32
    return %c0_i32, %c0_i32_0, %c0_i32_1, %c0_i32_2 : i32, i32, i32, i32
  }
  func.func @transform_1(%arg0: i32) -> (i32, i32) {
    %c0_i32 = arith.constant 0 : i32
    %c0_i32_0 = arith.constant 0 : i32
    %c0_i32_1 = arith.constant 0 : i32
    return %c0_i32, %c0_i32_0 : i32, i32
  }
  func.func @transform_2(%arg0: i32) -> (i32, i32) {
    %c0_i32 = arith.constant 0 : i32
    %c0_i32_0 = arith.constant 0 : i32
    %c0_i32_1 = arith.constant 0 : i32
    return %c0_i32, %c0_i32_0 : i32, i32
  }
  func.func @transform_3(%arg0: i32) -> (i32, i32) {
    %c0_i32 = arith.constant 0 : i32
    %c0_i32_0 = arith.constant 0 : i32
    %c0_i32_1 = arith.constant 0 : i32
    return %c0_i32, %c0_i32_0 : i32, i32
  }
  func.func @transform_4(%arg0: i32) -> (i32, i32) {
    %c0_i32 = arith.constant 0 : i32
    %c0_i32_0 = arith.constant 0 : i32
    %c0_i32_1 = arith.constant 0 : i32
    return %c0_i32, %c0_i32_0 : i32, i32
  }
  func.func @transform_5(%arg0: i32) -> (i32, i32) {
    %c0_i32 = arith.constant 0 : i32
    %c0_i32_0 = arith.constant 0 : i32
    %c0_i32_1 = arith.constant 0 : i32
    return %c0_i32, %c0_i32_0 : i32, i32
  }
  func.func @transform_6(%arg0: i32) -> (i32, i32) {
    %c0_i32 = arith.constant 0 : i32
    %c0_i32_0 = arith.constant 0 : i32
    %c0_i32_1 = arith.constant 0 : i32
    return %c0_i32, %c0_i32_0 : i32, i32
  }
  func.func @transform_7(%arg0: i32) -> (i32, i32, i32, i32) {
    %c0_i32 = arith.constant 0 : i32
    %c0_i32_0 = arith.constant 0 : i32
    %c0_i32_1 = arith.constant 0 : i32
    %c0_i32_2 = arith.constant 0 : i32
    %c0_i32_3 = arith.constant 0 : i32
    return %c0_i32, %c0_i32_0, %c0_i32_1, %c0_i32_2 : i32, i32, i32, i32
  }
}

</mosaic_0001>

<llo_original>
// kernel: residual_forward.1
$region0: #{residual_forward.1}
  #allocation0 [shape = 'u32[]', space=smem, size = 0x4, offset = 0x4, fixed_abs, tag = 'smem constant byte address 0x4 - core index']
  #allocation1 [shape = 'u32[144,128]{1,0:T(1,128)}', space=vmem, size = 0x12000, scoped, tag = 'internal scratch']
  #allocation2 [shape = 'bf16[2,18,18,128]{3,2,1,0:T(8,128)(2,1)}', space=vmem, size = 0x36000, scoped, tag = 'scratch operand']
  %s0 = inlined_call_operand.vmem [shape: f32[2,16,16,128], index: 0, kind: input, shape index: {}]
  %s1 = inlined_call_operand.vmem [shape: bf16[128,128], index: 1, kind: input, shape index: {}]
  %s2 = inlined_call_operand.vmem [shape: bf16[1152,128], index: 2, kind: input, shape index: {}]
  %s3 = inlined_call_operand.vmem [shape: f32[1,128], index: 3, kind: input, shape index: {}]
  %s4 = inlined_call_operand.vmem [shape: f32[1,128], index: 4, kind: input, shape index: {}]
  %s5 = inlined_call_operand.vmem [shape: f32[1,128], index: 5, kind: input, shape index: {}]
  %s6 = inlined_call_operand.vmem [shape: f32[1,128], index: 6, kind: input, shape index: {}]
  %s7 = inlined_call_operand.vmem [shape: f32[2,16,16,128], index: 7, kind: output, shape index: {}]
  %s8 = sld [smem:[#allocation0]]
  $region38: #{residual_forward.1} parent=0
    _
  %s10 = ssub.s32 1, %s8
  %s11 = scalar_select 0, %s10, %s8
  // Predicated region
  $region2: #{residual_forward.1} parent=0 // pred_check
    _
  $region3: #{residual_forward.1} parent=0 // pred_check_branch
    %13 = sbr.rel (0) target = $region5
  $region4: #{residual_forward.1} parent=0 // pred_region
    _
  $region5: #{residual_forward.1} parent=0 // pred_fallthru
    _
  // Predicated region
  $region6: #{residual_forward.1} parent=0 // pred_check
    _
  $region7: #{residual_forward.1} parent=0 // pred_check_branch
    %15 = sbr.rel (0) target = $region9
  $region8: #{residual_forward.1} parent=0 // pred_region
    _
  $region9: #{residual_forward.1} parent=0 // pred_fallthru
    _
  // Predicated region
  $region10: #{residual_forward.1} parent=0 // pred_check
    _
  $region11: #{residual_forward.1} parent=0 // pred_check_branch
    %17 = sbr.rel (0) target = $region13
  $region12: #{residual_forward.1} parent=0 // pred_region
    _
  $region13: #{residual_forward.1} parent=0 // pred_fallthru
    _
  // Predicated region
  $region14: #{residual_forward.1} parent=0 // pred_check
    _
  $region15: #{residual_forward.1} parent=0 // pred_check_branch
    %19 = sbr.rel (0) target = $region17
  $region16: #{residual_forward.1} parent=0 // pred_region
    _
  $region17: #{residual_forward.1} parent=0 // pred_fallthru
    _
  // Predicated region
  $region18: #{residual_forward.1} parent=0 // pred_check
    _
  $region19: #{residual_forward.1} parent=0 // pred_check_branch
    %21 = sbr.rel (0) target = $region21
  $region20: #{residual_forward.1} parent=0 // pred_region
    _
  $region21: #{residual_forward.1} parent=0 // pred_fallthru
    _
  // Predicated region
  $region22: #{residual_forward.1} parent=0 // pred_check
    _
  $region23: #{residual_forward.1} parent=0 // pred_check_branch
    %23 = sbr.rel (0) target = $region25
  $region24: #{residual_forward.1} parent=0 // pred_region
    _
  $region25: #{residual_forward.1} parent=0 // pred_fallthru
    _
  // Predicated region
  $region26: #{residual_forward.1} parent=0 // pred_check
    _
  $region27: #{residual_forward.1} parent=0 // pred_check_branch
    %25 = sbr.rel (0) target = $region29
  $region28: #{residual_forward.1} parent=0 // pred_region
    _
  $region29: #{residual_forward.1} parent=0 // pred_fallthru
    _
  %v27 = vld [vmem:[%s0] sm:$0xff]
  %v28 = vld [vmem:[%s0 + $0x8] sm:$0xff]
  %v29 = vld [vmem:[%s0 + $0x10] sm:$0xff]
  %v30 = vld [vmem:[%s0 + $0x18] sm:$0xff]
  %v31 = vld [vmem:[%s0 + $0x20] sm:$0xff]
  %v32 = vld [vmem:[%s0 + $0x28] sm:$0xff]
  %v33 = vld [vmem:[%s0 + $0x30] sm:$0xff]
  %v34 = vld [vmem:[%s0 + $0x38] sm:$0xff]
  %v35 = vld [vmem:[%s0 + $0x40] sm:$0xff]
  %v36 = vld [vmem:[%s0 + $0x48] sm:$0xff]
  %v37 = vld [vmem:[%s0 + $0x50] sm:$0xff]
  %v38 = vld [vmem:[%s0 + $0x58] sm:$0xff]
  %v39 = vld [vmem:[%s0 + $0x60] sm:$0xff]
  %v40 = vld [vmem:[%s0 + $0x68] sm:$0xff]
  %v41 = vld [vmem:[%s0 + $0x70] sm:$0xff]
  %v42 = vld [vmem:[%s0 + $0x78] sm:$0xff]
  %v43 = vld [vmem:[%s0 + $0x80] sm:$0xff]
  %v44 = vld [vmem:[%s0 + $0x88] sm:$0xff]
  %v45 = vld [vmem:[%s0 + $0x90] sm:$0xff]
  %v46 = vld [vmem:[%s0 + $0x98] sm:$0xff]
  %v47 = vld [vmem:[%s0 + $0xa0] sm:$0xff]
  %v48 = vld [vmem:[%s0 + $0xa8] sm:$0xff]
  %v49 = vld [vmem:[%s0 + $0xb0] sm:$0xff]
  %v50 = vld [vmem:[%s0 + $0xb8] sm:$0xff]
  %v51 = vld [vmem:[%s0 + $0xc0] sm:$0xff]
  %v52 = vld [vmem:[%s0 + $0xc8] sm:$0xff]
  %v53 = vld [vmem:[%s0 + $0xd0] sm:$0xff]
  %v54 = vld [vmem:[%s0 + $0xd8] sm:$0xff]
  %v55 = vld [vmem:[%s0 + $0xe0] sm:$0xff]
  %v56 = vld [vmem:[%s0 + $0xe8] sm:$0xff]
  %v57 = vld [vmem:[%s0 + $0xf0] sm:$0xff]
  %v58 = vld [vmem:[%s0 + $0xf8] sm:$0xff]
  %v59 = vld [vmem:[%s0 + $0x100] sm:$0xff]
  %v60 = vld [vmem:[%s0 + $0x108] sm:$0xff]
  %v61 = vld [vmem:[%s0 + $0x110] sm:$0xff]
  %v62 = vld [vmem:[%s0 + $0x118] sm:$0xff]
  %v63 = vld [vmem:[%s0 + $0x120] sm:$0xff]
  %v64 = vld [vmem:[%s0 + $0x128] sm:$0xff]
  %v65 = vld [vmem:[%s0 + $0x130] sm:$0xff]
  %v66 = vld [vmem:[%s0 + $0x138] sm:$0xff]
  %v67 = vld [vmem:[%s0 + $0x140] sm:$0xff]
  %v68 = vld [vmem:[%s0 + $0x148] sm:$0xff]
  %v69 = vld [vmem:[%s0 + $0x150] sm:$0xff]
  %v70 = vld [vmem:[%s0 + $0x158] sm:$0xff]
  %v71 = vld [vmem:[%s0 + $0x160] sm:$0xff]
  %v72 = vld [vmem:[%s0 + $0x168] sm:$0xff]
  %v73 = vld [vmem:[%s0 + $0x170] sm:$0xff]
  %v74 = vld [vmem:[%s0 + $0x178] sm:$0xff]
  %v75 = vld [vmem:[%s0 + $0x180] sm:$0xff]
  %v76 = vld [vmem:[%s0 + $0x188] sm:$0xff]
  %v77 = vld [vmem:[%s0 + $0x190] sm:$0xff]
  %v78 = vld [vmem:[%s0 + $0x198] sm:$0xff]
  %v79 = vld [vmem:[%s0 + $0x1a0] sm:$0xff]
  %v80 = vld [vmem:[%s0 + $0x1a8] sm:$0xff]
  %v81 = vld [vmem:[%s0 + $0x1b0] sm:$0xff]
  %v82 = vld [vmem:[%s0 + $0x1b8] sm:$0xff]
  %v83 = vld [vmem:[%s0 + $0x1c0] sm:$0xff]
  %v84 = vld [vmem:[%s0 + $0x1c8] sm:$0xff]
  %v85 = vld [vmem:[%s0 + $0x1d0] sm:$0xff]
  %v86 = vld [vmem:[%s0 + $0x1d8] sm:$0xff]
  %v87 = vld [vmem:[%s0 + $0x1e0] sm:$0xff]
  %v88 = vld [vmem:[%s0 + $0x1e8] sm:$0xff]
  %v89 = vld [vmem:[%s0 + $0x1f0] sm:$0xff]
  %v90 = vld [vmem:[%s0 + $0x1f8] sm:$0xff]
  %v91 = vpack.c.bf16 %v28, %v27
  %v92 = vpack.c.bf16 %v30, %v29
  %v93 = vpack.c.bf16 %v32, %v31
  %v94 = vpack.c.bf16 %v34, %v33
  %v95 = vpack.c.bf16 %v36, %v35
  %v96 = vpack.c.bf16 %v38, %v37
  %v97 = vpack.c.bf16 %v40, %v39
  %v98 = vpack.c.bf16 %v42, %v41
  %v99 = vpack.c.bf16 %v44, %v43
  %v100 = vpack.c.bf16 %v46, %v45
  %v101 = vpack.c.bf16 %v48, %v47
  %v102 = vpack.c.bf16 %v50, %v49
  %v103 = vpack.c.bf16 %v52, %v51
  %v104 = vpack.c.bf16 %v54, %v53
  %v105 = vpack.c.bf16 %v56, %v55
  %v106 = vpack.c.bf16 %v58, %v57
  %v107 = vpack.c.bf16 %v60, %v59
  %v108 = vpack.c.bf16 %v62, %v61
  %v109 = vpack.c.bf16 %v64, %v63
  %v110 = vpack.c.bf16 %v66, %v65
  %v111 = vpack.c.bf16 %v68, %v67
  %v112 = vpack.c.bf16 %v70, %v69
  %v113 = vpack.c.bf16 %v72, %v71
  %v114 = vpack.c.bf16 %v74, %v73
  %v115 = vpack.c.bf16 %v76, %v75
  %v116 = vpack.c.bf16 %v78, %v77
  %v117 = vpack.c.bf16 %v80, %v79
  %v118 = vpack.c.bf16 %v82, %v81
  %v119 = vpack.c.bf16 %v84, %v83
  %v120 = vpack.c.bf16 %v86, %v85
  %v121 = vpack.c.bf16 %v88, %v87
  %v122 = vpack.c.bf16 %v90, %v89
  %v123 = vld [vmem:[%s1] sm:$0xf]
  %v124 = vld [vmem:[%s1 + $0x4] sm:$0xf]
  %v125 = vld [vmem:[%s1 + $0x8] sm:$0xf]
  %v126 = vld [vmem:[%s1 + $0xc] sm:$0xf]
  %v127 = vld [vmem:[%s1 + $0x10] sm:$0xf]
  %v128 = vld [vmem:[%s1 + $0x14] sm:$0xf]
  %v129 = vld [vmem:[%s1 + $0x18] sm:$0xf]
  %v130 = vld [vmem:[%s1 + $0x1c] sm:$0xf]
  %v131 = vld [vmem:[%s1 + $0x20] sm:$0xf]
  %v132 = vld [vmem:[%s1 + $0x24] sm:$0xf]
  %v133 = vld [vmem:[%s1 + $0x28] sm:$0xf]
  %v134 = vld [vmem:[%s1 + $0x2c] sm:$0xf]
  %v135 = vld [vmem:[%s1 + $0x30] sm:$0xf]
  %v136 = vld [vmem:[%s1 + $0x34] sm:$0xf]
  %v137 = vld [vmem:[%s1 + $0x38] sm:$0xf]
  %v138 = vld [vmem:[%s1 + $0x3c] sm:$0xf]
  %v155 = vunpack.c.l.b16 %v123
  %v156 = vunpack.c.l.b16 %v124
  %v157 = vunpack.c.l.b16 %v125
  %v158 = vunpack.c.l.b16 %v126
  %v159 = vunpack.c.l.b16 %v127
  %v160 = vunpack.c.l.b16 %v128
  %v161 = vunpack.c.l.b16 %v129
  %v162 = vunpack.c.l.b16 %v130
  %v163 = vunpack.c.l.b16 %v131
  %v164 = vunpack.c.l.b16 %v132
  %v165 = vunpack.c.l.b16 %v133
  %v166 = vunpack.c.l.b16 %v134
  %v167 = vunpack.c.l.b16 %v135
  %v168 = vunpack.c.l.b16 %v136
  %v169 = vunpack.c.l.b16 %v137
  %v170 = vunpack.c.l.b16 %v138
  %v171 = vpack.c.b16 %v156, %v155
  %v172 = vpack.c.b16 %v158, %v157
  %v173 = vpack.c.b16 %v160, %v159
  %v174 = vpack.c.b16 %v162, %v161
  %v175 = vpack.c.b16 %v164, %v163
  %v176 = vpack.c.b16 %v166, %v165
  %v177 = vpack.c.b16 %v168, %v167
  %v178 = vpack.c.b16 %v170, %v169
  %187 = vmatprep.subr.bf16.mxu0 0
  %188 = vmatpush1.bf16.msra.mxu0 %v171
  %189 = vmatprep.subr.bf16.mxu0 0
  %190 = vmatpush1.bf16.msra.mxu0 %v172
  %191 = vmatprep.subr.bf16.mxu0 0
  %192 = vmatpush1.bf16.msra.mxu0 %v173
  %193 = vmatprep.subr.bf16.mxu0 0
  %194 = vmatpush1.bf16.msra.mxu0 %v174
  %195 = vmatprep.subr.bf16.mxu0 0
  %196 = vmatpush1.bf16.msra.mxu0 %v175
  %197 = vmatprep.subr.bf16.mxu0 0
  %198 = vmatpush1.bf16.msra.mxu0 %v176
  %199 = vmatprep.subr.bf16.mxu0 0
  %200 = vmatpush1.bf16.msra.mxu0 %v177
  %201 = vmatprep.subr.bf16.mxu0 0
  %202 = vmatpush1.bf16.msra.mxu0 %v178
  %203 = vmatprep.subr.bf16.mxu0 0
  %204 = vmatpush1.bf16.msra.mxu0 0
  %205 = vmatprep.subr.bf16.mxu0 0
  %206 = vmatpush1.bf16.msra.mxu0 0
  %207 = vmatprep.subr.bf16.mxu0 0
  %208 = vmatpush1.bf16.msra.mxu0 0
  %209 = vmatprep.subr.bf16.mxu0 0
  %210 = vmatpush1.bf16.msra.mxu0 0
  %211 = vmatprep.subr.bf16.mxu0 0
  %212 = vmatpush1.bf16.msra.mxu0 0
  %213 = vmatprep.subr.bf16.mxu0 0
  %214 = vmatpush1.bf16.msra.mxu0 0
  %215 = vmatprep.subr.bf16.mxu0 0
  %216 = vmatpush1.bf16.msra.mxu0 0
  %217 = vmatprep.subr.bf16.mxu0 0
  %218 = vmatpush1.bf16.msra.mxu0 0
  %219 = vmatprep.mubr.bf16.mxu0 0
  %220 = vmatmul.mubr.bf16.gmra.mrb[0].mxu0 %v91
  %v221 = vpop.f32.mrb[0].mxu0
  %v222 = vadd.f32 0.0, %v221
  %v223 = vpop.f32.mrb[0].mxu0
  %v224 = vpop.f32.mrb[0].mxu0
  %v225 = vadd.f32 0.0, %v224
  %v226 = vpop.f32.mrb[0].mxu0
  %227 = vmatprep.mubr.bf16.mxu0 0
  %228 = vmatmul.mubr.bf16.gmra.mrb[0].mxu0 %v92
  %v229 = vpop.f32.mrb[0].mxu0
  %v230 = vadd.f32 0.0, %v229
  %v231 = vpop.f32.mrb[0].mxu0
  %v232 = vpop.f32.mrb[0].mxu0
  %v233 = vadd.f32 0.0, %v232
  %v234 = vpop.f32.mrb[0].mxu0
  %235 = vmatprep.mubr.bf16.mxu0 0
  %236 = vmatmul.mubr.bf16.gmra.mrb[0].mxu0 %v93
  %v237 = vpop.f32.mrb[0].mxu0
  %v238 = vadd.f32 0.0, %v237
  %v239 = vpop.f32.mrb[0].mxu0
  %v240 = vpop.f32.mrb[0].mxu0
  %v241 = vadd.f32 0.0, %v240
  %v242 = vpop.f32.mrb[0].mxu0
  %243 = vmatprep.mubr.bf16.mxu0 0
  %244 = vmatmul.mubr.bf16.gmra.mrb[0].mxu0 %v94
  %v245 = vpop.f32.mrb[0].mxu0
  %v246 = vadd.f32 0.0, %v245
  %v247 = vpop.f32.mrb[0].mxu0
  %v248 = vpop.f32.mrb[0].mxu0
  %v249 = vadd.f32 0.0, %v248
  %v250 = vpop.f32.mrb[0].mxu0
  %251 = vmatprep.mubr.bf16.mxu0 0
  %252 = vmatmul.mubr.bf16.gmra.mrb[0].mxu0 %v95
  %v253 = vpop.f32.mrb[0].mxu0
  %v254 = vadd.f32 0.0, %v253
  %v255 = vpop.f32.mrb[0].mxu0
  %v256 = vpop.f32.mrb[0].mxu0
  %v257 = vadd.f32 0.0, %v256
  %v258 = vpop.f32.mrb[0].mxu0
  %259 = vmatprep.mubr.bf16.mxu0 0
  %260 = vmatmul.mubr.bf16.gmra.mrb[0].mxu0 %v96
  %v261 = vpop.f32.mrb[0].mxu0
  %v262 = vadd.f32 0.0, %v261
  %v263 = vpop.f32.mrb[0].mxu0
  %v264 = vpop.f32.mrb[0].mxu0
  %v265 = vadd.f32 0.0, %v264
  %v266 = vpop.f32.mrb[0].mxu0
  %267 = vmatprep.mubr.bf16.mxu0 0
  %268 = vmatmul.mubr.bf16.gmra.mrb[0].mxu0 %v97
  %v269 = vpop.f32.mrb[0].mxu0
  %v270 = vadd.f32 0.0, %v269
  %v271 = vpop.f32.mrb[0].mxu0
  %v272 = vpop.f32.mrb[0].mxu0
  %v273 = vadd.f32 0.0, %v272
  %v274 = vpop.f32.mrb[0].mxu0
  %275 = vmatprep.mubr.bf16.mxu0 0
  %276 = vmatmul.mubr.bf16.gmra.mrb[0].mxu0 %v98
  %v277 = vpop.f32.mrb[0].mxu0
  %v278 = vadd.f32 0.0, %v277
  %v279 = vpop.f32.mrb[0].mxu0
  %v280 = vpop.f32.mrb[0].mxu0
  %v281 = vadd.f32 0.0, %v280
  %v282 = vpop.f32.mrb[0].mxu0
  %283 = vmatprep.mubr.bf16.mxu0 0
  %284 = vmatmul.mubr.bf16.gmra.mrb[0].mxu0 %v99
  %v285 = vpop.f32.mrb[0].mxu0
  %v286 = vadd.f32 0.0, %v285
  %v287 = vpop.f32.mrb[0].mxu0
  %v288 = vpop.f32.mrb[0].mxu0
  %v289 = vadd.f32 0.0, %v288
  %v290 = vpop.f32.mrb[0].mxu0
  %291 = vmatprep.mubr.bf16.mxu0 0
  %292 = vmatmul.mubr.bf16.gmra.mrb[0].mxu0 %v100
  %v293 = vpop.f32.mrb[0].mxu0
  %v294 = vadd.f32 0.0, %v293
  %v295 = vpop.f32.mrb[0].mxu0
  %v296 = vpop.f32.mrb[0].mxu0
  %v297 = vadd.f32 0.0, %v296
  %v298 = vpop.f32.mrb[0].mxu0
  %299 = vmatprep.mubr.bf16.mxu0 0
  %300 = vmatmul.mubr.bf16.gmra.mrb[0].mxu0 %v101
  %v301 = vpop.f32.mrb[0].mxu0
  %v302 = vadd.f32 0.0, %v301
  %v303 = vpop.f32.mrb[0].mxu0
  %v304 = vpop.f32.mrb[0].mxu0
  %v305 = vadd.f32 0.0, %v304
  %v306 = vpop.f32.mrb[0].mxu0
  %307 = vmatprep.mubr.bf16.mxu0 0
  %308 = vmatmul.mubr.bf16.gmra.mrb[0].mxu0 %v102
  %v309 = vpop.f32.mrb[0].mxu0
  %v310 = vadd.f32 0.0, %v309
  %v311 = vpop.f32.mrb[0].mxu0
  %v312 = vpop.f32.mrb[0].mxu0
  %v313 = vadd.f32 0.0, %v312
  %v314 = vpop.f32.mrb[0].mxu0
  %315 = vmatprep.mubr.bf16.mxu0 0
  %316 = vmatmul.mubr.bf16.gmra.mrb[0].mxu0 %v103
  %v317 = vpop.f32.mrb[0].mxu0
  %v318 = vadd.f32 0.0, %v317
  %v319 = vpop.f32.mrb[0].mxu0
  %v320 = vpop.f32.mrb[0].mxu0
  %v321 = vadd.f32 0.0, %v320
  %v322 = vpop.f32.mrb[0].mxu0
  %323 = vmatprep.mubr.bf16.mxu0 0
  %324 = vmatmul.mubr.bf16.gmra.mrb[0].mxu0 %v104
  %v325 = vpop.f32.mrb[0].mxu0
  %v326 = vadd.f32 0.0, %v325
  %v327 = vpop.f32.mrb[0].mxu0
  %v328 = vpop.f32.mrb[0].mxu0
  %v329 = vadd.f32 0.0, %v328
  %v330 = vpop.f32.mrb[0].mxu0
  %331 = vmatprep.mubr.bf16.mxu0 0
  %332 = vmatmul.mubr.bf16.gmra.mrb[0].mxu0 %v105
  %v333 = vpop.f32.mrb[0].mxu0
  %v334 = vadd.f32 0.0, %v333
  %v335 = vpop.f32.mrb[0].mxu0
  %v336 = vpop.f32.mrb[0].mxu0
  %v337 = vadd.f32 0.0, %v336
  %v338 = vpop.f32.mrb[0].mxu0
  %339 = vmatprep.mubr.bf16.mxu0 0
  %340 = vmatmul.mubr.bf16.gmra.mrb[0].mxu0 %v106
  %v341 = vpop.f32.mrb[0].mxu0
  %v342 = vadd.f32 0.0, %v341
  %v343 = vpop.f32.mrb[0].mxu0
  %v344 = vpop.f32.mrb[0].mxu0
  %v345 = vadd.f32 0.0, %v344
  %v346 = vpop.f32.mrb[0].mxu0
  %347 = vmatprep.mubr.bf16.mxu0 0
  %348 = vmatmul.mubr.bf16.gmra.mrb[0].mxu0 %v107
  %v349 = vpop.f32.mrb[0].mxu0
  %v350 = vadd.f32 0.0, %v349
  %v351 = vpop.f32.mrb[0].mxu0
  %v352 = vpop.f32.mrb[0].mxu0
  %v353 = vadd.f32 0.0, %v352
  %v354 = vpop.f32.mrb[0].mxu0
  %355 = vmatprep.mubr.bf16.mxu0 0
  %356 = vmatmul.mubr.bf16.gmra.mrb[0].mxu0 %v108
  %v357 = vpop.f32.mrb[0].mxu0
  %v358 = vadd.f32 0.0, %v357
  %v359 = vpop.f32.mrb[0].mxu0
  %v360 = vpop.f32.mrb[0].mxu0
  %v361 = vadd.f32 0.0, %v360
  %v362 = vpop.f32.mrb[0].mxu0
  %363 = vmatprep.mubr.bf16.mxu0 0
  %364 = vmatmul.mubr.bf16.gmra.mrb[0].mxu0 %v109
  %v365 = vpop.f32.mrb[0].mxu0
  %v366 = vadd.f32 0.0, %v365
  %v367 = vpop.f32.mrb[0].mxu0
  %v368 = vpop.f32.mrb[0].mxu0
  %v369 = vadd.f32 0.0, %v368
  %v370 = vpop.f32.mrb[0].mxu0
  %371 = vmatprep.mubr.bf16.mxu0 0
  %372 = vmatmul.mubr.bf16.gmra.mrb[0].mxu0 %v110
  %v373 = vpop.f32.mrb[0].mxu0
  %v374 = vadd.f32 0.0, %v373
  %v375 = vpop.f32.mrb[0].mxu0
  %v376 = vpop.f32.mrb[0].mxu0
  %v377 = vadd.f32 0.0, %v376
  %v378 = vpop.f32.mrb[0].mxu0
  %379 = vmatprep.mubr.bf16.mxu0 0
  %380 = vmatmul.mubr.bf16.gmra.mrb[0].mxu0 %v111
  %v381 = vpop.f32.mrb[0].mxu0
  %v382 = vadd.f32 0.0, %v381
  %v383 = vpop.f32.mrb[0].mxu0
  %v384 = vpop.f32.mrb[0].mxu0
  %v385 = vadd.f32 0.0, %v384
  %v386 = vpop.f32.mrb[0].mxu0
  %387 = vmatprep.mubr.bf16.mxu0 0
  %388 = vmatmul.mubr.bf16.gmra.mrb[0].mxu0 %v112
  %v389 = vpop.f32.mrb[0].mxu0
  %v390 = vadd.f32 0.0, %v389
  %v391 = vpop.f32.mrb[0].mxu0
  %v392 = vpop.f32.mrb[0].mxu0
  %v393 = vadd.f32 0.0, %v392
  %v394 = vpop.f32.mrb[0].mxu0
  %395 = vmatprep.mubr.bf16.mxu0 0
  %396 = vmatmul.mubr.bf16.gmra.mrb[0].mxu0 %v113
  %v397 = vpop.f32.mrb[0].mxu0
  %v398 = vadd.f32 0.0, %v397
  %v399 = vpop.f32.mrb[0].mxu0
  %v400 = vpop.f32.mrb[0].mxu0
  %v401 = vadd.f32 0.0, %v400
  %v402 = vpop.f32.mrb[0].mxu0
  %403 = vmatprep.mubr.bf16.mxu0 0
  %404 = vmatmul.mubr.bf16.gmra.mrb[0].mxu0 %v114
  %v405 = vpop.f32.mrb[0].mxu0
  %v406 = vadd.f32 0.0, %v405
  %v407 = vpop.f32.mrb[0].mxu0
  %v408 = vpop.f32.mrb[0].mxu0
  %v409 = vadd.f32 0.0, %v408
  %v410 = vpop.f32.mrb[0].mxu0
  %411 = vmatprep.mubr.bf16.mxu0 0
  %412 = vmatmul.mubr.bf16.gmra.mrb[0].mxu0 %v115
  %v413 = vpop.f32.mrb[0].mxu0
  %v414 = vadd.f32 0.0, %v413
  %v415 = vpop.f32.mrb[0].mxu0
  %v416 = vpop.f32.mrb[0].mxu0
  %v417 = vadd.f32 0.0, %v416
  %v418 = vpop.f32.mrb[0].mxu0
  %419 = vmatprep.mubr.bf16.mxu0 0
  %420 = vmatmul.mubr.bf16.gmra.mrb[0].mxu0 %v116
  %v421 = vpop.f32.mrb[0].mxu0
  %v422 = vadd.f32 0.0, %v421
  %v423 = vpop.f32.mrb[0].mxu0
  %v424 = vpop.f32.mrb[0].mxu0
  %v425 = vadd.f32 0.0, %v424
  %v426 = vpop.f32.mrb[0].mxu0
  %427 = vmatprep.mubr.bf16.mxu0 0
  %428 = vmatmul.mubr.bf16.gmra.mrb[0].mxu0 %v117
  %v429 = vpop.f32.mrb[0].mxu0
  %v430 = vadd.f32 0.0, %v429
  %v431 = vpop.f32.mrb[0].mxu0
  %v432 = vpop.f32.mrb[0].mxu0
  %v433 = vadd.f32 0.0, %v432
  %v434 = vpop.f32.mrb[0].mxu0
  %435 = vmatprep.mubr.bf16.mxu0 0
  %436 = vmatmul.mubr.bf16.gmra.mrb[0].mxu0 %v118
  %v437 = vpop.f32.mrb[0].mxu0
  %v438 = vadd.f32 0.0, %v437
  %v439 = vpop.f32.mrb[0].mxu0
  %v440 = vpop.f32.mrb[0].mxu0
  %v441 = vadd.f32 0.0, %v440
  %v442 = vpop.f32.mrb[0].mxu0
  %443 = vmatprep.mubr.bf16.mxu0 0
  %444 = vmatmul.mubr.bf16.gmra.mrb[0].mxu0 %v119
  %v445 = vpop.f32.mrb[0].mxu0
  %v446 = vadd.f32 0.0, %v445
  %v447 = vpop.f32.mrb[0].mxu0
  %v448 = vpop.f32.mrb[0].mxu0
  %v449 = vadd.f32 0.0, %v448
  %v450 = vpop.f32.mrb[0].mxu0
  %451 = vmatprep.mubr.bf16.mxu0 0
  %452 = vmatmul.mubr.bf16.gmra.mrb[0].mxu0 %v120
  %v453 = vpop.f32.mrb[0].mxu0
  %v454 = vadd.f32 0.0, %v453
  %v455 = vpop.f32.mrb[0].mxu0
  %v456 = vpop.f32.mrb[0].mxu0
  %v457 = vadd.f32 0.0, %v456
  %v458 = vpop.f32.mrb[0].mxu0
  %459 = vmatprep.mubr.bf16.mxu0 0
  %460 = vmatmul.mubr.bf16.gmra.mrb[0].mxu0 %v121
  %v461 = vpop.f32.mrb[0].mxu0
  %v462 = vadd.f32 0.0, %v461
  %v463 = vpop.f32.mrb[0].mxu0
  %v464 = vpop.f32.mrb[0].mxu0
  %v465 = vadd.f32 0.0, %v464
  %v466 = vpop.f32.mrb[0].mxu0
  %467 = vmatprep.mubr.bf16.mxu0 0
  %468 = vmatmul.mubr.bf16.gmra.mrb[0].mxu0 %v122
  %v469 = vpop.f32.mrb[0].mxu0
  %v470 = vadd.f32 0.0, %v469
  %v471 = vpop.f32.mrb[0].mxu0
  %v472 = vpop.f32.mrb[0].mxu0
  %v473 = vadd.f32 0.0, %v472
  %v474 = vpop.f32.mrb[0].mxu0
  %475 = vdwg.mxu0
  %v476 = vadd.f32 %v222, %v225
  %v477 = vadd.f32 %v476, %v230
  %v478 = vadd.f32 %v477, %v233
  %v479 = vadd.f32 %v478, %v238
  %v480 = vadd.f32 %v479, %v241
  %v481 = vadd.f32 %v480, %v246
  %v482 = vadd.f32 %v481, %v249
  %v483 = vadd.f32 %v482, %v254
  %v484 = vadd.f32 %v483, %v257
  %v485 = vadd.f32 %v484, %v262
  %v486 = vadd.f32 %v485, %v265
  %v487 = vadd.f32 %v486, %v270
  %v488 = vadd.f32 %v487, %v273
  %v489 = vadd.f32 %v488, %v278
  %v490 = vadd.f32 %v489, %v281
  %v491 = vadd.f32 %v490, %v286
  %v492 = vadd.f32 %v491, %v289
  %v493 = vadd.f32 %v492, %v294
  %v494 = vadd.f32 %v493, %v297
  %v495 = vadd.f32 %v494, %v302
  %v496 = vadd.f32 %v495, %v305
  %v497 = vadd.f32 %v496, %v310
  %v498 = vadd.f32 %v497, %v313
  %v499 = vadd.f32 %v498, %v318
  %v500 = vadd.f32 %v499, %v321
  %v501 = vadd.f32 %v500, %v326
  %v502 = vadd.f32 %v501, %v329
  %v503 = vadd.f32 %v502, %v334
  %v504 = vadd.f32 %v503, %v337
  %v505 = vadd.f32 %v504, %v342
  %v506 = vadd.f32 %v505, %v345
  %v507 = vadd.f32 %v506, %v350
  %v508 = vadd.f32 %v507, %v353
  %v509 = vadd.f32 %v508, %v358
  %v510 = vadd.f32 %v509, %v361
  %v511 = vadd.f32 %v510, %v366
  %v512 = vadd.f32 %v511, %v369
  %v513 = vadd.f32 %v512, %v374
  %v514 = vadd.f32 %v513, %v377
  %v515 = vadd.f32 %v514, %v382
  %v516 = vadd.f32 %v515, %v385
  %v517 = vadd.f32 %v516, %v390
  %v518 = vadd.f32 %v517, %v393
  %v519 = vadd.f32 %v518, %v398
  %v520 = vadd.f32 %v519, %v401
  %v521 = vadd.f32 %v520, %v406
  %v522 = vadd.f32 %v521, %v409
  %v523 = vadd.f32 %v522, %v414
  %v524 = vadd.f32 %v523, %v417
  %v525 = vadd.f32 %v524, %v422
  %v526 = vadd.f32 %v525, %v425
  %v527 = vadd.f32 %v526, %v430
  %v528 = vadd.f32 %v527, %v433
  %v529 = vadd.f32 %v528, %v438
  %v530 = vadd.f32 %v529, %v441
  %v531 = vadd.f32 %v530, %v446
  %v532 = vadd.f32 %v531, %v449
  %v533 = vadd.f32 %v532, %v454
  %v534 = vadd.f32 %v533, %v457
  %v535 = vadd.f32 %v534, %v462
  %v536 = vadd.f32 %v535, %v465
  %v537 = vadd.f32 %v536, %v470
  %v538 = vadd.f32 %v537, %v473
  %v539 = vrot.slane %v538, 4
  %v540 = vadd.f32 %v538, %v539
  %v541 = vrot.slane %v540, 2
  %v542 = vadd.f32 %v540, %v541
  %v543 = vrot.slane %v542, 1
  %v544 = vadd.f32 %v542, %v543
  %v545 = vrcp.pop 512.0
  %v546 = vmul.f32 %v544, %v545
  %v547 = vsub.f32 %v222, %v546
  %v548 = vsub.f32 %v225, %v546
  %v549 = vsub.f32 %v230, %v546
  %v550 = vsub.f32 %v233, %v546
  %v551 = vsub.f32 %v238, %v546
  %v552 = vsub.f32 %v241, %v546
  %v553 = vsub.f32 %v246, %v546
  %v554 = vsub.f32 %v249, %v546
  %v555 = vsub.f32 %v254, %v546
  %v556 = vsub.f32 %v257, %v546
  %v557 = vsub.f32 %v262, %v546
  %v558 = vsub.f32 %v265, %v546
  %v559 = vsub.f32 %v270, %v546
  %v560 = vsub.f32 %v273, %v546
  %v561 = vsub.f32 %v278, %v546
  %v562 = vsub.f32 %v281, %v546
  %v563 = vsub.f32 %v286, %v546
  %v564 = vsub.f32 %v289, %v546
  %v565 = vsub.f32 %v294, %v546
  %v566 = vsub.f32 %v297, %v546
  %v567 = vsub.f32 %v302, %v546
  %v568 = vsub.f32 %v305, %v546
  %v569 = vsub.f32 %v310, %v546
  %v570 = vsub.f32 %v313, %v546
  %v571 = vsub.f32 %v318, %v546
  %v572 = vsub.f32 %v321, %v546
  %v573 = vsub.f32 %v326, %v546
  %v574 = vsub.f32 %v329, %v546
  %v575 = vsub.f32 %v334, %v546
  %v576 = vsub.f32 %v337, %v546
  %v577 = vsub.f32 %v342, %v546
  %v578 = vsub.f32 %v345, %v546
  %v579 = vsub.f32 %v350, %v546
  %v580 = vsub.f32 %v353, %v546
  %v581 = vsub.f32 %v358, %v546
  %v582 = vsub.f32 %v361, %v546
  %v583 = vsub.f32 %v366, %v546
  %v584 = vsub.f32 %v369, %v546
  %v585 = vsub.f32 %v374, %v546
  %v586 = vsub.f32 %v377, %v546
  %v587 = vsub.f32 %v382, %v546
  %v588 = vsub.f32 %v385, %v546
  %v589 = vsub.f32 %v390, %v546
  %v590 = vsub.f32 %v393, %v546
  %v591 = vsub.f32 %v398, %v546
  %v592 = vsub.f32 %v401, %v546
  %v593 = vsub.f32 %v406, %v546
  %v594 = vsub.f32 %v409, %v546
  %v595 = vsub.f32 %v414, %v546
  %v596 = vsub.f32 %v417, %v546
  %v597 = vsub.f32 %v422, %v546
  %v598 = vsub.f32 %v425, %v546
  %v599 = vsub.f32 %v430, %v546
  %v600 = vsub.f32 %v433, %v546
  %v601 = vsub.f32 %v438, %v546
  %v602 = vsub.f32 %v441, %v546
  %v603 = vsub.f32 %v446, %v546
  %v604 = vsub.f32 %v449, %v546
  %v605 = vsub.f32 %v454, %v546
  %v606 = vsub.f32 %v457, %v546
  %v607 = vsub.f32 %v462, %v546
  %v608 = vsub.f32 %v465, %v546
  %v609 = vsub.f32 %v470, %v546
  %v610 = vsub.f32 %v473, %v546
  %v611 = vmul.f32 %v547, %v547
  %v612 = vmul.f32 %v548, %v548
  %v613 = vmul.f32 %v549, %v549
  %v614 = vmul.f32 %v550, %v550
  %v615 = vmul.f32 %v551, %v551
  %v616 = vmul.f32 %v552, %v552
  %v617 = vmul.f32 %v553, %v553
  %v618 = vmul.f32 %v554, %v554
  %v619 = vmul.f32 %v555, %v555
  %v620 = vmul.f32 %v556, %v556
  %v621 = vmul.f32 %v557, %v557
  %v622 = vmul.f32 %v558, %v558
  %v623 = vmul.f32 %v559, %v559
  %v624 = vmul.f32 %v560, %v560
  %v625 = vmul.f32 %v561, %v561
  %v626 = vmul.f32 %v562, %v562
  %v627 = vmul.f32 %v563, %v563
  %v628 = vmul.f32 %v564, %v564
  %v629 = vmul.f32 %v565, %v565
  %v630 = vmul.f32 %v566, %v566
  %v631 = vmul.f32 %v567, %v567
  %v632 = vmul.f32 %v568, %v568
  %v633 = vmul.f32 %v569, %v569
  %v634 = vmul.f32 %v570, %v570
  %v635 = vmul.f32 %v571, %v571
  %v636 = vmul.f32 %v572, %v572
  %v637 = vmul.f32 %v573, %v573
  %v638 = vmul.f32 %v574, %v574
  %v639 = vmul.f32 %v575, %v575
  %v640 = vmul.f32 %v576, %v576
  %v641 = vmul.f32 %v577, %v577
  %v642 = vmul.f32 %v578, %v578
  %v643 = vmul.f32 %v579, %v579
  %v644 = vmul.f32 %v580, %v580
  %v645 = vmul.f32 %v581, %v581
  %v646 = vmul.f32 %v582, %v582
  %v647 = vmul.f32 %v583, %v583
  %v648 = vmul.f32 %v584, %v584
  %v649 = vmul.f32 %v585, %v585
  %v650 = vmul.f32 %v586, %v586
  %v651 = vmul.f32 %v587, %v587
  %v652 = vmul.f32 %v588, %v588
  %v653 = vmul.f32 %v589, %v589
  %v654 = vmul.f32 %v590, %v590
  %v655 = vmul.f32 %v591, %v591
  %v656 = vmul.f32 %v592, %v592
  %v657 = vmul.f32 %v593, %v593
  %v658 = vmul.f32 %v594, %v594
  %v659 = vmul.f32 %v595, %v595
  %v660 = vmul.f32 %v596, %v596
  %v661 = vmul.f32 %v597, %v597
  %v662 = vmul.f32 %v598, %v598
  %v663 = vmul.f32 %v599, %v599
  %v664 = vmul.f32 %v600, %v600
  %v665 = vmul.f32 %v601, %v601
  %v666 = vmul.f32 %v602, %v602
  %v667 = vmul.f32 %v603, %v603
  %v668 = vmul.f32 %v604, %v604
  %v669 = vmul.f32 %v605, %v605
  %v670 = vmul.f32 %v606, %v606
  %v671 = vmul.f32 %v607, %v607
  %v672 = vmul.f32 %v608, %v608
  %v673 = vmul.f32 %v609, %v609
  %v674 = vmul.f32 %v610, %v610
  %v675 = vadd.f32 %v611, %v612
  %v676 = vadd.f32 %v675, %v613
  %v677 = vadd.f32 %v676, %v614
  %v678 = vadd.f32 %v677, %v615
  %v679 = vadd.f32 %v678, %v616
  %v680 = vadd.f32 %v679, %v617
  %v681 = vadd.f32 %v680, %v618
  %v682 = vadd.f32 %v681, %v619
  %v683 = vadd.f32 %v682, %v620
  %v684 = vadd.f32 %v683, %v621
  %v685 = vadd.f32 %v684, %v622
  %v686 = vadd.f32 %v685, %v623
  %v687 = vadd.f32 %v686, %v624
  %v688 = vadd.f32 %v687, %v625
  %v689 = vadd.f32 %v688, %v626
  %v690 = vadd.f32 %v689, %v627
  %v691 = vadd.f32 %v690, %v628
  %v692 = vadd.f32 %v691, %v629
  %v693 = vadd.f32 %v692, %v630
  %v694 = vadd.f32 %v693, %v631
  %v695 = vadd.f32 %v694, %v632
  %v696 = vadd.f32 %v695, %v633
  %v697 = vadd.f32 %v696, %v634
  %v698 = vadd.f32 %v697, %v635
  %v699 = vadd.f32 %v698, %v636
  %v700 = vadd.f32 %v699, %v637
  %v701 = vadd.f32 %v700, %v638
  %v702 = vadd.f32 %v701, %v639
  %v703 = vadd.f32 %v702, %v640
  %v704 = vadd.f32 %v703, %v641
  %v705 = vadd.f32 %v704, %v642
  %v706 = vadd.f32 %v705, %v643
  %v707 = vadd.f32 %v706, %v644
  %v708 = vadd.f32 %v707, %v645
  %v709 = vadd.f32 %v708, %v646
  %v710 = vadd.f32 %v709, %v647
  %v711 = vadd.f32 %v710, %v648
  %v712 = vadd.f32 %v711, %v649
  %v713 = vadd.f32 %v712, %v650
  %v714 = vadd.f32 %v713, %v651
  %v715 = vadd.f32 %v714, %v652
  %v716 = vadd.f32 %v715, %v653
  %v717 = vadd.f32 %v716, %v654
  %v718 = vadd.f32 %v717, %v655
  %v719 = vadd.f32 %v718, %v656
  %v720 = vadd.f32 %v719, %v657
  %v721 = vadd.f32 %v720, %v658
  %v722 = vadd.f32 %v721, %v659
  %v723 = vadd.f32 %v722, %v660
  %v724 = vadd.f32 %v723, %v661
  %v725 = vadd.f32 %v724, %v662
  %v726 = vadd.f32 %v725, %v663
  %v727 = vadd.f32 %v726, %v664
  %v728 = vadd.f32 %v727, %v665
  %v729 = vadd.f32 %v728, %v666
  %v730 = vadd.f32 %v729, %v667
  %v731 = vadd.f32 %v730, %v668
  %v732 = vadd.f32 %v731, %v669
  %v733 = vadd.f32 %v732, %v670
  %v734 = vadd.f32 %v733, %v671
  %v735 = vadd.f32 %v734, %v672
  %v736 = vadd.f32 %v735, %v673
  %v737 = vadd.f32 %v736, %v674
  %v738 = vrot.slane %v737, 4
  %v739 = vadd.f32 %v737, %v738
  %v740 = vrot.slane %v739, 2
  %v741 = vadd.f32 %v739, %v740
  %v742 = vrot.slane %v741, 1
  %v743 = vadd.f32 %v741, %v742
  %v744 = vmul.f32 %v743, %v545
  %v745 = vld [vmem:[%s3] sm:$0x1]
  %v746 = vadd.f32 %v744, 1e-05
  %v747 = vrsqrt.pop %v746
  %v748 = vmul.f32 %v745, %v747
  %v749 = vld [vmem:[%s4] sm:$0x1]
  %v750 = vmul.f32 %v546, %v748
  %v751 = vsub.f32 %v749, %v750
  %v753 = vlaneseq
  %v754 = vshrl.u32 %v753, 7
  %v755 = vsub.s32 0, %v754
  %v756 = vrot.slane %v748, %v755
  %v758 = vmul.f32 %v222, %v756
  %v759 = vmul.f32 %v225, %v756
  %v760 = vmul.f32 %v230, %v756
  %v761 = vmul.f32 %v233, %v756
  %v762 = vmul.f32 %v238, %v756
  %v763 = vmul.f32 %v241, %v756
  %v764 = vmul.f32 %v246, %v756
  %v765 = vmul.f32 %v249, %v756
  %v766 = vmul.f32 %v254, %v756
  %v767 = vmul.f32 %v257, %v756
  %v768 = vmul.f32 %v262, %v756
  %v769 = vmul.f32 %v265, %v756
  %v770 = vmul.f32 %v270, %v756
  %v771 = vmul.f32 %v273, %v756
  %v772 = vmul.f32 %v278, %v756
  %v773 = vmul.f32 %v281, %v756
  %v774 = vmul.f32 %v286, %v756
  %v775 = vmul.f32 %v289, %v756
  %v776 = vmul.f32 %v294, %v756
  %v777 = vmul.f32 %v297, %v756
  %v778 = vmul.f32 %v302, %v756
  %v779 = vmul.f32 %v305, %v756
  %v780 = vmul.f32 %v310, %v756
  %v781 = vmul.f32 %v313, %v756
  %v782 = vmul.f32 %v318, %v756
  %v783 = vmul.f32 %v321, %v756
  %v784 = vmul.f32 %v326, %v756
  %v785 = vmul.f32 %v329, %v756
  %v786 = vmul.f32 %v334, %v756
  %v787 = vmul.f32 %v337, %v756
  %v788 = vmul.f32 %v342, %v756
  %v789 = vmul.f32 %v345, %v756
  %v790 = vmul.f32 %v350, %v756
  %v791 = vmul.f32 %v353, %v756
  %v792 = vmul.f32 %v358, %v756
  %v793 = vmul.f32 %v361, %v756
  %v794 = vmul.f32 %v366, %v756
  %v795 = vmul.f32 %v369, %v756
  %v796 = vmul.f32 %v374, %v756
  %v797 = vmul.f32 %v377, %v756
  %v798 = vmul.f32 %v382, %v756
  %v799 = vmul.f32 %v385, %v756
  %v800 = vmul.f32 %v390, %v756
  %v801 = vmul.f32 %v393, %v756
  %v802 = vmul.f32 %v398, %v756
  %v803 = vmul.f32 %v401, %v756
  %v804 = vmul.f32 %v406, %v756
  %v805 = vmul.f32 %v409, %v756
  %v806 = vmul.f32 %v414, %v756
  %v807 = vmul.f32 %v417, %v756
  %v808 = vmul.f32 %v422, %v756
  %v809 = vmul.f32 %v425, %v756
  %v810 = vmul.f32 %v430, %v756
  %v811 = vmul.f32 %v433, %v756
  %v812 = vmul.f32 %v438, %v756
  %v813 = vmul.f32 %v441, %v756
  %v814 = vmul.f32 %v446, %v756
  %v815 = vmul.f32 %v449, %v756
  %v816 = vmul.f32 %v454, %v756
  %v817 = vmul.f32 %v457, %v756
  %v818 = vmul.f32 %v462, %v756
  %v819 = vmul.f32 %v465, %v756
  %v820 = vmul.f32 %v470, %v756
  %v821 = vmul.f32 %v473, %v756
  %v823 = vlaneseq
  %v824 = vshrl.u32 %v823, 7
  %v825 = vsub.s32 0, %v824
  %v826 = vrot.slane %v751, %v825
  %v828 = vadd.f32 %v758, %v826
  %v829 = vadd.f32 %v759, %v826
  %v830 = vadd.f32 %v760, %v826
  %v831 = vadd.f32 %v761, %v826
  %v832 = vadd.f32 %v762, %v826
  %v833 = vadd.f32 %v763, %v826
  %v834 = vadd.f32 %v764, %v826
  %v835 = vadd.f32 %v765, %v826
  %v836 = vadd.f32 %v766, %v826
  %v837 = vadd.f32 %v767, %v826
  %v838 = vadd.f32 %v768, %v826
  %v839 = vadd.f32 %v769, %v826
  %v840 = vadd.f32 %v770, %v826
  %v841 = vadd.f32 %v771, %v826
  %v842 = vadd.f32 %v772, %v826
  %v843 = vadd.f32 %v773, %v826
  %v844 = vadd.f32 %v774, %v826
  %v845 = vadd.f32 %v775, %v826
  %v846 = vadd.f32 %v776, %v826
  %v847 = vadd.f32 %v777, %v826
  %v848 = vadd.f32 %v778, %v826
  %v849 = vadd.f32 %v779, %v826
  %v850 = vadd.f32 %v780, %v826
  %v851 = vadd.f32 %v781, %v826
  %v852 = vadd.f32 %v782, %v826
  %v853 = vadd.f32 %v783, %v826
  %v854 = vadd.f32 %v784, %v826
  %v855 = vadd.f32 %v785, %v826
  %v856 = vadd.f32 %v786, %v826
  %v857 = vadd.f32 %v787, %v826
  %v858 = vadd.f32 %v788, %v826
  %v859 = vadd.f32 %v789, %v826
  %v860 = vadd.f32 %v790, %v826
  %v861 = vadd.f32 %v791, %v826
  %v862 = vadd.f32 %v792, %v826
  %v863 = vadd.f32 %v793, %v826
  %v864 = vadd.f32 %v794, %v826
  %v865 = vadd.f32 %v795, %v826
  %v866 = vadd.f32 %v796, %v826
  %v867 = vadd.f32 %v797, %v826
  %v868 = vadd.f32 %v798, %v826
  %v869 = vadd.f32 %v799, %v826
  %v870 = vadd.f32 %v800, %v826
  %v871 = vadd.f32 %v801, %v826
  %v872 = vadd.f32 %v802, %v826
  %v873 = vadd.f32 %v803, %v826
  %v874 = vadd.f32 %v804, %v826
  %v875 = vadd.f32 %v805, %v826
  %v876 = vadd.f32 %v806, %v826
  %v877 = vadd.f32 %v807, %v826
  %v878 = vadd.f32 %v808, %v826
  %v879 = vadd.f32 %v809, %v826
  %v880 = vadd.f32 %v810, %v826
  %v881 = vadd.f32 %v811, %v826
  %v882 = vadd.f32 %v812, %v826
  %v883 = vadd.f32 %v813, %v826
  %v884 = vadd.f32 %v814, %v826
  %v885 = vadd.f32 %v815, %v826
  %v886 = vadd.f32 %v816, %v826
  %v887 = vadd.f32 %v817, %v826
  %v888 = vadd.f32 %v818, %v826
  %v889 = vadd.f32 %v819, %v826
  %v890 = vadd.f32 %v820, %v826
  %v891 = vadd.f32 %v821, %v826
  %v892 = vsub.f32 0.0, %v828
  %v893 = vsub.f32 0.0, %v829
  %v894 = vsub.f32 0.0, %v830
  %v895 = vsub.f32 0.0, %v831
  %v896 = vsub.f32 0.0, %v832
  %v897 = vsub.f32 0.0, %v833
  %v898 = vsub.f32 0.0, %v834
  %v899 = vsub.f32 0.0, %v835
  %v900 = vsub.f32 0.0, %v836
  %v901 = vsub.f32 0.0, %v837
  %v902 = vsub.f32 0.0, %v838
  %v903 = vsub.f32 0.0, %v839
  %v904 = vsub.f32 0.0, %v840
  %v905 = vsub.f32 0.0, %v841
  %v906 = vsub.f32 0.0, %v842
  %v907 = vsub.f32 0.0, %v843
  %v908 = vsub.f32 0.0, %v844
  %v909 = vsub.f32 0.0, %v845
  %v910 = vsub.f32 0.0, %v846
  %v911 = vsub.f32 0.0, %v847
  %v912 = vsub.f32 0.0, %v848
  %v913 = vsub.f32 0.0, %v849
  %v914 = vsub.f32 0.0, %v850
  %v915 = vsub.f32 0.0, %v851
  %v916 = vsub.f32 0.0, %v852
  %v917 = vsub.f32 0.0, %v853
  %v918 = vsub.f32 0.0, %v854
  %v919 = vsub.f32 0.0, %v855
  %v920 = vsub.f32 0.0, %v856
  %v921 = vsub.f32 0.0, %v857
  %v922 = vsub.f32 0.0, %v858
  %v923 = vsub.f32 0.0, %v859
  %v924 = vsub.f32 0.0, %v860
  %v925 = vsub.f32 0.0, %v861
  %v926 = vsub.f32 0.0, %v862
  %v927 = vsub.f32 0.0, %v863
  %v928 = vsub.f32 0.0, %v864
  %v929 = vsub.f32 0.0, %v865
  %v930 = vsub.f32 0.0, %v866
  %v931 = vsub.f32 0.0, %v867
  %v932 = vsub.f32 0.0, %v868
  %v933 = vsub.f32 0.0, %v869
  %v934 = vsub.f32 0.0, %v870
  %v935 = vsub.f32 0.0, %v871
  %v936 = vsub.f32 0.0, %v872
  %v937 = vsub.f32 0.0, %v873
  %v938 = vsub.f32 0.0, %v874
  %v939 = vsub.f32 0.0, %v875
  %v940 = vsub.f32 0.0, %v876
  %v941 = vsub.f32 0.0, %v877
  %v942 = vsub.f32 0.0, %v878
  %v943 = vsub.f32 0.0, %v879
  %v944 = vsub.f32 0.0, %v880
  %v945 = vsub.f32 0.0, %v881
  %v946 = vsub.f32 0.0, %v882
  %v947 = vsub.f32 0.0, %v883
  %v948 = vsub.f32 0.0, %v884
  %v949 = vsub.f32 0.0, %v885
  %v950 = vsub.f32 0.0, %v886
  %v951 = vsub.f32 0.0, %v887
  %v952 = vsub.f32 0.0, %v888
  %v953 = vsub.f32 0.0, %v889
  %v954 = vsub.f32 0.0, %v890
  %v955 = vsub.f32 0.0, %v891
  %v956 = vmul.f32 %v892, 1.442695
  %v957 = vpow.pop %v956
  %v958 = vmul.f32 %v893, 1.442695
  %v959 = vpow.pop %v958
  %v960 = vmul.f32 %v894, 1.442695
  %v961 = vpow.pop %v960
  %v962 = vmul.f32 %v895, 1.442695
  %v963 = vpow.pop %v962
  %v964 = vmul.f32 %v896, 1.442695
  %v965 = vpow.pop %v964
  %v966 = vmul.f32 %v897, 1.442695
  %v967 = vpow.pop %v966
  %v968 = vmul.f32 %v898, 1.442695
  %v969 = vpow.pop %v968
  %v970 = vmul.f32 %v899, 1.442695
  %v971 = vpow.pop %v970
  %v972 = vmul.f32 %v900, 1.442695
  %v973 = vpow.pop %v972
  %v974 = vmul.f32 %v901, 1.442695
  %v975 = vpow.pop %v974
  %v976 = vmul.f32 %v902, 1.442695
  %v977 = vpow.pop %v976
  %v978 = vmul.f32 %v903, 1.442695
  %v979 = vpow.pop %v978
  %v980 = vmul.f32 %v904, 1.442695
  %v981 = vpow.pop %v980
  %v982 = vmul.f32 %v905, 1.442695
  %v983 = vpow.pop %v982
  %v984 = vmul.f32 %v906, 1.442695
  %v985 = vpow.pop %v984
  %v986 = vmul.f32 %v907, 1.442695
  %v987 = vpow.pop %v986
  %v988 = vmul.f32 %v908, 1.442695
  %v989 = vpow.pop %v988
  %v990 = vmul.f32 %v909, 1.442695
  %v991 = vpow.pop %v990
  %v992 = vmul.f32 %v910, 1.442695
  %v993 = vpow.pop %v992
  %v994 = vmul.f32 %v911, 1.442695
  %v995 = vpow.pop %v994
  %v996 = vmul.f32 %v912, 1.442695
  %v997 = vpow.pop %v996
  %v998 = vmul.f32 %v913, 1.442695
  %v999 = vpow.pop %v998
  %v1000 = vmul.f32 %v914, 1.442695
  %v1001 = vpow.pop %v1000
  %v1002 = vmul.f32 %v915, 1.442695
  %v1003 = vpow.pop %v1002
  %v1004 = vmul.f32 %v916, 1.442695
  %v1005 = vpow.pop %v1004
  %v1006 = vmul.f32 %v917, 1.442695
  %v1007 = vpow.pop %v1006
  %v1008 = vmul.f32 %v918, 1.442695
  %v1009 = vpow.pop %v1008
  %v1010 = vmul.f32 %v919, 1.442695
  %v1011 = vpow.pop %v1010
  %v1012 = vmul.f32 %v920, 1.442695
  %v1013 = vpow.pop %v1012
  %v1014 = vmul.f32 %v921, 1.442695
  %v1015 = vpow.pop %v1014
  %v1016 = vmul.f32 %v922, 1.442695
  %v1017 = vpow.pop %v1016
  %v1018 = vmul.f32 %v923, 1.442695
  %v1019 = vpow.pop %v1018
  %v1020 = vmul.f32 %v924, 1.442695
  %v1021 = vpow.pop %v1020
  %v1022 = vmul.f32 %v925, 1.442695
  %v1023 = vpow.pop %v1022
  %v1024 = vmul.f32 %v926, 1.442695
  %v1025 = vpow.pop %v1024
  %v1026 = vmul.f32 %v927, 1.442695
  %v1027 = vpow.pop %v1026
  %v1028 = vmul.f32 %v928, 1.442695
  %v1029 = vpow.pop %v1028
  %v1030 = vmul.f32 %v929, 1.442695
  %v1031 = vpow.pop %v1030
  %v1032 = vmul.f32 %v930, 1.442695
  %v1033 = vpow.pop %v1032
  %v1034 = vmul.f32 %v931, 1.442695
  %v1035 = vpow.pop %v1034
  %v1036 = vmul.f32 %v932, 1.442695
  %v1037 = vpow.pop %v1036
  %v1038 = vmul.f32 %v933, 1.442695
  %v1039 = vpow.pop %v1038
  %v1040 = vmul.f32 %v934, 1.442695
  %v1041 = vpow.pop %v1040
  %v1042 = vmul.f32 %v935, 1.442695
  %v1043 = vpow.pop %v1042
  %v1044 = vmul.f32 %v936, 1.442695
  %v1045 = vpow.pop %v1044
  %v1046 = vmul.f32 %v937, 1.442695
  %v1047 = vpow.pop %v1046
  %v1048 = vmul.f32 %v938, 1.442695
  %v1049 = vpow.pop %v1048
  %v1050 = vmul.f32 %v939, 1.442695
  %v1051 = vpow.pop %v1050
  %v1052 = vmul.f32 %v940, 1.442695
  %v1053 = vpow.pop %v1052
  %v1054 = vmul.f32 %v941, 1.442695
  %v1055 = vpow.pop %v1054
  %v1056 = vmul.f32 %v942, 1.442695
  %v1057 = vpow.pop %v1056
  %v1058 = vmul.f32 %v943, 1.442695
  %v1059 = vpow.pop %v1058
  %v1060 = vmul.f32 %v944, 1.442695
  %v1061 = vpow.pop %v1060
  %v1062 = vmul.f32 %v945, 1.442695
  %v1063 = vpow.pop %v1062
  %v1064 = vmul.f32 %v946, 1.442695
  %v1065 = vpow.pop %v1064
  %v1066 = vmul.f32 %v947, 1.442695
  %v1067 = vpow.pop %v1066
  %v1068 = vmul.f32 %v948, 1.442695
  %v1069 = vpow.pop %v1068
  %v1070 = vmul.f32 %v949, 1.442695
  %v1071 = vpow.pop %v1070
  %v1072 = vmul.f32 %v950, 1.442695
  %v1073 = vpow.pop %v1072
  %v1074 = vmul.f32 %v951, 1.442695
  %v1075 = vpow.pop %v1074
  %v1076 = vmul.f32 %v952, 1.442695
  %v1077 = vpow.pop %v1076
  %v1078 = vmul.f32 %v953, 1.442695
  %v1079 = vpow.pop %v1078
  %v1080 = vmul.f32 %v954, 1.442695
  %v1081 = vpow.pop %v1080
  %v1082 = vmul.f32 %v955, 1.442695
  %v1083 = vpow.pop %v1082
  %v1084 = vadd.f32 %v957, 1.0
  %v1085 = vadd.f32 %v959, 1.0
  %v1086 = vadd.f32 %v961, 1.0
  %v1087 = vadd.f32 %v963, 1.0
  %v1088 = vadd.f32 %v965, 1.0
  %v1089 = vadd.f32 %v967, 1.0
  %v1090 = vadd.f32 %v969, 1.0
  %v1091 = vadd.f32 %v971, 1.0
  %v1092 = vadd.f32 %v973, 1.0
  %v1093 = vadd.f32 %v975, 1.0
  %v1094 = vadd.f32 %v977, 1.0
  %v1095 = vadd.f32 %v979, 1.0
  %v1096 = vadd.f32 %v981, 1.0
  %v1097 = vadd.f32 %v983, 1.0
  %v1098 = vadd.f32 %v985, 1.0
  %v1099 = vadd.f32 %v987, 1.0
  %v1100 = vadd.f32 %v989, 1.0
  %v1101 = vadd.f32 %v991, 1.0
  %v1102 = vadd.f32 %v993, 1.0
  %v1103 = vadd.f32 %v995, 1.0
  %v1104 = vadd.f32 %v997, 1.0
  %v1105 = vadd.f32 %v999, 1.0
  %v1106 = vadd.f32 %v1001, 1.0
  %v1107 = vadd.f32 %v1003, 1.0
  %v1108 = vadd.f32 %v1005, 1.0
  %v1109 = vadd.f32 %v1007, 1.0
  %v1110 = vadd.f32 %v1009, 1.0
  %v1111 = vadd.f32 %v1011, 1.0
  %v1112 = vadd.f32 %v1013, 1.0
  %v1113 = vadd.f32 %v1015, 1.0
  %v1114 = vadd.f32 %v1017, 1.0
  %v1115 = vadd.f32 %v1019, 1.0
  %v1116 = vadd.f32 %v1021, 1.0
  %v1117 = vadd.f32 %v1023, 1.0
  %v1118 = vadd.f32 %v1025, 1.0
  %v1119 = vadd.f32 %v1027, 1.0
  %v1120 = vadd.f32 %v1029, 1.0
  %v1121 = vadd.f32 %v1031, 1.0
  %v1122 = vadd.f32 %v1033, 1.0
  %v1123 = vadd.f32 %v1035, 1.0
  %v1124 = vadd.f32 %v1037, 1.0
  %v1125 = vadd.f32 %v1039, 1.0
  %v1126 = vadd.f32 %v1041, 1.0
  %v1127 = vadd.f32 %v1043, 1.0
  %v1128 = vadd.f32 %v1045, 1.0
  %v1129 = vadd.f32 %v1047, 1.0
  %v1130 = vadd.f32 %v1049, 1.0
  %v1131 = vadd.f32 %v1051, 1.0
  %v1132 = vadd.f32 %v1053, 1.0
  %v1133 = vadd.f32 %v1055, 1.0
  %v1134 = vadd.f32 %v1057, 1.0
  %v1135 = vadd.f32 %v1059, 1.0
  %v1136 = vadd.f32 %v1061, 1.0
  %v1137 = vadd.f32 %v1063, 1.0
  %v1138 = vadd.f32 %v1065, 1.0
  %v1139 = vadd.f32 %v1067, 1.0
  %v1140 = vadd.f32 %v1069, 1.0
  %v1141 = vadd.f32 %v1071, 1.0
  %v1142 = vadd.f32 %v1073, 1.0
  %v1143 = vadd.f32 %v1075, 1.0
  %v1144 = vadd.f32 %v1077, 1.0
  %v1145 = vadd.f32 %v1079, 1.0
  %v1146 = vadd.f32 %v1081, 1.0
  %v1147 = vadd.f32 %v1083, 1.0
  %v1148 = vrcp.pop %v1084
  %v1149 = vmul.f32 1.0, %v1148
  %v1150 = vrcp.pop %v1085
  %v1151 = vmul.f32 1.0, %v1150
  %v1152 = vrcp.pop %v1086
  %v1153 = vmul.f32 1.0, %v1152
  %v1154 = vrcp.pop %v1087
  %v1155 = vmul.f32 1.0, %v1154
  %v1156 = vrcp.pop %v1088
  %v1157 = vmul.f32 1.0, %v1156
  %v1158 = vrcp.pop %v1089
  %v1159 = vmul.f32 1.0, %v1158
  %v1160 = vrcp.pop %v1090
  %v1161 = vmul.f32 1.0, %v1160
  %v1162 = vrcp.pop %v1091
  %v1163 = vmul.f32 1.0, %v1162
  %v1164 = vrcp.pop %v1092
  %v1165 = vmul.f32 1.0, %v1164
  %v1166 = vrcp.pop %v1093
  %v1167 = vmul.f32 1.0, %v1166
  %v1168 = vrcp.pop %v1094
  %v1169 = vmul.f32 1.0, %v1168
  %v1170 = vrcp.pop %v1095
  %v1171 = vmul.f32 1.0, %v1170
  %v1172 = vrcp.pop %v1096
  %v1173 = vmul.f32 1.0, %v1172
  %v1174 = vrcp.pop %v1097
  %v1175 = vmul.f32 1.0, %v1174
  %v1176 = vrcp.pop %v1098
  %v1177 = vmul.f32 1.0, %v1176
  %v1178 = vrcp.pop %v1099
  %v1179 = vmul.f32 1.0, %v1178
  %v1180 = vrcp.pop %v1100
  %v1181 = vmul.f32 1.0, %v1180
  %v1182 = vrcp.pop %v1101
  %v1183 = vmul.f32 1.0, %v1182
  %v1184 = vrcp.pop %v1102
  %v1185 = vmul.f32 1.0, %v1184
  %v1186 = vrcp.pop %v1103
  %v1187 = vmul.f32 1.0, %v1186
  %v1188 = vrcp.pop %v1104
  %v1189 = vmul.f32 1.0, %v1188
  %v1190 = vrcp.pop %v1105
  %v1191 = vmul.f32 1.0, %v1190
  %v1192 = vrcp.pop %v1106
  %v1193 = vmul.f32 1.0, %v1192
  %v1194 = vrcp.pop %v1107
  %v1195 = vmul.f32 1.0, %v1194
  %v1196 = vrcp.pop %v1108
  %v1197 = vmul.f32 1.0, %v1196
  %v1198 = vrcp.pop %v1109
  %v1199 = vmul.f32 1.0, %v1198
  %v1200 = vrcp.pop %v1110
  %v1201 = vmul.f32 1.0, %v1200
  %v1202 = vrcp.pop %v1111
  %v1203 = vmul.f32 1.0, %v1202
  %v1204 = vrcp.pop %v1112
  %v1205 = vmul.f32 1.0, %v1204
  %v1206 = vrcp.pop %v1113
  %v1207 = vmul.f32 1.0, %v1206
  %v1208 = vrcp.pop %v1114
  %v1209 = vmul.f32 1.0, %v1208
  %v1210 = vrcp.pop %v1115
  %v1211 = vmul.f32 1.0, %v1210
  %v1212 = vrcp.pop %v1116
  %v1213 = vmul.f32 1.0, %v1212
  %v1214 = vrcp.pop %v1117
  %v1215 = vmul.f32 1.0, %v1214
  %v1216 = vrcp.pop %v1118
  %v1217 = vmul.f32 1.0, %v1216
  %v1218 = vrcp.pop %v1119
  %v1219 = vmul.f32 1.0, %v1218
  %v1220 = vrcp.pop %v1120
  %v1221 = vmul.f32 1.0, %v1220
  %v1222 = vrcp.pop %v1121
  %v1223 = vmul.f32 1.0, %v1222
  %v1224 = vrcp.pop %v1122
  %v1225 = vmul.f32 1.0, %v1224
  %v1226 = vrcp.pop %v1123
  %v1227 = vmul.f32 1.0, %v1226
  %v1228 = vrcp.pop %v1124
  %v1229 = vmul.f32 1.0, %v1228
  %v1230 = vrcp.pop %v1125
  %v1231 = vmul.f32 1.0, %v1230
  %v1232 = vrcp.pop %v1126
  %v1233 = vmul.f32 1.0, %v1232
  %v1234 = vrcp.pop %v1127
  %v1235 = vmul.f32 1.0, %v1234
  %v1236 = vrcp.pop %v1128
  %v1237 = vmul.f32 1.0, %v1236
  %v1238 = vrcp.pop %v1129
  %v1239 = vmul.f32 1.0, %v1238
  %v1240 = vrcp.pop %v1130
  %v1241 = vmul.f32 1.0, %v1240
  %v1242 = vrcp.pop %v1131
  %v1243 = vmul.f32 1.0, %v1242
  %v1244 = vrcp.pop %v1132
  %v1245 = vmul.f32 1.0, %v1244
  %v1246 = vrcp.pop %v1133
  %v1247 = vmul.f32 1.0, %v1246
  %v1248 = vrcp.pop %v1134
  %v1249 = vmul.f32 1.0, %v1248
  %v1250 = vrcp.pop %v1135
  %v1251 = vmul.f32 1.0, %v1250
  %v1252 = vrcp.pop %v1136
  %v1253 = vmul.f32 1.0, %v1252
  %v1254 = vrcp.pop %v1137
  %v1255 = vmul.f32 1.0, %v1254
  %v1256 = vrcp.pop %v1138
  %v1257 = vmul.f32 1.0, %v1256
  %v1258 = vrcp.pop %v1139
  %v1259 = vmul.f32 1.0, %v1258
  %v1260 = vrcp.pop %v1140
  %v1261 = vmul.f32 1.0, %v1260
  %v1262 = vrcp.pop %v1141
  %v1263 = vmul.f32 1.0, %v1262
  %v1264 = vrcp.pop %v1142
  %v1265 = vmul.f32 1.0, %v1264
  %v1266 = vrcp.pop %v1143
  %v1267 = vmul.f32 1.0, %v1266
  %v1268 = vrcp.pop %v1144
  %v1269 = vmul.f32 1.0, %v1268
  %v1270 = vrcp.pop %v1145
  %v1271 = vmul.f32 1.0, %v1270
  %v1272 = vrcp.pop %v1146
  %v1273 = vmul.f32 1.0, %v1272
  %v1274 = vrcp.pop %v1147
  %v1275 = vmul.f32 1.0, %v1274
  %v1276 = vmul.f32 %v828, %v1149
  %v1277 = vmul.f32 %v829, %v1151
  %v1278 = vmul.f32 %v830, %v1153
  %v1279 = vmul.f32 %v831, %v1155
  %v1280 = vmul.f32 %v832, %v1157
  %v1281 = vmul.f32 %v833, %v1159
  %v1282 = vmul.f32 %v834, %v1161
  %v1283 = vmul.f32 %v835, %v1163
  %v1284 = vmul.f32 %v836, %v1165
  %v1285 = vmul.f32 %v837, %v1167
  %v1286 = vmul.f32 %v838, %v1169
  %v1287 = vmul.f32 %v839, %v1171
  %v1288 = vmul.f32 %v840, %v1173
  %v1289 = vmul.f32 %v841, %v1175
  %v1290 = vmul.f32 %v842, %v1177
  %v1291 = vmul.f32 %v843, %v1179
  %v1292 = vmul.f32 %v844, %v1181
  %v1293 = vmul.f32 %v845, %v1183
  %v1294 = vmul.f32 %v846, %v1185
  %v1295 = vmul.f32 %v847, %v1187
  %v1296 = vmul.f32 %v848, %v1189
  %v1297 = vmul.f32 %v849, %v1191
  %v1298 = vmul.f32 %v850, %v1193
  %v1299 = vmul.f32 %v851, %v1195
  %v1300 = vmul.f32 %v852, %v1197
  %v1301 = vmul.f32 %v853, %v1199
  %v1302 = vmul.f32 %v854, %v1201
  %v1303 = vmul.f32 %v855, %v1203
  %v1304 = vmul.f32 %v856, %v1205
  %v1305 = vmul.f32 %v857, %v1207
  %v1306 = vmul.f32 %v858, %v1209
  %v1307 = vmul.f32 %v859, %v1211
  %v1308 = vmul.f32 %v860, %v1213
  %v1309 = vmul.f32 %v861, %v1215
  %v1310 = vmul.f32 %v862, %v1217
  %v1311 = vmul.f32 %v863, %v1219
  %v1312 = vmul.f32 %v864, %v1221
  %v1313 = vmul.f32 %v865, %v1223
  %v1314 = vmul.f32 %v866, %v1225
  %v1315 = vmul.f32 %v867, %v1227
  %v1316 = vmul.f32 %v868, %v1229
  %v1317 = vmul.f32 %v869, %v1231
  %v1318 = vmul.f32 %v870, %v1233
  %v1319 = vmul.f32 %v871, %v1235
  %v1320 = vmul.f32 %v872, %v1237
  %v1321 = vmul.f32 %v873, %v1239
  %v1322 = vmul.f32 %v874, %v1241
  %v1323 = vmul.f32 %v875, %v1243
  %v1324 = vmul.f32 %v876, %v1245
  %v1325 = vmul.f32 %v877, %v1247
  %v1326 = vmul.f32 %v878, %v1249
  %v1327 = vmul.f32 %v879, %v1251
  %v1328 = vmul.f32 %v880, %v1253
  %v1329 = vmul.f32 %v881, %v1255
  %v1330 = vmul.f32 %v882, %v1257
  %v1331 = vmul.f32 %v883, %v1259
  %v1332 = vmul.f32 %v884, %v1261
  %v1333 = vmul.f32 %v885, %v1263
  %v1334 = vmul.f32 %v886, %v1265
  %v1335 = vmul.f32 %v887, %v1267
  %v1336 = vmul.f32 %v888, %v1269
  %v1337 = vmul.f32 %v889, %v1271
  %v1338 = vmul.f32 %v890, %v1273
  %v1339 = vmul.f32 %v891, %v1275
  %1340 = vst [vmem:[#allocation2] sm:$0xf] 0
  %1341 = vst [vmem:[#allocation2 + $0x4] sm:$0xf] 0
  %1342 = vst [vmem:[#allocation2 + $0x8] sm:$0x1] 0
  %1343 = vst [vmem:[#allocation2 + $0xc] sm:$0xf] 0
  %1344 = vst [vmem:[#allocation2 + $0x10] sm:$0xf] 0
  %1345 = vst [vmem:[#allocation2 + $0x14] sm:$0x1] 0
  %1346 = vst [vmem:[#allocation2 + $0x18] sm:$0xf] 0
  %1347 = vst [vmem:[#allocation2 + $0x1c] sm:$0xf] 0
  %1348 = vst [vmem:[#allocation2 + $0x20] sm:$0x1] 0
  %1349 = vst [vmem:[#allocation2 + $0x24] sm:$0xf] 0
  %1350 = vst [vmem:[#allocation2 + $0x28] sm:$0xf] 0
  %1351 = vst [vmem:[#allocation2 + $0x2c] sm:$0x1] 0
  %1352 = vst [vmem:[#allocation2 + $0x30] sm:$0xf] 0
  %1353 = vst [vmem:[#allocation2 + $0x34] sm:$0xf] 0
  %1354 = vst [vmem:[#allocation2 + $0x38] sm:$0x1] 0
  %1355 = vst [vmem:[#allocation2 + $0x3c] sm:$0xf] 0
  %1356 = vst [vmem:[#allocation2 + $0x40] sm:$0xf] 0
  %1357 = vst [vmem:[#allocation2 + $0x44] sm:$0x1] 0
  %1358 = vst [vmem:[#allocation2 + $0x48] sm:$0xf] 0
  %1359 = vst [vmem:[#allocation2 + $0x4c] sm:$0xf] 0
  %1360 = vst [vmem:[#allocation2 + $0x50] sm:$0x1] 0
  %1361 = vst [vmem:[#allocation2 + $0x54] sm:$0xf] 0
  %1362 = vst [vmem:[#allocation2 + $0x58] sm:$0xf] 0
  %1363 = vst [vmem:[#allocation2 + $0x5c] sm:$0x1] 0
  %1364 = vst [vmem:[#allocation2 + $0x60] sm:$0xf] 0
  %1365 = vst [vmem:[#allocation2 + $0x64] sm:$0xf] 0
  %1366 = vst [vmem:[#allocation2 + $0x68] sm:$0x1] 0
  %1367 = vst [vmem:[#allocation2 + $0x6c] sm:$0xf] 0
  %1368 = vst [vmem:[#allocation2 + $0x70] sm:$0xf] 0
  %1369 = vst [vmem:[#allocation2 + $0x74] sm:$0x1] 0
  %1370 = vst [vmem:[#allocation2 + $0x78] sm:$0xf] 0
  %1371 = vst [vmem:[#allocation2 + $0x7c] sm:$0xf] 0
  %1372 = vst [vmem:[#allocation2 + $0x80] sm:$0x1] 0
  %1373 = vst [vmem:[#allocation2 + $0x84] sm:$0xf] 0
  %1374 = vst [vmem:[#allocation2 + $0x88] sm:$0xf] 0
  %1375 = vst [vmem:[#allocation2 + $0x8c] sm:$0x1] 0
  %1376 = vst [vmem:[#allocation2 + $0x90] sm:$0xf] 0
  %1377 = vst [vmem:[#allocation2 + $0x94] sm:$0xf] 0
  %1378 = vst [vmem:[#allocation2 + $0x98] sm:$0x1] 0
  %1379 = vst [vmem:[#allocation2 + $0x9c] sm:$0xf] 0
  %1380 = vst [vmem:[#allocation2 + $0xa0] sm:$0xf] 0
  %1381 = vst [vmem:[#allocation2 + $0xa4] sm:$0x1] 0
  %1382 = vst [vmem:[#allocation2 + $0xa8] sm:$0xf] 0
  %1383 = vst [vmem:[#allocation2 + $0xac] sm:$0xf] 0
  %1384 = vst [vmem:[#allocation2 + $0xb0] sm:$0x1] 0
  %1385 = vst [vmem:[#allocation2 + $0xb4] sm:$0xf] 0
  %1386 = vst [vmem:[#allocation2 + $0xb8] sm:$0xf] 0
  %1387 = vst [vmem:[#allocation2 + $0xbc] sm:$0x1] 0
  %1388 = vst [vmem:[#allocation2 + $0xc0] sm:$0xf] 0
  %1389 = vst [vmem:[#allocation2 + $0xc4] sm:$0xf] 0
  %1390 = vst [vmem:[#allocation2 + $0xc8] sm:$0x1] 0
  %1391 = vst [vmem:[#allocation2 + $0xcc] sm:$0xf] 0
  %1392 = vst [vmem:[#allocation2 + $0xd0] sm:$0xf] 0
  %1393 = vst [vmem:[#allocation2 + $0xd4] sm:$0x1] 0
  %1394 = vst [vmem:[#allocation2 + $0xd8] sm:$0xf] 0
  %1395 = vst [vmem:[#allocation2 + $0xdc] sm:$0xf] 0
  %1396 = vst [vmem:[#allocation2 + $0xe0] sm:$0x1] 0
  %1397 = vst [vmem:[#allocation2 + $0xe4] sm:$0xf] 0
  %1398 = vst [vmem:[#allocation2 + $0xe8] sm:$0xf] 0
  %1399 = vst [vmem:[#allocation2 + $0xec] sm:$0x1] 0
  %1400 = vst [vmem:[#allocation2 + $0xf0] sm:$0xf] 0
  %1401 = vst [vmem:[#allocation2 + $0xf4] sm:$0xf] 0
  %1402 = vst [vmem:[#allocation2 + $0xf8] sm:$0x1] 0
  %1403 = vst [vmem:[#allocation2 + $0xfc] sm:$0xf] 0
  %1404 = vst [vmem:[#allocation2 + $0x100] sm:$0xf] 0
  %1405 = vst [vmem:[#allocation2 + $0x104] sm:$0x1] 0
  %1406 = vst [vmem:[#allocation2 + $0x108] sm:$0xf] 0
  %1407 = vst [vmem:[#allocation2 + $0x10c] sm:$0xf] 0
  %1408 = vst [vmem:[#allocation2 + $0x110] sm:$0x1] 0
  %1409 = vst [vmem:[#allocation2 + $0x114] sm:$0xf] 0
  %1410 = vst [vmem:[#allocation2 + $0x118] sm:$0xf] 0
  %1411 = vst [vmem:[#allocation2 + $0x11c] sm:$0x1] 0
  %1412 = vst [vmem:[#allocation2 + $0x120] sm:$0xf] 0
  %1413 = vst [vmem:[#allocation2 + $0x124] sm:$0xf] 0
  %1414 = vst [vmem:[#allocation2 + $0x128] sm:$0x1] 0
  %1415 = vst [vmem:[#allocation2 + $0x12c] sm:$0xf] 0
  %1416 = vst [vmem:[#allocation2 + $0x130] sm:$0xf] 0
  %1417 = vst [vmem:[#allocation2 + $0x134] sm:$0x1] 0
  %1418 = vst [vmem:[#allocation2 + $0x138] sm:$0xf] 0
  %1419 = vst [vmem:[#allocation2 + $0x13c] sm:$0xf] 0
  %1420 = vst [vmem:[#allocation2 + $0x140] sm:$0x1] 0
  %1421 = vst [vmem:[#allocation2 + $0x144] sm:$0xf] 0
  %1422 = vst [vmem:[#allocation2 + $0x148] sm:$0xf] 0
  %1423 = vst [vmem:[#allocation2 + $0x14c] sm:$0x1] 0
  %1424 = vst [vmem:[#allocation2 + $0x150] sm:$0xf] 0
  %1425 = vst [vmem:[#allocation2 + $0x154] sm:$0xf] 0
  %1426 = vst [vmem:[#allocation2 + $0x158] sm:$0x1] 0
  %1427 = vst [vmem:[#allocation2 + $0x15c] sm:$0xf] 0
  %1428 = vst [vmem:[#allocation2 + $0x160] sm:$0xf] 0
  %1429 = vst [vmem:[#allocation2 + $0x164] sm:$0x1] 0
  %1430 = vst [vmem:[#allocation2 + $0x168] sm:$0xf] 0
  %1431 = vst [vmem:[#allocation2 + $0x16c] sm:$0xf] 0
  %1432 = vst [vmem:[#allocation2 + $0x170] sm:$0x1] 0
  %1433 = vst [vmem:[#allocation2 + $0x174] sm:$0xf] 0
  %1434 = vst [vmem:[#allocation2 + $0x178] sm:$0xf] 0
  %1435 = vst [vmem:[#allocation2 + $0x17c] sm:$0x1] 0
  %1436 = vst [vmem:[#allocation2 + $0x180] sm:$0xf] 0
  %1437 = vst [vmem:[#allocation2 + $0x184] sm:$0xf] 0
  %1438 = vst [vmem:[#allocation2 + $0x188] sm:$0x1] 0
  %1439 = vst [vmem:[#allocation2 + $0x18c] sm:$0xf] 0
  %1440 = vst [vmem:[#allocation2 + $0x190] sm:$0xf] 0
  %1441 = vst [vmem:[#allocation2 + $0x194] sm:$0x1] 0
  %1442 = vst [vmem:[#allocation2 + $0x198] sm:$0xf] 0
  %1443 = vst [vmem:[#allocation2 + $0x19c] sm:$0xf] 0
  %1444 = vst [vmem:[#allocation2 + $0x1a0] sm:$0x1] 0
  %1445 = vst [vmem:[#allocation2 + $0x1a4] sm:$0xf] 0
  %1446 = vst [vmem:[#allocation2 + $0x1a8] sm:$0xf] 0
  %1447 = vst [vmem:[#allocation2 + $0x1ac] sm:$0x1] 0
  %v1448 = vpack.c.bf16 %v1277, %v1276
  %v1449 = vpack.c.bf16 %v1279, %v1278
  %v1450 = vpack.c.bf16 %v1281, %v1280
  %v1451 = vpack.c.bf16 %v1283, %v1282
  %v1452 = vpack.c.bf16 %v1285, %v1284
  %v1453 = vpack.c.bf16 %v1287, %v1286
  %v1454 = vpack.c.bf16 %v1289, %v1288
  %v1455 = vpack.c.bf16 %v1291, %v1290
  %v1456 = vpack.c.bf16 %v1293, %v1292
  %v1457 = vpack.c.bf16 %v1295, %v1294
  %v1458 = vpack.c.bf16 %v1297, %v1296
  %v1459 = vpack.c.bf16 %v1299, %v1298
  %v1460 = vpack.c.bf16 %v1301, %v1300
  %v1461 = vpack.c.bf16 %v1303, %v1302
  %v1462 = vpack.c.bf16 %v1305, %v1304
  %v1463 = vpack.c.bf16 %v1307, %v1306
  %v1464 = vpack.c.bf16 %v1309, %v1308
  %v1465 = vpack.c.bf16 %v1311, %v1310
  %v1466 = vpack.c.bf16 %v1313, %v1312
  %v1467 = vpack.c.bf16 %v1315, %v1314
  %v1468 = vpack.c.bf16 %v1317, %v1316
  %v1469 = vpack.c.bf16 %v1319, %v1318
  %v1470 = vpack.c.bf16 %v1321, %v1320
  %v1471 = vpack.c.bf16 %v1323, %v1322
  %v1472 = vpack.c.bf16 %v1325, %v1324
  %v1473 = vpack.c.bf16 %v1327, %v1326
  %v1474 = vpack.c.bf16 %v1329, %v1328
  %v1475 = vpack.c.bf16 %v1331, %v1330
  %v1476 = vpack.c.bf16 %v1333, %v1332
  %v1477 = vpack.c.bf16 %v1335, %v1334
  %v1478 = vpack.c.bf16 %v1337, %v1336
  %v1479 = vpack.c.bf16 %v1339, %v1338
  %v1512 = vunpack.c.l.b16 %v1448
  %v1513 = vunpack.c.h.b16 %v1448
  %v1514 = vunpack.c.l.b16 %v1449
  %v1515 = vunpack.c.h.b16 %v1449
  %v1516 = vunpack.c.l.b16 %v1450
  %v1517 = vunpack.c.h.b16 %v1450
  %v1518 = vunpack.c.l.b16 %v1451
  %v1519 = vunpack.c.h.b16 %v1451
  %v1520 = vunpack.c.l.b16 %v1452
  %v1521 = vunpack.c.h.b16 %v1452
  %v1522 = vunpack.c.l.b16 %v1453
  %v1523 = vunpack.c.h.b16 %v1453
  %v1524 = vunpack.c.l.b16 %v1454
  %v1525 = vunpack.c.h.b16 %v1454
  %v1526 = vunpack.c.l.b16 %v1455
  %v1527 = vunpack.c.h.b16 %v1455
  %v1528 = vunpack.c.l.b16 %v1456
  %v1529 = vunpack.c.h.b16 %v1456
  %v1530 = vunpack.c.l.b16 %v1457
  %v1531 = vunpack.c.h.b16 %v1457
  %v1532 = vunpack.c.l.b16 %v1458
  %v1533 = vunpack.c.h.b16 %v1458
  %v1534 = vunpack.c.l.b16 %v1459
  %v1535 = vunpack.c.h.b16 %v1459
  %v1536 = vunpack.c.l.b16 %v1460
  %v1537 = vunpack.c.h.b16 %v1460
  %v1538 = vunpack.c.l.b16 %v1461
  %v1539 = vunpack.c.h.b16 %v1461
  %v1540 = vunpack.c.l.b16 %v1462
  %v1541 = vunpack.c.h.b16 %v1462
  %v1542 = vunpack.c.l.b16 %v1463
  %v1543 = vunpack.c.h.b16 %v1463
  %v1544 = vunpack.c.l.b16 %v1464
  %v1545 = vunpack.c.h.b16 %v1464
  %v1546 = vunpack.c.l.b16 %v1465
  %v1547 = vunpack.c.h.b16 %v1465
  %v1548 = vunpack.c.l.b16 %v1466
  %v1549 = vunpack.c.h.b16 %v1466
  %v1550 = vunpack.c.l.b16 %v1467
  %v1551 = vunpack.c.h.b16 %v1467
  %v1552 = vunpack.c.l.b16 %v1468
  %v1553 = vunpack.c.h.b16 %v1468
  %v1554 = vunpack.c.l.b16 %v1469
  %v1555 = vunpack.c.h.b16 %v1469
  %v1556 = vunpack.c.l.b16 %v1470
  %v1557 = vunpack.c.h.b16 %v1470
  %v1558 = vunpack.c.l.b16 %v1471
  %v1559 = vunpack.c.h.b16 %v1471
  %v1560 = vunpack.c.l.b16 %v1472
  %v1561 = vunpack.c.h.b16 %v1472
  %v1562 = vunpack.c.l.b16 %v1473
  %v1563 = vunpack.c.h.b16 %v1473
  %v1564 = vunpack.c.l.b16 %v1474
  %v1565 = vunpack.c.h.b16 %v1474
  %v1566 = vunpack.c.l.b16 %v1475
  %v1567 = vunpack.c.h.b16 %v1475
  %v1568 = vunpack.c.l.b16 %v1476
  %v1569 = vunpack.c.h.b16 %v1476
  %v1570 = vunpack.c.l.b16 %v1477
  %v1571 = vunpack.c.h.b16 %v1477
  %v1572 = vunpack.c.l.b16 %v1478
  %v1573 = vunpack.c.h.b16 %v1478
  %v1574 = vunpack.c.l.b16 %v1479
  %v1575 = vunpack.c.h.b16 %v1479
  %v1576 = vpack.c.b16 %v1512, %v1512
  %v1577 = vpack.c.b16 %v1513, %v1513
  %v1578 = vpack.c.b16 %v1514, %v1514
  %v1579 = vpack.c.b16 %v1515, %v1515
  %v1580 = vpack.c.b16 %v1516, %v1516
  %v1581 = vpack.c.b16 %v1517, %v1517
  %v1582 = vpack.c.b16 %v1518, %v1518
  %v1583 = vpack.c.b16 %v1519, %v1519
  %v1584 = vpack.c.b16 %v1520, %v1520
  %v1585 = vpack.c.b16 %v1521, %v1521
  %v1586 = vpack.c.b16 %v1522, %v1522
  %v1587 = vpack.c.b16 %v1523, %v1523
  %v1588 = vpack.c.b16 %v1524, %v1524
  %v1589 = vpack.c.b16 %v1525, %v1525
  %v1590 = vpack.c.b16 %v1526, %v1526
  %v1591 = vpack.c.b16 %v1527, %v1527
  %v1592 = vpack.c.b16 %v1528, %v1528
  %v1593 = vpack.c.b16 %v1529, %v1529
  %v1594 = vpack.c.b16 %v1530, %v1530
  %v1595 = vpack.c.b16 %v1531, %v1531
  %v1596 = vpack.c.b16 %v1532, %v1532
  %v1597 = vpack.c.b16 %v1533, %v1533
  %v1598 = vpack.c.b16 %v1534, %v1534
  %v1599 = vpack.c.b16 %v1535, %v1535
  %v1600 = vpack.c.b16 %v1536, %v1536
  %v1601 = vpack.c.b16 %v1537, %v1537
  %v1602 = vpack.c.b16 %v1538, %v1538
  %v1603 = vpack.c.b16 %v1539, %v1539
  %v1604 = vpack.c.b16 %v1540, %v1540
  %v1605 = vpack.c.b16 %v1541, %v1541
  %v1606 = vpack.c.b16 %v1542, %v1542
  %v1607 = vpack.c.b16 %v1543, %v1543
  %v1608 = vpack.c.b16 %v1544, %v1544
  %v1609 = vpack.c.b16 %v1545, %v1545
  %v1610 = vpack.c.b16 %v1546, %v1546
  %v1611 = vpack.c.b16 %v1547, %v1547
  %v1612 = vpack.c.b16 %v1548, %v1548
  %v1613 = vpack.c.b16 %v1549, %v1549
  %v1614 = vpack.c.b16 %v1550, %v1550
  %v1615 = vpack.c.b16 %v1551, %v1551
  %v1616 = vpack.c.b16 %v1552, %v1552
  %v1617 = vpack.c.b16 %v1553, %v1553
  %v1618 = vpack.c.b16 %v1554, %v1554
  %v1619 = vpack.c.b16 %v1555, %v1555
  %v1620 = vpack.c.b16 %v1556, %v1556
  %v1621 = vpack.c.b16 %v1557, %v1557
  %v1622 = vpack.c.b16 %v1558, %v1558
  %v1623 = vpack.c.b16 %v1559, %v1559
  %v1624 = vpack.c.b16 %v1560, %v1560
  %v1625 = vpack.c.b16 %v1561, %v1561
  %v1626 = vpack.c.b16 %v1562, %v1562
  %v1627 = vpack.c.b16 %v1563, %v1563
  %v1628 = vpack.c.b16 %v1564, %v1564
  %v1629 = vpack.c.b16 %v1565, %v1565
  %v1630 = vpack.c.b16 %v1566, %v1566
  %v1631 = vpack.c.b16 %v1567, %v1567
  %v1632 = vpack.c.b16 %v1568, %v1568
  %v1633 = vpack.c.b16 %v1569, %v1569
  %v1634 = vpack.c.b16 %v1570, %v1570
  %v1635 = vpack.c.b16 %v1571, %v1571
  %v1636 = vpack.c.b16 %v1572, %v1572
  %v1637 = vpack.c.b16 %v1573, %v1573
  %v1638 = vpack.c.b16 %v1574, %v1574
  %v1639 = vpack.c.b16 %v1575, %v1575
  %vm1640 = vsmask.f32 256
  %vm1641 = vsmask.f32 4368
  %vm1642 = vmor %vm1640, %vm1641
  %v1644 = vshrl.u32 %v1576, 16
  %v1646 = vrot.slane %v1644, 7
  %v1647 = vshll.u32 %v1576, 16
  %v1649 = vor.u32 %v1646, %v1647
  %v1650 = vrot.slane %v1646, 4
  %v1652 = vshrl.u32 %v1577, 16
  %v1654 = vrot.slane %v1652, 7
  %v1655 = vshll.u32 %v1577, 16
  %v1657 = vor.u32 %v1654, %v1655
  %v1658 = vsel %vm1642, %v1650, %v1657
  %v1659 = vrot.slane %v1654, 4
  %v1661 = vshrl.u32 %v1578, 16
  %v1663 = vrot.slane %v1661, 7
  %v1664 = vshll.u32 %v1578, 16
  %v1666 = vor.u32 %v1663, %v1664
  %v1667 = vrot.slane %v1663, 4
  %v1669 = vshrl.u32 %v1579, 16
  %v1671 = vrot.slane %v1669, 7
  %v1672 = vshll.u32 %v1579, 16
  %v1674 = vor.u32 %v1671, %v1672
  %v1675 = vsel %vm1642, %v1667, %v1674
  %v1676 = vrot.slane %v1671, 4
  %v1678 = vshrl.u32 %v1580, 16
  %v1680 = vrot.slane %v1678, 7
  %v1681 = vshll.u32 %v1580, 16
  %v1683 = vor.u32 %v1680, %v1681
  %v1684 = vrot.slane %v1680, 4
  %v1686 = vshrl.u32 %v1581, 16
  %v1688 = vrot.slane %v1686, 7
  %v1689 = vshll.u32 %v1581, 16
  %v1691 = vor.u32 %v1688, %v1689
  %v1692 = vsel %vm1642, %v1684, %v1691
  %v1693 = vrot.slane %v1688, 4
  %v1695 = vshrl.u32 %v1582, 16
  %v1697 = vrot.slane %v1695, 7
  %v1698 = vshll.u32 %v1582, 16
  %v1700 = vor.u32 %v1697, %v1698
  %v1701 = vrot.slane %v1697, 4
  %v1703 = vshrl.u32 %v1583, 16
  %v1705 = vrot.slane %v1703, 7
  %v1706 = vshll.u32 %v1583, 16
  %v1708 = vor.u32 %v1705, %v1706
  %v1709 = vsel %vm1642, %v1701, %v1708
  %v1710 = vrot.slane %v1705, 4
  %v1712 = vshrl.u32 %v1584, 16
  %v1714 = vrot.slane %v1712, 7
  %v1715 = vshll.u32 %v1584, 16
  %v1717 = vor.u32 %v1714, %v1715
  %v1718 = vrot.slane %v1714, 4
  %v1720 = vshrl.u32 %v1585, 16
  %v1722 = vrot.slane %v1720, 7
  %v1723 = vshll.u32 %v1585, 16
  %v1725 = vor.u32 %v1722, %v1723
  %v1726 = vsel %vm1642, %v1718, %v1725
  %v1727 = vrot.slane %v1722, 4
  %v1729 = vshrl.u32 %v1586, 16
  %v1731 = vrot.slane %v1729, 7
  %v1732 = vshll.u32 %v1586, 16
  %v1734 = vor.u32 %v1731, %v1732
  %v1735 = vrot.slane %v1731, 4
  %v1737 = vshrl.u32 %v1587, 16
  %v1739 = vrot.slane %v1737, 7
  %v1740 = vshll.u32 %v1587, 16
  %v1742 = vor.u32 %v1739, %v1740
  %v1743 = vsel %vm1642, %v1735, %v1742
  %v1744 = vrot.slane %v1739, 4
  %v1746 = vshrl.u32 %v1588, 16
  %v1748 = vrot.slane %v1746, 7
  %v1749 = vshll.u32 %v1588, 16
  %v1751 = vor.u32 %v1748, %v1749
  %v1752 = vrot.slane %v1748, 4
  %v1754 = vshrl.u32 %v1589, 16
  %v1756 = vrot.slane %v1754, 7
  %v1757 = vshll.u32 %v1589, 16
  %v1759 = vor.u32 %v1756, %v1757
  %v1760 = vsel %vm1642, %v1752, %v1759
  %v1761 = vrot.slane %v1756, 4
  %v1763 = vshrl.u32 %v1590, 16
  %v1765 = vrot.slane %v1763, 7
  %v1766 = vshll.u32 %v1590, 16
  %v1768 = vor.u32 %v1765, %v1766
  %v1769 = vrot.slane %v1765, 4
  %v1771 = vshrl.u32 %v1591, 16
  %v1773 = vrot.slane %v1771, 7
  %v1774 = vshll.u32 %v1591, 16
  %v1776 = vor.u32 %v1773, %v1774
  %v1777 = vsel %vm1642, %v1769, %v1776
  %v1778 = vrot.slane %v1773, 4
  %v1780 = vshrl.u32 %v1592, 16
  %v1782 = vrot.slane %v1780, 7
  %v1783 = vshll.u32 %v1592, 16
  %v1785 = vor.u32 %v1782, %v1783
  %v1786 = vrot.slane %v1782, 4
  %v1788 = vshrl.u32 %v1593, 16
  %v1790 = vrot.slane %v1788, 7
  %v1791 = vshll.u32 %v1593, 16
  %v1793 = vor.u32 %v1790, %v1791
  %v1794 = vsel %vm1642, %v1786, %v1793
  %v1795 = vrot.slane %v1790, 4
  %v1797 = vshrl.u32 %v1594, 16
  %v1799 = vrot.slane %v1797, 7
  %v1800 = vshll.u32 %v1594, 16
  %v1802 = vor.u32 %v1799, %v1800
  %v1803 = vrot.slane %v1799, 4
  %v1805 = vshrl.u32 %v1595, 16
  %v1807 = vrot.slane %v1805, 7
  %v1808 = vshll.u32 %v1595, 16
  %v1810 = vor.u32 %v1807, %v1808
  %v1811 = vsel %vm1642, %v1803, %v1810
  %v1812 = vrot.slane %v1807, 4
  %v1814 = vshrl.u32 %v1596, 16
  %v1816 = vrot.slane %v1814, 7
  %v1817 = vshll.u32 %v1596, 16
  %v1819 = vor.u32 %v1816, %v1817
  %v1820 = vrot.slane %v1816, 4
  %v1822 = vshrl.u32 %v1597, 16
  %v1824 = vrot.slane %v1822, 7
  %v1825 = vshll.u32 %v1597, 16
  %v1827 = vor.u32 %v1824, %v1825
  %v1828 = vsel %vm1642, %v1820, %v1827
  %v1829 = vrot.slane %v1824, 4
  %v1831 = vshrl.u32 %v1598, 16
  %v1833 = vrot.slane %v1831, 7
  %v1834 = vshll.u32 %v1598, 16
  %v1836 = vor.u32 %v1833, %v1834
  %v1837 = vrot.slane %v1833, 4
  %v1839 = vshrl.u32 %v1599, 16
  %v1841 = vrot.slane %v1839, 7
  %v1842 = vshll.u32 %v1599, 16
  %v1844 = vor.u32 %v1841, %v1842
  %v1845 = vsel %vm1642, %v1837, %v1844
  %v1846 = vrot.slane %v1841, 4
  %v1848 = vshrl.u32 %v1600, 16
  %v1850 = vrot.slane %v1848, 7
  %v1851 = vshll.u32 %v1600, 16
  %v1853 = vor.u32 %v1850, %v1851
  %v1854 = vrot.slane %v1850, 4
  %v1856 = vshrl.u32 %v1601, 16
  %v1858 = vrot.slane %v1856, 7
  %v1859 = vshll.u32 %v1601, 16
  %v1861 = vor.u32 %v1858, %v1859
  %v1862 = vsel %vm1642, %v1854, %v1861
  %v1863 = vrot.slane %v1858, 4
  %v1865 = vshrl.u32 %v1602, 16
  %v1867 = vrot.slane %v1865, 7
  %v1868 = vshll.u32 %v1602, 16
  %v1870 = vor.u32 %v1867, %v1868
  %v1871 = vrot.slane %v1867, 4
  %v1873 = vshrl.u32 %v1603, 16
  %v1875 = vrot.slane %v1873, 7
  %v1876 = vshll.u32 %v1603, 16
  %v1878 = vor.u32 %v1875, %v1876
  %v1879 = vsel %vm1642, %v1871, %v1878
  %v1880 = vrot.slane %v1875, 4
  %v1882 = vshrl.u32 %v1604, 16
  %v1884 = vrot.slane %v1882, 7
  %v1885 = vshll.u32 %v1604, 16
  %v1887 = vor.u32 %v1884, %v1885
  %v1888 = vrot.slane %v1884, 4
  %v1890 = vshrl.u32 %v1605, 16
  %v1892 = vrot.slane %v1890, 7
  %v1893 = vshll.u32 %v1605, 16
  %v1895 = vor.u32 %v1892, %v1893
  %v1896 = vsel %vm1642, %v1888, %v1895
  %v1897 = vrot.slane %v1892, 4
  %v1899 = vshrl.u32 %v1606, 16
  %v1901 = vrot.slane %v1899, 7
  %v1902 = vshll.u32 %v1606, 16
  %v1904 = vor.u32 %v1901, %v1902
  %v1905 = vrot.slane %v1901, 4
  %v1907 = vshrl.u32 %v1607, 16
  %v1909 = vrot.slane %v1907, 7
  %v1910 = vshll.u32 %v1607, 16
  %v1912 = vor.u32 %v1909, %v1910
  %v1913 = vsel %vm1642, %v1905, %v1912
  %v1914 = vrot.slane %v1909, 4
  %v1916 = vshrl.u32 %v1608, 16
  %v1918 = vrot.slane %v1916, 7
  %v1919 = vshll.u32 %v1608, 16
  %v1921 = vor.u32 %v1918, %v1919
  %v1922 = vrot.slane %v1918, 4
  %v1924 = vshrl.u32 %v1609, 16
  %v1926 = vrot.slane %v1924, 7
  %v1927 = vshll.u32 %v1609, 16
  %v1929 = vor.u32 %v1926, %v1927
  %v1930 = vsel %vm1642, %v1922, %v1929
  %v1931 = vrot.slane %v1926, 4
  %v1933 = vshrl.u32 %v1610, 16
  %v1935 = vrot.slane %v1933, 7
  %v1936 = vshll.u32 %v1610, 16
  %v1938 = vor.u32 %v1935, %v1936
  %v1939 = vrot.slane %v1935, 4
  %v1941 = vshrl.u32 %v1611, 16
  %v1943 = vrot.slane %v1941, 7
  %v1944 = vshll.u32 %v1611, 16
  %v1946 = vor.u32 %v1943, %v1944
  %v1947 = vsel %vm1642, %v1939, %v1946
  %v1948 = vrot.slane %v1943, 4
  %v1950 = vshrl.u32 %v1612, 16
  %v1952 = vrot.slane %v1950, 7
  %v1953 = vshll.u32 %v1612, 16
  %v1955 = vor.u32 %v1952, %v1953
  %v1956 = vrot.slane %v1952, 4
  %v1958 = vshrl.u32 %v1613, 16
  %v1960 = vrot.slane %v1958, 7
  %v1961 = vshll.u32 %v1613, 16
  %v1963 = vor.u32 %v1960, %v1961
  %v1964 = vsel %vm1642, %v1956, %v1963
  %v1965 = vrot.slane %v1960, 4
  %v1967 = vshrl.u32 %v1614, 16
  %v1969 = vrot.slane %v1967, 7
  %v1970 = vshll.u32 %v1614, 16
  %v1972 = vor.u32 %v1969, %v1970
  %v1973 = vrot.slane %v1969, 4
  %v1975 = vshrl.u32 %v1615, 16
  %v1977 = vrot.slane %v1975, 7
  %v1978 = vshll.u32 %v1615, 16
  %v1980 = vor.u32 %v1977, %v1978
  %v1981 = vsel %vm1642, %v1973, %v1980
  %v1982 = vrot.slane %v1977, 4
  %v1984 = vshrl.u32 %v1616, 16
  %v1986 = vrot.slane %v1984, 7
  %v1987 = vshll.u32 %v1616, 16
  %v1989 = vor.u32 %v1986, %v1987
  %v1990 = vrot.slane %v1986, 4
  %v1992 = vshrl.u32 %v1617, 16
  %v1994 = vrot.slane %v1992, 7
  %v1995 = vshll.u32 %v1617, 16
  %v1997 = vor.u32 %v1994, %v1995
  %v1998 = vsel %vm1642, %v1990, %v1997
  %v1999 = vrot.slane %v1994, 4
  %v2001 = vshrl.u32 %v1618, 16
  %v2003 = vrot.slane %v2001, 7
  %v2004 = vshll.u32 %v1618, 16
  %v2006 = vor.u32 %v2003, %v2004
  %v2007 = vrot.slane %v2003, 4
  %v2009 = vshrl.u32 %v1619, 16
  %v2011 = vrot.slane %v2009, 7
  %v2012 = vshll.u32 %v1619, 16
  %v2014 = vor.u32 %v2011, %v2012
  %v2015 = vsel %vm1642, %v2007, %v2014
  %v2016 = vrot.slane %v2011, 4
  %v2018 = vshrl.u32 %v1620, 16
  %v2020 = vrot.slane %v2018, 7
  %v2021 = vshll.u32 %v1620, 16
  %v2023 = vor.u32 %v2020, %v2021
  %v2024 = vrot.slane %v2020, 4
  %v2026 = vshrl.u32 %v1621, 16
  %v2028 = vrot.slane %v2026, 7
  %v2029 = vshll.u32 %v1621, 16
  %v2031 = vor.u32 %v2028, %v2029
  %v2032 = vsel %vm1642, %v2024, %v2031
  %v2033 = vrot.slane %v2028, 4
  %v2035 = vshrl.u32 %v1622, 16
  %v2037 = vrot.slane %v2035, 7
  %v2038 = vshll.u32 %v1622, 16
  %v2040 = vor.u32 %v2037, %v2038
  %v2041 = vrot.slane %v2037, 4
  %v2043 = vshrl.u32 %v1623, 16
  %v2045 = vrot.slane %v2043, 7
  %v2046 = vshll.u32 %v1623, 16
  %v2048 = vor.u32 %v2045, %v2046
  %v2049 = vsel %vm1642, %v2041, %v2048
  %v2050 = vrot.slane %v2045, 4
  %v2052 = vshrl.u32 %v1624, 16
  %v2054 = vrot.slane %v2052, 7
  %v2055 = vshll.u32 %v1624, 16
  %v2057 = vor.u32 %v2054, %v2055
  %v2058 = vrot.slane %v2054, 4
  %v2060 = vshrl.u32 %v1625, 16
  %v2062 = vrot.slane %v2060, 7
  %v2063 = vshll.u32 %v1625, 16
  %v2065 = vor.u32 %v2062, %v2063
  %v2066 = vsel %vm1642, %v2058, %v2065
  %v2067 = vrot.slane %v2062, 4
  %v2069 = vshrl.u32 %v1626, 16
  %v2071 = vrot.slane %v2069, 7
  %v2072 = vshll.u32 %v1626, 16
  %v2074 = vor.u32 %v2071, %v2072
  %v2075 = vrot.slane %v2071, 4
  %v2077 = vshrl.u32 %v1627, 16
  %v2079 = vrot.slane %v2077, 7
  %v2080 = vshll.u32 %v1627, 16
  %v2082 = vor.u32 %v2079, %v2080
  %v2083 = vsel %vm1642, %v2075, %v2082
  %v2084 = vrot.slane %v2079, 4
  %v2086 = vshrl.u32 %v1628, 16
  %v2088 = vrot.slane %v2086, 7
  %v2089 = vshll.u32 %v1628, 16
  %v2091 = vor.u32 %v2088, %v2089
  %v2092 = vrot.slane %v2088, 4
  %v2094 = vshrl.u32 %v1629, 16
  %v2096 = vrot.slane %v2094, 7
  %v2097 = vshll.u32 %v1629, 16
  %v2099 = vor.u32 %v2096, %v2097
  %v2100 = vsel %vm1642, %v2092, %v2099
  %v2101 = vrot.slane %v2096, 4
  %v2103 = vshrl.u32 %v1630, 16
  %v2105 = vrot.slane %v2103, 7
  %v2106 = vshll.u32 %v1630, 16
  %v2108 = vor.u32 %v2105, %v2106
  %v2109 = vrot.slane %v2105, 4
  %v2111 = vshrl.u32 %v1631, 16
  %v2113 = vrot.slane %v2111, 7
  %v2114 = vshll.u32 %v1631, 16
  %v2116 = vor.u32 %v2113, %v2114
  %v2117 = vsel %vm1642, %v2109, %v2116
  %v2118 = vrot.slane %v2113, 4
  %v2120 = vshrl.u32 %v1632, 16
  %v2122 = vrot.slane %v2120, 7
  %v2123 = vshll.u32 %v1632, 16
  %v2125 = vor.u32 %v2122, %v2123
  %v2126 = vrot.slane %v2122, 4
  %v2128 = vshrl.u32 %v1633, 16
  %v2130 = vrot.slane %v2128, 7
  %v2131 = vshll.u32 %v1633, 16
  %v2133 = vor.u32 %v2130, %v2131
  %v2134 = vsel %vm1642, %v2126, %v2133
  %v2135 = vrot.slane %v2130, 4
  %v2137 = vshrl.u32 %v1634, 16
  %v2139 = vrot.slane %v2137, 7
  %v2140 = vshll.u32 %v1634, 16
  %v2142 = vor.u32 %v2139, %v2140
  %v2143 = vrot.slane %v2139, 4
  %v2145 = vshrl.u32 %v1635, 16
  %v2147 = vrot.slane %v2145, 7
  %v2148 = vshll.u32 %v1635, 16
  %v2150 = vor.u32 %v2147, %v2148
  %v2151 = vsel %vm1642, %v2143, %v2150
  %v2152 = vrot.slane %v2147, 4
  %v2154 = vshrl.u32 %v1636, 16
  %v2156 = vrot.slane %v2154, 7
  %v2157 = vshll.u32 %v1636, 16
  %v2159 = vor.u32 %v2156, %v2157
  %v2160 = vrot.slane %v2156, 4
  %v2162 = vshrl.u32 %v1637, 16
  %v2164 = vrot.slane %v2162, 7
  %v2165 = vshll.u32 %v1637, 16
  %v2167 = vor.u32 %v2164, %v2165
  %v2168 = vsel %vm1642, %v2160, %v2167
  %v2169 = vrot.slane %v2164, 4
  %v2171 = vshrl.u32 %v1638, 16
  %v2173 = vrot.slane %v2171, 7
  %v2174 = vshll.u32 %v1638, 16
  %v2176 = vor.u32 %v2173, %v2174
  %v2177 = vrot.slane %v2173, 4
  %v2179 = vshrl.u32 %v1639, 16
  %v2181 = vrot.slane %v2179, 7
  %v2182 = vshll.u32 %v1639, 16
  %v2184 = vor.u32 %v2181, %v2182
  %v2185 = vsel %vm1642, %v2177, %v2184
  %v2186 = vrot.slane %v2181, 4
  %s2283 = scalar_lea.vmem [#allocation2], 12
  %vm2284 = vcmask 1043456
  %vm2285 = vsmask.f32 7938
  %vm2286 = vmand %vm2284, %vm2285
  %v2287 = vld [vmem:[%s2283] sm:$0xf]
  %v2288 = vsel %vm2286, %v1649, %v2287
  %2289 = vst [vmem:[%s2283] sm:$0xf] %v2288
  %2290 = vst [vmem:[%s2283 + $0x4] sm:$0xf] %v1658
  %vm2291 = vcmask 1040384
  %vm2292 = vmand %vm2291, %vm1640
  %v2293 = vld [vmem:[%s2283 + $0x8] sm:$0x1]
  %v2294 = vsel %vm2292, %v1659, %v2293
  %2295 = vst [vmem:[%s2283 + $0x8] sm:$0x1] %v2294
  %v2296 = vld [vmem:[%s2283 + $0xc] sm:$0xf]
  %v2297 = vsel %vm2286, %v1666, %v2296
  %2298 = vst [vmem:[%s2283 + $0xc] sm:$0xf] %v2297
  %2299 = vst [vmem:[%s2283 + $0x10] sm:$0xf] %v1675
  %v2300 = vld [vmem:[%s2283 + $0x14] sm:$0x1]
  %v2301 = vsel %vm2292, %v1676, %v2300
  %2302 = vst [vmem:[%s2283 + $0x14] sm:$0x1] %v2301
  %v2303 = vld [vmem:[%s2283 + $0x18] sm:$0xf]
  %v2304 = vsel %vm2286, %v1683, %v2303
  %2305 = vst [vmem:[%s2283 + $0x18] sm:$0xf] %v2304
  %2306 = vst [vmem:[%s2283 + $0x1c] sm:$0xf] %v1692
  %v2307 = vld [vmem:[%s2283 + $0x20] sm:$0x1]
  %v2308 = vsel %vm2292, %v1693, %v2307
  %2309 = vst [vmem:[%s2283 + $0x20] sm:$0x1] %v2308
  %v2310 = vld [vmem:[%s2283 + $0x24] sm:$0xf]
  %v2311 = vsel %vm2286, %v1700, %v2310
  %2312 = vst [vmem:[%s2283 + $0x24] sm:$0xf] %v2311
  %2313 = vst [vmem:[%s2283 + $0x28] sm:$0xf] %v1709
  %v2314 = vld [vmem:[%s2283 + $0x2c] sm:$0x1]
  %v2315 = vsel %vm2292, %v1710, %v2314
  %2316 = vst [vmem:[%s2283 + $0x2c] sm:$0x1] %v2315
  %v2317 = vld [vmem:[%s2283 + $0x30] sm:$0xf]
  %v2318 = vsel %vm2286, %v1717, %v2317
  %2319 = vst [vmem:[%s2283 + $0x30] sm:$0xf] %v2318
  %2320 = vst [vmem:[%s2283 + $0x34] sm:$0xf] %v1726
  %v2321 = vld [vmem:[%s2283 + $0x38] sm:$0x1]
  %v2322 = vsel %vm2292, %v1727, %v2321
  %2323 = vst [vmem:[%s2283 + $0x38] sm:$0x1] %v2322
  %v2324 = vld [vmem:[%s2283 + $0x3c] sm:$0xf]
  %v2325 = vsel %vm2286, %v1734, %v2324
  %2326 = vst [vmem:[%s2283 + $0x3c] sm:$0xf] %v2325
  %2327 = vst [vmem:[%s2283 + $0x40] sm:$0xf] %v1743
  %v2328 = vld [vmem:[%s2283 + $0x44] sm:$0x1]
  %v2329 = vsel %vm2292, %v1744, %v2328
  %2330 = vst [vmem:[%s2283 + $0x44] sm:$0x1] %v2329
  %v2331 = vld [vmem:[%s2283 + $0x48] sm:$0xf]
  %v2332 = vsel %vm2286, %v1751, %v2331
  %2333 = vst [vmem:[%s2283 + $0x48] sm:$0xf] %v2332
  %2334 = vst [vmem:[%s2283 + $0x4c] sm:$0xf] %v1760
  %v2335 = vld [vmem:[%s2283 + $0x50] sm:$0x1]
  %v2336 = vsel %vm2292, %v1761, %v2335
  %2337 = vst [vmem:[%s2283 + $0x50] sm:$0x1] %v2336
  %v2338 = vld [vmem:[%s2283 + $0x54] sm:$0xf]
  %v2339 = vsel %vm2286, %v1768, %v2338
  %2340 = vst [vmem:[%s2283 + $0x54] sm:$0xf] %v2339
  %2341 = vst [vmem:[%s2283 + $0x58] sm:$0xf] %v1777
  %v2342 = vld [vmem:[%s2283 + $0x5c] sm:$0x1]
  %v2343 = vsel %vm2292, %v1778, %v2342
  %2344 = vst [vmem:[%s2283 + $0x5c] sm:$0x1] %v2343
  %v2345 = vld [vmem:[%s2283 + $0x60] sm:$0xf]
  %v2346 = vsel %vm2286, %v1785, %v2345
  %2347 = vst [vmem:[%s2283 + $0x60] sm:$0xf] %v2346
  %2348 = vst [vmem:[%s2283 + $0x64] sm:$0xf] %v1794
  %v2349 = vld [vmem:[%s2283 + $0x68] sm:$0x1]
  %v2350 = vsel %vm2292, %v1795, %v2349
  %2351 = vst [vmem:[%s2283 + $0x68] sm:$0x1] %v2350
  %v2352 = vld [vmem:[%s2283 + $0x6c] sm:$0xf]
  %v2353 = vsel %vm2286, %v1802, %v2352
  %2354 = vst [vmem:[%s2283 + $0x6c] sm:$0xf] %v2353
  %2355 = vst [vmem:[%s2283 + $0x70] sm:$0xf] %v1811
  %v2356 = vld [vmem:[%s2283 + $0x74] sm:$0x1]
  %v2357 = vsel %vm2292, %v1812, %v2356
  %2358 = vst [vmem:[%s2283 + $0x74] sm:$0x1] %v2357
  %v2359 = vld [vmem:[%s2283 + $0x78] sm:$0xf]
  %v2360 = vsel %vm2286, %v1819, %v2359
  %2361 = vst [vmem:[%s2283 + $0x78] sm:$0xf] %v2360
  %2362 = vst [vmem:[%s2283 + $0x7c] sm:$0xf] %v1828
  %v2363 = vld [vmem:[%s2283 + $0x80] sm:$0x1]
  %v2364 = vsel %vm2292, %v1829, %v2363
  %2365 = vst [vmem:[%s2283 + $0x80] sm:$0x1] %v2364
  %v2366 = vld [vmem:[%s2283 + $0x84] sm:$0xf]
  %v2367 = vsel %vm2286, %v1836, %v2366
  %2368 = vst [vmem:[%s2283 + $0x84] sm:$0xf] %v2367
  %2369 = vst [vmem:[%s2283 + $0x88] sm:$0xf] %v1845
  %v2370 = vld [vmem:[%s2283 + $0x8c] sm:$0x1]
  %v2371 = vsel %vm2292, %v1846, %v2370
  %2372 = vst [vmem:[%s2283 + $0x8c] sm:$0x1] %v2371
  %v2373 = vld [vmem:[%s2283 + $0x90] sm:$0xf]
  %v2374 = vsel %vm2286, %v1853, %v2373
  %2375 = vst [vmem:[%s2283 + $0x90] sm:$0xf] %v2374
  %2376 = vst [vmem:[%s2283 + $0x94] sm:$0xf] %v1862
  %v2377 = vld [vmem:[%s2283 + $0x98] sm:$0x1]
  %v2378 = vsel %vm2292, %v1863, %v2377
  %2379 = vst [vmem:[%s2283 + $0x98] sm:$0x1] %v2378
  %v2380 = vld [vmem:[%s2283 + $0x9c] sm:$0xf]
  %v2381 = vsel %vm2286, %v1870, %v2380
  %2382 = vst [vmem:[%s2283 + $0x9c] sm:$0xf] %v2381
  %2383 = vst [vmem:[%s2283 + $0xa0] sm:$0xf] %v1879
  %v2384 = vld [vmem:[%s2283 + $0xa4] sm:$0x1]
  %v2385 = vsel %vm2292, %v1880, %v2384
  %2386 = vst [vmem:[%s2283 + $0xa4] sm:$0x1] %v2385
  %v2387 = vld [vmem:[%s2283 + $0xa8] sm:$0xf]
  %v2388 = vsel %vm2286, %v1887, %v2387
  %2389 = vst [vmem:[%s2283 + $0xa8] sm:$0xf] %v2388
  %2390 = vst [vmem:[%s2283 + $0xac] sm:$0xf] %v1896
  %v2391 = vld [vmem:[%s2283 + $0xb0] sm:$0x1]
  %v2392 = vsel %vm2292, %v1897, %v2391
  %2393 = vst [vmem:[%s2283 + $0xb0] sm:$0x1] %v2392
  %v2394 = vld [vmem:[%s2283 + $0xb4] sm:$0xf]
  %v2395 = vsel %vm2286, %v1904, %v2394
  %2396 = vst [vmem:[%s2283 + $0xb4] sm:$0xf] %v2395
  %2397 = vst [vmem:[%s2283 + $0xb8] sm:$0xf] %v1913
  %v2398 = vld [vmem:[%s2283 + $0xbc] sm:$0x1]
  %v2399 = vsel %vm2292, %v1914, %v2398
  %2400 = vst [vmem:[%s2283 + $0xbc] sm:$0x1] %v2399
  %v2401 = vld [vmem:[%s2283 + $0xd8] sm:$0xf]
  %v2402 = vsel %vm2286, %v1921, %v2401
  %2403 = vst [vmem:[%s2283 + $0xd8] sm:$0xf] %v2402
  %2404 = vst [vmem:[%s2283 + $0xdc] sm:$0xf] %v1930
  %v2405 = vld [vmem:[%s2283 + $0xe0] sm:$0x1]
  %v2406 = vsel %vm2292, %v1931, %v2405
  %2407 = vst [vmem:[%s2283 + $0xe0] sm:$0x1] %v2406
  %v2408 = vld [vmem:[%s2283 + $0xe4] sm:$0xf]
  %v2409 = vsel %vm2286, %v1938, %v2408
  %2410 = vst [vmem:[%s2283 + $0xe4] sm:$0xf] %v2409
  %2411 = vst [vmem:[%s2283 + $0xe8] sm:$0xf] %v1947
  %v2412 = vld [vmem:[%s2283 + $0xec] sm:$0x1]
  %v2413 = vsel %vm2292, %v1948, %v2412
  %2414 = vst [vmem:[%s2283 + $0xec] sm:$0x1] %v2413
  %v2415 = vld [vmem:[%s2283 + $0xf0] sm:$0xf]
  %v2416 = vsel %vm2286, %v1955, %v2415
  %2417 = vst [vmem:[%s2283 + $0xf0] sm:$0xf] %v2416
  %2418 = vst [vmem:[%s2283 + $0xf4] sm:$0xf] %v1964
  %v2419 = vld [vmem:[%s2283 + $0xf8] sm:$0x1]
  %v2420 = vsel %vm2292, %v1965, %v2419
  %2421 = vst [vmem:[%s2283 + $0xf8] sm:$0x1] %v2420
  %v2422 = vld [vmem:[%s2283 + $0xfc] sm:$0xf]
  %v2423 = vsel %vm2286, %v1972, %v2422
  %2424 = vst [vmem:[%s2283 + $0xfc] sm:$0xf] %v2423
  %2425 = vst [vmem:[%s2283 + $0x100] sm:$0xf] %v1981
  %v2426 = vld [vmem:[%s2283 + $0x104] sm:$0x1]
  %v2427 = vsel %vm2292, %v1982, %v2426
  %2428 = vst [vmem:[%s2283 + $0x104] sm:$0x1] %v2427
  %v2429 = vld [vmem:[%s2283 + $0x108] sm:$0xf]
  %v2430 = vsel %vm2286, %v1989, %v2429
  %2431 = vst [vmem:[%s2283 + $0x108] sm:$0xf] %v2430
  %2432 = vst [vmem:[%s2283 + $0x10c] sm:$0xf] %v1998
  %v2433 = vld [vmem:[%s2283 + $0x110] sm:$0x1]
  %v2434 = vsel %vm2292, %v1999, %v2433
  %2435 = vst [vmem:[%s2283 + $0x110] sm:$0x1] %v2434
  %v2436 = vld [vmem:[%s2283 + $0x114] sm:$0xf]
  %v2437 = vsel %vm2286, %v2006, %v2436
  %2438 = vst [vmem:[%s2283 + $0x114] sm:$0xf] %v2437
  %2439 = vst [vmem:[%s2283 + $0x118] sm:$0xf] %v2015
  %v2440 = vld [vmem:[%s2283 + $0x11c] sm:$0x1]
  %v2441 = vsel %vm2292, %v2016, %v2440
  %2442 = vst [vmem:[%s2283 + $0x11c] sm:$0x1] %v2441
  %v2443 = vld [vmem:[%s2283 + $0x120] sm:$0xf]
  %v2444 = vsel %vm2286, %v2023, %v2443
  %2445 = vst [vmem:[%s2283 + $0x120] sm:$0xf] %v2444
  %2446 = vst [vmem:[%s2283 + $0x124] sm:$0xf] %v2032
  %v2447 = vld [vmem:[%s2283 + $0x128] sm:$0x1]
  %v2448 = vsel %vm2292, %v2033, %v2447
  %2449 = vst [vmem:[%s2283 + $0x128] sm:$0x1] %v2448
  %v2450 = vld [vmem:[%s2283 + $0x12c] sm:$0xf]
  %v2451 = vsel %vm2286, %v2040, %v2450
  %2452 = vst [vmem:[%s2283 + $0x12c] sm:$0xf] %v2451
  %2453 = vst [vmem:[%s2283 + $0x130] sm:$0xf] %v2049
  %v2454 = vld [vmem:[%s2283 + $0x134] sm:$0x1]
  %v2455 = vsel %vm2292, %v2050, %v2454
  %2456 = vst [vmem:[%s2283 + $0x134] sm:$0x1] %v2455
  %v2457 = vld [vmem:[%s2283 + $0x138] sm:$0xf]
  %v2458 = vsel %vm2286, %v2057, %v2457
  %2459 = vst [vmem:[%s2283 + $0x138] sm:$0xf] %v2458
  %2460 = vst [vmem:[%s2283 + $0x13c] sm:$0xf] %v2066
  %v2461 = vld [vmem:[%s2283 + $0x140] sm:$0x1]
  %v2462 = vsel %vm2292, %v2067, %v2461
  %2463 = vst [vmem:[%s2283 + $0x140] sm:$0x1] %v2462
  %v2464 = vld [vmem:[%s2283 + $0x144] sm:$0xf]
  %v2465 = vsel %vm2286, %v2074, %v2464
  %2466 = vst [vmem:[%s2283 + $0x144] sm:$0xf] %v2465
  %2467 = vst [vmem:[%s2283 + $0x148] sm:$0xf] %v2083
  %v2468 = vld [vmem:[%s2283 + $0x14c] sm:$0x1]
  %v2469 = vsel %vm2292, %v2084, %v2468
  %2470 = vst [vmem:[%s2283 + $0x14c] sm:$0x1] %v2469
  %v2471 = vld [vmem:[%s2283 + $0x150] sm:$0xf]
  %v2472 = vsel %vm2286, %v2091, %v2471
  %2473 = vst [vmem:[%s2283 + $0x150] sm:$0xf] %v2472
  %2474 = vst [vmem:[%s2283 + $0x154] sm:$0xf] %v2100
  %v2475 = vld [vmem:[%s2283 + $0x158] sm:$0x1]
  %v2476 = vsel %vm2292, %v2101, %v2475
  %2477 = vst [vmem:[%s2283 + $0x158] sm:$0x1] %v2476
  %v2478 = vld [vmem:[%s2283 + $0x15c] sm:$0xf]
  %v2479 = vsel %vm2286, %v2108, %v2478
  %2480 = vst [vmem:[%s2283 + $0x15c] sm:$0xf] %v2479
  %2481 = vst [vmem:[%s2283 + $0x160] sm:$0xf] %v2117
  %v2482 = vld [vmem:[%s2283 + $0x164] sm:$0x1]
  %v2483 = vsel %vm2292, %v2118, %v2482
  %2484 = vst [vmem:[%s2283 + $0x164] sm:$0x1] %v2483
  %v2485 = vld [vmem:[%s2283 + $0x168] sm:$0xf]
  %v2486 = vsel %vm2286, %v2125, %v2485
  %2487 = vst [vmem:[%s2283 + $0x168] sm:$0xf] %v2486
  %2488 = vst [vmem:[%s2283 + $0x16c] sm:$0xf] %v2134
  %v2489 = vld [vmem:[%s2283 + $0x170] sm:$0x1]
  %v2490 = vsel %vm2292, %v2135, %v2489
  %2491 = vst [vmem:[%s2283 + $0x170] sm:$0x1] %v2490
  %v2492 = vld [vmem:[%s2283 + $0x174] sm:$0xf]
  %v2493 = vsel %vm2286, %v2142, %v2492
  %2494 = vst [vmem:[%s2283 + $0x174] sm:$0xf] %v2493
  %2495 = vst [vmem:[%s2283 + $0x178] sm:$0xf] %v2151
  %v2496 = vld [vmem:[%s2283 + $0x17c] sm:$0x1]
  %v2497 = vsel %vm2292, %v2152, %v2496
  %2498 = vst [vmem:[%s2283 + $0x17c] sm:$0x1] %v2497
  %v2499 = vld [vmem:[%s2283 + $0x180] sm:$0xf]
  %v2500 = vsel %vm2286, %v2159, %v2499
  %2501 = vst [vmem:[%s2283 + $0x180] sm:$0xf] %v2500
  %2502 = vst [vmem:[%s2283 + $0x184] sm:$0xf] %v2168
  %v2503 = vld [vmem:[%s2283 + $0x188] sm:$0x1]
  %v2504 = vsel %vm2292, %v2169, %v2503
  %2505 = vst [vmem:[%s2283 + $0x188] sm:$0x1] %v2504
  %v2506 = vld [vmem:[%s2283 + $0x18c] sm:$0xf]
  %v2507 = vsel %vm2286, %v2176, %v2506
  %2508 = vst [vmem:[%s2283 + $0x18c] sm:$0xf] %v2507
  %2509 = vst [vmem:[%s2283 + $0x190] sm:$0xf] %v2185
  %v2510 = vld [vmem:[%s2283 + $0x194] sm:$0x1]
  %v2511 = vsel %vm2292, %v2186, %v2510
  %2512 = vst [vmem:[%s2283 + $0x194] sm:$0x1] %v2511
  %v2513 = vld [vmem:[#allocation2] sm:$0xf]
  %v2514 = vld [vmem:[#allocation2 + $0x4] sm:$0xf]
  %v2515 = vld [vmem:[#allocation2 + $0xc] sm:$0xf]
  %v2516 = vld [vmem:[#allocation2 + $0x10] sm:$0xf]
  %v2517 = vld [vmem:[#allocation2 + $0x18] sm:$0xf]
  %v2518 = vld [vmem:[#allocation2 + $0x1c] sm:$0xf]
  %v2519 = vld [vmem:[#allocation2 + $0x24] sm:$0xf]
  %v2520 = vld [vmem:[#allocation2 + $0x28] sm:$0xf]
  %v2521 = vld [vmem:[#allocation2 + $0x30] sm:$0xf]
  %v2522 = vld [vmem:[#allocation2 + $0x34] sm:$0xf]
  %v2523 = vld [vmem:[#allocation2 + $0x3c] sm:$0xf]
  %v2524 = vld [vmem:[#allocation2 + $0x40] sm:$0xf]
  %v2525 = vld [vmem:[#allocation2 + $0x48] sm:$0xf]
  %v2526 = vld [vmem:[#allocation2 + $0x4c] sm:$0xf]
  %v2527 = vld [vmem:[#allocation2 + $0x54] sm:$0xf]
  %v2528 = vld [vmem:[#allocation2 + $0x58] sm:$0xf]
  %v2529 = vld [vmem:[#allocation2 + $0x60] sm:$0xf]
  %v2530 = vld [vmem:[#allocation2 + $0x64] sm:$0xf]
  %v2531 = vld [vmem:[#allocation2 + $0x6c] sm:$0xf]
  %v2532 = vld [vmem:[#allocation2 + $0x70] sm:$0xf]
  %v2533 = vld [vmem:[#allocation2 + $0x78] sm:$0xf]
  %v2534 = vld [vmem:[#allocation2 + $0x7c] sm:$0xf]
  %v2535 = vld [vmem:[#allocation2 + $0x84] sm:$0xf]
  %v2536 = vld [vmem:[#allocation2 + $0x88] sm:$0xf]
  %v2537 = vld [vmem:[#allocation2 + $0x90] sm:$0xf]
  %v2538 = vld [vmem:[#allocation2 + $0x94] sm:$0xf]
  %v2539 = vld [vmem:[#allocation2 + $0x9c] sm:$0xf]
  %v2540 = vld [vmem:[#allocation2 + $0xa0] sm:$0xf]
  %v2541 = vld [vmem:[#allocation2 + $0xa8] sm:$0xf]
  %v2542 = vld [vmem:[#allocation2 + $0xac] sm:$0xf]
  %v2543 = vld [vmem:[#allocation2 + $0xb4] sm:$0xf]
  %v2544 = vld [vmem:[#allocation2 + $0xb8] sm:$0xf]
  %v2545 = vld [vmem:[#allocation2 + $0xd8] sm:$0xf]
  %v2546 = vld [vmem:[#allocation2 + $0xdc] sm:$0xf]
  %v2547 = vld [vmem:[#allocation2 + $0xe4] sm:$0xf]
  %v2548 = vld [vmem:[#allocation2 + $0xe8] sm:$0xf]
  %v2549 = vld [vmem:[#allocation2 + $0xf0] sm:$0xf]
  %v2550 = vld [vmem:[#allocation2 + $0xf4] sm:$0xf]
  %v2551 = vld [vmem:[#allocation2 + $0xfc] sm:$0xf]
  %v2552 = vld [vmem:[#allocation2 + $0x100] sm:$0xf]
  %v2553 = vld [vmem:[#allocation2 + $0x108] sm:$0xf]
  %v2554 = vld [vmem:[#allocation2 + $0x10c] sm:$0xf]
  %v2555 = vld [vmem:[#allocation2 + $0x114] sm:$0xf]
  %v2556 = vld [vmem:[#allocation2 + $0x118] sm:$0xf]
  %v2557 = vld [vmem:[#allocation2 + $0x120] sm:$0xf]
  %v2558 = vld [vmem:[#allocation2 + $0x124] sm:$0xf]
  %v2559 = vld [vmem:[#allocation2 + $0x12c] sm:$0xf]
  %v2560 = vld [vmem:[#allocation2 + $0x130] sm:$0xf]
  %v2561 = vld [vmem:[#allocation2 + $0x138] sm:$0xf]
  %v2562 = vld [vmem:[#allocation2 + $0x13c] sm:$0xf]
  %v2563 = vld [vmem:[#allocation2 + $0x144] sm:$0xf]
  %v2564 = vld [vmem:[#allocation2 + $0x148] sm:$0xf]
  %v2565 = vld [vmem:[#allocation2 + $0x150] sm:$0xf]
  %v2566 = vld [vmem:[#allocation2 + $0x154] sm:$0xf]
  %v2567 = vld [vmem:[#allocation2 + $0x15c] sm:$0xf]
  %v2568 = vld [vmem:[#allocation2 + $0x160] sm:$0xf]
  %v2569 = vld [vmem:[#allocation2 + $0x168] sm:$0xf]
  %v2570 = vld [vmem:[#allocation2 + $0x16c] sm:$0xf]
  %v2571 = vld [vmem:[#allocation2 + $0x174] sm:$0xf]
  %v2572 = vld [vmem:[#allocation2 + $0x178] sm:$0xf]
  %v2573 = vld [vmem:[#allocation2 + $0x180] sm:$0xf]
  %v2574 = vld [vmem:[#allocation2 + $0x184] sm:$0xf]
  %v2575 = vld [vmem:[#allocation2 + $0x18c] sm:$0xf]
  %v2576 = vld [vmem:[#allocation2 + $0x190] sm:$0xf]
  %v2577 = vld [vmem:[%s2] sm:$0xf]
  %v2578 = vld [vmem:[%s2 + $0x4] sm:$0xf]
  %v2579 = vld [vmem:[%s2 + $0x8] sm:$0xf]
  %v2580 = vld [vmem:[%s2 + $0xc] sm:$0xf]
  %v2581 = vld [vmem:[%s2 + $0x10] sm:$0xf]
  %v2582 = vld [vmem:[%s2 + $0x14] sm:$0xf]
  %v2583 = vld [vmem:[%s2 + $0x18] sm:$0xf]
  %v2584 = vld [vmem:[%s2 + $0x1c] sm:$0xf]
  %v2585 = vld [vmem:[%s2 + $0x20] sm:$0xf]
  %v2586 = vld [vmem:[%s2 + $0x24] sm:$0xf]
  %v2587 = vld [vmem:[%s2 + $0x28] sm:$0xf]
  %v2588 = vld [vmem:[%s2 + $0x2c] sm:$0xf]
  %v2589 = vld [vmem:[%s2 + $0x30] sm:$0xf]
  %v2590 = vld [vmem:[%s2 + $0x34] sm:$0xf]
  %v2591 = vld [vmem:[%s2 + $0x38] sm:$0xf]
  %v2592 = vld [vmem:[%s2 + $0x3c] sm:$0xf]
  %v2593 = vld [vmem:[#allocation2 + $0x8] sm:$0x1]
  %v2594 = vld [vmem:[#allocation2 + $0x14] sm:$0x1]
  %v2595 = vld [vmem:[#allocation2 + $0x20] sm:$0x1]
  %v2596 = vld [vmem:[#allocation2 + $0x2c] sm:$0x1]
  %v2597 = vld [vmem:[#allocation2 + $0x38] sm:$0x1]
  %v2598 = vld [vmem:[#allocation2 + $0x44] sm:$0x1]
  %v2599 = vld [vmem:[#allocation2 + $0x50] sm:$0x1]
  %v2600 = vld [vmem:[#allocation2 + $0x5c] sm:$0x1]
  %v2601 = vld [vmem:[#allocation2 + $0x68] sm:$0x1]
  %v2602 = vld [vmem:[#allocation2 + $0x74] sm:$0x1]
  %v2603 = vld [vmem:[#allocation2 + $0x80] sm:$0x1]
  %v2604 = vld [vmem:[#allocation2 + $0x8c] sm:$0x1]
  %v2605 = vld [vmem:[#allocation2 + $0x98] sm:$0x1]
  %v2606 = vld [vmem:[#allocation2 + $0xa4] sm:$0x1]
  %v2607 = vld [vmem:[#allocation2 + $0xb0] sm:$0x1]
  %v2608 = vld [vmem:[#allocation2 + $0xbc] sm:$0x1]
  %v2609 = vld [vmem:[#allocation2 + $0xe0] sm:$0x1]
  %v2610 = vld [vmem:[#allocation2 + $0xec] sm:$0x1]
  %v2611 = vld [vmem:[#allocation2 + $0xf8] sm:$0x1]
  %v2612 = vld [vmem:[#allocation2 + $0x104] sm:$0x1]
  %v2613 = vld [vmem:[#allocation2 + $0x110] sm:$0x1]
  %v2614 = vld [vmem:[#allocation2 + $0x11c] sm:$0x1]
  %v2615 = vld [vmem:[#allocation2 + $0x128] sm:$0x1]
  %v2616 = vld [vmem:[#allocation2 + $0x134] sm:$0x1]
  %v2617 = vld [vmem:[#allocation2 + $0x140] sm:$0x1]
  %v2618 = vld [vmem:[#allocation2 + $0x14c] sm:$0x1]
  %v2619 = vld [vmem:[#allocation2 + $0x158] sm:$0x1]
  %v2620 = vld [vmem:[#allocation2 + $0x164] sm:$0x1]
  %v2621 = vld [vmem:[#allocation2 + $0x170] sm:$0x1]
  %v2622 = vld [vmem:[#allocation2 + $0x17c] sm:$0x1]
  %v2623 = vld [vmem:[#allocation2 + $0x188] sm:$0x1]
  %v2624 = vld [vmem:[#allocation2 + $0x194] sm:$0x1]
  %vm2625 = vsmask.f32 3328
  %vm2626 = vsmask.f32 7440
  %vm2627 = vmor %vm2625, %vm2626
  %v2629 = vshrl.u32 %v2513, 16
  %v2631 = vrot.slane %v2629, 4
  %v2632 = vshll.u32 %v2513, 16
  %v2634 = vrot.slane %v2632, 5
  %v2635 = vor.u32 %v2631, %v2634
  %v2636 = vrot.slane %v2635, 4
  %v2638 = vshll.u32 %v2514, 16
  %v2640 = vrot.slane %v2638, 5
  %v2641 = vsel %vm2627, %v2636, %v2640
  %v2642 = vshrl.u32 %v2514, 16
  %v2644 = vrot.slane %v2642, 4
  %v2645 = vor.u32 %v2644, %v2640
  %v2646 = vrot.slane %v2645, 4
  %v2648 = vshll.u32 %v2593, 16
  %v2650 = vrot.slane %v2648, 5
  %v2651 = vsel %vm2627, %v2646, %v2650
  %v2653 = vshrl.u32 %v2515, 16
  %v2655 = vrot.slane %v2653, 4
  %v2656 = vshll.u32 %v2515, 16
  %v2658 = vrot.slane %v2656, 5
  %v2659 = vor.u32 %v2655, %v2658
  %v2660 = vrot.slane %v2659, 4
  %v2662 = vshll.u32 %v2516, 16
  %v2664 = vrot.slane %v2662, 5
  %v2665 = vsel %vm2627, %v2660, %v2664
  %v2666 = vshrl.u32 %v2516, 16
  %v2668 = vrot.slane %v2666, 4
  %v2669 = vor.u32 %v2668, %v2664
  %v2670 = vrot.slane %v2669, 4
  %v2672 = vshll.u32 %v2594, 16
  %v2674 = vrot.slane %v2672, 5
  %v2675 = vsel %vm2627, %v2670, %v2674
  %v2677 = vshrl.u32 %v2517, 16
  %v2679 = vrot.slane %v2677, 4
  %v2680 = vshll.u32 %v2517, 16
  %v2682 = vrot.slane %v2680, 5
  %v2683 = vor.u32 %v2679, %v2682
  %v2684 = vrot.slane %v2683, 4
  %v2686 = vshll.u32 %v2518, 16
  %v2688 = vrot.slane %v2686, 5
  %v2689 = vsel %vm2627, %v2684, %v2688
  %v2690 = vshrl.u32 %v2518, 16
  %v2692 = vrot.slane %v2690, 4
  %v2693 = vor.u32 %v2692, %v2688
  %v2694 = vrot.slane %v2693, 4
  %v2696 = vshll.u32 %v2595, 16
  %v2698 = vrot.slane %v2696, 5
  %v2699 = vsel %vm2627, %v2694, %v2698
  %v2701 = vshrl.u32 %v2519, 16
  %v2703 = vrot.slane %v2701, 4
  %v2704 = vshll.u32 %v2519, 16
  %v2706 = vrot.slane %v2704, 5
  %v2707 = vor.u32 %v2703, %v2706
  %v2708 = vrot.slane %v2707, 4
  %v2710 = vshll.u32 %v2520, 16
  %v2712 = vrot.slane %v2710, 5
  %v2713 = vsel %vm2627, %v2708, %v2712
  %v2714 = vshrl.u32 %v2520, 16
  %v2716 = vrot.slane %v2714, 4
  %v2717 = vor.u32 %v2716, %v2712
  %v2718 = vrot.slane %v2717, 4
  %v2720 = vshll.u32 %v2596, 16
  %v2722 = vrot.slane %v2720, 5
  %v2723 = vsel %vm2627, %v2718, %v2722
  %v2725 = vshrl.u32 %v2521, 16
  %v2727 = vrot.slane %v2725, 4
  %v2728 = vshll.u32 %v2521, 16
  %v2730 = vrot.slane %v2728, 5
  %v2731 = vor.u32 %v2727, %v2730
  %v2732 = vrot.slane %v2731, 4
  %v2734 = vshll.u32 %v2522, 16
  %v2736 = vrot.slane %v2734, 5
  %v2737 = vsel %vm2627, %v2732, %v2736
  %v2738 = vshrl.u32 %v2522, 16
  %v2740 = vrot.slane %v2738, 4
  %v2741 = vor.u32 %v2740, %v2736
  %v2742 = vrot.slane %v2741, 4
  %v2744 = vshll.u32 %v2597, 16
  %v2746 = vrot.slane %v2744, 5
  %v2747 = vsel %vm2627, %v2742, %v2746
  %v2749 = vshrl.u32 %v2523, 16
  %v2751 = vrot.slane %v2749, 4
  %v2752 = vshll.u32 %v2523, 16
  %v2754 = vrot.slane %v2752, 5
  %v2755 = vor.u32 %v2751, %v2754
  %v2756 = vrot.slane %v2755, 4
  %v2758 = vshll.u32 %v2524, 16
  %v2760 = vrot.slane %v2758, 5
  %v2761 = vsel %vm2627, %v2756, %v2760
  %v2762 = vshrl.u32 %v2524, 16
  %v2764 = vrot.slane %v2762, 4
  %v2765 = vor.u32 %v2764, %v2760
  %v2766 = vrot.slane %v2765, 4
  %v2768 = vshll.u32 %v2598, 16
  %v2770 = vrot.slane %v2768, 5
  %v2771 = vsel %vm2627, %v2766, %v2770
  %v2773 = vshrl.u32 %v2525, 16
  %v2775 = vrot.slane %v2773, 4
  %v2776 = vshll.u32 %v2525, 16
  %v2778 = vrot.slane %v2776, 5
  %v2779 = vor.u32 %v2775, %v2778
  %v2780 = vrot.slane %v2779, 4
  %v2782 = vshll.u32 %v2526, 16
  %v2784 = vrot.slane %v2782, 5
  %v2785 = vsel %vm2627, %v2780, %v2784
  %v2786 = vshrl.u32 %v2526, 16
  %v2788 = vrot.slane %v2786, 4
  %v2789 = vor.u32 %v2788, %v2784
  %v2790 = vrot.slane %v2789, 4
  %v2792 = vshll.u32 %v2599, 16
  %v2794 = vrot.slane %v2792, 5
  %v2795 = vsel %vm2627, %v2790, %v2794
  %v2797 = vshrl.u32 %v2527, 16
  %v2799 = vrot.slane %v2797, 4
  %v2800 = vshll.u32 %v2527, 16
  %v2802 = vrot.slane %v2800, 5
  %v2803 = vor.u32 %v2799, %v2802
  %v2804 = vrot.slane %v2803, 4
  %v2806 = vshll.u32 %v2528, 16
  %v2808 = vrot.slane %v2806, 5
  %v2809 = vsel %vm2627, %v2804, %v2808
  %v2810 = vshrl.u32 %v2528, 16
  %v2812 = vrot.slane %v2810, 4
  %v2813 = vor.u32 %v2812, %v2808
  %v2814 = vrot.slane %v2813, 4
  %v2816 = vshll.u32 %v2600, 16
  %v2818 = vrot.slane %v2816, 5
  %v2819 = vsel %vm2627, %v2814, %v2818
  %v2821 = vshrl.u32 %v2529, 16
  %v2823 = vrot.slane %v2821, 4
  %v2824 = vshll.u32 %v2529, 16
  %v2826 = vrot.slane %v2824, 5
  %v2827 = vor.u32 %v2823, %v2826
  %v2828 = vrot.slane %v2827, 4
  %v2830 = vshll.u32 %v2530, 16
  %v2832 = vrot.slane %v2830, 5
  %v2833 = vsel %vm2627, %v2828, %v2832
  %v2834 = vshrl.u32 %v2530, 16
  %v2836 = vrot.slane %v2834, 4
  %v2837 = vor.u32 %v2836, %v2832
  %v2838 = vrot.slane %v2837, 4
  %v2840 = vshll.u32 %v2601, 16
  %v2842 = vrot.slane %v2840, 5
  %v2843 = vsel %vm2627, %v2838, %v2842
  %v2845 = vshrl.u32 %v2531, 16
  %v2847 = vrot.slane %v2845, 4
  %v2848 = vshll.u32 %v2531, 16
  %v2850 = vrot.slane %v2848, 5
  %v2851 = vor.u32 %v2847, %v2850
  %v2852 = vrot.slane %v2851, 4
  %v2854 = vshll.u32 %v2532, 16
  %v2856 = vrot.slane %v2854, 5
  %v2857 = vsel %vm2627, %v2852, %v2856
  %v2858 = vshrl.u32 %v2532, 16
  %v2860 = vrot.slane %v2858, 4
  %v2861 = vor.u32 %v2860, %v2856
  %v2862 = vrot.slane %v2861, 4
  %v2864 = vshll.u32 %v2602, 16
  %v2866 = vrot.slane %v2864, 5
  %v2867 = vsel %vm2627, %v2862, %v2866
  %v2869 = vshrl.u32 %v2533, 16
  %v2871 = vrot.slane %v2869, 4
  %v2872 = vshll.u32 %v2533, 16
  %v2874 = vrot.slane %v2872, 5
  %v2875 = vor.u32 %v2871, %v2874
  %v2876 = vrot.slane %v2875, 4
  %v2878 = vshll.u32 %v2534, 16
  %v2880 = vrot.slane %v2878, 5
  %v2881 = vsel %vm2627, %v2876, %v2880
  %v2882 = vshrl.u32 %v2534, 16
  %v2884 = vrot.slane %v2882, 4
  %v2885 = vor.u32 %v2884, %v2880
  %v2886 = vrot.slane %v2885, 4
  %v2888 = vshll.u32 %v2603, 16
  %v2890 = vrot.slane %v2888, 5
  %v2891 = vsel %vm2627, %v2886, %v2890
  %v2893 = vshrl.u32 %v2535, 16
  %v2895 = vrot.slane %v2893, 4
  %v2896 = vshll.u32 %v2535, 16
  %v2898 = vrot.slane %v2896, 5
  %v2899 = vor.u32 %v2895, %v2898
  %v2900 = vrot.slane %v2899, 4
  %v2902 = vshll.u32 %v2536, 16
  %v2904 = vrot.slane %v2902, 5
  %v2905 = vsel %vm2627, %v2900, %v2904
  %v2906 = vshrl.u32 %v2536, 16
  %v2908 = vrot.slane %v2906, 4
  %v2909 = vor.u32 %v2908, %v2904
  %v2910 = vrot.slane %v2909, 4
  %v2912 = vshll.u32 %v2604, 16
  %v2914 = vrot.slane %v2912, 5
  %v2915 = vsel %vm2627, %v2910, %v2914
  %v2917 = vshrl.u32 %v2537, 16
  %v2919 = vrot.slane %v2917, 4
  %v2920 = vshll.u32 %v2537, 16
  %v2922 = vrot.slane %v2920, 5
  %v2923 = vor.u32 %v2919, %v2922
  %v2924 = vrot.slane %v2923, 4
  %v2926 = vshll.u32 %v2538, 16
  %v2928 = vrot.slane %v2926, 5
  %v2929 = vsel %vm2627, %v2924, %v2928
  %v2930 = vshrl.u32 %v2538, 16
  %v2932 = vrot.slane %v2930, 4
  %v2933 = vor.u32 %v2932, %v2928
  %v2934 = vrot.slane %v2933, 4
  %v2936 = vshll.u32 %v2605, 16
  %v2938 = vrot.slane %v2936, 5
  %v2939 = vsel %vm2627, %v2934, %v2938
  %v2941 = vshrl.u32 %v2539, 16
  %v2943 = vrot.slane %v2941, 4
  %v2944 = vshll.u32 %v2539, 16
  %v2946 = vrot.slane %v2944, 5
  %v2947 = vor.u32 %v2943, %v2946
  %v2948 = vrot.slane %v2947, 4
  %v2950 = vshll.u32 %v2540, 16
  %v2952 = vrot.slane %v2950, 5
  %v2953 = vsel %vm2627, %v2948, %v2952
  %v2954 = vshrl.u32 %v2540, 16
  %v2956 = vrot.slane %v2954, 4
  %v2957 = vor.u32 %v2956, %v2952
  %v2958 = vrot.slane %v2957, 4
  %v2960 = vshll.u32 %v2606, 16
  %v2962 = vrot.slane %v2960, 5
  %v2963 = vsel %vm2627, %v2958, %v2962
  %v2965 = vshrl.u32 %v2541, 16
  %v2967 = vrot.slane %v2965, 4
  %v2968 = vshll.u32 %v2541, 16
  %v2970 = vrot.slane %v2968, 5
  %v2971 = vor.u32 %v2967, %v2970
  %v2972 = vrot.slane %v2971, 4
  %v2974 = vshll.u32 %v2542, 16
  %v2976 = vrot.slane %v2974, 5
  %v2977 = vsel %vm2627, %v2972, %v2976
  %v2978 = vshrl.u32 %v2542, 16
  %v2980 = vrot.slane %v2978, 4
  %v2981 = vor.u32 %v2980, %v2976
  %v2982 = vrot.slane %v2981, 4
  %v2984 = vshll.u32 %v2607, 16
  %v2986 = vrot.slane %v2984, 5
  %v2987 = vsel %vm2627, %v2982, %v2986
  %v2989 = vshrl.u32 %v2543, 16
  %v2991 = vrot.slane %v2989, 4
  %v2992 = vshll.u32 %v2543, 16
  %v2994 = vrot.slane %v2992, 5
  %v2995 = vor.u32 %v2991, %v2994
  %v2996 = vrot.slane %v2995, 4
  %v2998 = vshll.u32 %v2544, 16
  %v3000 = vrot.slane %v2998, 5
  %v3001 = vsel %vm2627, %v2996, %v3000
  %v3002 = vshrl.u32 %v2544, 16
  %v3004 = vrot.slane %v3002, 4
  %v3005 = vor.u32 %v3004, %v3000
  %v3006 = vrot.slane %v3005, 4
  %v3008 = vshll.u32 %v2608, 16
  %v3010 = vrot.slane %v3008, 5
  %v3011 = vsel %vm2627, %v3006, %v3010
  %v3013 = vshrl.u32 %v2545, 16
  %v3015 = vrot.slane %v3013, 4
  %v3016 = vshll.u32 %v2545, 16
  %v3018 = vrot.slane %v3016, 5
  %v3019 = vor.u32 %v3015, %v3018
  %v3020 = vrot.slane %v3019, 4
  %v3022 = vshll.u32 %v2546, 16
  %v3024 = vrot.slane %v3022, 5
  %v3025 = vsel %vm2627, %v3020, %v3024
  %v3026 = vshrl.u32 %v2546, 16
  %v3028 = vrot.slane %v3026, 4
  %v3029 = vor.u32 %v3028, %v3024
  %v3030 = vrot.slane %v3029, 4
  %v3032 = vshll.u32 %v2609, 16
  %v3034 = vrot.slane %v3032, 5
  %v3035 = vsel %vm2627, %v3030, %v3034
  %v3037 = vshrl.u32 %v2547, 16
  %v3039 = vrot.slane %v3037, 4
  %v3040 = vshll.u32 %v2547, 16
  %v3042 = vrot.slane %v3040, 5
  %v3043 = vor.u32 %v3039, %v3042
  %v3044 = vrot.slane %v3043, 4
  %v3046 = vshll.u32 %v2548, 16
  %v3048 = vrot.slane %v3046, 5
  %v3049 = vsel %vm2627, %v3044, %v3048
  %v3050 = vshrl.u32 %v2548, 16
  %v3052 = vrot.slane %v3050, 4
  %v3053 = vor.u32 %v3052, %v3048
  %v3054 = vrot.slane %v3053, 4
  %v3056 = vshll.u32 %v2610, 16
  %v3058 = vrot.slane %v3056, 5
  %v3059 = vsel %vm2627, %v3054, %v3058
  %v3061 = vshrl.u32 %v2549, 16
  %v3063 = vrot.slane %v3061, 4
  %v3064 = vshll.u32 %v2549, 16
  %v3066 = vrot.slane %v3064, 5
  %v3067 = vor.u32 %v3063, %v3066
  %v3068 = vrot.slane %v3067, 4
  %v3070 = vshll.u32 %v2550, 16
  %v3072 = vrot.slane %v3070, 5
  %v3073 = vsel %vm2627, %v3068, %v3072
  %v3074 = vshrl.u32 %v2550, 16
  %v3076 = vrot.slane %v3074, 4
  %v3077 = vor.u32 %v3076, %v3072
  %v3078 = vrot.slane %v3077, 4
  %v3080 = vshll.u32 %v2611, 16
  %v3082 = vrot.slane %v3080, 5
  %v3083 = vsel %vm2627, %v3078, %v3082
  %v3085 = vshrl.u32 %v2551, 16
  %v3087 = vrot.slane %v3085, 4
  %v3088 = vshll.u32 %v2551, 16
  %v3090 = vrot.slane %v3088, 5
  %v3091 = vor.u32 %v3087, %v3090
  %v3092 = vrot.slane %v3091, 4
  %v3094 = vshll.u32 %v2552, 16
  %v3096 = vrot.slane %v3094, 5
  %v3097 = vsel %vm2627, %v3092, %v3096
  %v3098 = vshrl.u32 %v2552, 16
  %v3100 = vrot.slane %v3098, 4
  %v3101 = vor.u32 %v3100, %v3096
  %v3102 = vrot.slane %v3101, 4
  %v3104 = vshll.u32 %v2612, 16
  %v3106 = vrot.slane %v3104, 5
  %v3107 = vsel %vm2627, %v3102, %v3106
  %v3109 = vshrl.u32 %v2553, 16
  %v3111 = vrot.slane %v3109, 4
  %v3112 = vshll.u32 %v2553, 16
  %v3114 = vrot.slane %v3112, 5
  %v3115 = vor.u32 %v3111, %v3114
  %v3116 = vrot.slane %v3115, 4
  %v3118 = vshll.u32 %v2554, 16
  %v3120 = vrot.slane %v3118, 5
  %v3121 = vsel %vm2627, %v3116, %v3120
  %v3122 = vshrl.u32 %v2554, 16
  %v3124 = vrot.slane %v3122, 4
  %v3125 = vor.u32 %v3124, %v3120
  %v3126 = vrot.slane %v3125, 4
  %v3128 = vshll.u32 %v2613, 16
  %v3130 = vrot.slane %v3128, 5
  %v3131 = vsel %vm2627, %v3126, %v3130
  %v3133 = vshrl.u32 %v2555, 16
  %v3135 = vrot.slane %v3133, 4
  %v3136 = vshll.u32 %v2555, 16
  %v3138 = vrot.slane %v3136, 5
  %v3139 = vor.u32 %v3135, %v3138
  %v3140 = vrot.slane %v3139, 4
  %v3142 = vshll.u32 %v2556, 16
  %v3144 = vrot.slane %v3142, 5
  %v3145 = vsel %vm2627, %v3140, %v3144
  %v3146 = vshrl.u32 %v2556, 16
  %v3148 = vrot.slane %v3146, 4
  %v3149 = vor.u32 %v3148, %v3144
  %v3150 = vrot.slane %v3149, 4
  %v3152 = vshll.u32 %v2614, 16
  %v3154 = vrot.slane %v3152, 5
  %v3155 = vsel %vm2627, %v3150, %v3154
  %v3157 = vshrl.u32 %v2557, 16
  %v3159 = vrot.slane %v3157, 4
  %v3160 = vshll.u32 %v2557, 16
  %v3162 = vrot.slane %v3160, 5
  %v3163 = vor.u32 %v3159, %v3162
  %v3164 = vrot.slane %v3163, 4
  %v3166 = vshll.u32 %v2558, 16
  %v3168 = vrot.slane %v3166, 5
  %v3169 = vsel %vm2627, %v3164, %v3168
  %v3170 = vshrl.u32 %v2558, 16
  %v3172 = vrot.slane %v3170, 4
  %v3173 = vor.u32 %v3172, %v3168
  %v3174 = vrot.slane %v3173, 4
  %v3176 = vshll.u32 %v2615, 16
  %v3178 = vrot.slane %v3176, 5
  %v3179 = vsel %vm2627, %v3174, %v3178
  %v3181 = vshrl.u32 %v2559, 16
  %v3183 = vrot.slane %v3181, 4
  %v3184 = vshll.u32 %v2559, 16
  %v3186 = vrot.slane %v3184, 5
  %v3187 = vor.u32 %v3183, %v3186
  %v3188 = vrot.slane %v3187, 4
  %v3190 = vshll.u32 %v2560, 16
  %v3192 = vrot.slane %v3190, 5
  %v3193 = vsel %vm2627, %v3188, %v3192
  %v3194 = vshrl.u32 %v2560, 16
  %v3196 = vrot.slane %v3194, 4
  %v3197 = vor.u32 %v3196, %v3192
  %v3198 = vrot.slane %v3197, 4
  %v3200 = vshll.u32 %v2616, 16
  %v3202 = vrot.slane %v3200, 5
  %v3203 = vsel %vm2627, %v3198, %v3202
  %v3205 = vshrl.u32 %v2561, 16
  %v3207 = vrot.slane %v3205, 4
  %v3208 = vshll.u32 %v2561, 16
  %v3210 = vrot.slane %v3208, 5
  %v3211 = vor.u32 %v3207, %v3210
  %v3212 = vrot.slane %v3211, 4
  %v3214 = vshll.u32 %v2562, 16
  %v3216 = vrot.slane %v3214, 5
  %v3217 = vsel %vm2627, %v3212, %v3216
  %v3218 = vshrl.u32 %v2562, 16
  %v3220 = vrot.slane %v3218, 4
  %v3221 = vor.u32 %v3220, %v3216
  %v3222 = vrot.slane %v3221, 4
  %v3224 = vshll.u32 %v2617, 16
  %v3226 = vrot.slane %v3224, 5
  %v3227 = vsel %vm2627, %v3222, %v3226
  %v3229 = vshrl.u32 %v2563, 16
  %v3231 = vrot.slane %v3229, 4
  %v3232 = vshll.u32 %v2563, 16
  %v3234 = vrot.slane %v3232, 5
  %v3235 = vor.u32 %v3231, %v3234
  %v3236 = vrot.slane %v3235, 4
  %v3238 = vshll.u32 %v2564, 16
  %v3240 = vrot.slane %v3238, 5
  %v3241 = vsel %vm2627, %v3236, %v3240
  %v3242 = vshrl.u32 %v2564, 16
  %v3244 = vrot.slane %v3242, 4
  %v3245 = vor.u32 %v3244, %v3240
  %v3246 = vrot.slane %v3245, 4
  %v3248 = vshll.u32 %v2618, 16
  %v3250 = vrot.slane %v3248, 5
  %v3251 = vsel %vm2627, %v3246, %v3250
  %v3253 = vshrl.u32 %v2565, 16
  %v3255 = vrot.slane %v3253, 4
  %v3256 = vshll.u32 %v2565, 16
  %v3258 = vrot.slane %v3256, 5
  %v3259 = vor.u32 %v3255, %v3258
  %v3260 = vrot.slane %v3259, 4
  %v3262 = vshll.u32 %v2566, 16
  %v3264 = vrot.slane %v3262, 5
  %v3265 = vsel %vm2627, %v3260, %v3264
  %v3266 = vshrl.u32 %v2566, 16
  %v3268 = vrot.slane %v3266, 4
  %v3269 = vor.u32 %v3268, %v3264
  %v3270 = vrot.slane %v3269, 4
  %v3272 = vshll.u32 %v2619, 16
  %v3274 = vrot.slane %v3272, 5
  %v3275 = vsel %vm2627, %v3270, %v3274
  %v3277 = vshrl.u32 %v2567, 16
  %v3279 = vrot.slane %v3277, 4
  %v3280 = vshll.u32 %v2567, 16
  %v3282 = vrot.slane %v3280, 5
  %v3283 = vor.u32 %v3279, %v3282
  %v3284 = vrot.slane %v3283, 4
  %v3286 = vshll.u32 %v2568, 16
  %v3288 = vrot.slane %v3286, 5
  %v3289 = vsel %vm2627, %v3284, %v3288
  %v3290 = vshrl.u32 %v2568, 16
  %v3292 = vrot.slane %v3290, 4
  %v3293 = vor.u32 %v3292, %v3288
  %v3294 = vrot.slane %v3293, 4
  %v3296 = vshll.u32 %v2620, 16
  %v3298 = vrot.slane %v3296, 5
  %v3299 = vsel %vm2627, %v3294, %v3298
  %v3301 = vshrl.u32 %v2569, 16
  %v3303 = vrot.slane %v3301, 4
  %v3304 = vshll.u32 %v2569, 16
  %v3306 = vrot.slane %v3304, 5
  %v3307 = vor.u32 %v3303, %v3306
  %v3308 = vrot.slane %v3307, 4
  %v3310 = vshll.u32 %v2570, 16
  %v3312 = vrot.slane %v3310, 5
  %v3313 = vsel %vm2627, %v3308, %v3312
  %v3314 = vshrl.u32 %v2570, 16
  %v3316 = vrot.slane %v3314, 4
  %v3317 = vor.u32 %v3316, %v3312
  %v3318 = vrot.slane %v3317, 4
  %v3320 = vshll.u32 %v2621, 16
  %v3322 = vrot.slane %v3320, 5
  %v3323 = vsel %vm2627, %v3318, %v3322
  %v3325 = vshrl.u32 %v2571, 16
  %v3327 = vrot.slane %v3325, 4
  %v3328 = vshll.u32 %v2571, 16
  %v3330 = vrot.slane %v3328, 5
  %v3331 = vor.u32 %v3327, %v3330
  %v3332 = vrot.slane %v3331, 4
  %v3334 = vshll.u32 %v2572, 16
  %v3336 = vrot.slane %v3334, 5
  %v3337 = vsel %vm2627, %v3332, %v3336
  %v3338 = vshrl.u32 %v2572, 16
  %v3340 = vrot.slane %v3338, 4
  %v3341 = vor.u32 %v3340, %v3336
  %v3342 = vrot.slane %v3341, 4
  %v3344 = vshll.u32 %v2622, 16
  %v3346 = vrot.slane %v3344, 5
  %v3347 = vsel %vm2627, %v3342, %v3346
  %v3349 = vshrl.u32 %v2573, 16
  %v3351 = vrot.slane %v3349, 4
  %v3352 = vshll.u32 %v2573, 16
  %v3354 = vrot.slane %v3352, 5
  %v3355 = vor.u32 %v3351, %v3354
  %v3356 = vrot.slane %v3355, 4
  %v3358 = vshll.u32 %v2574, 16
  %v3360 = vrot.slane %v3358, 5
  %v3361 = vsel %vm2627, %v3356, %v3360
  %v3362 = vshrl.u32 %v2574, 16
  %v3364 = vrot.slane %v3362, 4
  %v3365 = vor.u32 %v3364, %v3360
  %v3366 = vrot.slane %v3365, 4
  %v3368 = vshll.u32 %v2623, 16
  %v3370 = vrot.slane %v3368, 5
  %v3371 = vsel %vm2627, %v3366, %v3370
  %v3373 = vshrl.u32 %v2575, 16
  %v3375 = vrot.slane %v3373, 4
  %v3376 = vshll.u32 %v2575, 16
  %v3378 = vrot.slane %v3376, 5
  %v3379 = vor.u32 %v3375, %v3378
  %v3380 = vrot.slane %v3379, 4
  %v3382 = vshll.u32 %v2576, 16
  %v3384 = vrot.slane %v3382, 5
  %v3385 = vsel %vm2627, %v3380, %v3384
  %v3386 = vshrl.u32 %v2576, 16
  %v3388 = vrot.slane %v3386, 4
  %v3389 = vor.u32 %v3388, %v3384
  %v3390 = vrot.slane %v3389, 4
  %v3392 = vshll.u32 %v2624, 16
  %v3394 = vrot.slane %v3392, 5
  %v3395 = vsel %vm2627, %v3390, %v3394
  %v3396 = vld [vmem:[%s2 + $0x40] sm:$0xf]
  %v3397 = vld [vmem:[%s2 + $0x44] sm:$0xf]
  %v3398 = vld [vmem:[%s2 + $0x48] sm:$0xf]
  %v3399 = vld [vmem:[%s2 + $0x4c] sm:$0xf]
  %v3400 = vld [vmem:[%s2 + $0x50] sm:$0xf]
  %v3401 = vld [vmem:[%s2 + $0x54] sm:$0xf]
  %v3402 = vld [vmem:[%s2 + $0x58] sm:$0xf]
  %v3403 = vld [vmem:[%s2 + $0x5c] sm:$0xf]
  %v3404 = vld [vmem:[%s2 + $0x60] sm:$0xf]
  %v3405 = vld [vmem:[%s2 + $0x64] sm:$0xf]
  %v3406 = vld [vmem:[%s2 + $0x68] sm:$0xf]
  %v3407 = vld [vmem:[%s2 + $0x6c] sm:$0xf]
  %v3408 = vld [vmem:[%s2 + $0x70] sm:$0xf]
  %v3409 = vld [vmem:[%s2 + $0x74] sm:$0xf]
  %v3410 = vld [vmem:[%s2 + $0x78] sm:$0xf]
  %v3411 = vld [vmem:[%s2 + $0x7c] sm:$0xf]
  %v3412 = vunpack.c.l.b16 %v2641
  %v3413 = vunpack.c.l.b16 %v2651
  %v3414 = vunpack.c.l.b16 %v2665
  %v3415 = vunpack.c.l.b16 %v2675
  %v3416 = vunpack.c.l.b16 %v2689
  %v3417 = vunpack.c.l.b16 %v2699
  %v3418 = vunpack.c.l.b16 %v2713
  %v3419 = vunpack.c.l.b16 %v2723
  %v3420 = vunpack.c.l.b16 %v2737
  %v3421 = vunpack.c.l.b16 %v2747
  %v3422 = vunpack.c.l.b16 %v2761
  %v3423 = vunpack.c.l.b16 %v2771
  %v3424 = vunpack.c.l.b16 %v2785
  %v3425 = vunpack.c.l.b16 %v2795
  %v3426 = vunpack.c.l.b16 %v2809
  %v3427 = vunpack.c.l.b16 %v2819
  %v3428 = vunpack.c.l.b16 %v2833
  %v3429 = vunpack.c.l.b16 %v2843
  %v3430 = vunpack.c.l.b16 %v2857
  %v3431 = vunpack.c.l.b16 %v2867
  %v3432 = vunpack.c.l.b16 %v2881
  %v3433 = vunpack.c.l.b16 %v2891
  %v3434 = vunpack.c.l.b16 %v2905
  %v3435 = vunpack.c.l.b16 %v2915
  %v3436 = vunpack.c.l.b16 %v2929
  %v3437 = vunpack.c.l.b16 %v2939
  %v3438 = vunpack.c.l.b16 %v2953
  %v3439 = vunpack.c.l.b16 %v2963
  %v3440 = vunpack.c.l.b16 %v2977
  %v3441 = vunpack.c.l.b16 %v2987
  %v3442 = vunpack.c.l.b16 %v3001
  %v3443 = vunpack.c.l.b16 %v3011
  %v3444 = vunpack.c.l.b16 %v3025
  %v3445 = vunpack.c.l.b16 %v3035
  %v3446 = vunpack.c.l.b16 %v3049
  %v3447 = vunpack.c.l.b16 %v3059
  %v3448 = vunpack.c.l.b16 %v3073
  %v3449 = vunpack.c.l.b16 %v3083
  %v3450 = vunpack.c.l.b16 %v3097
  %v3451 = vunpack.c.l.b16 %v3107
  %v3452 = vunpack.c.l.b16 %v3121
  %v3453 = vunpack.c.l.b16 %v3131
  %v3454 = vunpack.c.l.b16 %v3145
  %v3455 = vunpack.c.l.b16 %v3155
  %v3456 = vunpack.c.l.b16 %v3169
  %v3457 = vunpack.c.l.b16 %v3179
  %v3458 = vunpack.c.l.b16 %v3193
  %v3459 = vunpack.c.l.b16 %v3203
  %v3460 = vunpack.c.l.b16 %v3217
  %v3461 = vunpack.c.l.b16 %v3227
  %v3462 = vunpack.c.l.b16 %v3241
  %v3463 = vunpack.c.l.b16 %v3251
  %v3464 = vunpack.c.l.b16 %v3265
  %v3465 = vunpack.c.l.b16 %v3275
  %v3466 = vunpack.c.l.b16 %v3289
  %v3467 = vunpack.c.l.b16 %v3299
  %v3468 = vunpack.c.l.b16 %v3313
  %v3469 = vunpack.c.l.b16 %v3323
  %v3470 = vunpack.c.l.b16 %v3337
  %v3471 = vunpack.c.l.b16 %v3347
  %v3472 = vunpack.c.l.b16 %v3361
  %v3473 = vunpack.c.l.b16 %v3371
  %v3474 = vunpack.c.l.b16 %v3385
  %v3475 = vunpack.c.l.b16 %v3395
  %v3476 = vpack.c.b16 %v3413, %v3412
  %v3477 = vpack.c.b16 %v3415, %v3414
  %v3478 = vpack.c.b16 %v3417, %v3416
  %v3479 = vpack.c.b16 %v3419, %v3418
  %v3480 = vpack.c.b16 %v3421, %v3420
  %v3481 = vpack.c.b16 %v3423, %v3422
  %v3482 = vpack.c.b16 %v3425, %v3424
  %v3483 = vpack.c.b16 %v3427, %v3426
  %v3484 = vpack.c.b16 %v3429, %v3428
  %v3485 = vpack.c.b16 %v3431, %v3430
  %v3486 = vpack.c.b16 %v3433, %v3432
  %v3487 = vpack.c.b16 %v3435, %v3434
  %v3488 = vpack.c.b16 %v3437, %v3436
  %v3489 = vpack.c.b16 %v3439, %v3438
  %v3490 = vpack.c.b16 %v3441, %v3440
  %v3491 = vpack.c.b16 %v3443, %v3442
  %v3492 = vpack.c.b16 %v3445, %v3444
  %v3493 = vpack.c.b16 %v3447, %v3446
  %v3494 = vpack.c.b16 %v3449, %v3448
  %v3495 = vpack.c.b16 %v3451, %v3450
  %v3496 = vpack.c.b16 %v3453, %v3452
  %v3497 = vpack.c.b16 %v3455, %v3454
  %v3498 = vpack.c.b16 %v3457, %v3456
  %v3499 = vpack.c.b16 %v3459, %v3458
  %v3500 = vpack.c.b16 %v3461, %v3460
  %v3501 = vpack.c.b16 %v3463, %v3462
  %v3502 = vpack.c.b16 %v3465, %v3464
  %v3503 = vpack.c.b16 %v3467, %v3466
  %v3504 = vpack.c.b16 %v3469, %v3468
  %v3505 = vpack.c.b16 %v3471, %v3470
  %v3506 = vpack.c.b16 %v3473, %v3472
  %v3507 = vpack.c.b16 %v3475, %v3474
  %v3556 = vunpack.c.l.b16 %v3396
  %v3557 = vunpack.c.l.b16 %v3397
  %v3558 = vunpack.c.l.b16 %v3398
  %v3559 = vunpack.c.l.b16 %v3399
  %v3560 = vunpack.c.l.b16 %v3400
  %v3561 = vunpack.c.l.b16 %v3401
  %v3562 = vunpack.c.l.b16 %v3402
  %v3563 = vunpack.c.l.b16 %v3403
  %v3564 = vunpack.c.l.b16 %v3404
  %v3565 = vunpack.c.l.b16 %v3405
  %v3566 = vunpack.c.l.b16 %v3406
  %v3567 = vunpack.c.l.b16 %v3407
  %v3568 = vunpack.c.l.b16 %v3408
  %v3569 = vunpack.c.l.b16 %v3409
  %v3570 = vunpack.c.l.b16 %v3410
  %v3571 = vunpack.c.l.b16 %v3411
  %v3572 = vpack.c.b16 %v3557, %v3556
  %v3573 = vpack.c.b16 %v3559, %v3558
  %v3574 = vpack.c.b16 %v3561, %v3560
  %v3575 = vpack.c.b16 %v3563, %v3562
  %v3576 = vpack.c.b16 %v3565, %v3564
  %v3577 = vpack.c.b16 %v3567, %v3566
  %v3578 = vpack.c.b16 %v3569, %v3568
  %v3579 = vpack.c.b16 %v3571, %v3570
  %3588 = vmatprep.subr.bf16.mxu0 0
  %3589 = vmatpush1.bf16.msra.mxu0 %v3572
  %3590 = vmatprep.subr.bf16.mxu0 0
  %3591 = vmatpush1.bf16.msra.mxu0 %v3573
  %3592 = vmatprep.subr.bf16.mxu0 0
  %3593 = vmatpush1.bf16.msra.mxu0 %v3574
  %3594 = vmatprep.subr.bf16.mxu0 0
  %3595 = vmatpush1.bf16.msra.mxu0 %v3575
  %3596 = vmatprep.subr.bf16.mxu0 0
  %3597 = vmatpush1.bf16.msra.mxu0 %v3576
  %3598 = vmatprep.subr.bf16.mxu0 0
  %3599 = vmatpush1.bf16.msra.mxu0 %v3577
  %3600 = vmatprep.subr.bf16.mxu0 0
  %3601 = vmatpush1.bf16.msra.mxu0 %v3578
  %3602 = vmatprep.subr.bf16.mxu0 0
  %3603 = vmatpush1.bf16.msra.mxu0 %v3579
  %3604 = vmatprep.subr.bf16.mxu0 0
  %3605 = vmatpush1.bf16.msra.mxu0 0
  %3606 = vmatprep.subr.bf16.mxu0 0
  %3607 = vmatpush1.bf16.msra.mxu0 0
  %3608 = vmatprep.subr.bf16.mxu0 0
  %3609 = vmatpush1.bf16.msra.mxu0 0
  %3610 = vmatprep.subr.bf16.mxu0 0
  %3611 = vmatpush1.bf16.msra.mxu0 0
  %3612 = vmatprep.subr.bf16.mxu0 0
  %3613 = vmatpush1.bf16.msra.mxu0 0
  %3614 = vmatprep.subr.bf16.mxu0 0
  %3615 = vmatpush1.bf16.msra.mxu0 0
  %3616 = vmatprep.subr.bf16.mxu0 0
  %3617 = vmatpush1.bf16.msra.mxu0 0
  %3618 = vmatprep.subr.bf16.mxu0 0
  %3619 = vmatpush1.bf16.msra.mxu0 0
  %3620 = vmatprep.mubr.bf16.mxu0 0
  %3621 = vmatmul.mubr.bf16.gmra.mrb[0].mxu0 %v3476
  %v3622 = vpop.f32.mrb[0].mxu0
  %v3623 = vadd.f32 0.0, %v3622
  %v3624 = vpop.f32.mrb[0].mxu0
  %v3625 = vpop.f32.mrb[0].mxu0
  %v3626 = vadd.f32 0.0, %v3625
  %v3627 = vpop.f32.mrb[0].mxu0
  %3628 = vmatprep.mubr.bf16.mxu0 0
  %3629 = vmatmul.mubr.bf16.gmra.mrb[0].mxu0 %v3477
  %v3630 = vpop.f32.mrb[0].mxu0
  %v3631 = vadd.f32 0.0, %v3630
  %v3632 = vpop.f32.mrb[0].mxu0
  %v3633 = vpop.f32.mrb[0].mxu0
  %v3634 = vadd.f32 0.0, %v3633
  %v3635 = vpop.f32.mrb[0].mxu0
  %3636 = vmatprep.mubr.bf16.mxu0 0
  %3637 = vmatmul.mubr.bf16.gmra.mrb[0].mxu0 %v3478
  %v3638 = vpop.f32.mrb[0].mxu0
  %v3639 = vadd.f32 0.0, %v3638
  %v3640 = vpop.f32.mrb[0].mxu0
  %v3641 = vpop.f32.mrb[0].mxu0
  %v3642 = vadd.f32 0.0, %v3641
  %v3643 = vpop.f32.mrb[0].mxu0
  %3644 = vmatprep.mubr.bf16.mxu0 0
  %3645 = vmatmul.mubr.bf16.gmra.mrb[0].mxu0 %v3479
  %v3646 = vpop.f32.mrb[0].mxu0
  %v3647 = vadd.f32 0.0, %v3646
  %v3648 = vpop.f32.mrb[0].mxu0
  %v3649 = vpop.f32.mrb[0].mxu0
  %v3650 = vadd.f32 0.0, %v3649
  %v3651 = vpop.f32.mrb[0].mxu0
  %3652 = vmatprep.mubr.bf16.mxu0 0
  %3653 = vmatmul.mubr.bf16.gmra.mrb[0].mxu0 %v3480
  %v3654 = vpop.f32.mrb[0].mxu0
  %v3655 = vadd.f32 0.0, %v3654
  %v3656 = vpop.f32.mrb[0].mxu0
  %v3657 = vpop.f32.mrb[0].mxu0
  %v3658 = vadd.f32 0.0, %v3657
  %v3659 = vpop.f32.mrb[0].mxu0
  %3660 = vmatprep.mubr.bf16.mxu0 0
  %3661 = vmatmul.mubr.bf16.gmra.mrb[0].mxu0 %v3481
  %v3662 = vpop.f32.mrb[0].mxu0
  %v3663 = vadd.f32 0.0, %v3662
  %v3664 = vpop.f32.mrb[0].mxu0
  %v3665 = vpop.f32.mrb[0].mxu0
  %v3666 = vadd.f32 0.0, %v3665
  %v3667 = vpop.f32.mrb[0].mxu0
  %3668 = vmatprep.mubr.bf16.mxu0 0
  %3669 = vmatmul.mubr.bf16.gmra.mrb[0].mxu0 %v3482
  %v3670 = vpop.f32.mrb[0].mxu0
  %v3671 = vadd.f32 0.0, %v3670
  %v3672 = vpop.f32.mrb[0].mxu0
  %v3673 = vpop.f32.mrb[0].mxu0
  %v3674 = vadd.f32 0.0, %v3673
  %v3675 = vpop.f32.mrb[0].mxu0
  %3676 = vmatprep.mubr.bf16.mxu0 0
  %3677 = vmatmul.mubr.bf16.gmra.mrb[0].mxu0 %v3483
  %v3678 = vpop.f32.mrb[0].mxu0
  %v3679 = vadd.f32 0.0, %v3678
  %v3680 = vpop.f32.mrb[0].mxu0
  %v3681 = vpop.f32.mrb[0].mxu0
  %v3682 = vadd.f32 0.0, %v3681
  %v3683 = vpop.f32.mrb[0].mxu0
  %3684 = vmatprep.mubr.bf16.mxu0 0
  %3685 = vmatmul.mubr.bf16.gmra.mrb[0].mxu0 %v3484
  %v3686 = vpop.f32.mrb[0].mxu0
  %v3687 = vadd.f32 0.0, %v3686
  %v3688 = vpop.f32.mrb[0].mxu0
  %v3689 = vpop.f32.mrb[0].mxu0
  %v3690 = vadd.f32 0.0, %v3689
  %v3691 = vpop.f32.mrb[0].mxu0
  %3692 = vmatprep.mubr.bf16.mxu0 0
  %3693 = vmatmul.mubr.bf16.gmra.mrb[0].mxu0 %v3485
  %v3694 = vpop.f32.mrb[0].mxu0
  %v3695 = vadd.f32 0.0, %v3694
  %v3696 = vpop.f32.mrb[0].mxu0
  %v3697 = vpop.f32.mrb[0].mxu0
  %v3698 = vadd.f32 0.0, %v3697
  %v3699 = vpop.f32.mrb[0].mxu0
  %3700 = vmatprep.mubr.bf16.mxu0 0
  %3701 = vmatmul.mubr.bf16.gmra.mrb[0].mxu0 %v3486
  %v3702 = vpop.f32.mrb[0].mxu0
  %v3703 = vadd.f32 0.0, %v3702
  %v3704 = vpop.f32.mrb[0].mxu0
  %v3705 = vpop.f32.mrb[0].mxu0
  %v3706 = vadd.f32 0.0, %v3705
  %v3707 = vpop.f32.mrb[0].mxu0
  %3708 = vmatprep.mubr.bf16.mxu0 0
  %3709 = vmatmul.mubr.bf16.gmra.mrb[0].mxu0 %v3487
  %v3710 = vpop.f32.mrb[0].mxu0
  %v3711 = vadd.f32 0.0, %v3710
  %v3712 = vpop.f32.mrb[0].mxu0
  %v3713 = vpop.f32.mrb[0].mxu0
  %v3714 = vadd.f32 0.0, %v3713
  %v3715 = vpop.f32.mrb[0].mxu0
  %3716 = vmatprep.mubr.bf16.mxu0 0
  %3717 = vmatmul.mubr.bf16.gmra.mrb[0].mxu0 %v3488
  %v3718 = vpop.f32.mrb[0].mxu0
  %v3719 = vadd.f32 0.0, %v3718
  %v3720 = vpop.f32.mrb[0].mxu0
  %v3721 = vpop.f32.mrb[0].mxu0
  %v3722 = vadd.f32 0.0, %v3721
  %v3723 = vpop.f32.mrb[0].mxu0
  %3724 = vmatprep.mubr.bf16.mxu0 0
  %3725 = vmatmul.mubr.bf16.gmra.mrb[0].mxu0 %v3489
  %v3726 = vpop.f32.mrb[0].mxu0
  %v3727 = vadd.f32 0.0, %v3726
  %v3728 = vpop.f32.mrb[0].mxu0
  %v3729 = vpop.f32.mrb[0].mxu0
  %v3730 = vadd.f32 0.0, %v3729
  %v3731 = vpop.f32.mrb[0].mxu0
  %3732 = vmatprep.mubr.bf16.mxu0 0
  %3733 = vmatmul.mubr.bf16.gmra.mrb[0].mxu0 %v3490
  %v3734 = vpop.f32.mrb[0].mxu0
  %v3735 = vadd.f32 0.0, %v3734
  %v3736 = vpop.f32.mrb[0].mxu0
  %v3737 = vpop.f32.mrb[0].mxu0
  %v3738 = vadd.f32 0.0, %v3737
  %v3739 = vpop.f32.mrb[0].mxu0
  %3740 = vmatprep.mubr.bf16.mxu0 0
  %3741 = vmatmul.mubr.bf16.gmra.mrb[0].mxu0 %v3491
  %v3742 = vpop.f32.mrb[0].mxu0
  %v3743 = vadd.f32 0.0, %v3742
  %v3744 = vpop.f32.mrb[0].mxu0
  %v3745 = vpop.f32.mrb[0].mxu0
  %v3746 = vadd.f32 0.0, %v3745
  %v3747 = vpop.f32.mrb[0].mxu0
  %3748 = vmatprep.mubr.bf16.mxu0 0
  %3749 = vmatmul.mubr.bf16.gmra.mrb[0].mxu0 %v3492
  %v3750 = vpop.f32.mrb[0].mxu0
  %v3751 = vadd.f32 0.0, %v3750
  %v3752 = vpop.f32.mrb[0].mxu0
  %v3753 = vpop.f32.mrb[0].mxu0
  %v3754 = vadd.f32 0.0, %v3753
  %v3755 = vpop.f32.mrb[0].mxu0
  %3756 = vmatprep.mubr.bf16.mxu0 0
  %3757 = vmatmul.mubr.bf16.gmra.mrb[0].mxu0 %v3493
  %v3758 = vpop.f32.mrb[0].mxu0
  %v3759 = vadd.f32 0.0, %v3758
  %v3760 = vpop.f32.mrb[0].mxu0
  %v3761 = vpop.f32.mrb[0].mxu0
  %v3762 = vadd.f32 0.0, %v3761
  %v3763 = vpop.f32.mrb[0].mxu0
  %3764 = vmatprep.mubr.bf16.mxu0 0
  %3765 = vmatmul.mubr.bf16.gmra.mrb[0].mxu0 %v3494
  %v3766 = vpop.f32.mrb[0].mxu0
  %v3767 = vadd.f32 0.0, %v3766
  %v3768 = vpop.f32.mrb[0].mxu0
  %v3769 = vpop.f32.mrb[0].mxu0
  %v3770 = vadd.f32 0.0, %v3769
  %v3771 = vpop.f32.mrb[0].mxu0
  %3772 = vmatprep.mubr.bf16.mxu0 0
  %3773 = vmatmul.mubr.bf16.gmra.mrb[0].mxu0 %v3495
  %v3774 = vpop.f32.mrb[0].mxu0
  %v3775 = vadd.f32 0.0, %v3774
  %v3776 = vpop.f32.mrb[0].mxu0
  %v3777 = vpop.f32.mrb[0].mxu0
  %v3778 = vadd.f32 0.0, %v3777
  %v3779 = vpop.f32.mrb[0].mxu0
  %3780 = vmatprep.mubr.bf16.mxu0 0
  %3781 = vmatmul.mubr.bf16.gmra.mrb[0].mxu0 %v3496
  %v3782 = vpop.f32.mrb[0].mxu0
  %v3783 = vadd.f32 0.0, %v3782
  %v3784 = vpop.f32.mrb[0].mxu0
  %v3785 = vpop.f32.mrb[0].mxu0
  %v3786 = vadd.f32 0.0, %v3785
  %v3787 = vpop.f32.mrb[0].mxu0
  %3788 = vmatprep.mubr.bf16.mxu0 0
  %3789 = vmatmul.mubr.bf16.gmra.mrb[0].mxu0 %v3497
  %v3790 = vpop.f32.mrb[0].mxu0
  %v3791 = vadd.f32 0.0, %v3790
  %v3792 = vpop.f32.mrb[0].mxu0
  %v3793 = vpop.f32.mrb[0].mxu0
  %v3794 = vadd.f32 0.0, %v3793
  %v3795 = vpop.f32.mrb[0].mxu0
  %3796 = vmatprep.mubr.bf16.mxu0 0
  %3797 = vmatmul.mubr.bf16.gmra.mrb[0].mxu0 %v3498
  %v3798 = vpop.f32.mrb[0].mxu0
  %v3799 = vadd.f32 0.0, %v3798
  %v3800 = vpop.f32.mrb[0].mxu0
  %v3801 = vpop.f32.mrb[0].mxu0
  %v3802 = vadd.f32 0.0, %v3801
  %v3803 = vpop.f32.mrb[0].mxu0
  %3804 = vmatprep.mubr.bf16.mxu0 0
  %3805 = vmatmul.mubr.bf16.gmra.mrb[0].mxu0 %v3499
  %v3806 = vpop.f32.mrb[0].mxu0
  %v3807 = vadd.f32 0.0, %v3806
  %v3808 = vpop.f32.mrb[0].mxu0
  %v3809 = vpop.f32.mrb[0].mxu0
  %v3810 = vadd.f32 0.0, %v3809
  %v3811 = vpop.f32.mrb[0].mxu0
  %3812 = vmatprep.mubr.bf16.mxu0 0
  %3813 = vmatmul.mubr.bf16.gmra.mrb[0].mxu0 %v3500
  %v3814 = vpop.f32.mrb[0].mxu0
  %v3815 = vadd.f32 0.0, %v3814
  %v3816 = vpop.f32.mrb[0].mxu0
  %v3817 = vpop.f32.mrb[0].mxu0
  %v3818 = vadd.f32 0.0, %v3817
  %v3819 = vpop.f32.mrb[0].mxu0
  %3820 = vmatprep.mubr.bf16.mxu0 0
  %3821 = vmatmul.mubr.bf16.gmra.mrb[0].mxu0 %v3501
  %v3822 = vpop.f32.mrb[0].mxu0
  %v3823 = vadd.f32 0.0, %v3822
  %v3824 = vpop.f32.mrb[0].mxu0
  %v3825 = vpop.f32.mrb[0].mxu0
  %v3826 = vadd.f32 0.0, %v3825
  %v3827 = vpop.f32.mrb[0].mxu0
  %3828 = vmatprep.mubr.bf16.mxu0 0
  %3829 = vmatmul.mubr.bf16.gmra.mrb[0].mxu0 %v3502
  %v3830 = vpop.f32.mrb[0].mxu0
  %v3831 = vadd.f32 0.0, %v3830
  %v3832 = vpop.f32.mrb[0].mxu0
  %v3833 = vpop.f32.mrb[0].mxu0
  %v3834 = vadd.f32 0.0, %v3833
  %v3835 = vpop.f32.mrb[0].mxu0
  %3836 = vmatprep.mubr.bf16.mxu0 0
  %3837 = vmatmul.mubr.bf16.gmra.mrb[0].mxu0 %v3503
  %v3838 = vpop.f32.mrb[0].mxu0
  %v3839 = vadd.f32 0.0, %v3838
  %v3840 = vpop.f32.mrb[0].mxu0
  %v3841 = vpop.f32.mrb[0].mxu0
  %v3842 = vadd.f32 0.0, %v3841
  %v3843 = vpop.f32.mrb[0].mxu0
  %3844 = vmatprep.mubr.bf16.mxu0 0
  %3845 = vmatmul.mubr.bf16.gmra.mrb[0].mxu0 %v3504
  %v3846 = vpop.f32.mrb[0].mxu0
  %v3847 = vadd.f32 0.0, %v3846
  %v3848 = vpop.f32.mrb[0].mxu0
  %v3849 = vpop.f32.mrb[0].mxu0
  %v3850 = vadd.f32 0.0, %v3849
  %v3851 = vpop.f32.mrb[0].mxu0
  %3852 = vmatprep.mubr.bf16.mxu0 0
  %3853 = vmatmul.mubr.bf16.gmra.mrb[0].mxu0 %v3505
  %v3854 = vpop.f32.mrb[0].mxu0
  %v3855 = vadd.f32 0.0, %v3854
  %v3856 = vpop.f32.mrb[0].mxu0
  %v3857 = vpop.f32.mrb[0].mxu0
  %v3858 = vadd.f32 0.0, %v3857
  %v3859 = vpop.f32.mrb[0].mxu0
  %3860 = vmatprep.mubr.bf16.mxu0 0
  %3861 = vmatmul.mubr.bf16.gmra.mrb[0].mxu0 %v3506
  %v3862 = vpop.f32.mrb[0].mxu0
  %v3863 = vadd.f32 0.0, %v3862
  %v3864 = vpop.f32.mrb[0].mxu0
  %v3865 = vpop.f32.mrb[0].mxu0
  %v3866 = vadd.f32 0.0, %v3865
  %v3867 = vpop.f32.mrb[0].mxu0
  %3868 = vmatprep.mubr.bf16.mxu0 0
  %3869 = vmatmul.mubr.bf16.gmra.mrb[0].mxu0 %v3507
  %v3870 = vpop.f32.mrb[0].mxu0
  %v3871 = vadd.f32 0.0, %v3870
  %v3872 = vpop.f32.mrb[0].mxu0
  %v3873 = vpop.f32.mrb[0].mxu0
  %v3874 = vadd.f32 0.0, %v3873
  %v3875 = vpop.f32.mrb[0].mxu0
  %3876 = vdwg.mxu0
  %v3941 = vunpack.c.l.b16 %v2513
  %v3942 = vunpack.c.l.b16 %v2514
  %v3943 = vunpack.c.l.b16 %v2515
  %v3944 = vunpack.c.l.b16 %v2516
  %v3945 = vunpack.c.l.b16 %v2517
  %v3946 = vunpack.c.l.b16 %v2518
  %v3947 = vunpack.c.l.b16 %v2519
  %v3948 = vunpack.c.l.b16 %v2520
  %v3949 = vunpack.c.l.b16 %v2521
  %v3950 = vunpack.c.l.b16 %v2522
  %v3951 = vunpack.c.l.b16 %v2523
  %v3952 = vunpack.c.l.b16 %v2524
  %v3953 = vunpack.c.l.b16 %v2525
  %v3954 = vunpack.c.l.b16 %v2526
  %v3955 = vunpack.c.l.b16 %v2527
  %v3956 = vunpack.c.l.b16 %v2528
  %v3957 = vunpack.c.l.b16 %v2529
  %v3958 = vunpack.c.l.b16 %v2530
  %v3959 = vunpack.c.l.b16 %v2531
  %v3960 = vunpack.c.l.b16 %v2532
  %v3961 = vunpack.c.l.b16 %v2533
  %v3962 = vunpack.c.l.b16 %v2534
  %v3963 = vunpack.c.l.b16 %v2535
  %v3964 = vunpack.c.l.b16 %v2536
  %v3965 = vunpack.c.l.b16 %v2537
  %v3966 = vunpack.c.l.b16 %v2538
  %v3967 = vunpack.c.l.b16 %v2539
  %v3968 = vunpack.c.l.b16 %v2540
  %v3969 = vunpack.c.l.b16 %v2541
  %v3970 = vunpack.c.l.b16 %v2542
  %v3971 = vunpack.c.l.b16 %v2543
  %v3972 = vunpack.c.l.b16 %v2544
  %v3973 = vunpack.c.l.b16 %v2545
  %v3974 = vunpack.c.l.b16 %v2546
  %v3975 = vunpack.c.l.b16 %v2547
  %v3976 = vunpack.c.l.b16 %v2548
  %v3977 = vunpack.c.l.b16 %v2549
  %v3978 = vunpack.c.l.b16 %v2550
  %v3979 = vunpack.c.l.b16 %v2551
  %v3980 = vunpack.c.l.b16 %v2552
  %v3981 = vunpack.c.l.b16 %v2553
  %v3982 = vunpack.c.l.b16 %v2554
  %v3983 = vunpack.c.l.b16 %v2555
  %v3984 = vunpack.c.l.b16 %v2556
  %v3985 = vunpack.c.l.b16 %v2557
  %v3986 = vunpack.c.l.b16 %v2558
  %v3987 = vunpack.c.l.b16 %v2559
  %v3988 = vunpack.c.l.b16 %v2560
  %v3989 = vunpack.c.l.b16 %v2561
  %v3990 = vunpack.c.l.b16 %v2562
  %v3991 = vunpack.c.l.b16 %v2563
  %v3992 = vunpack.c.l.b16 %v2564
  %v3993 = vunpack.c.l.b16 %v2565
  %v3994 = vunpack.c.l.b16 %v2566
  %v3995 = vunpack.c.l.b16 %v2567
  %v3996 = vunpack.c.l.b16 %v2568
  %v3997 = vunpack.c.l.b16 %v2569
  %v3998 = vunpack.c.l.b16 %v2570
  %v3999 = vunpack.c.l.b16 %v2571
  %v4000 = vunpack.c.l.b16 %v2572
  %v4001 = vunpack.c.l.b16 %v2573
  %v4002 = vunpack.c.l.b16 %v2574
  %v4003 = vunpack.c.l.b16 %v2575
  %v4004 = vunpack.c.l.b16 %v2576
  %v4005 = vpack.c.b16 %v3942, %v3941
  %v4006 = vpack.c.b16 %v3944, %v3943
  %v4007 = vpack.c.b16 %v3946, %v3945
  %v4008 = vpack.c.b16 %v3948, %v3947
  %v4009 = vpack.c.b16 %v3950, %v3949
  %v4010 = vpack.c.b16 %v3952, %v3951
  %v4011 = vpack.c.b16 %v3954, %v3953
  %v4012 = vpack.c.b16 %v3956, %v3955
  %v4013 = vpack.c.b16 %v3958, %v3957
  %v4014 = vpack.c.b16 %v3960, %v3959
  %v4015 = vpack.c.b16 %v3962, %v3961
  %v4016 = vpack.c.b16 %v3964, %v3963
  %v4017 = vpack.c.b16 %v3966, %v3965
  %v4018 = vpack.c.b16 %v3968, %v3967
  %v4019 = vpack.c.b16 %v3970, %v3969
  %v4020 = vpack.c.b16 %v3972, %v3971
  %v4021 = vpack.c.b16 %v3974, %v3973
  %v4022 = vpack.c.b16 %v3976, %v3975
  %v4023 = vpack.c.b16 %v3978, %v3977
  %v4024 = vpack.c.b16 %v3980, %v3979
  %v4025 = vpack.c.b16 %v3982, %v3981
  %v4026 = vpack.c.b16 %v3984, %v3983
  %v4027 = vpack.c.b16 %v3986, %v3985
  %v4028 = vpack.c.b16 %v3988, %v3987
  %v4029 = vpack.c.b16 %v3990, %v3989
  %v4030 = vpack.c.b16 %v3992, %v3991
  %v4031 = vpack.c.b16 %v3994, %v3993
  %v4032 = vpack.c.b16 %v3996, %v3995
  %v4033 = vpack.c.b16 %v3998, %v3997
  %v4034 = vpack.c.b16 %v4000, %v3999
  %v4035 = vpack.c.b16 %v4002, %v4001
  %v4036 = vpack.c.b16 %v4004, %v4003
  %v4085 = vunpack.c.l.b16 %v2577
  %v4086 = vunpack.c.l.b16 %v2578
  %v4087 = vunpack.c.l.b16 %v2579
  %v4088 = vunpack.c.l.b16 %v2580
  %v4089 = vunpack.c.l.b16 %v2581
  %v4090 = vunpack.c.l.b16 %v2582
  %v4091 = vunpack.c.l.b16 %v2583
  %v4092 = vunpack.c.l.b16 %v2584
  %v4093 = vunpack.c.l.b16 %v2585
  %v4094 = vunpack.c.l.b16 %v2586
  %v4095 = vunpack.c.l.b16 %v2587
  %v4096 = vunpack.c.l.b16 %v2588
  %v4097 = vunpack.c.l.b16 %v2589
  %v4098 = vunpack.c.l.b16 %v2590
  %v4099 = vunpack.c.l.b16 %v2591
  %v4100 = vunpack.c.l.b16 %v2592
  %v4101 = vpack.c.b16 %v4086, %v4085
  %v4102 = vpack.c.b16 %v4088, %v4087
  %v4103 = vpack.c.b16 %v4090, %v4089
  %v4104 = vpack.c.b16 %v4092, %v4091
  %v4105 = vpack.c.b16 %v4094, %v4093
  %v4106 = vpack.c.b16 %v4096, %v4095
  %v4107 = vpack.c.b16 %v4098, %v4097
  %v4108 = vpack.c.b16 %v4100, %v4099
  %4117 = vmatprep.subr.bf16.mxu0 0
  %4118 = vmatpush1.bf16.msra.mxu0 %v4101
  %4119 = vmatprep.subr.bf16.mxu0 0
  %4120 = vmatpush1.bf16.msra.mxu0 %v4102
  %4121 = vmatprep.subr.bf16.mxu0 0
  %4122 = vmatpush1.bf16.msra.mxu0 %v4103
  %4123 = vmatprep.subr.bf16.mxu0 0
  %4124 = vmatpush1.bf16.msra.mxu0 %v4104
  %4125 = vmatprep.subr.bf16.mxu0 0
  %4126 = vmatpush1.bf16.msra.mxu0 %v4105
  %4127 = vmatprep.subr.bf16.mxu0 0
  %4128 = vmatpush1.bf16.msra.mxu0 %v4106
  %4129 = vmatprep.subr.bf16.mxu0 0
  %4130 = vmatpush1.bf16.msra.mxu0 %v4107
  %4131 = vmatprep.subr.bf16.mxu0 0
  %4132 = vmatpush1.bf16.msra.mxu0 %v4108
  %4133 = vmatprep.subr.bf16.mxu0 0
  %4134 = vmatpush1.bf16.msra.mxu0 0
  %4135 = vmatprep.subr.bf16.mxu0 0
  %4136 = vmatpush1.bf16.msra.mxu0 0
  %4137 = vmatprep.subr.bf16.mxu0 0
  %4138 = vmatpush1.bf16.msra.mxu0 0
  %4139 = vmatprep.subr.bf16.mxu0 0
  %4140 = vmatpush1.bf16.msra.mxu0 0
  %4141 = vmatprep.subr.bf16.mxu0 0
  %4142 = vmatpush1.bf16.msra.mxu0 0
  %4143 = vmatprep.subr.bf16.mxu0 0
  %4144 = vmatpush1.bf16.msra.mxu0 0
  %4145 = vmatprep.subr.bf16.mxu0 0
  %4146 = vmatpush1.bf16.msra.mxu0 0
  %4147 = vmatprep.subr.bf16.mxu0 0
  %4148 = vmatpush1.bf16.msra.mxu0 0
  %4149 = vmatprep.mubr.bf16.mxu0 0
  %4150 = vmatmul.mubr.bf16.gmra.mrb[0].mxu0 %v4005
  %v4151 = vpop.f32.mrb[0].mxu0
  %v4152 = vadd.f32 %v3623, %v4151
  %v4153 = vpop.f32.mrb[0].mxu0
  %v4154 = vpop.f32.mrb[0].mxu0
  %v4155 = vadd.f32 %v3626, %v4154
  %v4156 = vpop.f32.mrb[0].mxu0
  %4157 = vmatprep.mubr.bf16.mxu0 0
  %4158 = vmatmul.mubr.bf16.gmra.mrb[0].mxu0 %v4006
  %v4159 = vpop.f32.mrb[0].mxu0
  %v4160 = vadd.f32 %v3631, %v4159
  %v4161 = vpop.f32.mrb[0].mxu0
  %v4162 = vpop.f32.mrb[0].mxu0
  %v4163 = vadd.f32 %v3634, %v4162
  %v4164 = vpop.f32.mrb[0].mxu0
  %4165 = vmatprep.mubr.bf16.mxu0 0
  %4166 = vmatmul.mubr.bf16.gmra.mrb[0].mxu0 %v4007
  %v4167 = vpop.f32.mrb[0].mxu0
  %v4168 = vadd.f32 %v3639, %v4167
  %v4169 = vpop.f32.mrb[0].mxu0
  %v4170 = vpop.f32.mrb[0].mxu0
  %v4171 = vadd.f32 %v3642, %v4170
  %v4172 = vpop.f32.mrb[0].mxu0
  %4173 = vmatprep.mubr.bf16.mxu0 0
  %4174 = vmatmul.mubr.bf16.gmra.mrb[0].mxu0 %v4008
  %v4175 = vpop.f32.mrb[0].mxu0
  %v4176 = vadd.f32 %v3647, %v4175
  %v4177 = vpop.f32.mrb[0].mxu0
  %v4178 = vpop.f32.mrb[0].mxu0
  %v4179 = vadd.f32 %v3650, %v4178
  %v4180 = vpop.f32.mrb[0].mxu0
  %4181 = vmatprep.mubr.bf16.mxu0 0
  %4182 = vmatmul.mubr.bf16.gmra.mrb[0].mxu0 %v4009
  %v4183 = vpop.f32.mrb[0].mxu0
  %v4184 = vadd.f32 %v3655, %v4183
  %v4185 = vpop.f32.mrb[0].mxu0
  %v4186 = vpop.f32.mrb[0].mxu0
  %v4187 = vadd.f32 %v3658, %v4186
  %v4188 = vpop.f32.mrb[0].mxu0
  %4189 = vmatprep.mubr.bf16.mxu0 0
  %4190 = vmatmul.mubr.bf16.gmra.mrb[0].mxu0 %v4010
  %v4191 = vpop.f32.mrb[0].mxu0
  %v4192 = vadd.f32 %v3663, %v4191
  %v4193 = vpop.f32.mrb[0].mxu0
  %v4194 = vpop.f32.mrb[0].mxu0
  %v4195 = vadd.f32 %v3666, %v4194
  %v4196 = vpop.f32.mrb[0].mxu0
  %4197 = vmatprep.mubr.bf16.mxu0 0
  %4198 = vmatmul.mubr.bf16.gmra.mrb[0].mxu0 %v4011
  %v4199 = vpop.f32.mrb[0].mxu0
  %v4200 = vadd.f32 %v3671, %v4199
  %v4201 = vpop.f32.mrb[0].mxu0
  %v4202 = vpop.f32.mrb[0].mxu0
  %v4203 = vadd.f32 %v3674, %v4202
  %v4204 = vpop.f32.mrb[0].mxu0
  %4205 = vmatprep.mubr.bf16.mxu0 0
  %4206 = vmatmul.mubr.bf16.gmra.mrb[0].mxu0 %v4012
  %v4207 = vpop.f32.mrb[0].mxu0
  %v4208 = vadd.f32 %v3679, %v4207
  %v4209 = vpop.f32.mrb[0].mxu0
  %v4210 = vpop.f32.mrb[0].mxu0
  %v4211 = vadd.f32 %v3682, %v4210
  %v4212 = vpop.f32.mrb[0].mxu0
  %4213 = vmatprep.mubr.bf16.mxu0 0
  %4214 = vmatmul.mubr.bf16.gmra.mrb[0].mxu0 %v4013
  %v4215 = vpop.f32.mrb[0].mxu0
  %v4216 = vadd.f32 %v3687, %v4215
  %v4217 = vpop.f32.mrb[0].mxu0
  %v4218 = vpop.f32.mrb[0].mxu0
  %v4219 = vadd.f32 %v3690, %v4218
  %v4220 = vpop.f32.mrb[0].mxu0
  %4221 = vmatprep.mubr.bf16.mxu0 0
  %4222 = vmatmul.mubr.bf16.gmra.mrb[0].mxu0 %v4014
  %v4223 = vpop.f32.mrb[0].mxu0
  %v4224 = vadd.f32 %v3695, %v4223
  %v4225 = vpop.f32.mrb[0].mxu0
  %v4226 = vpop.f32.mrb[0].mxu0
  %v4227 = vadd.f32 %v3698, %v4226
  %v4228 = vpop.f32.mrb[0].mxu0
  %4229 = vmatprep.mubr.bf16.mxu0 0
  %4230 = vmatmul.mubr.bf16.gmra.mrb[0].mxu0 %v4015
  %v4231 = vpop.f32.mrb[0].mxu0
  %v4232 = vadd.f32 %v3703, %v4231
  %v4233 = vpop.f32.mrb[0].mxu0
  %v4234 = vpop.f32.mrb[0].mxu0
  %v4235 = vadd.f32 %v3706, %v4234
  %v4236 = vpop.f32.mrb[0].mxu0
  %4237 = vmatprep.mubr.bf16.mxu0 0
  %4238 = vmatmul.mubr.bf16.gmra.mrb[0].mxu0 %v4016
  %v4239 = vpop.f32.mrb[0].mxu0
  %v4240 = vadd.f32 %v3711, %v4239
  %v4241 = vpop.f32.mrb[0].mxu0
  %v4242 = vpop.f32.mrb[0].mxu0
  %v4243 = vadd.f32 %v3714, %v4242
  %v4244 = vpop.f32.mrb[0].mxu0
  %4245 = vmatprep.mubr.bf16.mxu0 0
  %4246 = vmatmul.mubr.bf16.gmra.mrb[0].mxu0 %v4017
  %v4247 = vpop.f32.mrb[0].mxu0
  %v4248 = vadd.f32 %v3719, %v4247
  %v4249 = vpop.f32.mrb[0].mxu0
  %v4250 = vpop.f32.mrb[0].mxu0
  %v4251 = vadd.f32 %v3722, %v4250
  %v4252 = vpop.f32.mrb[0].mxu0
  %4253 = vmatprep.mubr.bf16.mxu0 0
  %4254 = vmatmul.mubr.bf16.gmra.mrb[0].mxu0 %v4018
  %v4255 = vpop.f32.mrb[0].mxu0
  %v4256 = vadd.f32 %v3727, %v4255
  %v4257 = vpop.f32.mrb[0].mxu0
  %v4258 = vpop.f32.mrb[0].mxu0
  %v4259 = vadd.f32 %v3730, %v4258
  %v4260 = vpop.f32.mrb[0].mxu0
  %4261 = vmatprep.mubr.bf16.mxu0 0
  %4262 = vmatmul.mubr.bf16.gmra.mrb[0].mxu0 %v4019
  %v4263 = vpop.f32.mrb[0].mxu0
  %v4264 = vadd.f32 %v3735, %v4263
  %v4265 = vpop.f32.mrb[0].mxu0
  %v4266 = vpop.f32.mrb[0].mxu0
  %v4267 = vadd.f32 %v3738, %v4266
  %v4268 = vpop.f32.mrb[0].mxu0
  %4269 = vmatprep.mubr.bf16.mxu0 0
  %4270 = vmatmul.mubr.bf16.gmra.mrb[0].mxu0 %v4020
  %v4271 = vpop.f32.mrb[0].mxu0
  %v4272 = vadd.f32 %v3743, %v4271
  %v4273 = vpop.f32.mrb[0].mxu0
  %v4274 = vpop.f32.mrb[0].mxu0
  %v4275 = vadd.f32 %v3746, %v4274
  %v4276 = vpop.f32.mrb[0].mxu0
  %4277 = vmatprep.mubr.bf16.mxu0 0
  %4278 = vmatmul.mubr.bf16.gmra.mrb[0].mxu0 %v4021
  %v4279 = vpop.f32.mrb[0].mxu0
  %v4280 = vadd.f32 %v3751, %v4279
  %v4281 = vpop.f32.mrb[0].mxu0
  %v4282 = vpop.f32.mrb[0].mxu0
  %v4283 = vadd.f32 %v3754, %v4282
  %v4284 = vpop.f32.mrb[0].mxu0
  %4285 = vmatprep.mubr.bf16.mxu0 0
  %4286 = vmatmul.mubr.bf16.gmra.mrb[0].mxu0 %v4022
  %v4287 = vpop.f32.mrb[0].mxu0
  %v4288 = vadd.f32 %v3759, %v4287
  %v4289 = vpop.f32.mrb[0].mxu0
  %v4290 = vpop.f32.mrb[0].mxu0
  %v4291 = vadd.f32 %v3762, %v4290
  %v4292 = vpop.f32.mrb[0].mxu0
  %4293 = vmatprep.mubr.bf16.mxu0 0
  %4294 = vmatmul.mubr.bf16.gmra.mrb[0].mxu0 %v4023
  %v4295 = vpop.f32.mrb[0].mxu0
  %v4296 = vadd.f32 %v3767, %v4295
  %v4297 = vpop.f32.mrb[0].mxu0
  %v4298 = vpop.f32.mrb[0].mxu0
  %v4299 = vadd.f32 %v3770, %v4298
  %v4300 = vpop.f32.mrb[0].mxu0
  %4301 = vmatprep.mubr.bf16.mxu0 0
  %4302 = vmatmul.mubr.bf16.gmra.mrb[0].mxu0 %v4024
  %v4303 = vpop.f32.mrb[0].mxu0
  %v4304 = vadd.f32 %v3775, %v4303
  %v4305 = vpop.f32.mrb[0].mxu0
  %v4306 = vpop.f32.mrb[0].mxu0
  %v4307 = vadd.f32 %v3778, %v4306
  %v4308 = vpop.f32.mrb[0].mxu0
  %4309 = vmatprep.mubr.bf16.mxu0 0
  %4310 = vmatmul.mubr.bf16.gmra.mrb[0].mxu0 %v4025
  %v4311 = vpop.f32.mrb[0].mxu0
  %v4312 = vadd.f32 %v3783, %v4311
  %v4313 = vpop.f32.mrb[0].mxu0
  %v4314 = vpop.f32.mrb[0].mxu0
  %v4315 = vadd.f32 %v3786, %v4314
  %v4316 = vpop.f32.mrb[0].mxu0
  %4317 = vmatprep.mubr.bf16.mxu0 0
  %4318 = vmatmul.mubr.bf16.gmra.mrb[0].mxu0 %v4026
  %v4319 = vpop.f32.mrb[0].mxu0
  %v4320 = vadd.f32 %v3791, %v4319
  %v4321 = vpop.f32.mrb[0].mxu0
  %v4322 = vpop.f32.mrb[0].mxu0
  %v4323 = vadd.f32 %v3794, %v4322
  %v4324 = vpop.f32.mrb[0].mxu0
  %4325 = vmatprep.mubr.bf16.mxu0 0
  %4326 = vmatmul.mubr.bf16.gmra.mrb[0].mxu0 %v4027
  %v4327 = vpop.f32.mrb[0].mxu0
  %v4328 = vadd.f32 %v3799, %v4327
  %v4329 = vpop.f32.mrb[0].mxu0
  %v4330 = vpop.f32.mrb[0].mxu0
  %v4331 = vadd.f32 %v3802, %v4330
  %v4332 = vpop.f32.mrb[0].mxu0
  %4333 = vmatprep.mubr.bf16.mxu0 0
  %4334 = vmatmul.mubr.bf16.gmra.mrb[0].mxu0 %v4028
  %v4335 = vpop.f32.mrb[0].mxu0
  %v4336 = vadd.f32 %v3807, %v4335
  %v4337 = vpop.f32.mrb[0].mxu0
  %v4338 = vpop.f32.mrb[0].mxu0
  %v4339 = vadd.f32 %v3810, %v4338
  %v4340 = vpop.f32.mrb[0].mxu0
  %4341 = vmatprep.mubr.bf16.mxu0 0
  %4342 = vmatmul.mubr.bf16.gmra.mrb[0].mxu0 %v4029
  %v4343 = vpop.f32.mrb[0].mxu0
  %v4344 = vadd.f32 %v3815, %v4343
  %v4345 = vpop.f32.mrb[0].mxu0
  %v4346 = vpop.f32.mrb[0].mxu0
  %v4347 = vadd.f32 %v3818, %v4346
  %v4348 = vpop.f32.mrb[0].mxu0
  %4349 = vmatprep.mubr.bf16.mxu0 0
  %4350 = vmatmul.mubr.bf16.gmra.mrb[0].mxu0 %v4030
  %v4351 = vpop.f32.mrb[0].mxu0
  %v4352 = vadd.f32 %v3823, %v4351
  %v4353 = vpop.f32.mrb[0].mxu0
  %v4354 = vpop.f32.mrb[0].mxu0
  %v4355 = vadd.f32 %v3826, %v4354
  %v4356 = vpop.f32.mrb[0].mxu0
  %4357 = vmatprep.mubr.bf16.mxu0 0
  %4358 = vmatmul.mubr.bf16.gmra.mrb[0].mxu0 %v4031
  %v4359 = vpop.f32.mrb[0].mxu0
  %v4360 = vadd.f32 %v3831, %v4359
  %v4361 = vpop.f32.mrb[0].mxu0
  %v4362 = vpop.f32.mrb[0].mxu0
  %v4363 = vadd.f32 %v3834, %v4362
  %v4364 = vpop.f32.mrb[0].mxu0
  %4365 = vmatprep.mubr.bf16.mxu0 0
  %4366 = vmatmul.mubr.bf16.gmra.mrb[0].mxu0 %v4032
  %v4367 = vpop.f32.mrb[0].mxu0
  %v4368 = vadd.f32 %v3839, %v4367
  %v4369 = vpop.f32.mrb[0].mxu0
  %v4370 = vpop.f32.mrb[0].mxu0
  %v4371 = vadd.f32 %v3842, %v4370
  %v4372 = vpop.f32.mrb[0].mxu0
  %4373 = vmatprep.mubr.bf16.mxu0 0
  %4374 = vmatmul.mubr.bf16.gmra.mrb[0].mxu0 %v4033
  %v4375 = vpop.f32.mrb[0].mxu0
  %v4376 = vadd.f32 %v3847, %v4375
  %v4377 = vpop.f32.mrb[0].mxu0
  %v4378 = vpop.f32.mrb[0].mxu0
  %v4379 = vadd.f32 %v3850, %v4378
  %v4380 = vpop.f32.mrb[0].mxu0
  %4381 = vmatprep.mubr.bf16.mxu0 0
  %4382 = vmatmul.mubr.bf16.gmra.mrb[0].mxu0 %v4034
  %v4383 = vpop.f32.mrb[0].mxu0
  %v4384 = vadd.f32 %v3855, %v4383
  %v4385 = vpop.f32.mrb[0].mxu0
  %v4386 = vpop.f32.mrb[0].mxu0
  %v4387 = vadd.f32 %v3858, %v4386
  %v4388 = vpop.f32.mrb[0].mxu0
  %4389 = vmatprep.mubr.bf16.mxu0 0
  %4390 = vmatmul.mubr.bf16.gmra.mrb[0].mxu0 %v4035
  %v4391 = vpop.f32.mrb[0].mxu0
  %v4392 = vadd.f32 %v3863, %v4391
  %v4393 = vpop.f32.mrb[0].mxu0
  %v4394 = vpop.f32.mrb[0].mxu0
  %v4395 = vadd.f32 %v3866, %v4394
  %v4396 = vpop.f32.mrb[0].mxu0
  %4397 = vmatprep.mubr.bf16.mxu0 0
  %4398 = vmatmul.mubr.bf16.gmra.mrb[0].mxu0 %v4036
  %v4399 = vpop.f32.mrb[0].mxu0
  %v4400 = vadd.f32 %v3871, %v4399
  %v4401 = vpop.f32.mrb[0].mxu0
  %v4402 = vpop.f32.mrb[0].mxu0
  %v4403 = vadd.f32 %v3874, %v4402
  %v4404 = vpop.f32.mrb[0].mxu0
  %4405 = vdwg.mxu0
  %v4406 = vld [vmem:[#allocation2] sm:$0xe]
  %v4407 = vld [vmem:[#allocation2 + $0xc] sm:$0xe]
  %v4408 = vld [vmem:[#allocation2 + $0x18] sm:$0xe]
  %v4409 = vld [vmem:[#allocation2 + $0x24] sm:$0xe]
  %v4410 = vld [vmem:[#allocation2 + $0x30] sm:$0xe]
  %v4411 = vld [vmem:[#allocation2 + $0x3c] sm:$0xe]
  %v4412 = vld [vmem:[#allocation2 + $0x48] sm:$0xe]
  %v4413 = vld [vmem:[#allocation2 + $0x54] sm:$0xe]
  %v4414 = vld [vmem:[#allocation2 + $0x60] sm:$0xe]
  %v4415 = vld [vmem:[#allocation2 + $0x6c] sm:$0xe]
  %v4416 = vld [vmem:[#allocation2 + $0x78] sm:$0xe]
  %v4417 = vld [vmem:[#allocation2 + $0x84] sm:$0xe]
  %v4418 = vld [vmem:[#allocation2 + $0x90] sm:$0xe]
  %v4419 = vld [vmem:[#allocation2 + $0x9c] sm:$0xe]
  %v4420 = vld [vmem:[#allocation2 + $0xa8] sm:$0xe]
  %v4421 = vld [vmem:[#allocation2 + $0xb4] sm:$0xe]
  %v4422 = vld [vmem:[#allocation2 + $0xd8] sm:$0xe]
  %v4423 = vld [vmem:[#allocation2 + $0xe4] sm:$0xe]
  %v4424 = vld [vmem:[#allocation2 + $0xf0] sm:$0xe]
  %v4425 = vld [vmem:[#allocation2 + $0xfc] sm:$0xe]
  %v4426 = vld [vmem:[#allocation2 + $0x108] sm:$0xe]
  %v4427 = vld [vmem:[#allocation2 + $0x114] sm:$0xe]
  %v4428 = vld [vmem:[#allocation2 + $0x120] sm:$0xe]
  %v4429 = vld [vmem:[#allocation2 + $0x12c] sm:$0xe]
  %v4430 = vld [vmem:[#allocation2 + $0x138] sm:$0xe]
  %v4431 = vld [vmem:[#allocation2 + $0x144] sm:$0xe]
  %v4432 = vld [vmem:[#allocation2 + $0x150] sm:$0xe]
  %v4433 = vld [vmem:[#allocation2 + $0x15c] sm:$0xe]
  %v4434 = vld [vmem:[#allocation2 + $0x168] sm:$0xe]
  %v4435 = vld [vmem:[#allocation2 + $0x174] sm:$0xe]
  %v4436 = vld [vmem:[#allocation2 + $0x180] sm:$0xe]
  %v4437 = vld [vmem:[#allocation2 + $0x18c] sm:$0xe]
  %vm4502 = vcmask 1042432
  %vm4503 = vcmask 1046532
  %vm4504 = vmor %vm4502, %vm4503
  %v4505 = vrot.slane %v4406, 5
  %v4506 = vrot.slane %v4505, 4
  %v4507 = vrot.slane %v2514, 5
  %v4508 = vsel %vm4504, %v4506, %v4507
  %v4509 = vrot.slane %v4507, 4
  %v4510 = vrot.slane %v2593, 5
  %v4511 = vsel %vm4504, %v4509, %v4510
  %v4512 = vrot.slane %v4407, 5
  %v4513 = vrot.slane %v4512, 4
  %v4514 = vrot.slane %v2516, 5
  %v4515 = vsel %vm4504, %v4513, %v4514
  %v4516 = vrot.slane %v4514, 4
  %v4517 = vrot.slane %v2594, 5
  %v4518 = vsel %vm4504, %v4516, %v4517
  %v4519 = vrot.slane %v4408, 5
  %v4520 = vrot.slane %v4519, 4
  %v4521 = vrot.slane %v2518, 5
  %v4522 = vsel %vm4504, %v4520, %v4521
  %v4523 = vrot.slane %v4521, 4
  %v4524 = vrot.slane %v2595, 5
  %v4525 = vsel %vm4504, %v4523, %v4524
  %v4526 = vrot.slane %v4409, 5
  %v4527 = vrot.slane %v4526, 4
  %v4528 = vrot.slane %v2520, 5
  %v4529 = vsel %vm4504, %v4527, %v4528
  %v4530 = vrot.slane %v4528, 4
  %v4531 = vrot.slane %v2596, 5
  %v4532 = vsel %vm4504, %v4530, %v4531
  %v4533 = vrot.slane %v4410, 5
  %v4534 = vrot.slane %v4533, 4
  %v4535 = vrot.slane %v2522, 5
  %v4536 = vsel %vm4504, %v4534, %v4535
  %v4537 = vrot.slane %v4535, 4
  %v4538 = vrot.slane %v2597, 5
  %v4539 = vsel %vm4504, %v4537, %v4538
  %v4540 = vrot.slane %v4411, 5
  %v4541 = vrot.slane %v4540, 4
  %v4542 = vrot.slane %v2524, 5
  %v4543 = vsel %vm4504, %v4541, %v4542
  %v4544 = vrot.slane %v4542, 4
  %v4545 = vrot.slane %v2598, 5
  %v4546 = vsel %vm4504, %v4544, %v4545
  %v4547 = vrot.slane %v4412, 5
  %v4548 = vrot.slane %v4547, 4
  %v4549 = vrot.slane %v2526, 5
  %v4550 = vsel %vm4504, %v4548, %v4549
  %v4551 = vrot.slane %v4549, 4
  %v4552 = vrot.slane %v2599, 5
  %v4553 = vsel %vm4504, %v4551, %v4552
  %v4554 = vrot.slane %v4413, 5
  %v4555 = vrot.slane %v4554, 4
  %v4556 = vrot.slane %v2528, 5
  %v4557 = vsel %vm4504, %v4555, %v4556
  %v4558 = vrot.slane %v4556, 4
  %v4559 = vrot.slane %v2600, 5
  %v4560 = vsel %vm4504, %v4558, %v4559
  %v4561 = vrot.slane %v4414, 5
  %v4562 = vrot.slane %v4561, 4
  %v4563 = vrot.slane %v2530, 5
  %v4564 = vsel %vm4504, %v4562, %v4563
  %v4565 = vrot.slane %v4563, 4
  %v4566 = vrot.slane %v2601, 5
  %v4567 = vsel %vm4504, %v4565, %v4566
  %v4568 = vrot.slane %v4415, 5
  %v4569 = vrot.slane %v4568, 4
  %v4570 = vrot.slane %v2532, 5
  %v4571 = vsel %vm4504, %v4569, %v4570
  %v4572 = vrot.slane %v4570, 4
  %v4573 = vrot.slane %v2602, 5
  %v4574 = vsel %vm4504, %v4572, %v4573
  %v4575 = vrot.slane %v4416, 5
  %v4576 = vrot.slane %v4575, 4
  %v4577 = vrot.slane %v2534, 5
  %v4578 = vsel %vm4504, %v4576, %v4577
  %v4579 = vrot.slane %v4577, 4
  %v4580 = vrot.slane %v2603, 5
  %v4581 = vsel %vm4504, %v4579, %v4580
  %v4582 = vrot.slane %v4417, 5
  %v4583 = vrot.slane %v4582, 4
  %v4584 = vrot.slane %v2536, 5
  %v4585 = vsel %vm4504, %v4583, %v4584
  %v4586 = vrot.slane %v4584, 4
  %v4587 = vrot.slane %v2604, 5
  %v4588 = vsel %vm4504, %v4586, %v4587
  %v4589 = vrot.slane %v4418, 5
  %v4590 = vrot.slane %v4589, 4
  %v4591 = vrot.slane %v2538, 5
  %v4592 = vsel %vm4504, %v4590, %v4591
  %v4593 = vrot.slane %v4591, 4
  %v4594 = vrot.slane %v2605, 5
  %v4595 = vsel %vm4504, %v4593, %v4594
  %v4596 = vrot.slane %v4419, 5
  %v4597 = vrot.slane %v4596, 4
  %v4598 = vrot.slane %v2540, 5
  %v4599 = vsel %vm4504, %v4597, %v4598
  %v4600 = vrot.slane %v4598, 4
  %v4601 = vrot.slane %v2606, 5
  %v4602 = vsel %vm4504, %v4600, %v4601
  %v4603 = vrot.slane %v4420, 5
  %v4604 = vrot.slane %v4603, 4
  %v4605 = vrot.slane %v2542, 5
  %v4606 = vsel %vm4504, %v4604, %v4605
  %v4607 = vrot.slane %v4605, 4
  %v4608 = vrot.slane %v2607, 5
  %v4609 = vsel %vm4504, %v4607, %v4608
  %v4610 = vrot.slane %v4421, 5
  %v4611 = vrot.slane %v4610, 4
  %v4612 = vrot.slane %v2544, 5
  %v4613 = vsel %vm4504, %v4611, %v4612
  %v4614 = vrot.slane %v4612, 4
  %v4615 = vrot.slane %v2608, 5
  %v4616 = vsel %vm4504, %v4614, %v4615
  %v4617 = vrot.slane %v4422, 5
  %v4618 = vrot.slane %v4617, 4
  %v4619 = vrot.slane %v2546, 5
  %v4620 = vsel %vm4504, %v4618, %v4619
  %v4621 = vrot.slane %v4619, 4
  %v4622 = vrot.slane %v2609, 5
  %v4623 = vsel %vm4504, %v4621, %v4622
  %v4624 = vrot.slane %v4423, 5
  %v4625 = vrot.slane %v4624, 4
  %v4626 = vrot.slane %v2548, 5
  %v4627 = vsel %vm4504, %v4625, %v4626
  %v4628 = vrot.slane %v4626, 4
  %v4629 = vrot.slane %v2610, 5
  %v4630 = vsel %vm4504, %v4628, %v4629
  %v4631 = vrot.slane %v4424, 5
  %v4632 = vrot.slane %v4631, 4
  %v4633 = vrot.slane %v2550, 5
  %v4634 = vsel %vm4504, %v4632, %v4633
  %v4635 = vrot.slane %v4633, 4
  %v4636 = vrot.slane %v2611, 5
  %v4637 = vsel %vm4504, %v4635, %v4636
  %v4638 = vrot.slane %v4425, 5
  %v4639 = vrot.slane %v4638, 4
  %v4640 = vrot.slane %v2552, 5
  %v4641 = vsel %vm4504, %v4639, %v4640
  %v4642 = vrot.slane %v4640, 4
  %v4643 = vrot.slane %v2612, 5
  %v4644 = vsel %vm4504, %v4642, %v4643
  %v4645 = vrot.slane %v4426, 5
  %v4646 = vrot.slane %v4645, 4
  %v4647 = vrot.slane %v2554, 5
  %v4648 = vsel %vm4504, %v4646, %v4647
  %v4649 = vrot.slane %v4647, 4
  %v4650 = vrot.slane %v2613, 5
  %v4651 = vsel %vm4504, %v4649, %v4650
  %v4652 = vrot.slane %v4427, 5
  %v4653 = vrot.slane %v4652, 4
  %v4654 = vrot.slane %v2556, 5
  %v4655 = vsel %vm4504, %v4653, %v4654
  %v4656 = vrot.slane %v4654, 4
  %v4657 = vrot.slane %v2614, 5
  %v4658 = vsel %vm4504, %v4656, %v4657
  %v4659 = vrot.slane %v4428, 5
  %v4660 = vrot.slane %v4659, 4
  %v4661 = vrot.slane %v2558, 5
  %v4662 = vsel %vm4504, %v4660, %v4661
  %v4663 = vrot.slane %v4661, 4
  %v4664 = vrot.slane %v2615, 5
  %v4665 = vsel %vm4504, %v4663, %v4664
  %v4666 = vrot.slane %v4429, 5
  %v4667 = vrot.slane %v4666, 4
  %v4668 = vrot.slane %v2560, 5
  %v4669 = vsel %vm4504, %v4667, %v4668
  %v4670 = vrot.slane %v4668, 4
  %v4671 = vrot.slane %v2616, 5
  %v4672 = vsel %vm4504, %v4670, %v4671
  %v4673 = vrot.slane %v4430, 5
  %v4674 = vrot.slane %v4673, 4
  %v4675 = vrot.slane %v2562, 5
  %v4676 = vsel %vm4504, %v4674, %v4675
  %v4677 = vrot.slane %v4675, 4
  %v4678 = vrot.slane %v2617, 5
  %v4679 = vsel %vm4504, %v4677, %v4678
  %v4680 = vrot.slane %v4431, 5
  %v4681 = vrot.slane %v4680, 4
  %v4682 = vrot.slane %v2564, 5
  %v4683 = vsel %vm4504, %v4681, %v4682
  %v4684 = vrot.slane %v4682, 4
  %v4685 = vrot.slane %v2618, 5
  %v4686 = vsel %vm4504, %v4684, %v4685
  %v4687 = vrot.slane %v4432, 5
  %v4688 = vrot.slane %v4687, 4
  %v4689 = vrot.slane %v2566, 5
  %v4690 = vsel %vm4504, %v4688, %v4689
  %v4691 = vrot.slane %v4689, 4
  %v4692 = vrot.slane %v2619, 5
  %v4693 = vsel %vm4504, %v4691, %v4692
  %v4694 = vrot.slane %v4433, 5
  %v4695 = vrot.slane %v4694, 4
  %v4696 = vrot.slane %v2568, 5
  %v4697 = vsel %vm4504, %v4695, %v4696
  %v4698 = vrot.slane %v4696, 4
  %v4699 = vrot.slane %v2620, 5
  %v4700 = vsel %vm4504, %v4698, %v4699
  %v4701 = vrot.slane %v4434, 5
  %v4702 = vrot.slane %v4701, 4
  %v4703 = vrot.slane %v2570, 5
  %v4704 = vsel %vm4504, %v4702, %v4703
  %v4705 = vrot.slane %v4703, 4
  %v4706 = vrot.slane %v2621, 5
  %v4707 = vsel %vm4504, %v4705, %v4706
  %v4708 = vrot.slane %v4435, 5
  %v4709 = vrot.slane %v4708, 4
  %v4710 = vrot.slane %v2572, 5
  %v4711 = vsel %vm4504, %v4709, %v4710
  %v4712 = vrot.slane %v4710, 4
  %v4713 = vrot.slane %v2622, 5
  %v4714 = vsel %vm4504, %v4712, %v4713
  %v4715 = vrot.slane %v4436, 5
  %v4716 = vrot.slane %v4715, 4
  %v4717 = vrot.slane %v2574, 5
  %v4718 = vsel %vm4504, %v4716, %v4717
  %v4719 = vrot.slane %v4717, 4
  %v4720 = vrot.slane %v2623, 5
  %v4721 = vsel %vm4504, %v4719, %v4720
  %v4722 = vrot.slane %v4437, 5
  %v4723 = vrot.slane %v4722, 4
  %v4724 = vrot.slane %v2576, 5
  %v4725 = vsel %vm4504, %v4723, %v4724
  %v4726 = vrot.slane %v4724, 4
  %v4727 = vrot.slane %v2624, 5
  %v4728 = vsel %vm4504, %v4726, %v4727
  %v4729 = vld [vmem:[%s2 + $0x80] sm:$0xf]
  %v4730 = vld [vmem:[%s2 + $0x84] sm:$0xf]
  %v4731 = vld [vmem:[%s2 + $0x88] sm:$0xf]
  %v4732 = vld [vmem:[%s2 + $0x8c] sm:$0xf]
  %v4733 = vld [vmem:[%s2 + $0x90] sm:$0xf]
  %v4734 = vld [vmem:[%s2 + $0x94] sm:$0xf]
  %v4735 = vld [vmem:[%s2 + $0x98] sm:$0xf]
  %v4736 = vld [vmem:[%s2 + $0x9c] sm:$0xf]
  %v4737 = vld [vmem:[%s2 + $0xa0] sm:$0xf]
  %v4738 = vld [vmem:[%s2 + $0xa4] sm:$0xf]
  %v4739 = vld [vmem:[%s2 + $0xa8] sm:$0xf]
  %v4740 = vld [vmem:[%s2 + $0xac] sm:$0xf]
  %v4741 = vld [vmem:[%s2 + $0xb0] sm:$0xf]
  %v4742 = vld [vmem:[%s2 + $0xb4] sm:$0xf]
  %v4743 = vld [vmem:[%s2 + $0xb8] sm:$0xf]
  %v4744 = vld [vmem:[%s2 + $0xbc] sm:$0xf]
  %v4745 = vunpack.c.l.b16 %v4508
  %v4746 = vunpack.c.l.b16 %v4511
  %v4747 = vunpack.c.l.b16 %v4515
  %v4748 = vunpack.c.l.b16 %v4518
  %v4749 = vunpack.c.l.b16 %v4522
  %v4750 = vunpack.c.l.b16 %v4525
  %v4751 = vunpack.c.l.b16 %v4529
  %v4752 = vunpack.c.l.b16 %v4532
  %v4753 = vunpack.c.l.b16 %v4536
  %v4754 = vunpack.c.l.b16 %v4539
  %v4755 = vunpack.c.l.b16 %v4543
  %v4756 = vunpack.c.l.b16 %v4546
  %v4757 = vunpack.c.l.b16 %v4550
  %v4758 = vunpack.c.l.b16 %v4553
  %v4759 = vunpack.c.l.b16 %v4557
  %v4760 = vunpack.c.l.b16 %v4560
  %v4761 = vunpack.c.l.b16 %v4564
  %v4762 = vunpack.c.l.b16 %v4567
  %v4763 = vunpack.c.l.b16 %v4571
  %v4764 = vunpack.c.l.b16 %v4574
  %v4765 = vunpack.c.l.b16 %v4578
  %v4766 = vunpack.c.l.b16 %v4581
  %v4767 = vunpack.c.l.b16 %v4585
  %v4768 = vunpack.c.l.b16 %v4588
  %v4769 = vunpack.c.l.b16 %v4592
  %v4770 = vunpack.c.l.b16 %v4595
  %v4771 = vunpack.c.l.b16 %v4599
  %v4772 = vunpack.c.l.b16 %v4602
  %v4773 = vunpack.c.l.b16 %v4606
  %v4774 = vunpack.c.l.b16 %v4609
  %v4775 = vunpack.c.l.b16 %v4613
  %v4776 = vunpack.c.l.b16 %v4616
  %v4777 = vunpack.c.l.b16 %v4620
  %v4778 = vunpack.c.l.b16 %v4623
  %v4779 = vunpack.c.l.b16 %v4627
  %v4780 = vunpack.c.l.b16 %v4630
  %v4781 = vunpack.c.l.b16 %v4634
  %v4782 = vunpack.c.l.b16 %v4637
  %v4783 = vunpack.c.l.b16 %v4641
  %v4784 = vunpack.c.l.b16 %v4644
  %v4785 = vunpack.c.l.b16 %v4648
  %v4786 = vunpack.c.l.b16 %v4651
  %v4787 = vunpack.c.l.b16 %v4655
  %v4788 = vunpack.c.l.b16 %v4658
  %v4789 = vunpack.c.l.b16 %v4662
  %v4790 = vunpack.c.l.b16 %v4665
  %v4791 = vunpack.c.l.b16 %v4669
  %v4792 = vunpack.c.l.b16 %v4672
  %v4793 = vunpack.c.l.b16 %v4676
  %v4794 = vunpack.c.l.b16 %v4679
  %v4795 = vunpack.c.l.b16 %v4683
  %v4796 = vunpack.c.l.b16 %v4686
  %v4797 = vunpack.c.l.b16 %v4690
  %v4798 = vunpack.c.l.b16 %v4693
  %v4799 = vunpack.c.l.b16 %v4697
  %v4800 = vunpack.c.l.b16 %v4700
  %v4801 = vunpack.c.l.b16 %v4704
  %v4802 = vunpack.c.l.b16 %v4707
  %v4803 = vunpack.c.l.b16 %v4711
  %v4804 = vunpack.c.l.b16 %v4714
  %v4805 = vunpack.c.l.b16 %v4718
  %v4806 = vunpack.c.l.b16 %v4721
  %v4807 = vunpack.c.l.b16 %v4725
  %v4808 = vunpack.c.l.b16 %v4728
  %v4809 = vpack.c.b16 %v4746, %v4745
  %v4810 = vpack.c.b16 %v4748, %v4747
  %v4811 = vpack.c.b16 %v4750, %v4749
  %v4812 = vpack.c.b16 %v4752, %v4751
  %v4813 = vpack.c.b16 %v4754, %v4753
  %v4814 = vpack.c.b16 %v4756, %v4755
  %v4815 = vpack.c.b16 %v4758, %v4757
  %v4816 = vpack.c.b16 %v4760, %v4759
  %v4817 = vpack.c.b16 %v4762, %v4761
  %v4818 = vpack.c.b16 %v4764, %v4763
  %v4819 = vpack.c.b16 %v4766, %v4765
  %v4820 = vpack.c.b16 %v4768, %v4767
  %v4821 = vpack.c.b16 %v4770, %v4769
  %v4822 = vpack.c.b16 %v4772, %v4771
  %v4823 = vpack.c.b16 %v4774, %v4773
  %v4824 = vpack.c.b16 %v4776, %v4775
  %v4825 = vpack.c.b16 %v4778, %v4777
  %v4826 = vpack.c.b16 %v4780, %v4779
  %v4827 = vpack.c.b16 %v4782, %v4781
  %v4828 = vpack.c.b16 %v4784, %v4783
  %v4829 = vpack.c.b16 %v4786, %v4785
  %v4830 = vpack.c.b16 %v4788, %v4787
  %v4831 = vpack.c.b16 %v4790, %v4789
  %v4832 = vpack.c.b16 %v4792, %v4791
  %v4833 = vpack.c.b16 %v4794, %v4793
  %v4834 = vpack.c.b16 %v4796, %v4795
  %v4835 = vpack.c.b16 %v4798, %v4797
  %v4836 = vpack.c.b16 %v4800, %v4799
  %v4837 = vpack.c.b16 %v4802, %v4801
  %v4838 = vpack.c.b16 %v4804, %v4803
  %v4839 = vpack.c.b16 %v4806, %v4805
  %v4840 = vpack.c.b16 %v4808, %v4807
  %v4889 = vunpack.c.l.b16 %v4729
  %v4890 = vunpack.c.l.b16 %v4730
  %v4891 = vunpack.c.l.b16 %v4731
  %v4892 = vunpack.c.l.b16 %v4732
  %v4893 = vunpack.c.l.b16 %v4733
  %v4894 = vunpack.c.l.b16 %v4734
  %v4895 = vunpack.c.l.b16 %v4735
  %v4896 = vunpack.c.l.b16 %v4736
  %v4897 = vunpack.c.l.b16 %v4737
  %v4898 = vunpack.c.l.b16 %v4738
  %v4899 = vunpack.c.l.b16 %v4739
  %v4900 = vunpack.c.l.b16 %v4740
  %v4901 = vunpack.c.l.b16 %v4741
  %v4902 = vunpack.c.l.b16 %v4742
  %v4903 = vunpack.c.l.b16 %v4743
  %v4904 = vunpack.c.l.b16 %v4744
  %v4905 = vpack.c.b16 %v4890, %v4889
  %v4906 = vpack.c.b16 %v4892, %v4891
  %v4907 = vpack.c.b16 %v4894, %v4893
  %v4908 = vpack.c.b16 %v4896, %v4895
  %v4909 = vpack.c.b16 %v4898, %v4897
  %v4910 = vpack.c.b16 %v4900, %v4899
  %v4911 = vpack.c.b16 %v4902, %v4901
  %v4912 = vpack.c.b16 %v4904, %v4903
  %4921 = vmatprep.subr.bf16.mxu0 0
  %4922 = vmatpush1.bf16.msra.mxu0 %v4905
  %4923 = vmatprep.subr.bf16.mxu0 0
  %4924 = vmatpush1.bf16.msra.mxu0 %v4906
  %4925 = vmatprep.subr.bf16.mxu0 0
  %4926 = vmatpush1.bf16.msra.mxu0 %v4907
  %4927 = vmatprep.subr.bf16.mxu0 0
  %4928 = vmatpush1.bf16.msra.mxu0 %v4908
  %4929 = vmatprep.subr.bf16.mxu0 0
  %4930 = vmatpush1.bf16.msra.mxu0 %v4909
  %4931 = vmatprep.subr.bf16.mxu0 0
  %4932 = vmatpush1.bf16.msra.mxu0 %v4910
  %4933 = vmatprep.subr.bf16.mxu0 0
  %4934 = vmatpush1.bf16.msra.mxu0 %v4911
  %4935 = vmatprep.subr.bf16.mxu0 0
  %4936 = vmatpush1.bf16.msra.mxu0 %v4912
  %4937 = vmatprep.subr.bf16.mxu0 0
  %4938 = vmatpush1.bf16.msra.mxu0 0
  %4939 = vmatprep.subr.bf16.mxu0 0
  %4940 = vmatpush1.bf16.msra.mxu0 0
  %4941 = vmatprep.subr.bf16.mxu0 0
  %4942 = vmatpush1.bf16.msra.mxu0 0
  %4943 = vmatprep.subr.bf16.mxu0 0
  %4944 = vmatpush1.bf16.msra.mxu0 0
  %4945 = vmatprep.subr.bf16.mxu0 0
  %4946 = vmatpush1.bf16.msra.mxu0 0
  %4947 = vmatprep.subr.bf16.mxu0 0
  %4948 = vmatpush1.bf16.msra.mxu0 0
  %4949 = vmatprep.subr.bf16.mxu0 0
  %4950 = vmatpush1.bf16.msra.mxu0 0
  %4951 = vmatprep.subr.bf16.mxu0 0
  %4952 = vmatpush1.bf16.msra.mxu0 0
  %4953 = vmatprep.mubr.bf16.mxu0 0
  %4954 = vmatmul.mubr.bf16.gmra.mrb[0].mxu0 %v4809
  %v4955 = vpop.f32.mrb[0].mxu0
  %v4956 = vadd.f32 0.0, %v4955
  %v4957 = vpop.f32.mrb[0].mxu0
  %v4958 = vpop.f32.mrb[0].mxu0
  %v4959 = vadd.f32 0.0, %v4958
  %v4960 = vpop.f32.mrb[0].mxu0
  %4961 = vmatprep.mubr.bf16.mxu0 0
  %4962 = vmatmul.mubr.bf16.gmra.mrb[0].mxu0 %v4810
  %v4963 = vpop.f32.mrb[0].mxu0
  %v4964 = vadd.f32 0.0, %v4963
  %v4965 = vpop.f32.mrb[0].mxu0
  %v4966 = vpop.f32.mrb[0].mxu0
  %v4967 = vadd.f32 0.0, %v4966
  %v4968 = vpop.f32.mrb[0].mxu0
  %4969 = vmatprep.mubr.bf16.mxu0 0
  %4970 = vmatmul.mubr.bf16.gmra.mrb[0].mxu0 %v4811
  %v4971 = vpop.f32.mrb[0].mxu0
  %v4972 = vadd.f32 0.0, %v4971
  %v4973 = vpop.f32.mrb[0].mxu0
  %v4974 = vpop.f32.mrb[0].mxu0
  %v4975 = vadd.f32 0.0, %v4974
  %v4976 = vpop.f32.mrb[0].mxu0
  %4977 = vmatprep.mubr.bf16.mxu0 0
  %4978 = vmatmul.mubr.bf16.gmra.mrb[0].mxu0 %v4812
  %v4979 = vpop.f32.mrb[0].mxu0
  %v4980 = vadd.f32 0.0, %v4979
  %v4981 = vpop.f32.mrb[0].mxu0
  %v4982 = vpop.f32.mrb[0].mxu0
  %v4983 = vadd.f32 0.0, %v4982
  %v4984 = vpop.f32.mrb[0].mxu0
  %4985 = vmatprep.mubr.bf16.mxu0 0
  %4986 = vmatmul.mubr.bf16.gmra.mrb[0].mxu0 %v4813
  %v4987 = vpop.f32.mrb[0].mxu0
  %v4988 = vadd.f32 0.0, %v4987
  %v4989 = vpop.f32.mrb[0].mxu0
  %v4990 = vpop.f32.mrb[0].mxu0
  %v4991 = vadd.f32 0.0, %v4990
  %v4992 = vpop.f32.mrb[0].mxu0
  %4993 = vmatprep.mubr.bf16.mxu0 0
  %4994 = vmatmul.mubr.bf16.gmra.mrb[0].mxu0 %v4814
  %v4995 = vpop.f32.mrb[0].mxu0
  %v4996 = vadd.f32 0.0, %v4995
  %v4997 = vpop.f32.mrb[0].mxu0
  %v4998 = vpop.f32.mrb[0].mxu0
  %v4999 = vadd.f32 0.0, %v4998
  %v5000 = vpop.f32.mrb[0].mxu0
  %5001 = vmatprep.mubr.bf16.mxu0 0
  %5002 = vmatmul.mubr.bf16.gmra.mrb[0].mxu0 %v4815
  %v5003 = vpop.f32.mrb[0].mxu0
  %v5004 = vadd.f32 0.0, %v5003
  %v5005 = vpop.f32.mrb[0].mxu0
  %v5006 = vpop.f32.mrb[0].mxu0
  %v5007 = vadd.f32 0.0, %v5006
  %v5008 = vpop.f32.mrb[0].mxu0
  %5009 = vmatprep.mubr.bf16.mxu0 0
  %5010 = vmatmul.mubr.bf16.gmra.mrb[0].mxu0 %v4816
  %v5011 = vpop.f32.mrb[0].mxu0
  %v5012 = vadd.f32 0.0, %v5011
  %v5013 = vpop.f32.mrb[0].mxu0
  %v5014 = vpop.f32.mrb[0].mxu0
  %v5015 = vadd.f32 0.0, %v5014
  %v5016 = vpop.f32.mrb[0].mxu0
  %5017 = vmatprep.mubr.bf16.mxu0 0
  %5018 = vmatmul.mubr.bf16.gmra.mrb[0].mxu0 %v4817
  %v5019 = vpop.f32.mrb[0].mxu0
  %v5020 = vadd.f32 0.0, %v5019
  %v5021 = vpop.f32.mrb[0].mxu0
  %v5022 = vpop.f32.mrb[0].mxu0
  %v5023 = vadd.f32 0.0, %v5022
  %v5024 = vpop.f32.mrb[0].mxu0
  %5025 = vmatprep.mubr.bf16.mxu0 0
  %5026 = vmatmul.mubr.bf16.gmra.mrb[0].mxu0 %v4818
  %v5027 = vpop.f32.mrb[0].mxu0
  %v5028 = vadd.f32 0.0, %v5027
  %v5029 = vpop.f32.mrb[0].mxu0
  %v5030 = vpop.f32.mrb[0].mxu0
  %v5031 = vadd.f32 0.0, %v5030
  %v5032 = vpop.f32.mrb[0].mxu0
  %5033 = vmatprep.mubr.bf16.mxu0 0
  %5034 = vmatmul.mubr.bf16.gmra.mrb[0].mxu0 %v4819
  %v5035 = vpop.f32.mrb[0].mxu0
  %v5036 = vadd.f32 0.0, %v5035
  %v5037 = vpop.f32.mrb[0].mxu0
  %v5038 = vpop.f32.mrb[0].mxu0
  %v5039 = vadd.f32 0.0, %v5038
  %v5040 = vpop.f32.mrb[0].mxu0
  %5041 = vmatprep.mubr.bf16.mxu0 0
  %5042 = vmatmul.mubr.bf16.gmra.mrb[0].mxu0 %v4820
  %v5043 = vpop.f32.mrb[0].mxu0
  %v5044 = vadd.f32 0.0, %v5043
  %v5045 = vpop.f32.mrb[0].mxu0
  %v5046 = vpop.f32.mrb[0].mxu0
  %v5047 = vadd.f32 0.0, %v5046
  %v5048 = vpop.f32.mrb[0].mxu0
  %5049 = vmatprep.mubr.bf16.mxu0 0
  %5050 = vmatmul.mubr.bf16.gmra.mrb[0].mxu0 %v4821
  %v5051 = vpop.f32.mrb[0].mxu0
  %v5052 = vadd.f32 0.0, %v5051
  %v5053 = vpop.f32.mrb[0].mxu0
  %v5054 = vpop.f32.mrb[0].mxu0
  %v5055 = vadd.f32 0.0, %v5054
  %v5056 = vpop.f32.mrb[0].mxu0
  %5057 = vmatprep.mubr.bf16.mxu0 0
  %5058 = vmatmul.mubr.bf16.gmra.mrb[0].mxu0 %v4822
  %v5059 = vpop.f32.mrb[0].mxu0
  %v5060 = vadd.f32 0.0, %v5059
  %v5061 = vpop.f32.mrb[0].mxu0
  %v5062 = vpop.f32.mrb[0].mxu0
  %v5063 = vadd.f32 0.0, %v5062
  %v5064 = vpop.f32.mrb[0].mxu0
  %5065 = vmatprep.mubr.bf16.mxu0 0
  %5066 = vmatmul.mubr.bf16.gmra.mrb[0].mxu0 %v4823
  %v5067 = vpop.f32.mrb[0].mxu0
  %v5068 = vadd.f32 0.0, %v5067
  %v5069 = vpop.f32.mrb[0].mxu0
  %v5070 = vpop.f32.mrb[0].mxu0
  %v5071 = vadd.f32 0.0, %v5070
  %v5072 = vpop.f32.mrb[0].mxu0
  %5073 = vmatprep.mubr.bf16.mxu0 0
  %5074 = vmatmul.mubr.bf16.gmra.mrb[0].mxu0 %v4824
  %v5075 = vpop.f32.mrb[0].mxu0
  %v5076 = vadd.f32 0.0, %v5075
  %v5077 = vpop.f32.mrb[0].mxu0
  %v5078 = vpop.f32.mrb[0].mxu0
  %v5079 = vadd.f32 0.0, %v5078
  %v5080 = vpop.f32.mrb[0].mxu0
  %5081 = vmatprep.mubr.bf16.mxu0 0
  %5082 = vmatmul.mubr.bf16.gmra.mrb[0].mxu0 %v4825
  %v5083 = vpop.f32.mrb[0].mxu0
  %v5084 = vadd.f32 0.0, %v5083
  %v5085 = vpop.f32.mrb[0].mxu0
  %v5086 = vpop.f32.mrb[0].mxu0
  %v5087 = vadd.f32 0.0, %v5086
  %v5088 = vpop.f32.mrb[0].mxu0
  %5089 = vmatprep.mubr.bf16.mxu0 0
  %5090 = vmatmul.mubr.bf16.gmra.mrb[0].mxu0 %v4826
  %v5091 = vpop.f32.mrb[0].mxu0
  %v5092 = vadd.f32 0.0, %v5091
  %v5093 = vpop.f32.mrb[0].mxu0
  %v5094 = vpop.f32.mrb[0].mxu0
  %v5095 = vadd.f32 0.0, %v5094
  %v5096 = vpop.f32.mrb[0].mxu0
  %5097 = vmatprep.mubr.bf16.mxu0 0
  %5098 = vmatmul.mubr.bf16.gmra.mrb[0].mxu0 %v4827
  %v5099 = vpop.f32.mrb[0].mxu0
  %v5100 = vadd.f32 0.0, %v5099
  %v5101 = vpop.f32.mrb[0].mxu0
  %v5102 = vpop.f32.mrb[0].mxu0
  %v5103 = vadd.f32 0.0, %v5102
  %v5104 = vpop.f32.mrb[0].mxu0
  %5105 = vmatprep.mubr.bf16.mxu0 0
  %5106 = vmatmul.mubr.bf16.gmra.mrb[0].mxu0 %v4828
  %v5107 = vpop.f32.mrb[0].mxu0
  %v5108 = vadd.f32 0.0, %v5107
  %v5109 = vpop.f32.mrb[0].mxu0
  %v5110 = vpop.f32.mrb[0].mxu0
  %v5111 = vadd.f32 0.0, %v5110
  %v5112 = vpop.f32.mrb[0].mxu0
  %5113 = vmatprep.mubr.bf16.mxu0 0
  %5114 = vmatmul.mubr.bf16.gmra.mrb[0].mxu0 %v4829
  %v5115 = vpop.f32.mrb[0].mxu0
  %v5116 = vadd.f32 0.0, %v5115
  %v5117 = vpop.f32.mrb[0].mxu0
  %v5118 = vpop.f32.mrb[0].mxu0
  %v5119 = vadd.f32 0.0, %v5118
  %v5120 = vpop.f32.mrb[0].mxu0
  %5121 = vmatprep.mubr.bf16.mxu0 0
  %5122 = vmatmul.mubr.bf16.gmra.mrb[0].mxu0 %v4830
  %v5123 = vpop.f32.mrb[0].mxu0
  %v5124 = vadd.f32 0.0, %v5123
  %v5125 = vpop.f32.mrb[0].mxu0
  %v5126 = vpop.f32.mrb[0].mxu0
  %v5127 = vadd.f32 0.0, %v5126
  %v5128 = vpop.f32.mrb[0].mxu0
  %5129 = vmatprep.mubr.bf16.mxu0 0
  %5130 = vmatmul.mubr.bf16.gmra.mrb[0].mxu0 %v4831
  %v5131 = vpop.f32.mrb[0].mxu0
  %v5132 = vadd.f32 0.0, %v5131
  %v5133 = vpop.f32.mrb[0].mxu0
  %v5134 = vpop.f32.mrb[0].mxu0
  %v5135 = vadd.f32 0.0, %v5134
  %v5136 = vpop.f32.mrb[0].mxu0
  %5137 = vmatprep.mubr.bf16.mxu0 0
  %5138 = vmatmul.mubr.bf16.gmra.mrb[0].mxu0 %v4832
  %v5139 = vpop.f32.mrb[0].mxu0
  %v5140 = vadd.f32 0.0, %v5139
  %v5141 = vpop.f32.mrb[0].mxu0
  %v5142 = vpop.f32.mrb[0].mxu0
  %v5143 = vadd.f32 0.0, %v5142
  %v5144 = vpop.f32.mrb[0].mxu0
  %5145 = vmatprep.mubr.bf16.mxu0 0
  %5146 = vmatmul.mubr.bf16.gmra.mrb[0].mxu0 %v4833
  %v5147 = vpop.f32.mrb[0].mxu0
  %v5148 = vadd.f32 0.0, %v5147
  %v5149 = vpop.f32.mrb[0].mxu0
  %v5150 = vpop.f32.mrb[0].mxu0
  %v5151 = vadd.f32 0.0, %v5150
  %v5152 = vpop.f32.mrb[0].mxu0
  %5153 = vmatprep.mubr.bf16.mxu0 0
  %5154 = vmatmul.mubr.bf16.gmra.mrb[0].mxu0 %v4834
  %v5155 = vpop.f32.mrb[0].mxu0
  %v5156 = vadd.f32 0.0, %v5155
  %v5157 = vpop.f32.mrb[0].mxu0
  %v5158 = vpop.f32.mrb[0].mxu0
  %v5159 = vadd.f32 0.0, %v5158
  %v5160 = vpop.f32.mrb[0].mxu0
  %5161 = vmatprep.mubr.bf16.mxu0 0
  %5162 = vmatmul.mubr.bf16.gmra.mrb[0].mxu0 %v4835
  %v5163 = vpop.f32.mrb[0].mxu0
  %v5164 = vadd.f32 0.0, %v5163
  %v5165 = vpop.f32.mrb[0].mxu0
  %v5166 = vpop.f32.mrb[0].mxu0
  %v5167 = vadd.f32 0.0, %v5166
  %v5168 = vpop.f32.mrb[0].mxu0
  %5169 = vmatprep.mubr.bf16.mxu0 0
  %5170 = vmatmul.mubr.bf16.gmra.mrb[0].mxu0 %v4836
  %v5171 = vpop.f32.mrb[0].mxu0
  %v5172 = vadd.f32 0.0, %v5171
  %v5173 = vpop.f32.mrb[0].mxu0
  %v5174 = vpop.f32.mrb[0].mxu0
  %v5175 = vadd.f32 0.0, %v5174
  %v5176 = vpop.f32.mrb[0].mxu0
  %5177 = vmatprep.mubr.bf16.mxu0 0
  %5178 = vmatmul.mubr.bf16.gmra.mrb[0].mxu0 %v4837
  %v5179 = vpop.f32.mrb[0].mxu0
  %v5180 = vadd.f32 0.0, %v5179
  %v5181 = vpop.f32.mrb[0].mxu0
  %v5182 = vpop.f32.mrb[0].mxu0
  %v5183 = vadd.f32 0.0, %v5182
  %v5184 = vpop.f32.mrb[0].mxu0
  %5185 = vmatprep.mubr.bf16.mxu0 0
  %5186 = vmatmul.mubr.bf16.gmra.mrb[0].mxu0 %v4838
  %v5187 = vpop.f32.mrb[0].mxu0
  %v5188 = vadd.f32 0.0, %v5187
  %v5189 = vpop.f32.mrb[0].mxu0
  %v5190 = vpop.f32.mrb[0].mxu0
  %v5191 = vadd.f32 0.0, %v5190
  %v5192 = vpop.f32.mrb[0].mxu0
  %5193 = vmatprep.mubr.bf16.mxu0 0
  %5194 = vmatmul.mubr.bf16.gmra.mrb[0].mxu0 %v4839
  %v5195 = vpop.f32.mrb[0].mxu0
  %v5196 = vadd.f32 0.0, %v5195
  %v5197 = vpop.f32.mrb[0].mxu0
  %v5198 = vpop.f32.mrb[0].mxu0
  %v5199 = vadd.f32 0.0, %v5198
  %v5200 = vpop.f32.mrb[0].mxu0
  %5201 = vmatprep.mubr.bf16.mxu0 0
  %5202 = vmatmul.mubr.bf16.gmra.mrb[0].mxu0 %v4840
  %v5203 = vpop.f32.mrb[0].mxu0
  %v5204 = vadd.f32 0.0, %v5203
  %v5205 = vpop.f32.mrb[0].mxu0
  %v5206 = vpop.f32.mrb[0].mxu0
  %v5207 = vadd.f32 0.0, %v5206
  %v5208 = vpop.f32.mrb[0].mxu0
  %5209 = vdwg.mxu0
  %v5210 = vadd.f32 %v4152, %v4956
  %v5211 = vadd.f32 %v4155, %v4959
  %v5212 = vadd.f32 %v4160, %v4964
  %v5213 = vadd.f32 %v4163, %v4967
  %v5214 = vadd.f32 %v4168, %v4972
  %v5215 = vadd.f32 %v4171, %v4975
  %v5216 = vadd.f32 %v4176, %v4980
  %v5217 = vadd.f32 %v4179, %v4983
  %v5218 = vadd.f32 %v4184, %v4988
  %v5219 = vadd.f32 %v4187, %v4991
  %v5220 = vadd.f32 %v4192, %v4996
  %v5221 = vadd.f32 %v4195, %v4999
  %v5222 = vadd.f32 %v4200, %v5004
  %v5223 = vadd.f32 %v4203, %v5007
  %v5224 = vadd.f32 %v4208, %v5012
  %v5225 = vadd.f32 %v4211, %v5015
  %v5226 = vadd.f32 %v4216, %v5020
  %v5227 = vadd.f32 %v4219, %v5023
  %v5228 = vadd.f32 %v4224, %v5028
  %v5229 = vadd.f32 %v4227, %v5031
  %v5230 = vadd.f32 %v4232, %v5036
  %v5231 = vadd.f32 %v4235, %v5039
  %v5232 = vadd.f32 %v4240, %v5044
  %v5233 = vadd.f32 %v4243, %v5047
  %v5234 = vadd.f32 %v4248, %v5052
  %v5235 = vadd.f32 %v4251, %v5055
  %v5236 = vadd.f32 %v4256, %v5060
  %v5237 = vadd.f32 %v4259, %v5063
  %v5238 = vadd.f32 %v4264, %v5068
  %v5239 = vadd.f32 %v4267, %v5071
  %v5240 = vadd.f32 %v4272, %v5076
  %v5241 = vadd.f32 %v4275, %v5079
  %v5242 = vadd.f32 %v4280, %v5084
  %v5243 = vadd.f32 %v4283, %v5087
  %v5244 = vadd.f32 %v4288, %v5092
  %v5245 = vadd.f32 %v4291, %v5095
  %v5246 = vadd.f32 %v4296, %v5100
  %v5247 = vadd.f32 %v4299, %v5103
  %v5248 = vadd.f32 %v4304, %v5108
  %v5249 = vadd.f32 %v4307, %v5111
  %v5250 = vadd.f32 %v4312, %v5116
  %v5251 = vadd.f32 %v4315, %v5119
  %v5252 = vadd.f32 %v4320, %v5124
  %v5253 = vadd.f32 %v4323, %v5127
  %v5254 = vadd.f32 %v4328, %v5132
  %v5255 = vadd.f32 %v4331, %v5135
  %v5256 = vadd.f32 %v4336, %v5140
  %v5257 = vadd.f32 %v4339, %v5143
  %v5258 = vadd.f32 %v4344, %v5148
  %v5259 = vadd.f32 %v4347, %v5151
  %v5260 = vadd.f32 %v4352, %v5156
  %v5261 = vadd.f32 %v4355, %v5159
  %v5262 = vadd.f32 %v4360, %v5164
  %v5263 = vadd.f32 %v4363, %v5167
  %v5264 = vadd.f32 %v4368, %v5172
  %v5265 = vadd.f32 %v4371, %v5175
  %v5266 = vadd.f32 %v4376, %v5180
  %v5267 = vadd.f32 %v4379, %v5183
  %v5268 = vadd.f32 %v4384, %v5188
  %v5269 = vadd.f32 %v4387, %v5191
  %v5270 = vadd.f32 %v4392, %v5196
  %v5271 = vadd.f32 %v4395, %v5199
  %v5272 = vadd.f32 %v4400, %v5204
  %v5273 = vadd.f32 %v4403, %v5207
  %v5274 = vld [vmem:[%s2283] sm:$0xf]
  %v5275 = vld [vmem:[%s2283 + $0x4] sm:$0xf]
  %v5276 = vld [vmem:[%s2283 + $0xc] sm:$0xf]
  %v5277 = vld [vmem:[%s2283 + $0x10] sm:$0xf]
  %v5278 = vld [vmem:[%s2283 + $0x18] sm:$0xf]
  %v5279 = vld [vmem:[%s2283 + $0x1c] sm:$0xf]
  %v5280 = vld [vmem:[%s2283 + $0x24] sm:$0xf]
  %v5281 = vld [vmem:[%s2283 + $0x28] sm:$0xf]
  %v5282 = vld [vmem:[%s2283 + $0x30] sm:$0xf]
  %v5283 = vld [vmem:[%s2283 + $0x34] sm:$0xf]
  %v5284 = vld [vmem:[%s2283 + $0x3c] sm:$0xf]
  %v5285 = vld [vmem:[%s2283 + $0x40] sm:$0xf]
  %v5286 = vld [vmem:[%s2283 + $0x48] sm:$0xf]
  %v5287 = vld [vmem:[%s2283 + $0x4c] sm:$0xf]
  %v5288 = vld [vmem:[%s2283 + $0x54] sm:$0xf]
  %v5289 = vld [vmem:[%s2283 + $0x58] sm:$0xf]
  %v5290 = vld [vmem:[%s2283 + $0x60] sm:$0xf]
  %v5291 = vld [vmem:[%s2283 + $0x64] sm:$0xf]
  %v5292 = vld [vmem:[%s2283 + $0x6c] sm:$0xf]
  %v5293 = vld [vmem:[%s2283 + $0x70] sm:$0xf]
  %v5294 = vld [vmem:[%s2283 + $0x78] sm:$0xf]
  %v5295 = vld [vmem:[%s2283 + $0x7c] sm:$0xf]
  %v5296 = vld [vmem:[%s2283 + $0x84] sm:$0xf]
  %v5297 = vld [vmem:[%s2283 + $0x88] sm:$0xf]
  %v5298 = vld [vmem:[%s2283 + $0x90] sm:$0xf]
  %v5299 = vld [vmem:[%s2283 + $0x94] sm:$0xf]
  %v5300 = vld [vmem:[%s2283 + $0x9c] sm:$0xf]
  %v5301 = vld [vmem:[%s2283 + $0xa0] sm:$0xf]
  %v5302 = vld [vmem:[%s2283 + $0xa8] sm:$0xf]
  %v5303 = vld [vmem:[%s2283 + $0xac] sm:$0xf]
  %v5304 = vld [vmem:[%s2283 + $0xb4] sm:$0xf]
  %v5305 = vld [vmem:[%s2283 + $0xb8] sm:$0xf]
  %v5306 = vld [vmem:[%s2283 + $0xd8] sm:$0xf]
  %v5307 = vld [vmem:[%s2283 + $0xdc] sm:$0xf]
  %v5308 = vld [vmem:[%s2283 + $0xe4] sm:$0xf]
  %v5309 = vld [vmem:[%s2283 + $0xe8] sm:$0xf]
  %v5310 = vld [vmem:[%s2283 + $0xf0] sm:$0xf]
  %v5311 = vld [vmem:[%s2283 + $0xf4] sm:$0xf]
  %v5312 = vld [vmem:[%s2283 + $0xfc] sm:$0xf]
  %v5313 = vld [vmem:[%s2283 + $0x100] sm:$0xf]
  %v5314 = vld [vmem:[%s2283 + $0x108] sm:$0xf]
  %v5315 = vld [vmem:[%s2283 + $0x10c] sm:$0xf]
  %v5316 = vld [vmem:[%s2283 + $0x114] sm:$0xf]
  %v5317 = vld [vmem:[%s2283 + $0x118] sm:$0xf]
  %v5318 = vld [vmem:[%s2283 + $0x120] sm:$0xf]
  %v5319 = vld [vmem:[%s2283 + $0x124] sm:$0xf]
  %v5320 = vld [vmem:[%s2283 + $0x12c] sm:$0xf]
  %v5321 = vld [vmem:[%s2283 + $0x130] sm:$0xf]
  %v5322 = vld [vmem:[%s2283 + $0x138] sm:$0xf]
  %v5323 = vld [vmem:[%s2283 + $0x13c] sm:$0xf]
  %v5324 = vld [vmem:[%s2283 + $0x144] sm:$0xf]
  %v5325 = vld [vmem:[%s2283 + $0x148] sm:$0xf]
  %v5326 = vld [vmem:[%s2283 + $0x150] sm:$0xf]
  %v5327 = vld [vmem:[%s2283 + $0x154] sm:$0xf]
  %v5328 = vld [vmem:[%s2283 + $0x15c] sm:$0xf]
  %v5329 = vld [vmem:[%s2283 + $0x160] sm:$0xf]
  %v5330 = vld [vmem:[%s2283 + $0x168] sm:$0xf]
  %v5331 = vld [vmem:[%s2283 + $0x16c] sm:$0xf]
  %v5332 = vld [vmem:[%s2283 + $0x174] sm:$0xf]
  %v5333 = vld [vmem:[%s2283 + $0x178] sm:$0xf]
  %v5334 = vld [vmem:[%s2283 + $0x180] sm:$0xf]
  %v5335 = vld [vmem:[%s2283 + $0x184] sm:$0xf]
  %v5336 = vld [vmem:[%s2283 + $0x18c] sm:$0xf]
  %v5337 = vld [vmem:[%s2283 + $0x190] sm:$0xf]
  %v5338 = vld [vmem:[%s2 + $0xc0] sm:$0xf]
  %v5339 = vld [vmem:[%s2 + $0xc4] sm:$0xf]
  %v5340 = vld [vmem:[%s2 + $0xc8] sm:$0xf]
  %v5341 = vld [vmem:[%s2 + $0xcc] sm:$0xf]
  %v5342 = vld [vmem:[%s2 + $0xd0] sm:$0xf]
  %v5343 = vld [vmem:[%s2 + $0xd4] sm:$0xf]
  %v5344 = vld [vmem:[%s2 + $0xd8] sm:$0xf]
  %v5345 = vld [vmem:[%s2 + $0xdc] sm:$0xf]
  %v5346 = vld [vmem:[%s2 + $0xe0] sm:$0xf]
  %v5347 = vld [vmem:[%s2 + $0xe4] sm:$0xf]
  %v5348 = vld [vmem:[%s2 + $0xe8] sm:$0xf]
  %v5349 = vld [vmem:[%s2 + $0xec] sm:$0xf]
  %v5350 = vld [vmem:[%s2 + $0xf0] sm:$0xf]
  %v5351 = vld [vmem:[%s2 + $0xf4] sm:$0xf]
  %v5352 = vld [vmem:[%s2 + $0xf8] sm:$0xf]
  %v5353 = vld [vmem:[%s2 + $0xfc] sm:$0xf]
  %v5418 = vunpack.c.l.b16 %v5274
  %v5419 = vunpack.c.l.b16 %v5275
  %v5420 = vunpack.c.l.b16 %v5276
  %v5421 = vunpack.c.l.b16 %v5277
  %v5422 = vunpack.c.l.b16 %v5278
  %v5423 = vunpack.c.l.b16 %v5279
  %v5424 = vunpack.c.l.b16 %v5280
  %v5425 = vunpack.c.l.b16 %v5281
  %v5426 = vunpack.c.l.b16 %v5282
  %v5427 = vunpack.c.l.b16 %v5283
  %v5428 = vunpack.c.l.b16 %v5284
  %v5429 = vunpack.c.l.b16 %v5285
  %v5430 = vunpack.c.l.b16 %v5286
  %v5431 = vunpack.c.l.b16 %v5287
  %v5432 = vunpack.c.l.b16 %v5288
  %v5433 = vunpack.c.l.b16 %v5289
  %v5434 = vunpack.c.l.b16 %v5290
  %v5435 = vunpack.c.l.b16 %v5291
  %v5436 = vunpack.c.l.b16 %v5292
  %v5437 = vunpack.c.l.b16 %v5293
  %v5438 = vunpack.c.l.b16 %v5294
  %v5439 = vunpack.c.l.b16 %v5295
  %v5440 = vunpack.c.l.b16 %v5296
  %v5441 = vunpack.c.l.b16 %v5297
  %v5442 = vunpack.c.l.b16 %v5298
  %v5443 = vunpack.c.l.b16 %v5299
  %v5444 = vunpack.c.l.b16 %v5300
  %v5445 = vunpack.c.l.b16 %v5301
  %v5446 = vunpack.c.l.b16 %v5302
  %v5447 = vunpack.c.l.b16 %v5303
  %v5448 = vunpack.c.l.b16 %v5304
  %v5449 = vunpack.c.l.b16 %v5305
  %v5450 = vunpack.c.l.b16 %v5306
  %v5451 = vunpack.c.l.b16 %v5307
  %v5452 = vunpack.c.l.b16 %v5308
  %v5453 = vunpack.c.l.b16 %v5309
  %v5454 = vunpack.c.l.b16 %v5310
  %v5455 = vunpack.c.l.b16 %v5311
  %v5456 = vunpack.c.l.b16 %v5312
  %v5457 = vunpack.c.l.b16 %v5313
  %v5458 = vunpack.c.l.b16 %v5314
  %v5459 = vunpack.c.l.b16 %v5315
  %v5460 = vunpack.c.l.b16 %v5316
  %v5461 = vunpack.c.l.b16 %v5317
  %v5462 = vunpack.c.l.b16 %v5318
  %v5463 = vunpack.c.l.b16 %v5319
  %v5464 = vunpack.c.l.b16 %v5320
  %v5465 = vunpack.c.l.b16 %v5321
  %v5466 = vunpack.c.l.b16 %v5322
  %v5467 = vunpack.c.l.b16 %v5323
  %v5468 = vunpack.c.l.b16 %v5324
  %v5469 = vunpack.c.l.b16 %v5325
  %v5470 = vunpack.c.l.b16 %v5326
  %v5471 = vunpack.c.l.b16 %v5327
  %v5472 = vunpack.c.l.b16 %v5328
  %v5473 = vunpack.c.l.b16 %v5329
  %v5474 = vunpack.c.l.b16 %v5330
  %v5475 = vunpack.c.l.b16 %v5331
  %v5476 = vunpack.c.l.b16 %v5332
  %v5477 = vunpack.c.l.b16 %v5333
  %v5478 = vunpack.c.l.b16 %v5334
  %v5479 = vunpack.c.l.b16 %v5335
  %v5480 = vunpack.c.l.b16 %v5336
  %v5481 = vunpack.c.l.b16 %v5337
  %v5482 = vpack.c.b16 %v5419, %v5418
  %v5483 = vpack.c.b16 %v5421, %v5420
  %v5484 = vpack.c.b16 %v5423, %v5422
  %v5485 = vpack.c.b16 %v5425, %v5424
  %v5486 = vpack.c.b16 %v5427, %v5426
  %v5487 = vpack.c.b16 %v5429, %v5428
  %v5488 = vpack.c.b16 %v5431, %v5430
  %v5489 = vpack.c.b16 %v5433, %v5432
  %v5490 = vpack.c.b16 %v5435, %v5434
  %v5491 = vpack.c.b16 %v5437, %v5436
  %v5492 = vpack.c.b16 %v5439, %v5438
  %v5493 = vpack.c.b16 %v5441, %v5440
  %v5494 = vpack.c.b16 %v5443, %v5442
  %v5495 = vpack.c.b16 %v5445, %v5444
  %v5496 = vpack.c.b16 %v5447, %v5446
  %v5497 = vpack.c.b16 %v5449, %v5448
  %v5498 = vpack.c.b16 %v5451, %v5450
  %v5499 = vpack.c.b16 %v5453, %v5452
  %v5500 = vpack.c.b16 %v5455, %v5454
  %v5501 = vpack.c.b16 %v5457, %v5456
  %v5502 = vpack.c.b16 %v5459, %v5458
  %v5503 = vpack.c.b16 %v5461, %v5460
  %v5504 = vpack.c.b16 %v5463, %v5462
  %v5505 = vpack.c.b16 %v5465, %v5464
  %v5506 = vpack.c.b16 %v5467, %v5466
  %v5507 = vpack.c.b16 %v5469, %v5468
  %v5508 = vpack.c.b16 %v5471, %v5470
  %v5509 = vpack.c.b16 %v5473, %v5472
  %v5510 = vpack.c.b16 %v5475, %v5474
  %v5511 = vpack.c.b16 %v5477, %v5476
  %v5512 = vpack.c.b16 %v5479, %v5478
  %v5513 = vpack.c.b16 %v5481, %v5480
  %v5562 = vunpack.c.l.b16 %v5338
  %v5563 = vunpack.c.l.b16 %v5339
  %v5564 = vunpack.c.l.b16 %v5340
  %v5565 = vunpack.c.l.b16 %v5341
  %v5566 = vunpack.c.l.b16 %v5342
  %v5567 = vunpack.c.l.b16 %v5343
  %v5568 = vunpack.c.l.b16 %v5344
  %v5569 = vunpack.c.l.b16 %v5345
  %v5570 = vunpack.c.l.b16 %v5346
  %v5571 = vunpack.c.l.b16 %v5347
  %v5572 = vunpack.c.l.b16 %v5348
  %v5573 = vunpack.c.l.b16 %v5349
  %v5574 = vunpack.c.l.b16 %v5350
  %v5575 = vunpack.c.l.b16 %v5351
  %v5576 = vunpack.c.l.b16 %v5352
  %v5577 = vunpack.c.l.b16 %v5353
  %v5578 = vpack.c.b16 %v5563, %v5562
  %v5579 = vpack.c.b16 %v5565, %v5564
  %v5580 = vpack.c.b16 %v5567, %v5566
  %v5581 = vpack.c.b16 %v5569, %v5568
  %v5582 = vpack.c.b16 %v5571, %v5570
  %v5583 = vpack.c.b16 %v5573, %v5572
  %v5584 = vpack.c.b16 %v5575, %v5574
  %v5585 = vpack.c.b16 %v5577, %v5576
  %5594 = vmatprep.subr.bf16.mxu0 0
  %5595 = vmatpush1.bf16.msra.mxu0 %v5578
  %5596 = vmatprep.subr.bf16.mxu0 0
  %5597 = vmatpush1.bf16.msra.mxu0 %v5579
  %5598 = vmatprep.subr.bf16.mxu0 0
  %5599 = vmatpush1.bf16.msra.mxu0 %v5580
  %5600 = vmatprep.subr.bf16.mxu0 0
  %5601 = vmatpush1.bf16.msra.mxu0 %v5581
  %5602 = vmatprep.subr.bf16.mxu0 0
  %5603 = vmatpush1.bf16.msra.mxu0 %v5582
  %5604 = vmatprep.subr.bf16.mxu0 0
  %5605 = vmatpush1.bf16.msra.mxu0 %v5583
  %5606 = vmatprep.subr.bf16.mxu0 0
  %5607 = vmatpush1.bf16.msra.mxu0 %v5584
  %5608 = vmatprep.subr.bf16.mxu0 0
  %5609 = vmatpush1.bf16.msra.mxu0 %v5585
  %5610 = vmatprep.subr.bf16.mxu0 0
  %5611 = vmatpush1.bf16.msra.mxu0 0
  %5612 = vmatprep.subr.bf16.mxu0 0
  %5613 = vmatpush1.bf16.msra.mxu0 0
  %5614 = vmatprep.subr.bf16.mxu0 0
  %5615 = vmatpush1.bf16.msra.mxu0 0
  %5616 = vmatprep.subr.bf16.mxu0 0
  %5617 = vmatpush1.bf16.msra.mxu0 0
  %5618 = vmatprep.subr.bf16.mxu0 0
  %5619 = vmatpush1.bf16.msra.mxu0 0
  %5620 = vmatprep.subr.bf16.mxu0 0
  %5621 = vmatpush1.bf16.msra.mxu0 0
  %5622 = vmatprep.subr.bf16.mxu0 0
  %5623 = vmatpush1.bf16.msra.mxu0 0
  %5624 = vmatprep.subr.bf16.mxu0 0
  %5625 = vmatpush1.bf16.msra.mxu0 0
  %5626 = vmatprep.mubr.bf16.mxu0 0
  %5627 = vmatmul.mubr.bf16.gmra.mrb[0].mxu0 %v5482
  %v5628 = vpop.f32.mrb[0].mxu0
  %v5629 = vadd.f32 0.0, %v5628
  %v5630 = vpop.f32.mrb[0].mxu0
  %v5631 = vpop.f32.mrb[0].mxu0
  %v5632 = vadd.f32 0.0, %v5631
  %v5633 = vpop.f32.mrb[0].mxu0
  %5634 = vmatprep.mubr.bf16.mxu0 0
  %5635 = vmatmul.mubr.bf16.gmra.mrb[0].mxu0 %v5483
  %v5636 = vpop.f32.mrb[0].mxu0
  %v5637 = vadd.f32 0.0, %v5636
  %v5638 = vpop.f32.mrb[0].mxu0
  %v5639 = vpop.f32.mrb[0].mxu0
  %v5640 = vadd.f32 0.0, %v5639
  %v5641 = vpop.f32.mrb[0].mxu0
  %5642 = vmatprep.mubr.bf16.mxu0 0
  %5643 = vmatmul.mubr.bf16.gmra.mrb[0].mxu0 %v5484
  %v5644 = vpop.f32.mrb[0].mxu0
  %v5645 = vadd.f32 0.0, %v5644
  %v5646 = vpop.f32.mrb[0].mxu0
  %v5647 = vpop.f32.mrb[0].mxu0
  %v5648 = vadd.f32 0.0, %v5647
  %v5649 = vpop.f32.mrb[0].mxu0
  %5650 = vmatprep.mubr.bf16.mxu0 0
  %5651 = vmatmul.mubr.bf16.gmra.mrb[0].mxu0 %v5485
  %v5652 = vpop.f32.mrb[0].mxu0
  %v5653 = vadd.f32 0.0, %v5652
  %v5654 = vpop.f32.mrb[0].mxu0
  %v5655 = vpop.f32.mrb[0].mxu0
  %v5656 = vadd.f32 0.0, %v5655
  %v5657 = vpop.f32.mrb[0].mxu0
  %5658 = vmatprep.mubr.bf16.mxu0 0
  %5659 = vmatmul.mubr.bf16.gmra.mrb[0].mxu0 %v5486
  %v5660 = vpop.f32.mrb[0].mxu0
  %v5661 = vadd.f32 0.0, %v5660
  %v5662 = vpop.f32.mrb[0].mxu0
  %v5663 = vpop.f32.mrb[0].mxu0
  %v5664 = vadd.f32 0.0, %v5663
  %v5665 = vpop.f32.mrb[0].mxu0
  %5666 = vmatprep.mubr.bf16.mxu0 0
  %5667 = vmatmul.mubr.bf16.gmra.mrb[0].mxu0 %v5487
  %v5668 = vpop.f32.mrb[0].mxu0
  %v5669 = vadd.f32 0.0, %v5668
  %v5670 = vpop.f32.mrb[0].mxu0
  %v5671 = vpop.f32.mrb[0].mxu0
  %v5672 = vadd.f32 0.0, %v5671
  %v5673 = vpop.f32.mrb[0].mxu0
  %5674 = vmatprep.mubr.bf16.mxu0 0
  %5675 = vmatmul.mubr.bf16.gmra.mrb[0].mxu0 %v5488
  %v5676 = vpop.f32.mrb[0].mxu0
  %v5677 = vadd.f32 0.0, %v5676
  %v5678 = vpop.f32.mrb[0].mxu0
  %v5679 = vpop.f32.mrb[0].mxu0
  %v5680 = vadd.f32 0.0, %v5679
  %v5681 = vpop.f32.mrb[0].mxu0
  %5682 = vmatprep.mubr.bf16.mxu0 0
  %5683 = vmatmul.mubr.bf16.gmra.mrb[0].mxu0 %v5489
  %v5684 = vpop.f32.mrb[0].mxu0
  %v5685 = vadd.f32 0.0, %v5684
  %v5686 = vpop.f32.mrb[0].mxu0
  %v5687 = vpop.f32.mrb[0].mxu0
  %v5688 = vadd.f32 0.0, %v5687
  %v5689 = vpop.f32.mrb[0].mxu0
  %5690 = vmatprep.mubr.bf16.mxu0 0
  %5691 = vmatmul.mubr.bf16.gmra.mrb[0].mxu0 %v5490
  %v5692 = vpop.f32.mrb[0].mxu0
  %v5693 = vadd.f32 0.0, %v5692
  %v5694 = vpop.f32.mrb[0].mxu0
  %v5695 = vpop.f32.mrb[0].mxu0
  %v5696 = vadd.f32 0.0, %v5695
  %v5697 = vpop.f32.mrb[0].mxu0
  %5698 = vmatprep.mubr.bf16.mxu0 0
  %5699 = vmatmul.mubr.bf16.gmra.mrb[0].mxu0 %v5491
  %v5700 = vpop.f32.mrb[0].mxu0
  %v5701 = vadd.f32 0.0, %v5700
  %v5702 = vpop.f32.mrb[0].mxu0
  %v5703 = vpop.f32.mrb[0].mxu0
  %v5704 = vadd.f32 0.0, %v5703
  %v5705 = vpop.f32.mrb[0].mxu0
  %5706 = vmatprep.mubr.bf16.mxu0 0
  %5707 = vmatmul.mubr.bf16.gmra.mrb[0].mxu0 %v5492
  %v5708 = vpop.f32.mrb[0].mxu0
  %v5709 = vadd.f32 0.0, %v5708
  %v5710 = vpop.f32.mrb[0].mxu0
  %v5711 = vpop.f32.mrb[0].mxu0
  %v5712 = vadd.f32 0.0, %v5711
  %v5713 = vpop.f32.mrb[0].mxu0
  %5714 = vmatprep.mubr.bf16.mxu0 0
  %5715 = vmatmul.mubr.bf16.gmra.mrb[0].mxu0 %v5493
  %v5716 = vpop.f32.mrb[0].mxu0
  %v5717 = vadd.f32 0.0, %v5716
  %v5718 = vpop.f32.mrb[0].mxu0
  %v5719 = vpop.f32.mrb[0].mxu0
  %v5720 = vadd.f32 0.0, %v5719
  %v5721 = vpop.f32.mrb[0].mxu0
  %5722 = vmatprep.mubr.bf16.mxu0 0
  %5723 = vmatmul.mubr.bf16.gmra.mrb[0].mxu0 %v5494
  %v5724 = vpop.f32.mrb[0].mxu0
  %v5725 = vadd.f32 0.0, %v5724
  %v5726 = vpop.f32.mrb[0].mxu0
  %v5727 = vpop.f32.mrb[0].mxu0
  %v5728 = vadd.f32 0.0, %v5727
  %v5729 = vpop.f32.mrb[0].mxu0
  %5730 = vmatprep.mubr.bf16.mxu0 0
  %5731 = vmatmul.mubr.bf16.gmra.mrb[0].mxu0 %v5495
  %v5732 = vpop.f32.mrb[0].mxu0
  %v5733 = vadd.f32 0.0, %v5732
  %v5734 = vpop.f32.mrb[0].mxu0
  %v5735 = vpop.f32.mrb[0].mxu0
  %v5736 = vadd.f32 0.0, %v5735
  %v5737 = vpop.f32.mrb[0].mxu0
  %5738 = vmatprep.mubr.bf16.mxu0 0
  %5739 = vmatmul.mubr.bf16.gmra.mrb[0].mxu0 %v5496
  %v5740 = vpop.f32.mrb[0].mxu0
  %v5741 = vadd.f32 0.0, %v5740
  %v5742 = vpop.f32.mrb[0].mxu0
  %v5743 = vpop.f32.mrb[0].mxu0
  %v5744 = vadd.f32 0.0, %v5743
  %v5745 = vpop.f32.mrb[0].mxu0
  %5746 = vmatprep.mubr.bf16.mxu0 0
  %5747 = vmatmul.mubr.bf16.gmra.mrb[0].mxu0 %v5497
  %v5748 = vpop.f32.mrb[0].mxu0
  %v5749 = vadd.f32 0.0, %v5748
  %v5750 = vpop.f32.mrb[0].mxu0
  %v5751 = vpop.f32.mrb[0].mxu0
  %v5752 = vadd.f32 0.0, %v5751
  %v5753 = vpop.f32.mrb[0].mxu0
  %5754 = vmatprep.mubr.bf16.mxu0 0
  %5755 = vmatmul.mubr.bf16.gmra.mrb[0].mxu0 %v5498
  %v5756 = vpop.f32.mrb[0].mxu0
  %v5757 = vadd.f32 0.0, %v5756
  %v5758 = vpop.f32.mrb[0].mxu0
  %v5759 = vpop.f32.mrb[0].mxu0
  %v5760 = vadd.f32 0.0, %v5759
  %v5761 = vpop.f32.mrb[0].mxu0
  %5762 = vmatprep.mubr.bf16.mxu0 0
  %5763 = vmatmul.mubr.bf16.gmra.mrb[0].mxu0 %v5499
  %v5764 = vpop.f32.mrb[0].mxu0
  %v5765 = vadd.f32 0.0, %v5764
  %v5766 = vpop.f32.mrb[0].mxu0
  %v5767 = vpop.f32.mrb[0].mxu0
  %v5768 = vadd.f32 0.0, %v5767
  %v5769 = vpop.f32.mrb[0].mxu0
  %5770 = vmatprep.mubr.bf16.mxu0 0
  %5771 = vmatmul.mubr.bf16.gmra.mrb[0].mxu0 %v5500
  %v5772 = vpop.f32.mrb[0].mxu0
  %v5773 = vadd.f32 0.0, %v5772
  %v5774 = vpop.f32.mrb[0].mxu0
  %v5775 = vpop.f32.mrb[0].mxu0
  %v5776 = vadd.f32 0.0, %v5775
  %v5777 = vpop.f32.mrb[0].mxu0
  %5778 = vmatprep.mubr.bf16.mxu0 0
  %5779 = vmatmul.mubr.bf16.gmra.mrb[0].mxu0 %v5501
  %v5780 = vpop.f32.mrb[0].mxu0
  %v5781 = vadd.f32 0.0, %v5780
  %v5782 = vpop.f32.mrb[0].mxu0
  %v5783 = vpop.f32.mrb[0].mxu0
  %v5784 = vadd.f32 0.0, %v5783
  %v5785 = vpop.f32.mrb[0].mxu0
  %5786 = vmatprep.mubr.bf16.mxu0 0
  %5787 = vmatmul.mubr.bf16.gmra.mrb[0].mxu0 %v5502
  %v5788 = vpop.f32.mrb[0].mxu0
  %v5789 = vadd.f32 0.0, %v5788
  %v5790 = vpop.f32.mrb[0].mxu0
  %v5791 = vpop.f32.mrb[0].mxu0
  %v5792 = vadd.f32 0.0, %v5791
  %v5793 = vpop.f32.mrb[0].mxu0
  %5794 = vmatprep.mubr.bf16.mxu0 0
  %5795 = vmatmul.mubr.bf16.gmra.mrb[0].mxu0 %v5503
  %v5796 = vpop.f32.mrb[0].mxu0
  %v5797 = vadd.f32 0.0, %v5796
  %v5798 = vpop.f32.mrb[0].mxu0
  %v5799 = vpop.f32.mrb[0].mxu0
  %v5800 = vadd.f32 0.0, %v5799
  %v5801 = vpop.f32.mrb[0].mxu0
  %5802 = vmatprep.mubr.bf16.mxu0 0
  %5803 = vmatmul.mubr.bf16.gmra.mrb[0].mxu0 %v5504
  %v5804 = vpop.f32.mrb[0].mxu0
  %v5805 = vadd.f32 0.0, %v5804
  %v5806 = vpop.f32.mrb[0].mxu0
  %v5807 = vpop.f32.mrb[0].mxu0
  %v5808 = vadd.f32 0.0, %v5807
  %v5809 = vpop.f32.mrb[0].mxu0
  %5810 = vmatprep.mubr.bf16.mxu0 0
  %5811 = vmatmul.mubr.bf16.gmra.mrb[0].mxu0 %v5505
  %v5812 = vpop.f32.mrb[0].mxu0
  %v5813 = vadd.f32 0.0, %v5812
  %v5814 = vpop.f32.mrb[0].mxu0
  %v5815 = vpop.f32.mrb[0].mxu0
  %v5816 = vadd.f32 0.0, %v5815
  %v5817 = vpop.f32.mrb[0].mxu0
  %5818 = vmatprep.mubr.bf16.mxu0 0
  %5819 = vmatmul.mubr.bf16.gmra.mrb[0].mxu0 %v5506
  %v5820 = vpop.f32.mrb[0].mxu0
  %v5821 = vadd.f32 0.0, %v5820
  %v5822 = vpop.f32.mrb[0].mxu0
  %v5823 = vpop.f32.mrb[0].mxu0
  %v5824 = vadd.f32 0.0, %v5823
  %v5825 = vpop.f32.mrb[0].mxu0
  %5826 = vmatprep.mubr.bf16.mxu0 0
  %5827 = vmatmul.mubr.bf16.gmra.mrb[0].mxu0 %v5507
  %v5828 = vpop.f32.mrb[0].mxu0
  %v5829 = vadd.f32 0.0, %v5828
  %v5830 = vpop.f32.mrb[0].mxu0
  %v5831 = vpop.f32.mrb[0].mxu0
  %v5832 = vadd.f32 0.0, %v5831
  %v5833 = vpop.f32.mrb[0].mxu0
  %5834 = vmatprep.mubr.bf16.mxu0 0
  %5835 = vmatmul.mubr.bf16.gmra.mrb[0].mxu0 %v5508
  %v5836 = vpop.f32.mrb[0].mxu0
  %v5837 = vadd.f32 0.0, %v5836
  %v5838 = vpop.f32.mrb[0].mxu0
  %v5839 = vpop.f32.mrb[0].mxu0
  %v5840 = vadd.f32 0.0, %v5839
  %v5841 = vpop.f32.mrb[0].mxu0
  %5842 = vmatprep.mubr.bf16.mxu0 0
  %5843 = vmatmul.mubr.bf16.gmra.mrb[0].mxu0 %v5509
  %v5844 = vpop.f32.mrb[0].mxu0
  %v5845 = vadd.f32 0.0, %v5844
  %v5846 = vpop.f32.mrb[0].mxu0
  %v5847 = vpop.f32.mrb[0].mxu0
  %v5848 = vadd.f32 0.0, %v5847
  %v5849 = vpop.f32.mrb[0].mxu0
  %5850 = vmatprep.mubr.bf16.mxu0 0
  %5851 = vmatmul.mubr.bf16.gmra.mrb[0].mxu0 %v5510
  %v5852 = vpop.f32.mrb[0].mxu0
  %v5853 = vadd.f32 0.0, %v5852
  %v5854 = vpop.f32.mrb[0].mxu0
  %v5855 = vpop.f32.mrb[0].mxu0
  %v5856 = vadd.f32 0.0, %v5855
  %v5857 = vpop.f32.mrb[0].mxu0
  %5858 = vmatprep.mubr.bf16.mxu0 0
  %5859 = vmatmul.mubr.bf16.gmra.mrb[0].mxu0 %v5511
  %v5860 = vpop.f32.mrb[0].mxu0
  %v5861 = vadd.f32 0.0, %v5860
  %v5862 = vpop.f32.mrb[0].mxu0
  %v5863 = vpop.f32.mrb[0].mxu0
  %v5864 = vadd.f32 0.0, %v5863
  %v5865 = vpop.f32.mrb[0].mxu0
  %5866 = vmatprep.mubr.bf16.mxu0 0
  %5867 = vmatmul.mubr.bf16.gmra.mrb[0].mxu0 %v5512
  %v5868 = vpop.f32.mrb[0].mxu0
  %v5869 = vadd.f32 0.0, %v5868
  %v5870 = vpop.f32.mrb[0].mxu0
  %v5871 = vpop.f32.mrb[0].mxu0
  %v5872 = vadd.f32 0.0, %v5871
  %v5873 = vpop.f32.mrb[0].mxu0
  %5874 = vmatprep.mubr.bf16.mxu0 0
  %5875 = vmatmul.mubr.bf16.gmra.mrb[0].mxu0 %v5513
  %v5876 = vpop.f32.mrb[0].mxu0
  %v5877 = vadd.f32 0.0, %v5876
  %v5878 = vpop.f32.mrb[0].mxu0
  %v5879 = vpop.f32.mrb[0].mxu0
  %v5880 = vadd.f32 0.0, %v5879
  %v5881 = vpop.f32.mrb[0].mxu0
  %5882 = vdwg.mxu0
  %v5883 = vadd.f32 %v5210, %v5629
  %v5884 = vadd.f32 %v5211, %v5632
  %v5885 = vadd.f32 %v5212, %v5637
  %v5886 = vadd.f32 %v5213, %v5640
  %v5887 = vadd.f32 %v5214, %v5645
  %v5888 = vadd.f32 %v5215, %v5648
  %v5889 = vadd.f32 %v5216, %v5653
  %v5890 = vadd.f32 %v5217, %v5656
  %v5891 = vadd.f32 %v5218, %v5661
  %v5892 = vadd.f32 %v5219, %v5664
  %v5893 = vadd.f32 %v5220, %v5669
  %v5894 = vadd.f32 %v5221, %v5672
  %v5895 = vadd.f32 %v5222, %v5677
  %v5896 = vadd.f32 %v5223, %v5680
  %v5897 = vadd.f32 %v5224, %v5685
  %v5898 = vadd.f32 %v5225, %v5688
  %v5899 = vadd.f32 %v5226, %v5693
  %v5900 = vadd.f32 %v5227, %v5696
  %v5901 = vadd.f32 %v5228, %v5701
  %v5902 = vadd.f32 %v5229, %v5704
  %v5903 = vadd.f32 %v5230, %v5709
  %v5904 = vadd.f32 %v5231, %v5712
  %v5905 = vadd.f32 %v5232, %v5717
  %v5906 = vadd.f32 %v5233, %v5720
  %v5907 = vadd.f32 %v5234, %v5725
  %v5908 = vadd.f32 %v5235, %v5728
  %v5909 = vadd.f32 %v5236, %v5733
  %v5910 = vadd.f32 %v5237, %v5736
  %v5911 = vadd.f32 %v5238, %v5741
  %v5912 = vadd.f32 %v5239, %v5744
  %v5913 = vadd.f32 %v5240, %v5749
  %v5914 = vadd.f32 %v5241, %v5752
  %v5915 = vadd.f32 %v5242, %v5757
  %v5916 = vadd.f32 %v5243, %v5760
  %v5917 = vadd.f32 %v5244, %v5765
  %v5918 = vadd.f32 %v5245, %v5768
  %v5919 = vadd.f32 %v5246, %v5773
  %v5920 = vadd.f32 %v5247, %v5776
  %v5921 = vadd.f32 %v5248, %v5781
  %v5922 = vadd.f32 %v5249, %v5784
  %v5923 = vadd.f32 %v5250, %v5789
  %v5924 = vadd.f32 %v5251, %v5792
  %v5925 = vadd.f32 %v5252, %v5797
  %v5926 = vadd.f32 %v5253, %v5800
  %v5927 = vadd.f32 %v5254, %v5805
  %v5928 = vadd.f32 %v5255, %v5808
  %v5929 = vadd.f32 %v5256, %v5813
  %v5930 = vadd.f32 %v5257, %v5816
  %v5931 = vadd.f32 %v5258, %v5821
  %v5932 = vadd.f32 %v5259, %v5824
  %v5933 = vadd.f32 %v5260, %v5829
  %v5934 = vadd.f32 %v5261, %v5832
  %v5935 = vadd.f32 %v5262, %v5837
  %v5936 = vadd.f32 %v5263, %v5840
  %v5937 = vadd.f32 %v5264, %v5845
  %v5938 = vadd.f32 %v5265, %v5848
  %v5939 = vadd.f32 %v5266, %v5853
  %v5940 = vadd.f32 %v5267, %v5856
  %v5941 = vadd.f32 %v5268, %v5861
  %v5942 = vadd.f32 %v5269, %v5864
  %v5943 = vadd.f32 %v5270, %v5869
  %v5944 = vadd.f32 %v5271, %v5872
  %v5945 = vadd.f32 %v5272, %v5877
  %v5946 = vadd.f32 %v5273, %v5880
  %v5947 = vld [vmem:[%s2283] sm:$0xf]
  %v5948 = vld [vmem:[%s2283 + $0x4] sm:$0xf]
  %v5949 = vld [vmem:[%s2283 + $0x8] sm:$0x1]
  %v5950 = vld [vmem:[%s2283 + $0xc] sm:$0xf]
  %v5951 = vld [vmem:[%s2283 + $0x10] sm:$0xf]
  %v5952 = vld [vmem:[%s2283 + $0x14] sm:$0x1]
  %v5953 = vld [vmem:[%s2283 + $0x18] sm:$0xf]
  %v5954 = vld [vmem:[%s2283 + $0x1c] sm:$0xf]
  %v5955 = vld [vmem:[%s2283 + $0x20] sm:$0x1]
  %v5956 = vld [vmem:[%s2283 + $0x24] sm:$0xf]
  %v5957 = vld [vmem:[%s2283 + $0x28] sm:$0xf]
  %v5958 = vld [vmem:[%s2283 + $0x2c] sm:$0x1]
  %v5959 = vld [vmem:[%s2283 + $0x30] sm:$0xf]
  %v5960 = vld [vmem:[%s2283 + $0x34] sm:$0xf]
  %v5961 = vld [vmem:[%s2283 + $0x38] sm:$0x1]
  %v5962 = vld [vmem:[%s2283 + $0x3c] sm:$0xf]
  %v5963 = vld [vmem:[%s2283 + $0x40] sm:$0xf]
  %v5964 = vld [vmem:[%s2283 + $0x44] sm:$0x1]
  %v5965 = vld [vmem:[%s2283 + $0x48] sm:$0xf]
  %v5966 = vld [vmem:[%s2283 + $0x4c] sm:$0xf]
  %v5967 = vld [vmem:[%s2283 + $0x50] sm:$0x1]
  %v5968 = vld [vmem:[%s2283 + $0x54] sm:$0xf]
  %v5969 = vld [vmem:[%s2283 + $0x58] sm:$0xf]
  %v5970 = vld [vmem:[%s2283 + $0x5c] sm:$0x1]
  %v5971 = vld [vmem:[%s2283 + $0x60] sm:$0xf]
  %v5972 = vld [vmem:[%s2283 + $0x64] sm:$0xf]
  %v5973 = vld [vmem:[%s2283 + $0x68] sm:$0x1]
  %v5974 = vld [vmem:[%s2283 + $0x6c] sm:$0xf]
  %v5975 = vld [vmem:[%s2283 + $0x70] sm:$0xf]
  %v5976 = vld [vmem:[%s2283 + $0x74] sm:$0x1]
  %v5977 = vld [vmem:[%s2283 + $0x78] sm:$0xf]
  %v5978 = vld [vmem:[%s2283 + $0x7c] sm:$0xf]
  %v5979 = vld [vmem:[%s2283 + $0x80] sm:$0x1]
  %v5980 = vld [vmem:[%s2283 + $0x84] sm:$0xf]
  %v5981 = vld [vmem:[%s2283 + $0x88] sm:$0xf]
  %v5982 = vld [vmem:[%s2283 + $0x8c] sm:$0x1]
  %v5983 = vld [vmem:[%s2283 + $0x90] sm:$0xf]
  %v5984 = vld [vmem:[%s2283 + $0x94] sm:$0xf]
  %v5985 = vld [vmem:[%s2283 + $0x98] sm:$0x1]
  %v5986 = vld [vmem:[%s2283 + $0x9c] sm:$0xf]
  %v5987 = vld [vmem:[%s2283 + $0xa0] sm:$0xf]
  %v5988 = vld [vmem:[%s2283 + $0xa4] sm:$0x1]
  %v5989 = vld [vmem:[%s2283 + $0xa8] sm:$0xf]
  %v5990 = vld [vmem:[%s2283 + $0xac] sm:$0xf]
  %v5991 = vld [vmem:[%s2283 + $0xb0] sm:$0x1]
  %v5992 = vld [vmem:[%s2283 + $0xb4] sm:$0xf]
  %v5993 = vld [vmem:[%s2283 + $0xb8] sm:$0xf]
  %v5994 = vld [vmem:[%s2283 + $0xbc] sm:$0x1]
  %v5995 = vld [vmem:[%s2283 + $0xd8] sm:$0xf]
  %v5996 = vld [vmem:[%s2283 + $0xdc] sm:$0xf]
  %v5997 = vld [vmem:[%s2283 + $0xe0] sm:$0x1]
  %v5998 = vld [vmem:[%s2283 + $0xe4] sm:$0xf]
  %v5999 = vld [vmem:[%s2283 + $0xe8] sm:$0xf]
  %v6000 = vld [vmem:[%s2283 + $0xec] sm:$0x1]
  %v6001 = vld [vmem:[%s2283 + $0xf0] sm:$0xf]
  %v6002 = vld [vmem:[%s2283 + $0xf4] sm:$0xf]
  %v6003 = vld [vmem:[%s2283 + $0xf8] sm:$0x1]
  %v6004 = vld [vmem:[%s2283 + $0xfc] sm:$0xf]
  %v6005 = vld [vmem:[%s2283 + $0x100] sm:$0xf]
  %v6006 = vld [vmem:[%s2283 + $0x104] sm:$0x1]
  %v6007 = vld [vmem:[%s2283 + $0x108] sm:$0xf]
  %v6008 = vld [vmem:[%s2283 + $0x10c] sm:$0xf]
  %v6009 = vld [vmem:[%s2283 + $0x110] sm:$0x1]
  %v6010 = vld [vmem:[%s2283 + $0x114] sm:$0xf]
  %v6011 = vld [vmem:[%s2283 + $0x118] sm:$0xf]
  %v6012 = vld [vmem:[%s2283 + $0x11c] sm:$0x1]
  %v6013 = vld [vmem:[%s2283 + $0x120] sm:$0xf]
  %v6014 = vld [vmem:[%s2283 + $0x124] sm:$0xf]
  %v6015 = vld [vmem:[%s2283 + $0x128] sm:$0x1]
  %v6016 = vld [vmem:[%s2283 + $0x12c] sm:$0xf]
  %v6017 = vld [vmem:[%s2283 + $0x130] sm:$0xf]
  %v6018 = vld [vmem:[%s2283 + $0x134] sm:$0x1]
  %v6019 = vld [vmem:[%s2283 + $0x138] sm:$0xf]
  %v6020 = vld [vmem:[%s2283 + $0x13c] sm:$0xf]
  %v6021 = vld [vmem:[%s2283 + $0x140] sm:$0x1]
  %v6022 = vld [vmem:[%s2283 + $0x144] sm:$0xf]
  %v6023 = vld [vmem:[%s2283 + $0x148] sm:$0xf]
  %v6024 = vld [vmem:[%s2283 + $0x14c] sm:$0x1]
  %v6025 = vld [vmem:[%s2283 + $0x150] sm:$0xf]
  %v6026 = vld [vmem:[%s2283 + $0x154] sm:$0xf]
  %v6027 = vld [vmem:[%s2283 + $0x158] sm:$0x1]
  %v6028 = vld [vmem:[%s2283 + $0x15c] sm:$0xf]
  %v6029 = vld [vmem:[%s2283 + $0x160] sm:$0xf]
  %v6030 = vld [vmem:[%s2283 + $0x164] sm:$0x1]
  %v6031 = vld [vmem:[%s2283 + $0x168] sm:$0xf]
  %v6032 = vld [vmem:[%s2283 + $0x16c] sm:$0xf]
  %v6033 = vld [vmem:[%s2283 + $0x170] sm:$0x1]
  %v6034 = vld [vmem:[%s2283 + $0x174] sm:$0xf]
  %v6035 = vld [vmem:[%s2283 + $0x178] sm:$0xf]
  %v6036 = vld [vmem:[%s2283 + $0x17c] sm:$0x1]
  %v6037 = vld [vmem:[%s2283 + $0x180] sm:$0xf]
  %v6038 = vld [vmem:[%s2283 + $0x184] sm:$0xf]
  %v6039 = vld [vmem:[%s2283 + $0x188] sm:$0x1]
  %v6040 = vld [vmem:[%s2283 + $0x18c] sm:$0xf]
  %v6041 = vld [vmem:[%s2283 + $0x190] sm:$0xf]
  %v6042 = vld [vmem:[%s2283 + $0x194] sm:$0x1]
  %v6044 = vshrl.u32 %v5947, 16
  %v6046 = vrot.slane %v6044, 4
  %v6047 = vshll.u32 %v5947, 16
  %v6049 = vrot.slane %v6047, 5
  %v6050 = vor.u32 %v6046, %v6049
  %v6051 = vrot.slane %v6050, 4
  %v6053 = vshll.u32 %v5948, 16
  %v6055 = vrot.slane %v6053, 5
  %v6056 = vsel %vm2627, %v6051, %v6055
  %v6057 = vshrl.u32 %v5948, 16
  %v6059 = vrot.slane %v6057, 4
  %v6060 = vor.u32 %v6059, %v6055
  %v6061 = vrot.slane %v6060, 4
  %v6063 = vshll.u32 %v5949, 16
  %v6065 = vrot.slane %v6063, 5
  %v6066 = vsel %vm2627, %v6061, %v6065
  %v6068 = vshrl.u32 %v5950, 16
  %v6070 = vrot.slane %v6068, 4
  %v6071 = vshll.u32 %v5950, 16
  %v6073 = vrot.slane %v6071, 5
  %v6074 = vor.u32 %v6070, %v6073
  %v6075 = vrot.slane %v6074, 4
  %v6077 = vshll.u32 %v5951, 16
  %v6079 = vrot.slane %v6077, 5
  %v6080 = vsel %vm2627, %v6075, %v6079
  %v6081 = vshrl.u32 %v5951, 16
  %v6083 = vrot.slane %v6081, 4
  %v6084 = vor.u32 %v6083, %v6079
  %v6085 = vrot.slane %v6084, 4
  %v6087 = vshll.u32 %v5952, 16
  %v6089 = vrot.slane %v6087, 5
  %v6090 = vsel %vm2627, %v6085, %v6089
  %v6092 = vshrl.u32 %v5953, 16
  %v6094 = vrot.slane %v6092, 4
  %v6095 = vshll.u32 %v5953, 16
  %v6097 = vrot.slane %v6095, 5
  %v6098 = vor.u32 %v6094, %v6097
  %v6099 = vrot.slane %v6098, 4
  %v6101 = vshll.u32 %v5954, 16
  %v6103 = vrot.slane %v6101, 5
  %v6104 = vsel %vm2627, %v6099, %v6103
  %v6105 = vshrl.u32 %v5954, 16
  %v6107 = vrot.slane %v6105, 4
  %v6108 = vor.u32 %v6107, %v6103
  %v6109 = vrot.slane %v6108, 4
  %v6111 = vshll.u32 %v5955, 16
  %v6113 = vrot.slane %v6111, 5
  %v6114 = vsel %vm2627, %v6109, %v6113
  %v6116 = vshrl.u32 %v5956, 16
  %v6118 = vrot.slane %v6116, 4
  %v6119 = vshll.u32 %v5956, 16
  %v6121 = vrot.slane %v6119, 5
  %v6122 = vor.u32 %v6118, %v6121
  %v6123 = vrot.slane %v6122, 4
  %v6125 = vshll.u32 %v5957, 16
  %v6127 = vrot.slane %v6125, 5
  %v6128 = vsel %vm2627, %v6123, %v6127
  %v6129 = vshrl.u32 %v5957, 16
  %v6131 = vrot.slane %v6129, 4
  %v6132 = vor.u32 %v6131, %v6127
  %v6133 = vrot.slane %v6132, 4
  %v6135 = vshll.u32 %v5958, 16
  %v6137 = vrot.slane %v6135, 5
  %v6138 = vsel %vm2627, %v6133, %v6137
  %v6140 = vshrl.u32 %v5959, 16
  %v6142 = vrot.slane %v6140, 4
  %v6143 = vshll.u32 %v5959, 16
  %v6145 = vrot.slane %v6143, 5
  %v6146 = vor.u32 %v6142, %v6145
  %v6147 = vrot.slane %v6146, 4
  %v6149 = vshll.u32 %v5960, 16
  %v6151 = vrot.slane %v6149, 5
  %v6152 = vsel %vm2627, %v6147, %v6151
  %v6153 = vshrl.u32 %v5960, 16
  %v6155 = vrot.slane %v6153, 4
  %v6156 = vor.u32 %v6155, %v6151
  %v6157 = vrot.slane %v6156, 4
  %v6159 = vshll.u32 %v5961, 16
  %v6161 = vrot.slane %v6159, 5
  %v6162 = vsel %vm2627, %v6157, %v6161
  %v6164 = vshrl.u32 %v5962, 16
  %v6166 = vrot.slane %v6164, 4
  %v6167 = vshll.u32 %v5962, 16
  %v6169 = vrot.slane %v6167, 5
  %v6170 = vor.u32 %v6166, %v6169
  %v6171 = vrot.slane %v6170, 4
  %v6173 = vshll.u32 %v5963, 16
  %v6175 = vrot.slane %v6173, 5
  %v6176 = vsel %vm2627, %v6171, %v6175
  %v6177 = vshrl.u32 %v5963, 16
  %v6179 = vrot.slane %v6177, 4
  %v6180 = vor.u32 %v6179, %v6175
  %v6181 = vrot.slane %v6180, 4
  %v6183 = vshll.u32 %v5964, 16
  %v6185 = vrot.slane %v6183, 5
  %v6186 = vsel %vm2627, %v6181, %v6185
  %v6188 = vshrl.u32 %v5965, 16
  %v6190 = vrot.slane %v6188, 4
  %v6191 = vshll.u32 %v5965, 16
  %v6193 = vrot.slane %v6191, 5
  %v6194 = vor.u32 %v6190, %v6193
  %v6195 = vrot.slane %v6194, 4
  %v6197 = vshll.u32 %v5966, 16
  %v6199 = vrot.slane %v6197, 5
  %v6200 = vsel %vm2627, %v6195, %v6199
  %v6201 = vshrl.u32 %v5966, 16
  %v6203 = vrot.slane %v6201, 4
  %v6204 = vor.u32 %v6203, %v6199
  %v6205 = vrot.slane %v6204, 4
  %v6207 = vshll.u32 %v5967, 16
  %v6209 = vrot.slane %v6207, 5
  %v6210 = vsel %vm2627, %v6205, %v6209
  %v6212 = vshrl.u32 %v5968, 16
  %v6214 = vrot.slane %v6212, 4
  %v6215 = vshll.u32 %v5968, 16
  %v6217 = vrot.slane %v6215, 5
  %v6218 = vor.u32 %v6214, %v6217
  %v6219 = vrot.slane %v6218, 4
  %v6221 = vshll.u32 %v5969, 16
  %v6223 = vrot.slane %v6221, 5
  %v6224 = vsel %vm2627, %v6219, %v6223
  %v6225 = vshrl.u32 %v5969, 16
  %v6227 = vrot.slane %v6225, 4
  %v6228 = vor.u32 %v6227, %v6223
  %v6229 = vrot.slane %v6228, 4
  %v6231 = vshll.u32 %v5970, 16
  %v6233 = vrot.slane %v6231, 5
  %v6234 = vsel %vm2627, %v6229, %v6233
  %v6236 = vshrl.u32 %v5971, 16
  %v6238 = vrot.slane %v6236, 4
  %v6239 = vshll.u32 %v5971, 16
  %v6241 = vrot.slane %v6239, 5
  %v6242 = vor.u32 %v6238, %v6241
  %v6243 = vrot.slane %v6242, 4
  %v6245 = vshll.u32 %v5972, 16
  %v6247 = vrot.slane %v6245, 5
  %v6248 = vsel %vm2627, %v6243, %v6247
  %v6249 = vshrl.u32 %v5972, 16
  %v6251 = vrot.slane %v6249, 4
  %v6252 = vor.u32 %v6251, %v6247
  %v6253 = vrot.slane %v6252, 4
  %v6255 = vshll.u32 %v5973, 16
  %v6257 = vrot.slane %v6255, 5
  %v6258 = vsel %vm2627, %v6253, %v6257
  %v6260 = vshrl.u32 %v5974, 16
  %v6262 = vrot.slane %v6260, 4
  %v6263 = vshll.u32 %v5974, 16
  %v6265 = vrot.slane %v6263, 5
  %v6266 = vor.u32 %v6262, %v6265
  %v6267 = vrot.slane %v6266, 4
  %v6269 = vshll.u32 %v5975, 16
  %v6271 = vrot.slane %v6269, 5
  %v6272 = vsel %vm2627, %v6267, %v6271
  %v6273 = vshrl.u32 %v5975, 16
  %v6275 = vrot.slane %v6273, 4
  %v6276 = vor.u32 %v6275, %v6271
  %v6277 = vrot.slane %v6276, 4
  %v6279 = vshll.u32 %v5976, 16
  %v6281 = vrot.slane %v6279, 5
  %v6282 = vsel %vm2627, %v6277, %v6281
  %v6284 = vshrl.u32 %v5977, 16
  %v6286 = vrot.slane %v6284, 4
  %v6287 = vshll.u32 %v5977, 16
  %v6289 = vrot.slane %v6287, 5
  %v6290 = vor.u32 %v6286, %v6289
  %v6291 = vrot.slane %v6290, 4
  %v6293 = vshll.u32 %v5978, 16
  %v6295 = vrot.slane %v6293, 5
  %v6296 = vsel %vm2627, %v6291, %v6295
  %v6297 = vshrl.u32 %v5978, 16
  %v6299 = vrot.slane %v6297, 4
  %v6300 = vor.u32 %v6299, %v6295
  %v6301 = vrot.slane %v6300, 4
  %v6303 = vshll.u32 %v5979, 16
  %v6305 = vrot.slane %v6303, 5
  %v6306 = vsel %vm2627, %v6301, %v6305
  %v6308 = vshrl.u32 %v5980, 16
  %v6310 = vrot.slane %v6308, 4
  %v6311 = vshll.u32 %v5980, 16
  %v6313 = vrot.slane %v6311, 5
  %v6314 = vor.u32 %v6310, %v6313
  %v6315 = vrot.slane %v6314, 4
  %v6317 = vshll.u32 %v5981, 16
  %v6319 = vrot.slane %v6317, 5
  %v6320 = vsel %vm2627, %v6315, %v6319
  %v6321 = vshrl.u32 %v5981, 16
  %v6323 = vrot.slane %v6321, 4
  %v6324 = vor.u32 %v6323, %v6319
  %v6325 = vrot.slane %v6324, 4
  %v6327 = vshll.u32 %v5982, 16
  %v6329 = vrot.slane %v6327, 5
  %v6330 = vsel %vm2627, %v6325, %v6329
  %v6332 = vshrl.u32 %v5983, 16
  %v6334 = vrot.slane %v6332, 4
  %v6335 = vshll.u32 %v5983, 16
  %v6337 = vrot.slane %v6335, 5
  %v6338 = vor.u32 %v6334, %v6337
  %v6339 = vrot.slane %v6338, 4
  %v6341 = vshll.u32 %v5984, 16
  %v6343 = vrot.slane %v6341, 5
  %v6344 = vsel %vm2627, %v6339, %v6343
  %v6345 = vshrl.u32 %v5984, 16
  %v6347 = vrot.slane %v6345, 4
  %v6348 = vor.u32 %v6347, %v6343
  %v6349 = vrot.slane %v6348, 4
  %v6351 = vshll.u32 %v5985, 16
  %v6353 = vrot.slane %v6351, 5
  %v6354 = vsel %vm2627, %v6349, %v6353
  %v6356 = vshrl.u32 %v5986, 16
  %v6358 = vrot.slane %v6356, 4
  %v6359 = vshll.u32 %v5986, 16
  %v6361 = vrot.slane %v6359, 5
  %v6362 = vor.u32 %v6358, %v6361
  %v6363 = vrot.slane %v6362, 4
  %v6365 = vshll.u32 %v5987, 16
  %v6367 = vrot.slane %v6365, 5
  %v6368 = vsel %vm2627, %v6363, %v6367
  %v6369 = vshrl.u32 %v5987, 16
  %v6371 = vrot.slane %v6369, 4
  %v6372 = vor.u32 %v6371, %v6367
  %v6373 = vrot.slane %v6372, 4
  %v6375 = vshll.u32 %v5988, 16
  %v6377 = vrot.slane %v6375, 5
  %v6378 = vsel %vm2627, %v6373, %v6377
  %v6380 = vshrl.u32 %v5989, 16
  %v6382 = vrot.slane %v6380, 4
  %v6383 = vshll.u32 %v5989, 16
  %v6385 = vrot.slane %v6383, 5
  %v6386 = vor.u32 %v6382, %v6385
  %v6387 = vrot.slane %v6386, 4
  %v6389 = vshll.u32 %v5990, 16
  %v6391 = vrot.slane %v6389, 5
  %v6392 = vsel %vm2627, %v6387, %v6391
  %v6393 = vshrl.u32 %v5990, 16
  %v6395 = vrot.slane %v6393, 4
  %v6396 = vor.u32 %v6395, %v6391
  %v6397 = vrot.slane %v6396, 4
  %v6399 = vshll.u32 %v5991, 16
  %v6401 = vrot.slane %v6399, 5
  %v6402 = vsel %vm2627, %v6397, %v6401
  %v6404 = vshrl.u32 %v5992, 16
  %v6406 = vrot.slane %v6404, 4
  %v6407 = vshll.u32 %v5992, 16
  %v6409 = vrot.slane %v6407, 5
  %v6410 = vor.u32 %v6406, %v6409
  %v6411 = vrot.slane %v6410, 4
  %v6413 = vshll.u32 %v5993, 16
  %v6415 = vrot.slane %v6413, 5
  %v6416 = vsel %vm2627, %v6411, %v6415
  %v6417 = vshrl.u32 %v5993, 16
  %v6419 = vrot.slane %v6417, 4
  %v6420 = vor.u32 %v6419, %v6415
  %v6421 = vrot.slane %v6420, 4
  %v6423 = vshll.u32 %v5994, 16
  %v6425 = vrot.slane %v6423, 5
  %v6426 = vsel %vm2627, %v6421, %v6425
  %v6428 = vshrl.u32 %v5995, 16
  %v6430 = vrot.slane %v6428, 4
  %v6431 = vshll.u32 %v5995, 16
  %v6433 = vrot.slane %v6431, 5
  %v6434 = vor.u32 %v6430, %v6433
  %v6435 = vrot.slane %v6434, 4
  %v6437 = vshll.u32 %v5996, 16
  %v6439 = vrot.slane %v6437, 5
  %v6440 = vsel %vm2627, %v6435, %v6439
  %v6441 = vshrl.u32 %v5996, 16
  %v6443 = vrot.slane %v6441, 4
  %v6444 = vor.u32 %v6443, %v6439
  %v6445 = vrot.slane %v6444, 4
  %v6447 = vshll.u32 %v5997, 16
  %v6449 = vrot.slane %v6447, 5
  %v6450 = vsel %vm2627, %v6445, %v6449
  %v6452 = vshrl.u32 %v5998, 16
  %v6454 = vrot.slane %v6452, 4
  %v6455 = vshll.u32 %v5998, 16
  %v6457 = vrot.slane %v6455, 5
  %v6458 = vor.u32 %v6454, %v6457
  %v6459 = vrot.slane %v6458, 4
  %v6461 = vshll.u32 %v5999, 16
  %v6463 = vrot.slane %v6461, 5
  %v6464 = vsel %vm2627, %v6459, %v6463
  %v6465 = vshrl.u32 %v5999, 16
  %v6467 = vrot.slane %v6465, 4
  %v6468 = vor.u32 %v6467, %v6463
  %v6469 = vrot.slane %v6468, 4
  %v6471 = vshll.u32 %v6000, 16
  %v6473 = vrot.slane %v6471, 5
  %v6474 = vsel %vm2627, %v6469, %v6473
  %v6476 = vshrl.u32 %v6001, 16
  %v6478 = vrot.slane %v6476, 4
  %v6479 = vshll.u32 %v6001, 16
  %v6481 = vrot.slane %v6479, 5
  %v6482 = vor.u32 %v6478, %v6481
  %v6483 = vrot.slane %v6482, 4
  %v6485 = vshll.u32 %v6002, 16
  %v6487 = vrot.slane %v6485, 5
  %v6488 = vsel %vm2627, %v6483, %v6487
  %v6489 = vshrl.u32 %v6002, 16
  %v6491 = vrot.slane %v6489, 4
  %v6492 = vor.u32 %v6491, %v6487
  %v6493 = vrot.slane %v6492, 4
  %v6495 = vshll.u32 %v6003, 16
  %v6497 = vrot.slane %v6495, 5
  %v6498 = vsel %vm2627, %v6493, %v6497
  %v6500 = vshrl.u32 %v6004, 16
  %v6502 = vrot.slane %v6500, 4
  %v6503 = vshll.u32 %v6004, 16
  %v6505 = vrot.slane %v6503, 5
  %v6506 = vor.u32 %v6502, %v6505
  %v6507 = vrot.slane %v6506, 4
  %v6509 = vshll.u32 %v6005, 16
  %v6511 = vrot.slane %v6509, 5
  %v6512 = vsel %vm2627, %v6507, %v6511
  %v6513 = vshrl.u32 %v6005, 16
  %v6515 = vrot.slane %v6513, 4
  %v6516 = vor.u32 %v6515, %v6511
  %v6517 = vrot.slane %v6516, 4
  %v6519 = vshll.u32 %v6006, 16
  %v6521 = vrot.slane %v6519, 5
  %v6522 = vsel %vm2627, %v6517, %v6521
  %v6524 = vshrl.u32 %v6007, 16
  %v6526 = vrot.slane %v6524, 4
  %v6527 = vshll.u32 %v6007, 16
  %v6529 = vrot.slane %v6527, 5
  %v6530 = vor.u32 %v6526, %v6529
  %v6531 = vrot.slane %v6530, 4
  %v6533 = vshll.u32 %v6008, 16
  %v6535 = vrot.slane %v6533, 5
  %v6536 = vsel %vm2627, %v6531, %v6535
  %v6537 = vshrl.u32 %v6008, 16
  %v6539 = vrot.slane %v6537, 4
  %v6540 = vor.u32 %v6539, %v6535
  %v6541 = vrot.slane %v6540, 4
  %v6543 = vshll.u32 %v6009, 16
  %v6545 = vrot.slane %v6543, 5
  %v6546 = vsel %vm2627, %v6541, %v6545
  %v6548 = vshrl.u32 %v6010, 16
  %v6550 = vrot.slane %v6548, 4
  %v6551 = vshll.u32 %v6010, 16
  %v6553 = vrot.slane %v6551, 5
  %v6554 = vor.u32 %v6550, %v6553
  %v6555 = vrot.slane %v6554, 4
  %v6557 = vshll.u32 %v6011, 16
  %v6559 = vrot.slane %v6557, 5
  %v6560 = vsel %vm2627, %v6555, %v6559
  %v6561 = vshrl.u32 %v6011, 16
  %v6563 = vrot.slane %v6561, 4
  %v6564 = vor.u32 %v6563, %v6559
  %v6565 = vrot.slane %v6564, 4
  %v6567 = vshll.u32 %v6012, 16
  %v6569 = vrot.slane %v6567, 5
  %v6570 = vsel %vm2627, %v6565, %v6569
  %v6572 = vshrl.u32 %v6013, 16
  %v6574 = vrot.slane %v6572, 4
  %v6575 = vshll.u32 %v6013, 16
  %v6577 = vrot.slane %v6575, 5
  %v6578 = vor.u32 %v6574, %v6577
  %v6579 = vrot.slane %v6578, 4
  %v6581 = vshll.u32 %v6014, 16
  %v6583 = vrot.slane %v6581, 5
  %v6584 = vsel %vm2627, %v6579, %v6583
  %v6585 = vshrl.u32 %v6014, 16
  %v6587 = vrot.slane %v6585, 4
  %v6588 = vor.u32 %v6587, %v6583
  %v6589 = vrot.slane %v6588, 4
  %v6591 = vshll.u32 %v6015, 16
  %v6593 = vrot.slane %v6591, 5
  %v6594 = vsel %vm2627, %v6589, %v6593
  %v6596 = vshrl.u32 %v6016, 16
  %v6598 = vrot.slane %v6596, 4
  %v6599 = vshll.u32 %v6016, 16
  %v6601 = vrot.slane %v6599, 5
  %v6602 = vor.u32 %v6598, %v6601
  %v6603 = vrot.slane %v6602, 4
  %v6605 = vshll.u32 %v6017, 16
  %v6607 = vrot.slane %v6605, 5
  %v6608 = vsel %vm2627, %v6603, %v6607
  %v6609 = vshrl.u32 %v6017, 16
  %v6611 = vrot.slane %v6609, 4
  %v6612 = vor.u32 %v6611, %v6607
  %v6613 = vrot.slane %v6612, 4
  %v6615 = vshll.u32 %v6018, 16
  %v6617 = vrot.slane %v6615, 5
  %v6618 = vsel %vm2627, %v6613, %v6617
  %v6620 = vshrl.u32 %v6019, 16
  %v6622 = vrot.slane %v6620, 4
  %v6623 = vshll.u32 %v6019, 16
  %v6625 = vrot.slane %v6623, 5
  %v6626 = vor.u32 %v6622, %v6625
  %v6627 = vrot.slane %v6626, 4
  %v6629 = vshll.u32 %v6020, 16
  %v6631 = vrot.slane %v6629, 5
  %v6632 = vsel %vm2627, %v6627, %v6631
  %v6633 = vshrl.u32 %v6020, 16
  %v6635 = vrot.slane %v6633, 4
  %v6636 = vor.u32 %v6635, %v6631
  %v6637 = vrot.slane %v6636, 4
  %v6639 = vshll.u32 %v6021, 16
  %v6641 = vrot.slane %v6639, 5
  %v6642 = vsel %vm2627, %v6637, %v6641
  %v6644 = vshrl.u32 %v6022, 16
  %v6646 = vrot.slane %v6644, 4
  %v6647 = vshll.u32 %v6022, 16
  %v6649 = vrot.slane %v6647, 5
  %v6650 = vor.u32 %v6646, %v6649
  %v6651 = vrot.slane %v6650, 4
  %v6653 = vshll.u32 %v6023, 16
  %v6655 = vrot.slane %v6653, 5
  %v6656 = vsel %vm2627, %v6651, %v6655
  %v6657 = vshrl.u32 %v6023, 16
  %v6659 = vrot.slane %v6657, 4
  %v6660 = vor.u32 %v6659, %v6655
  %v6661 = vrot.slane %v6660, 4
  %v6663 = vshll.u32 %v6024, 16
  %v6665 = vrot.slane %v6663, 5
  %v6666 = vsel %vm2627, %v6661, %v6665
  %v6668 = vshrl.u32 %v6025, 16
  %v6670 = vrot.slane %v6668, 4
  %v6671 = vshll.u32 %v6025, 16
  %v6673 = vrot.slane %v6671, 5
  %v6674 = vor.u32 %v6670, %v6673
  %v6675 = vrot.slane %v6674, 4
  %v6677 = vshll.u32 %v6026, 16
  %v6679 = vrot.slane %v6677, 5
  %v6680 = vsel %vm2627, %v6675, %v6679
  %v6681 = vshrl.u32 %v6026, 16
  %v6683 = vrot.slane %v6681, 4
  %v6684 = vor.u32 %v6683, %v6679
  %v6685 = vrot.slane %v6684, 4
  %v6687 = vshll.u32 %v6027, 16
  %v6689 = vrot.slane %v6687, 5
  %v6690 = vsel %vm2627, %v6685, %v6689
  %v6692 = vshrl.u32 %v6028, 16
  %v6694 = vrot.slane %v6692, 4
  %v6695 = vshll.u32 %v6028, 16
  %v6697 = vrot.slane %v6695, 5
  %v6698 = vor.u32 %v6694, %v6697
  %v6699 = vrot.slane %v6698, 4
  %v6701 = vshll.u32 %v6029, 16
  %v6703 = vrot.slane %v6701, 5
  %v6704 = vsel %vm2627, %v6699, %v6703
  %v6705 = vshrl.u32 %v6029, 16
  %v6707 = vrot.slane %v6705, 4
  %v6708 = vor.u32 %v6707, %v6703
  %v6709 = vrot.slane %v6708, 4
  %v6711 = vshll.u32 %v6030, 16
  %v6713 = vrot.slane %v6711, 5
  %v6714 = vsel %vm2627, %v6709, %v6713
  %v6716 = vshrl.u32 %v6031, 16
  %v6718 = vrot.slane %v6716, 4
  %v6719 = vshll.u32 %v6031, 16
  %v6721 = vrot.slane %v6719, 5
  %v6722 = vor.u32 %v6718, %v6721
  %v6723 = vrot.slane %v6722, 4
  %v6725 = vshll.u32 %v6032, 16
  %v6727 = vrot.slane %v6725, 5
  %v6728 = vsel %vm2627, %v6723, %v6727
  %v6729 = vshrl.u32 %v6032, 16
  %v6731 = vrot.slane %v6729, 4
  %v6732 = vor.u32 %v6731, %v6727
  %v6733 = vrot.slane %v6732, 4
  %v6735 = vshll.u32 %v6033, 16
  %v6737 = vrot.slane %v6735, 5
  %v6738 = vsel %vm2627, %v6733, %v6737
  %v6740 = vshrl.u32 %v6034, 16
  %v6742 = vrot.slane %v6740, 4
  %v6743 = vshll.u32 %v6034, 16
  %v6745 = vrot.slane %v6743, 5
  %v6746 = vor.u32 %v6742, %v6745
  %v6747 = vrot.slane %v6746, 4
  %v6749 = vshll.u32 %v6035, 16
  %v6751 = vrot.slane %v6749, 5
  %v6752 = vsel %vm2627, %v6747, %v6751
  %v6753 = vshrl.u32 %v6035, 16
  %v6755 = vrot.slane %v6753, 4
  %v6756 = vor.u32 %v6755, %v6751
  %v6757 = vrot.slane %v6756, 4
  %v6759 = vshll.u32 %v6036, 16
  %v6761 = vrot.slane %v6759, 5
  %v6762 = vsel %vm2627, %v6757, %v6761
  %v6764 = vshrl.u32 %v6037, 16
  %v6766 = vrot.slane %v6764, 4
  %v6767 = vshll.u32 %v6037, 16
  %v6769 = vrot.slane %v6767, 5
  %v6770 = vor.u32 %v6766, %v6769
  %v6771 = vrot.slane %v6770, 4
  %v6773 = vshll.u32 %v6038, 16
  %v6775 = vrot.slane %v6773, 5
  %v6776 = vsel %vm2627, %v6771, %v6775
  %v6777 = vshrl.u32 %v6038, 16
  %v6779 = vrot.slane %v6777, 4
  %v6780 = vor.u32 %v6779, %v6775
  %v6781 = vrot.slane %v6780, 4
  %v6783 = vshll.u32 %v6039, 16
  %v6785 = vrot.slane %v6783, 5
  %v6786 = vsel %vm2627, %v6781, %v6785
  %v6788 = vshrl.u32 %v6040, 16
  %v6790 = vrot.slane %v6788, 4
  %v6791 = vshll.u32 %v6040, 16
  %v6793 = vrot.slane %v6791, 5
  %v6794 = vor.u32 %v6790, %v6793
  %v6795 = vrot.slane %v6794, 4
  %v6797 = vshll.u32 %v6041, 16
  %v6799 = vrot.slane %v6797, 5
  %v6800 = vsel %vm2627, %v6795, %v6799
  %v6801 = vshrl.u32 %v6041, 16
  %v6803 = vrot.slane %v6801, 4
  %v6804 = vor.u32 %v6803, %v6799
  %v6805 = vrot.slane %v6804, 4
  %v6807 = vshll.u32 %v6042, 16
  %v6809 = vrot.slane %v6807, 5
  %v6810 = vsel %vm2627, %v6805, %v6809
  %v6811 = vld [vmem:[%s2 + $0x100] sm:$0xf]
  %v6812 = vld [vmem:[%s2 + $0x104] sm:$0xf]
  %v6813 = vld [vmem:[%s2 + $0x108] sm:$0xf]
  %v6814 = vld [vmem:[%s2 + $0x10c] sm:$0xf]
  %v6815 = vld [vmem:[%s2 + $0x110] sm:$0xf]
  %v6816 = vld [vmem:[%s2 + $0x114] sm:$0xf]
  %v6817 = vld [vmem:[%s2 + $0x118] sm:$0xf]
  %v6818 = vld [vmem:[%s2 + $0x11c] sm:$0xf]
  %v6819 = vld [vmem:[%s2 + $0x120] sm:$0xf]
  %v6820 = vld [vmem:[%s2 + $0x124] sm:$0xf]
  %v6821 = vld [vmem:[%s2 + $0x128] sm:$0xf]
  %v6822 = vld [vmem:[%s2 + $0x12c] sm:$0xf]
  %v6823 = vld [vmem:[%s2 + $0x130] sm:$0xf]
  %v6824 = vld [vmem:[%s2 + $0x134] sm:$0xf]
  %v6825 = vld [vmem:[%s2 + $0x138] sm:$0xf]
  %v6826 = vld [vmem:[%s2 + $0x13c] sm:$0xf]
  %v6827 = vunpack.c.l.b16 %v6056
  %v6828 = vunpack.c.l.b16 %v6066
  %v6829 = vunpack.c.l.b16 %v6080
  %v6830 = vunpack.c.l.b16 %v6090
  %v6831 = vunpack.c.l.b16 %v6104
  %v6832 = vunpack.c.l.b16 %v6114
  %v6833 = vunpack.c.l.b16 %v6128
  %v6834 = vunpack.c.l.b16 %v6138
  %v6835 = vunpack.c.l.b16 %v6152
  %v6836 = vunpack.c.l.b16 %v6162
  %v6837 = vunpack.c.l.b16 %v6176
  %v6838 = vunpack.c.l.b16 %v6186
  %v6839 = vunpack.c.l.b16 %v6200
  %v6840 = vunpack.c.l.b16 %v6210
  %v6841 = vunpack.c.l.b16 %v6224
  %v6842 = vunpack.c.l.b16 %v6234
  %v6843 = vunpack.c.l.b16 %v6248
  %v6844 = vunpack.c.l.b16 %v6258
  %v6845 = vunpack.c.l.b16 %v6272
  %v6846 = vunpack.c.l.b16 %v6282
  %v6847 = vunpack.c.l.b16 %v6296
  %v6848 = vunpack.c.l.b16 %v6306
  %v6849 = vunpack.c.l.b16 %v6320
  %v6850 = vunpack.c.l.b16 %v6330
  %v6851 = vunpack.c.l.b16 %v6344
  %v6852 = vunpack.c.l.b16 %v6354
  %v6853 = vunpack.c.l.b16 %v6368
  %v6854 = vunpack.c.l.b16 %v6378
  %v6855 = vunpack.c.l.b16 %v6392
  %v6856 = vunpack.c.l.b16 %v6402
  %v6857 = vunpack.c.l.b16 %v6416
  %v6858 = vunpack.c.l.b16 %v6426
  %v6859 = vunpack.c.l.b16 %v6440
  %v6860 = vunpack.c.l.b16 %v6450
  %v6861 = vunpack.c.l.b16 %v6464
  %v6862 = vunpack.c.l.b16 %v6474
  %v6863 = vunpack.c.l.b16 %v6488
  %v6864 = vunpack.c.l.b16 %v6498
  %v6865 = vunpack.c.l.b16 %v6512
  %v6866 = vunpack.c.l.b16 %v6522
  %v6867 = vunpack.c.l.b16 %v6536
  %v6868 = vunpack.c.l.b16 %v6546
  %v6869 = vunpack.c.l.b16 %v6560
  %v6870 = vunpack.c.l.b16 %v6570
  %v6871 = vunpack.c.l.b16 %v6584
  %v6872 = vunpack.c.l.b16 %v6594
  %v6873 = vunpack.c.l.b16 %v6608
  %v6874 = vunpack.c.l.b16 %v6618
  %v6875 = vunpack.c.l.b16 %v6632
  %v6876 = vunpack.c.l.b16 %v6642
  %v6877 = vunpack.c.l.b16 %v6656
  %v6878 = vunpack.c.l.b16 %v6666
  %v6879 = vunpack.c.l.b16 %v6680
  %v6880 = vunpack.c.l.b16 %v6690
  %v6881 = vunpack.c.l.b16 %v6704
  %v6882 = vunpack.c.l.b16 %v6714
  %v6883 = vunpack.c.l.b16 %v6728
  %v6884 = vunpack.c.l.b16 %v6738
  %v6885 = vunpack.c.l.b16 %v6752
  %v6886 = vunpack.c.l.b16 %v6762
  %v6887 = vunpack.c.l.b16 %v6776
  %v6888 = vunpack.c.l.b16 %v6786
  %v6889 = vunpack.c.l.b16 %v6800
  %v6890 = vunpack.c.l.b16 %v6810
  %v6891 = vpack.c.b16 %v6828, %v6827
  %v6892 = vpack.c.b16 %v6830, %v6829
  %v6893 = vpack.c.b16 %v6832, %v6831
  %v6894 = vpack.c.b16 %v6834, %v6833
  %v6895 = vpack.c.b16 %v6836, %v6835
  %v6896 = vpack.c.b16 %v6838, %v6837
  %v6897 = vpack.c.b16 %v6840, %v6839
  %v6898 = vpack.c.b16 %v6842, %v6841
  %v6899 = vpack.c.b16 %v6844, %v6843
  %v6900 = vpack.c.b16 %v6846, %v6845
  %v6901 = vpack.c.b16 %v6848, %v6847
  %v6902 = vpack.c.b16 %v6850, %v6849
  %v6903 = vpack.c.b16 %v6852, %v6851
  %v6904 = vpack.c.b16 %v6854, %v6853
  %v6905 = vpack.c.b16 %v6856, %v6855
  %v6906 = vpack.c.b16 %v6858, %v6857
  %v6907 = vpack.c.b16 %v6860, %v6859
  %v6908 = vpack.c.b16 %v6862, %v6861
  %v6909 = vpack.c.b16 %v6864, %v6863
  %v6910 = vpack.c.b16 %v6866, %v6865
  %v6911 = vpack.c.b16 %v6868, %v6867
  %v6912 = vpack.c.b16 %v6870, %v6869
  %v6913 = vpack.c.b16 %v6872, %v6871
  %v6914 = vpack.c.b16 %v6874, %v6873
  %v6915 = vpack.c.b16 %v6876, %v6875
  %v6916 = vpack.c.b16 %v6878, %v6877
  %v6917 = vpack.c.b16 %v6880, %v6879
  %v6918 = vpack.c.b16 %v6882, %v6881
  %v6919 = vpack.c.b16 %v6884, %v6883
  %v6920 = vpack.c.b16 %v6886, %v6885
  %v6921 = vpack.c.b16 %v6888, %v6887
  %v6922 = vpack.c.b16 %v6890, %v6889
  %v6971 = vunpack.c.l.b16 %v6811
  %v6972 = vunpack.c.l.b16 %v6812
  %v6973 = vunpack.c.l.b16 %v6813
  %v6974 = vunpack.c.l.b16 %v6814
  %v6975 = vunpack.c.l.b16 %v6815
  %v6976 = vunpack.c.l.b16 %v6816
  %v6977 = vunpack.c.l.b16 %v6817
  %v6978 = vunpack.c.l.b16 %v6818
  %v6979 = vunpack.c.l.b16 %v6819
  %v6980 = vunpack.c.l.b16 %v6820
  %v6981 = vunpack.c.l.b16 %v6821
  %v6982 = vunpack.c.l.b16 %v6822
  %v6983 = vunpack.c.l.b16 %v6823
  %v6984 = vunpack.c.l.b16 %v6824
  %v6985 = vunpack.c.l.b16 %v6825
  %v6986 = vunpack.c.l.b16 %v6826
  %v6987 = vpack.c.b16 %v6972, %v6971
  %v6988 = vpack.c.b16 %v6974, %v6973
  %v6989 = vpack.c.b16 %v6976, %v6975
  %v6990 = vpack.c.b16 %v6978, %v6977
  %v6991 = vpack.c.b16 %v6980, %v6979
  %v6992 = vpack.c.b16 %v6982, %v6981
  %v6993 = vpack.c.b16 %v6984, %v6983
  %v6994 = vpack.c.b16 %v6986, %v6985
  %7003 = vmatprep.subr.bf16.mxu0 0
  %7004 = vmatpush1.bf16.msra.mxu0 %v6987
  %7005 = vmatprep.subr.bf16.mxu0 0
  %7006 = vmatpush1.bf16.msra.mxu0 %v6988
  %7007 = vmatprep.subr.bf16.mxu0 0
  %7008 = vmatpush1.bf16.msra.mxu0 %v6989
  %7009 = vmatprep.subr.bf16.mxu0 0
  %7010 = vmatpush1.bf16.msra.mxu0 %v6990
  %7011 = vmatprep.subr.bf16.mxu0 0
  %7012 = vmatpush1.bf16.msra.mxu0 %v6991
  %7013 = vmatprep.subr.bf16.mxu0 0
  %7014 = vmatpush1.bf16.msra.mxu0 %v6992
  %7015 = vmatprep.subr.bf16.mxu0 0
  %7016 = vmatpush1.bf16.msra.mxu0 %v6993
  %7017 = vmatprep.subr.bf16.mxu0 0
  %7018 = vmatpush1.bf16.msra.mxu0 %v6994
  %7019 = vmatprep.subr.bf16.mxu0 0
  %7020 = vmatpush1.bf16.msra.mxu0 0
  %7021 = vmatprep.subr.bf16.mxu0 0
  %7022 = vmatpush1.bf16.msra.mxu0 0
  %7023 = vmatprep.subr.bf16.mxu0 0
  %7024 = vmatpush1.bf16.msra.mxu0 0
  %7025 = vmatprep.subr.bf16.mxu0 0
  %7026 = vmatpush1.bf16.msra.mxu0 0
  %7027 = vmatprep.subr.bf16.mxu0 0
  %7028 = vmatpush1.bf16.msra.mxu0 0
  %7029 = vmatprep.subr.bf16.mxu0 0
  %7030 = vmatpush1.bf16.msra.mxu0 0
  %7031 = vmatprep.subr.bf16.mxu0 0
  %7032 = vmatpush1.bf16.msra.mxu0 0
  %7033 = vmatprep.subr.bf16.mxu0 0
  %7034 = vmatpush1.bf16.msra.mxu0 0
  %7035 = vmatprep.mubr.bf16.mxu0 0
  %7036 = vmatmul.mubr.bf16.gmra.mrb[0].mxu0 %v6891
  %v7037 = vpop.f32.mrb[0].mxu0
  %v7038 = vadd.f32 0.0, %v7037
  %v7039 = vpop.f32.mrb[0].mxu0
  %v7040 = vpop.f32.mrb[0].mxu0
  %v7041 = vadd.f32 0.0, %v7040
  %v7042 = vpop.f32.mrb[0].mxu0
  %7043 = vmatprep.mubr.bf16.mxu0 0
  %7044 = vmatmul.mubr.bf16.gmra.mrb[0].mxu0 %v6892
  %v7045 = vpop.f32.mrb[0].mxu0
  %v7046 = vadd.f32 0.0, %v7045
  %v7047 = vpop.f32.mrb[0].mxu0
  %v7048 = vpop.f32.mrb[0].mxu0
  %v7049 = vadd.f32 0.0, %v7048
  %v7050 = vpop.f32.mrb[0].mxu0
  %7051 = vmatprep.mubr.bf16.mxu0 0
  %7052 = vmatmul.mubr.bf16.gmra.mrb[0].mxu0 %v6893
  %v7053 = vpop.f32.mrb[0].mxu0
  %v7054 = vadd.f32 0.0, %v7053
  %v7055 = vpop.f32.mrb[0].mxu0
  %v7056 = vpop.f32.mrb[0].mxu0
  %v7057 = vadd.f32 0.0, %v7056
  %v7058 = vpop.f32.mrb[0].mxu0
  %7059 = vmatprep.mubr.bf16.mxu0 0
  %7060 = vmatmul.mubr.bf16.gmra.mrb[0].mxu0 %v6894
  %v7061 = vpop.f32.mrb[0].mxu0
  %v7062 = vadd.f32 0.0, %v7061
  %v7063 = vpop.f32.mrb[0].mxu0
  %v7064 = vpop.f32.mrb[0].mxu0
  %v7065 = vadd.f32 0.0, %v7064
  %v7066 = vpop.f32.mrb[0].mxu0
  %7067 = vmatprep.mubr.bf16.mxu0 0
  %7068 = vmatmul.mubr.bf16.gmra.mrb[0].mxu0 %v6895
  %v7069 = vpop.f32.mrb[0].mxu0
  %v7070 = vadd.f32 0.0, %v7069
  %v7071 = vpop.f32.mrb[0].mxu0
  %v7072 = vpop.f32.mrb[0].mxu0
  %v7073 = vadd.f32 0.0, %v7072
  %v7074 = vpop.f32.mrb[0].mxu0
  %7075 = vmatprep.mubr.bf16.mxu0 0
  %7076 = vmatmul.mubr.bf16.gmra.mrb[0].mxu0 %v6896
  %v7077 = vpop.f32.mrb[0].mxu0
  %v7078 = vadd.f32 0.0, %v7077
  %v7079 = vpop.f32.mrb[0].mxu0
  %v7080 = vpop.f32.mrb[0].mxu0
  %v7081 = vadd.f32 0.0, %v7080
  %v7082 = vpop.f32.mrb[0].mxu0
  %7083 = vmatprep.mubr.bf16.mxu0 0
  %7084 = vmatmul.mubr.bf16.gmra.mrb[0].mxu0 %v6897
  %v7085 = vpop.f32.mrb[0].mxu0
  %v7086 = vadd.f32 0.0, %v7085
  %v7087 = vpop.f32.mrb[0].mxu0
  %v7088 = vpop.f32.mrb[0].mxu0
  %v7089 = vadd.f32 0.0, %v7088
  %v7090 = vpop.f32.mrb[0].mxu0
  %7091 = vmatprep.mubr.bf16.mxu0 0
  %7092 = vmatmul.mubr.bf16.gmra.mrb[0].mxu0 %v6898
  %v7093 = vpop.f32.mrb[0].mxu0
  %v7094 = vadd.f32 0.0, %v7093
  %v7095 = vpop.f32.mrb[0].mxu0
  %v7096 = vpop.f32.mrb[0].mxu0
  %v7097 = vadd.f32 0.0, %v7096
  %v7098 = vpop.f32.mrb[0].mxu0
  %7099 = vmatprep.mubr.bf16.mxu0 0
  %7100 = vmatmul.mubr.bf16.gmra.mrb[0].mxu0 %v6899
  %v7101 = vpop.f32.mrb[0].mxu0
  %v7102 = vadd.f32 0.0, %v7101
  %v7103 = vpop.f32.mrb[0].mxu0
  %v7104 = vpop.f32.mrb[0].mxu0
  %v7105 = vadd.f32 0.0, %v7104
  %v7106 = vpop.f32.mrb[0].mxu0
  %7107 = vmatprep.mubr.bf16.mxu0 0
  %7108 = vmatmul.mubr.bf16.gmra.mrb[0].mxu0 %v6900
  %v7109 = vpop.f32.mrb[0].mxu0
  %v7110 = vadd.f32 0.0, %v7109
  %v7111 = vpop.f32.mrb[0].mxu0
  %v7112 = vpop.f32.mrb[0].mxu0
  %v7113 = vadd.f32 0.0, %v7112
  %v7114 = vpop.f32.mrb[0].mxu0
  %7115 = vmatprep.mubr.bf16.mxu0 0
  %7116 = vmatmul.mubr.bf16.gmra.mrb[0].mxu0 %v6901
  %v7117 = vpop.f32.mrb[0].mxu0
  %v7118 = vadd.f32 0.0, %v7117
  %v7119 = vpop.f32.mrb[0].mxu0
  %v7120 = vpop.f32.mrb[0].mxu0
  %v7121 = vadd.f32 0.0, %v7120
  %v7122 = vpop.f32.mrb[0].mxu0
  %7123 = vmatprep.mubr.bf16.mxu0 0
  %7124 = vmatmul.mubr.bf16.gmra.mrb[0].mxu0 %v6902
  %v7125 = vpop.f32.mrb[0].mxu0
  %v7126 = vadd.f32 0.0, %v7125
  %v7127 = vpop.f32.mrb[0].mxu0
  %v7128 = vpop.f32.mrb[0].mxu0
  %v7129 = vadd.f32 0.0, %v7128
  %v7130 = vpop.f32.mrb[0].mxu0
  %7131 = vmatprep.mubr.bf16.mxu0 0
  %7132 = vmatmul.mubr.bf16.gmra.mrb[0].mxu0 %v6903
  %v7133 = vpop.f32.mrb[0].mxu0
  %v7134 = vadd.f32 0.0, %v7133
  %v7135 = vpop.f32.mrb[0].mxu0
  %v7136 = vpop.f32.mrb[0].mxu0
  %v7137 = vadd.f32 0.0, %v7136
  %v7138 = vpop.f32.mrb[0].mxu0
  %7139 = vmatprep.mubr.bf16.mxu0 0
  %7140 = vmatmul.mubr.bf16.gmra.mrb[0].mxu0 %v6904
  %v7141 = vpop.f32.mrb[0].mxu0
  %v7142 = vadd.f32 0.0, %v7141
  %v7143 = vpop.f32.mrb[0].mxu0
  %v7144 = vpop.f32.mrb[0].mxu0
  %v7145 = vadd.f32 0.0, %v7144
  %v7146 = vpop.f32.mrb[0].mxu0
  %7147 = vmatprep.mubr.bf16.mxu0 0
  %7148 = vmatmul.mubr.bf16.gmra.mrb[0].mxu0 %v6905
  %v7149 = vpop.f32.mrb[0].mxu0
  %v7150 = vadd.f32 0.0, %v7149
  %v7151 = vpop.f32.mrb[0].mxu0
  %v7152 = vpop.f32.mrb[0].mxu0
  %v7153 = vadd.f32 0.0, %v7152
  %v7154 = vpop.f32.mrb[0].mxu0
  %7155 = vmatprep.mubr.bf16.mxu0 0
  %7156 = vmatmul.mubr.bf16.gmra.mrb[0].mxu0 %v6906
  %v7157 = vpop.f32.mrb[0].mxu0
  %v7158 = vadd.f32 0.0, %v7157
  %v7159 = vpop.f32.mrb[0].mxu0
  %v7160 = vpop.f32.mrb[0].mxu0
  %v7161 = vadd.f32 0.0, %v7160
  %v7162 = vpop.f32.mrb[0].mxu0
  %7163 = vmatprep.mubr.bf16.mxu0 0
  %7164 = vmatmul.mubr.bf16.gmra.mrb[0].mxu0 %v6907
  %v7165 = vpop.f32.mrb[0].mxu0
  %v7166 = vadd.f32 0.0, %v7165
  %v7167 = vpop.f32.mrb[0].mxu0
  %v7168 = vpop.f32.mrb[0].mxu0
  %v7169 = vadd.f32 0.0, %v7168
  %v7170 = vpop.f32.mrb[0].mxu0
  %7171 = vmatprep.mubr.bf16.mxu0 0
  %7172 = vmatmul.mubr.bf16.gmra.mrb[0].mxu0 %v6908
  %v7173 = vpop.f32.mrb[0].mxu0
  %v7174 = vadd.f32 0.0, %v7173
  %v7175 = vpop.f32.mrb[0].mxu0
  %v7176 = vpop.f32.mrb[0].mxu0
  %v7177 = vadd.f32 0.0, %v7176
  %v7178 = vpop.f32.mrb[0].mxu0
  %7179 = vmatprep.mubr.bf16.mxu0 0
  %7180 = vmatmul.mubr.bf16.gmra.mrb[0].mxu0 %v6909
  %v7181 = vpop.f32.mrb[0].mxu0
  %v7182 = vadd.f32 0.0, %v7181
  %v7183 = vpop.f32.mrb[0].mxu0
  %v7184 = vpop.f32.mrb[0].mxu0
  %v7185 = vadd.f32 0.0, %v7184
  %v7186 = vpop.f32.mrb[0].mxu0
  %7187 = vmatprep.mubr.bf16.mxu0 0
  %7188 = vmatmul.mubr.bf16.gmra.mrb[0].mxu0 %v6910
  %v7189 = vpop.f32.mrb[0].mxu0
  %v7190 = vadd.f32 0.0, %v7189
  %v7191 = vpop.f32.mrb[0].mxu0
  %v7192 = vpop.f32.mrb[0].mxu0
  %v7193 = vadd.f32 0.0, %v7192
  %v7194 = vpop.f32.mrb[0].mxu0
  %7195 = vmatprep.mubr.bf16.mxu0 0
  %7196 = vmatmul.mubr.bf16.gmra.mrb[0].mxu0 %v6911
  %v7197 = vpop.f32.mrb[0].mxu0
  %v7198 = vadd.f32 0.0, %v7197
  %v7199 = vpop.f32.mrb[0].mxu0
  %v7200 = vpop.f32.mrb[0].mxu0
  %v7201 = vadd.f32 0.0, %v7200
  %v7202 = vpop.f32.mrb[0].mxu0
  %7203 = vmatprep.mubr.bf16.mxu0 0
  %7204 = vmatmul.mubr.bf16.gmra.mrb[0].mxu0 %v6912
  %v7205 = vpop.f32.mrb[0].mxu0
  %v7206 = vadd.f32 0.0, %v7205
  %v7207 = vpop.f32.mrb[0].mxu0
  %v7208 = vpop.f32.mrb[0].mxu0
  %v7209 = vadd.f32 0.0, %v7208
  %v7210 = vpop.f32.mrb[0].mxu0
  %7211 = vmatprep.mubr.bf16.mxu0 0
  %7212 = vmatmul.mubr.bf16.gmra.mrb[0].mxu0 %v6913
  %v7213 = vpop.f32.mrb[0].mxu0
  %v7214 = vadd.f32 0.0, %v7213
  %v7215 = vpop.f32.mrb[0].mxu0
  %v7216 = vpop.f32.mrb[0].mxu0
  %v7217 = vadd.f32 0.0, %v7216
  %v7218 = vpop.f32.mrb[0].mxu0
  %7219 = vmatprep.mubr.bf16.mxu0 0
  %7220 = vmatmul.mubr.bf16.gmra.mrb[0].mxu0 %v6914
  %v7221 = vpop.f32.mrb[0].mxu0
  %v7222 = vadd.f32 0.0, %v7221
  %v7223 = vpop.f32.mrb[0].mxu0
  %v7224 = vpop.f32.mrb[0].mxu0
  %v7225 = vadd.f32 0.0, %v7224
  %v7226 = vpop.f32.mrb[0].mxu0
  %7227 = vmatprep.mubr.bf16.mxu0 0
  %7228 = vmatmul.mubr.bf16.gmra.mrb[0].mxu0 %v6915
  %v7229 = vpop.f32.mrb[0].mxu0
  %v7230 = vadd.f32 0.0, %v7229
  %v7231 = vpop.f32.mrb[0].mxu0
  %v7232 = vpop.f32.mrb[0].mxu0
  %v7233 = vadd.f32 0.0, %v7232
  %v7234 = vpop.f32.mrb[0].mxu0
  %7235 = vmatprep.mubr.bf16.mxu0 0
  %7236 = vmatmul.mubr.bf16.gmra.mrb[0].mxu0 %v6916
  %v7237 = vpop.f32.mrb[0].mxu0
  %v7238 = vadd.f32 0.0, %v7237
  %v7239 = vpop.f32.mrb[0].mxu0
  %v7240 = vpop.f32.mrb[0].mxu0
  %v7241 = vadd.f32 0.0, %v7240
  %v7242 = vpop.f32.mrb[0].mxu0
  %7243 = vmatprep.mubr.bf16.mxu0 0
  %7244 = vmatmul.mubr.bf16.gmra.mrb[0].mxu0 %v6917
  %v7245 = vpop.f32.mrb[0].mxu0
  %v7246 = vadd.f32 0.0, %v7245
  %v7247 = vpop.f32.mrb[0].mxu0
  %v7248 = vpop.f32.mrb[0].mxu0
  %v7249 = vadd.f32 0.0, %v7248
  %v7250 = vpop.f32.mrb[0].mxu0
  %7251 = vmatprep.mubr.bf16.mxu0 0
  %7252 = vmatmul.mubr.bf16.gmra.mrb[0].mxu0 %v6918
  %v7253 = vpop.f32.mrb[0].mxu0
  %v7254 = vadd.f32 0.0, %v7253
  %v7255 = vpop.f32.mrb[0].mxu0
  %v7256 = vpop.f32.mrb[0].mxu0
  %v7257 = vadd.f32 0.0, %v7256
  %v7258 = vpop.f32.mrb[0].mxu0
  %7259 = vmatprep.mubr.bf16.mxu0 0
  %7260 = vmatmul.mubr.bf16.gmra.mrb[0].mxu0 %v6919
  %v7261 = vpop.f32.mrb[0].mxu0
  %v7262 = vadd.f32 0.0, %v7261
  %v7263 = vpop.f32.mrb[0].mxu0
  %v7264 = vpop.f32.mrb[0].mxu0
  %v7265 = vadd.f32 0.0, %v7264
  %v7266 = vpop.f32.mrb[0].mxu0
  %7267 = vmatprep.mubr.bf16.mxu0 0
  %7268 = vmatmul.mubr.bf16.gmra.mrb[0].mxu0 %v6920
  %v7269 = vpop.f32.mrb[0].mxu0
  %v7270 = vadd.f32 0.0, %v7269
  %v7271 = vpop.f32.mrb[0].mxu0
  %v7272 = vpop.f32.mrb[0].mxu0
  %v7273 = vadd.f32 0.0, %v7272
  %v7274 = vpop.f32.mrb[0].mxu0
  %7275 = vmatprep.mubr.bf16.mxu0 0
  %7276 = vmatmul.mubr.bf16.gmra.mrb[0].mxu0 %v6921
  %v7277 = vpop.f32.mrb[0].mxu0
  %v7278 = vadd.f32 0.0, %v7277
  %v7279 = vpop.f32.mrb[0].mxu0
  %v7280 = vpop.f32.mrb[0].mxu0
  %v7281 = vadd.f32 0.0, %v7280
  %v7282 = vpop.f32.mrb[0].mxu0
  %7283 = vmatprep.mubr.bf16.mxu0 0
  %7284 = vmatmul.mubr.bf16.gmra.mrb[0].mxu0 %v6922
  %v7285 = vpop.f32.mrb[0].mxu0
  %v7286 = vadd.f32 0.0, %v7285
  %v7287 = vpop.f32.mrb[0].mxu0
  %v7288 = vpop.f32.mrb[0].mxu0
  %v7289 = vadd.f32 0.0, %v7288
  %v7290 = vpop.f32.mrb[0].mxu0
  %7291 = vdwg.mxu0
  %v7292 = vadd.f32 %v5883, %v7038
  %v7293 = vadd.f32 %v5884, %v7041
  %v7294 = vadd.f32 %v5885, %v7046
  %v7295 = vadd.f32 %v5886, %v7049
  %v7296 = vadd.f32 %v5887, %v7054
  %v7297 = vadd.f32 %v5888, %v7057
  %v7298 = vadd.f32 %v5889, %v7062
  %v7299 = vadd.f32 %v5890, %v7065
  %v7300 = vadd.f32 %v5891, %v7070
  %v7301 = vadd.f32 %v5892, %v7073
  %v7302 = vadd.f32 %v5893, %v7078
  %v7303 = vadd.f32 %v5894, %v7081
  %v7304 = vadd.f32 %v5895, %v7086
  %v7305 = vadd.f32 %v5896, %v7089
  %v7306 = vadd.f32 %v5897, %v7094
  %v7307 = vadd.f32 %v5898, %v7097
  %v7308 = vadd.f32 %v5899, %v7102
  %v7309 = vadd.f32 %v5900, %v7105
  %v7310 = vadd.f32 %v5901, %v7110
  %v7311 = vadd.f32 %v5902, %v7113
  %v7312 = vadd.f32 %v5903, %v7118
  %v7313 = vadd.f32 %v5904, %v7121
  %v7314 = vadd.f32 %v5905, %v7126
  %v7315 = vadd.f32 %v5906, %v7129
  %v7316 = vadd.f32 %v5907, %v7134
  %v7317 = vadd.f32 %v5908, %v7137
  %v7318 = vadd.f32 %v5909, %v7142
  %v7319 = vadd.f32 %v5910, %v7145
  %v7320 = vadd.f32 %v5911, %v7150
  %v7321 = vadd.f32 %v5912, %v7153
  %v7322 = vadd.f32 %v5913, %v7158
  %v7323 = vadd.f32 %v5914, %v7161
  %v7324 = vadd.f32 %v5915, %v7166
  %v7325 = vadd.f32 %v5916, %v7169
  %v7326 = vadd.f32 %v5917, %v7174
  %v7327 = vadd.f32 %v5918, %v7177
  %v7328 = vadd.f32 %v5919, %v7182
  %v7329 = vadd.f32 %v5920, %v7185
  %v7330 = vadd.f32 %v5921, %v7190
  %v7331 = vadd.f32 %v5922, %v7193
  %v7332 = vadd.f32 %v5923, %v7198
  %v7333 = vadd.f32 %v5924, %v7201
  %v7334 = vadd.f32 %v5925, %v7206
  %v7335 = vadd.f32 %v5926, %v7209
  %v7336 = vadd.f32 %v5927, %v7214
  %v7337 = vadd.f32 %v5928, %v7217
  %v7338 = vadd.f32 %v5929, %v7222
  %v7339 = vadd.f32 %v5930, %v7225
  %v7340 = vadd.f32 %v5931, %v7230
  %v7341 = vadd.f32 %v5932, %v7233
  %v7342 = vadd.f32 %v5933, %v7238
  %v7343 = vadd.f32 %v5934, %v7241
  %v7344 = vadd.f32 %v5935, %v7246
  %v7345 = vadd.f32 %v5936, %v7249
  %v7346 = vadd.f32 %v5937, %v7254
  %v7347 = vadd.f32 %v5938, %v7257
  %v7348 = vadd.f32 %v5939, %v7262
  %v7349 = vadd.f32 %v5940, %v7265
  %v7350 = vadd.f32 %v5941, %v7270
  %v7351 = vadd.f32 %v5942, %v7273
  %v7352 = vadd.f32 %v5943, %v7278
  %v7353 = vadd.f32 %v5944, %v7281
  %v7354 = vadd.f32 %v5945, %v7286
  %v7355 = vadd.f32 %v5946, %v7289
  %v7356 = vld [vmem:[%s2283] sm:$0xe]
  %v7357 = vld [vmem:[%s2283 + $0xc] sm:$0xe]
  %v7358 = vld [vmem:[%s2283 + $0x18] sm:$0xe]
  %v7359 = vld [vmem:[%s2283 + $0x24] sm:$0xe]
  %v7360 = vld [vmem:[%s2283 + $0x30] sm:$0xe]
  %v7361 = vld [vmem:[%s2283 + $0x3c] sm:$0xe]
  %v7362 = vld [vmem:[%s2283 + $0x48] sm:$0xe]
  %v7363 = vld [vmem:[%s2283 + $0x54] sm:$0xe]
  %v7364 = vld [vmem:[%s2283 + $0x60] sm:$0xe]
  %v7365 = vld [vmem:[%s2283 + $0x6c] sm:$0xe]
  %v7366 = vld [vmem:[%s2283 + $0x78] sm:$0xe]
  %v7367 = vld [vmem:[%s2283 + $0x84] sm:$0xe]
  %v7368 = vld [vmem:[%s2283 + $0x90] sm:$0xe]
  %v7369 = vld [vmem:[%s2283 + $0x9c] sm:$0xe]
  %v7370 = vld [vmem:[%s2283 + $0xa8] sm:$0xe]
  %v7371 = vld [vmem:[%s2283 + $0xb4] sm:$0xe]
  %v7372 = vld [vmem:[%s2283 + $0xd8] sm:$0xe]
  %v7373 = vld [vmem:[%s2283 + $0xe4] sm:$0xe]
  %v7374 = vld [vmem:[%s2283 + $0xf0] sm:$0xe]
  %v7375 = vld [vmem:[%s2283 + $0xfc] sm:$0xe]
  %v7376 = vld [vmem:[%s2283 + $0x108] sm:$0xe]
  %v7377 = vld [vmem:[%s2283 + $0x114] sm:$0xe]
  %v7378 = vld [vmem:[%s2283 + $0x120] sm:$0xe]
  %v7379 = vld [vmem:[%s2283 + $0x12c] sm:$0xe]
  %v7380 = vld [vmem:[%s2283 + $0x138] sm:$0xe]
  %v7381 = vld [vmem:[%s2283 + $0x144] sm:$0xe]
  %v7382 = vld [vmem:[%s2283 + $0x150] sm:$0xe]
  %v7383 = vld [vmem:[%s2283 + $0x15c] sm:$0xe]
  %v7384 = vld [vmem:[%s2283 + $0x168] sm:$0xe]
  %v7385 = vld [vmem:[%s2283 + $0x174] sm:$0xe]
  %v7386 = vld [vmem:[%s2283 + $0x180] sm:$0xe]
  %v7387 = vld [vmem:[%s2283 + $0x18c] sm:$0xe]
  %v7484 = vrot.slane %v7356, 5
  %v7485 = vrot.slane %v7484, 4
  %v7486 = vrot.slane %v5948, 5
  %v7487 = vsel %vm4504, %v7485, %v7486
  %v7488 = vrot.slane %v7486, 4
  %v7489 = vrot.slane %v5949, 5
  %v7490 = vsel %vm4504, %v7488, %v7489
  %v7491 = vrot.slane %v7357, 5
  %v7492 = vrot.slane %v7491, 4
  %v7493 = vrot.slane %v5951, 5
  %v7494 = vsel %vm4504, %v7492, %v7493
  %v7495 = vrot.slane %v7493, 4
  %v7496 = vrot.slane %v5952, 5
  %v7497 = vsel %vm4504, %v7495, %v7496
  %v7498 = vrot.slane %v7358, 5
  %v7499 = vrot.slane %v7498, 4
  %v7500 = vrot.slane %v5954, 5
  %v7501 = vsel %vm4504, %v7499, %v7500
  %v7502 = vrot.slane %v7500, 4
  %v7503 = vrot.slane %v5955, 5
  %v7504 = vsel %vm4504, %v7502, %v7503
  %v7505 = vrot.slane %v7359, 5
  %v7506 = vrot.slane %v7505, 4
  %v7507 = vrot.slane %v5957, 5
  %v7508 = vsel %vm4504, %v7506, %v7507
  %v7509 = vrot.slane %v7507, 4
  %v7510 = vrot.slane %v5958, 5
  %v7511 = vsel %vm4504, %v7509, %v7510
  %v7512 = vrot.slane %v7360, 5
  %v7513 = vrot.slane %v7512, 4
  %v7514 = vrot.slane %v5960, 5
  %v7515 = vsel %vm4504, %v7513, %v7514
  %v7516 = vrot.slane %v7514, 4
  %v7517 = vrot.slane %v5961, 5
  %v7518 = vsel %vm4504, %v7516, %v7517
  %v7519 = vrot.slane %v7361, 5
  %v7520 = vrot.slane %v7519, 4
  %v7521 = vrot.slane %v5963, 5
  %v7522 = vsel %vm4504, %v7520, %v7521
  %v7523 = vrot.slane %v7521, 4
  %v7524 = vrot.slane %v5964, 5
  %v7525 = vsel %vm4504, %v7523, %v7524
  %v7526 = vrot.slane %v7362, 5
  %v7527 = vrot.slane %v7526, 4
  %v7528 = vrot.slane %v5966, 5
  %v7529 = vsel %vm4504, %v7527, %v7528
  %v7530 = vrot.slane %v7528, 4
  %v7531 = vrot.slane %v5967, 5
  %v7532 = vsel %vm4504, %v7530, %v7531
  %v7533 = vrot.slane %v7363, 5
  %v7534 = vrot.slane %v7533, 4
  %v7535 = vrot.slane %v5969, 5
  %v7536 = vsel %vm4504, %v7534, %v7535
  %v7537 = vrot.slane %v7535, 4
  %v7538 = vrot.slane %v5970, 5
  %v7539 = vsel %vm4504, %v7537, %v7538
  %v7540 = vrot.slane %v7364, 5
  %v7541 = vrot.slane %v7540, 4
  %v7542 = vrot.slane %v5972, 5
  %v7543 = vsel %vm4504, %v7541, %v7542
  %v7544 = vrot.slane %v7542, 4
  %v7545 = vrot.slane %v5973, 5
  %v7546 = vsel %vm4504, %v7544, %v7545
  %v7547 = vrot.slane %v7365, 5
  %v7548 = vrot.slane %v7547, 4
  %v7549 = vrot.slane %v5975, 5
  %v7550 = vsel %vm4504, %v7548, %v7549
  %v7551 = vrot.slane %v7549, 4
  %v7552 = vrot.slane %v5976, 5
  %v7553 = vsel %vm4504, %v7551, %v7552
  %v7554 = vrot.slane %v7366, 5
  %v7555 = vrot.slane %v7554, 4
  %v7556 = vrot.slane %v5978, 5
  %v7557 = vsel %vm4504, %v7555, %v7556
  %v7558 = vrot.slane %v7556, 4
  %v7559 = vrot.slane %v5979, 5
  %v7560 = vsel %vm4504, %v7558, %v7559
  %v7561 = vrot.slane %v7367, 5
  %v7562 = vrot.slane %v7561, 4
  %v7563 = vrot.slane %v5981, 5
  %v7564 = vsel %vm4504, %v7562, %v7563
  %v7565 = vrot.slane %v7563, 4
  %v7566 = vrot.slane %v5982, 5
  %v7567 = vsel %vm4504, %v7565, %v7566
  %v7568 = vrot.slane %v7368, 5
  %v7569 = vrot.slane %v7568, 4
  %v7570 = vrot.slane %v5984, 5
  %v7571 = vsel %vm4504, %v7569, %v7570
  %v7572 = vrot.slane %v7570, 4
  %v7573 = vrot.slane %v5985, 5
  %v7574 = vsel %vm4504, %v7572, %v7573
  %v7575 = vrot.slane %v7369, 5
  %v7576 = vrot.slane %v7575, 4
  %v7577 = vrot.slane %v5987, 5
  %v7578 = vsel %vm4504, %v7576, %v7577
  %v7579 = vrot.slane %v7577, 4
  %v7580 = vrot.slane %v5988, 5
  %v7581 = vsel %vm4504, %v7579, %v7580
  %v7582 = vrot.slane %v7370, 5
  %v7583 = vrot.slane %v7582, 4
  %v7584 = vrot.slane %v5990, 5
  %v7585 = vsel %vm4504, %v7583, %v7584
  %v7586 = vrot.slane %v7584, 4
  %v7587 = vrot.slane %v5991, 5
  %v7588 = vsel %vm4504, %v7586, %v7587
  %v7589 = vrot.slane %v7371, 5
  %v7590 = vrot.slane %v7589, 4
  %v7591 = vrot.slane %v5993, 5
  %v7592 = vsel %vm4504, %v7590, %v7591
  %v7593 = vrot.slane %v7591, 4
  %v7594 = vrot.slane %v5994, 5
  %v7595 = vsel %vm4504, %v7593, %v7594
  %v7596 = vrot.slane %v7372, 5
  %v7597 = vrot.slane %v7596, 4
  %v7598 = vrot.slane %v5996, 5
  %v7599 = vsel %vm4504, %v7597, %v7598
  %v7600 = vrot.slane %v7598, 4
  %v7601 = vrot.slane %v5997, 5
  %v7602 = vsel %vm4504, %v7600, %v7601
  %v7603 = vrot.slane %v7373, 5
  %v7604 = vrot.slane %v7603, 4
  %v7605 = vrot.slane %v5999, 5
  %v7606 = vsel %vm4504, %v7604, %v7605
  %v7607 = vrot.slane %v7605, 4
  %v7608 = vrot.slane %v6000, 5
  %v7609 = vsel %vm4504, %v7607, %v7608
  %v7610 = vrot.slane %v7374, 5
  %v7611 = vrot.slane %v7610, 4
  %v7612 = vrot.slane %v6002, 5
  %v7613 = vsel %vm4504, %v7611, %v7612
  %v7614 = vrot.slane %v7612, 4
  %v7615 = vrot.slane %v6003, 5
  %v7616 = vsel %vm4504, %v7614, %v7615
  %v7617 = vrot.slane %v7375, 5
  %v7618 = vrot.slane %v7617, 4
  %v7619 = vrot.slane %v6005, 5
  %v7620 = vsel %vm4504, %v7618, %v7619
  %v7621 = vrot.slane %v7619, 4
  %v7622 = vrot.slane %v6006, 5
  %v7623 = vsel %vm4504, %v7621, %v7622
  %v7624 = vrot.slane %v7376, 5
  %v7625 = vrot.slane %v7624, 4
  %v7626 = vrot.slane %v6008, 5
  %v7627 = vsel %vm4504, %v7625, %v7626
  %v7628 = vrot.slane %v7626, 4
  %v7629 = vrot.slane %v6009, 5
  %v7630 = vsel %vm4504, %v7628, %v7629
  %v7631 = vrot.slane %v7377, 5
  %v7632 = vrot.slane %v7631, 4
  %v7633 = vrot.slane %v6011, 5
  %v7634 = vsel %vm4504, %v7632, %v7633
  %v7635 = vrot.slane %v7633, 4
  %v7636 = vrot.slane %v6012, 5
  %v7637 = vsel %vm4504, %v7635, %v7636
  %v7638 = vrot.slane %v7378, 5
  %v7639 = vrot.slane %v7638, 4
  %v7640 = vrot.slane %v6014, 5
  %v7641 = vsel %vm4504, %v7639, %v7640
  %v7642 = vrot.slane %v7640, 4
  %v7643 = vrot.slane %v6015, 5
  %v7644 = vsel %vm4504, %v7642, %v7643
  %v7645 = vrot.slane %v7379, 5
  %v7646 = vrot.slane %v7645, 4
  %v7647 = vrot.slane %v6017, 5
  %v7648 = vsel %vm4504, %v7646, %v7647
  %v7649 = vrot.slane %v7647, 4
  %v7650 = vrot.slane %v6018, 5
  %v7651 = vsel %vm4504, %v7649, %v7650
  %v7652 = vrot.slane %v7380, 5
  %v7653 = vrot.slane %v7652, 4
  %v7654 = vrot.slane %v6020, 5
  %v7655 = vsel %vm4504, %v7653, %v7654
  %v7656 = vrot.slane %v7654, 4
  %v7657 = vrot.slane %v6021, 5
  %v7658 = vsel %vm4504, %v7656, %v7657
  %v7659 = vrot.slane %v7381, 5
  %v7660 = vrot.slane %v7659, 4
  %v7661 = vrot.slane %v6023, 5
  %v7662 = vsel %vm4504, %v7660, %v7661
  %v7663 = vrot.slane %v7661, 4
  %v7664 = vrot.slane %v6024, 5
  %v7665 = vsel %vm4504, %v7663, %v7664
  %v7666 = vrot.slane %v7382, 5
  %v7667 = vrot.slane %v7666, 4
  %v7668 = vrot.slane %v6026, 5
  %v7669 = vsel %vm4504, %v7667, %v7668
  %v7670 = vrot.slane %v7668, 4
  %v7671 = vrot.slane %v6027, 5
  %v7672 = vsel %vm4504, %v7670, %v7671
  %v7673 = vrot.slane %v7383, 5
  %v7674 = vrot.slane %v7673, 4
  %v7675 = vrot.slane %v6029, 5
  %v7676 = vsel %vm4504, %v7674, %v7675
  %v7677 = vrot.slane %v7675, 4
  %v7678 = vrot.slane %v6030, 5
  %v7679 = vsel %vm4504, %v7677, %v7678
  %v7680 = vrot.slane %v7384, 5
  %v7681 = vrot.slane %v7680, 4
  %v7682 = vrot.slane %v6032, 5
  %v7683 = vsel %vm4504, %v7681, %v7682
  %v7684 = vrot.slane %v7682, 4
  %v7685 = vrot.slane %v6033, 5
  %v7686 = vsel %vm4504, %v7684, %v7685
  %v7687 = vrot.slane %v7385, 5
  %v7688 = vrot.slane %v7687, 4
  %v7689 = vrot.slane %v6035, 5
  %v7690 = vsel %vm4504, %v7688, %v7689
  %v7691 = vrot.slane %v7689, 4
  %v7692 = vrot.slane %v6036, 5
  %v7693 = vsel %vm4504, %v7691, %v7692
  %v7694 = vrot.slane %v7386, 5
  %v7695 = vrot.slane %v7694, 4
  %v7696 = vrot.slane %v6038, 5
  %v7697 = vsel %vm4504, %v7695, %v7696
  %v7698 = vrot.slane %v7696, 4
  %v7699 = vrot.slane %v6039, 5
  %v7700 = vsel %vm4504, %v7698, %v7699
  %v7701 = vrot.slane %v7387, 5
  %v7702 = vrot.slane %v7701, 4
  %v7703 = vrot.slane %v6041, 5
  %v7704 = vsel %vm4504, %v7702, %v7703
  %v7705 = vrot.slane %v7703, 4
  %v7706 = vrot.slane %v6042, 5
  %v7707 = vsel %vm4504, %v7705, %v7706
  %v7708 = vld [vmem:[%s2 + $0x140] sm:$0xf]
  %v7709 = vld [vmem:[%s2 + $0x144] sm:$0xf]
  %v7710 = vld [vmem:[%s2 + $0x148] sm:$0xf]
  %v7711 = vld [vmem:[%s2 + $0x14c] sm:$0xf]
  %v7712 = vld [vmem:[%s2 + $0x150] sm:$0xf]
  %v7713 = vld [vmem:[%s2 + $0x154] sm:$0xf]
  %v7714 = vld [vmem:[%s2 + $0x158] sm:$0xf]
  %v7715 = vld [vmem:[%s2 + $0x15c] sm:$0xf]
  %v7716 = vld [vmem:[%s2 + $0x160] sm:$0xf]
  %v7717 = vld [vmem:[%s2 + $0x164] sm:$0xf]
  %v7718 = vld [vmem:[%s2 + $0x168] sm:$0xf]
  %v7719 = vld [vmem:[%s2 + $0x16c] sm:$0xf]
  %v7720 = vld [vmem:[%s2 + $0x170] sm:$0xf]
  %v7721 = vld [vmem:[%s2 + $0x174] sm:$0xf]
  %v7722 = vld [vmem:[%s2 + $0x178] sm:$0xf]
  %v7723 = vld [vmem:[%s2 + $0x17c] sm:$0xf]
  %v7724 = vunpack.c.l.b16 %v7487
  %v7725 = vunpack.c.l.b16 %v7490
  %v7726 = vunpack.c.l.b16 %v7494
  %v7727 = vunpack.c.l.b16 %v7497
  %v7728 = vunpack.c.l.b16 %v7501
  %v7729 = vunpack.c.l.b16 %v7504
  %v7730 = vunpack.c.l.b16 %v7508
  %v7731 = vunpack.c.l.b16 %v7511
  %v7732 = vunpack.c.l.b16 %v7515
  %v7733 = vunpack.c.l.b16 %v7518
  %v7734 = vunpack.c.l.b16 %v7522
  %v7735 = vunpack.c.l.b16 %v7525
  %v7736 = vunpack.c.l.b16 %v7529
  %v7737 = vunpack.c.l.b16 %v7532
  %v7738 = vunpack.c.l.b16 %v7536
  %v7739 = vunpack.c.l.b16 %v7539
  %v7740 = vunpack.c.l.b16 %v7543
  %v7741 = vunpack.c.l.b16 %v7546
  %v7742 = vunpack.c.l.b16 %v7550
  %v7743 = vunpack.c.l.b16 %v7553
  %v7744 = vunpack.c.l.b16 %v7557
  %v7745 = vunpack.c.l.b16 %v7560
  %v7746 = vunpack.c.l.b16 %v7564
  %v7747 = vunpack.c.l.b16 %v7567
  %v7748 = vunpack.c.l.b16 %v7571
  %v7749 = vunpack.c.l.b16 %v7574
  %v7750 = vunpack.c.l.b16 %v7578
  %v7751 = vunpack.c.l.b16 %v7581
  %v7752 = vunpack.c.l.b16 %v7585
  %v7753 = vunpack.c.l.b16 %v7588
  %v7754 = vunpack.c.l.b16 %v7592
  %v7755 = vunpack.c.l.b16 %v7595
  %v7756 = vunpack.c.l.b16 %v7599
  %v7757 = vunpack.c.l.b16 %v7602
  %v7758 = vunpack.c.l.b16 %v7606
  %v7759 = vunpack.c.l.b16 %v7609
  %v7760 = vunpack.c.l.b16 %v7613
  %v7761 = vunpack.c.l.b16 %v7616
  %v7762 = vunpack.c.l.b16 %v7620
  %v7763 = vunpack.c.l.b16 %v7623
  %v7764 = vunpack.c.l.b16 %v7627
  %v7765 = vunpack.c.l.b16 %v7630
  %v7766 = vunpack.c.l.b16 %v7634
  %v7767 = vunpack.c.l.b16 %v7637
  %v7768 = vunpack.c.l.b16 %v7641
  %v7769 = vunpack.c.l.b16 %v7644
  %v7770 = vunpack.c.l.b16 %v7648
  %v7771 = vunpack.c.l.b16 %v7651
  %v7772 = vunpack.c.l.b16 %v7655
  %v7773 = vunpack.c.l.b16 %v7658
  %v7774 = vunpack.c.l.b16 %v7662
  %v7775 = vunpack.c.l.b16 %v7665
  %v7776 = vunpack.c.l.b16 %v7669
  %v7777 = vunpack.c.l.b16 %v7672
  %v7778 = vunpack.c.l.b16 %v7676
  %v7779 = vunpack.c.l.b16 %v7679
  %v7780 = vunpack.c.l.b16 %v7683
  %v7781 = vunpack.c.l.b16 %v7686
  %v7782 = vunpack.c.l.b16 %v7690
  %v7783 = vunpack.c.l.b16 %v7693
  %v7784 = vunpack.c.l.b16 %v7697
  %v7785 = vunpack.c.l.b16 %v7700
  %v7786 = vunpack.c.l.b16 %v7704
  %v7787 = vunpack.c.l.b16 %v7707
  %v7788 = vpack.c.b16 %v7725, %v7724
  %v7789 = vpack.c.b16 %v7727, %v7726
  %v7790 = vpack.c.b16 %v7729, %v7728
  %v7791 = vpack.c.b16 %v7731, %v7730
  %v7792 = vpack.c.b16 %v7733, %v7732
  %v7793 = vpack.c.b16 %v7735, %v7734
  %v7794 = vpack.c.b16 %v7737, %v7736
  %v7795 = vpack.c.b16 %v7739, %v7738
  %v7796 = vpack.c.b16 %v7741, %v7740
  %v7797 = vpack.c.b16 %v7743, %v7742
  %v7798 = vpack.c.b16 %v7745, %v7744
  %v7799 = vpack.c.b16 %v7747, %v7746
  %v7800 = vpack.c.b16 %v7749, %v7748
  %v7801 = vpack.c.b16 %v7751, %v7750
  %v7802 = vpack.c.b16 %v7753, %v7752
  %v7803 = vpack.c.b16 %v7755, %v7754
  %v7804 = vpack.c.b16 %v7757, %v7756
  %v7805 = vpack.c.b16 %v7759, %v7758
  %v7806 = vpack.c.b16 %v7761, %v7760
  %v7807 = vpack.c.b16 %v7763, %v7762
  %v7808 = vpack.c.b16 %v7765, %v7764
  %v7809 = vpack.c.b16 %v7767, %v7766
  %v7810 = vpack.c.b16 %v7769, %v7768
  %v7811 = vpack.c.b16 %v7771, %v7770
  %v7812 = vpack.c.b16 %v7773, %v7772
  %v7813 = vpack.c.b16 %v7775, %v7774
  %v7814 = vpack.c.b16 %v7777, %v7776
  %v7815 = vpack.c.b16 %v7779, %v7778
  %v7816 = vpack.c.b16 %v7781, %v7780
  %v7817 = vpack.c.b16 %v7783, %v7782
  %v7818 = vpack.c.b16 %v7785, %v7784
  %v7819 = vpack.c.b16 %v7787, %v7786
  %v7868 = vunpack.c.l.b16 %v7708
  %v7869 = vunpack.c.l.b16 %v7709
  %v7870 = vunpack.c.l.b16 %v7710
  %v7871 = vunpack.c.l.b16 %v7711
  %v7872 = vunpack.c.l.b16 %v7712
  %v7873 = vunpack.c.l.b16 %v7713
  %v7874 = vunpack.c.l.b16 %v7714
  %v7875 = vunpack.c.l.b16 %v7715
  %v7876 = vunpack.c.l.b16 %v7716
  %v7877 = vunpack.c.l.b16 %v7717
  %v7878 = vunpack.c.l.b16 %v7718
  %v7879 = vunpack.c.l.b16 %v7719
  %v7880 = vunpack.c.l.b16 %v7720
  %v7881 = vunpack.c.l.b16 %v7721
  %v7882 = vunpack.c.l.b16 %v7722
  %v7883 = vunpack.c.l.b16 %v7723
  %v7884 = vpack.c.b16 %v7869, %v7868
  %v7885 = vpack.c.b16 %v7871, %v7870
  %v7886 = vpack.c.b16 %v7873, %v7872
  %v7887 = vpack.c.b16 %v7875, %v7874
  %v7888 = vpack.c.b16 %v7877, %v7876
  %v7889 = vpack.c.b16 %v7879, %v7878
  %v7890 = vpack.c.b16 %v7881, %v7880
  %v7891 = vpack.c.b16 %v7883, %v7882
  %7900 = vmatprep.subr.bf16.mxu0 0
  %7901 = vmatpush1.bf16.msra.mxu0 %v7884
  %7902 = vmatprep.subr.bf16.mxu0 0
  %7903 = vmatpush1.bf16.msra.mxu0 %v7885
  %7904 = vmatprep.subr.bf16.mxu0 0
  %7905 = vmatpush1.bf16.msra.mxu0 %v7886
  %7906 = vmatprep.subr.bf16.mxu0 0
  %7907 = vmatpush1.bf16.msra.mxu0 %v7887
  %7908 = vmatprep.subr.bf16.mxu0 0
  %7909 = vmatpush1.bf16.msra.mxu0 %v7888
  %7910 = vmatprep.subr.bf16.mxu0 0
  %7911 = vmatpush1.bf16.msra.mxu0 %v7889
  %7912 = vmatprep.subr.bf16.mxu0 0
  %7913 = vmatpush1.bf16.msra.mxu0 %v7890
  %7914 = vmatprep.subr.bf16.mxu0 0
  %7915 = vmatpush1.bf16.msra.mxu0 %v7891
  %7916 = vmatprep.subr.bf16.mxu0 0
  %7917 = vmatpush1.bf16.msra.mxu0 0
  %7918 = vmatprep.subr.bf16.mxu0 0
  %7919 = vmatpush1.bf16.msra.mxu0 0
  %7920 = vmatprep.subr.bf16.mxu0 0
  %7921 = vmatpush1.bf16.msra.mxu0 0
  %7922 = vmatprep.subr.bf16.mxu0 0
  %7923 = vmatpush1.bf16.msra.mxu0 0
  %7924 = vmatprep.subr.bf16.mxu0 0
  %7925 = vmatpush1.bf16.msra.mxu0 0
  %7926 = vmatprep.subr.bf16.mxu0 0
  %7927 = vmatpush1.bf16.msra.mxu0 0
  %7928 = vmatprep.subr.bf16.mxu0 0
  %7929 = vmatpush1.bf16.msra.mxu0 0
  %7930 = vmatprep.subr.bf16.mxu0 0
  %7931 = vmatpush1.bf16.msra.mxu0 0
  %7932 = vmatprep.mubr.bf16.mxu0 0
  %7933 = vmatmul.mubr.bf16.gmra.mrb[0].mxu0 %v7788
  %v7934 = vpop.f32.mrb[0].mxu0
  %v7935 = vadd.f32 0.0, %v7934
  %v7936 = vpop.f32.mrb[0].mxu0
  %v7937 = vpop.f32.mrb[0].mxu0
  %v7938 = vadd.f32 0.0, %v7937
  %v7939 = vpop.f32.mrb[0].mxu0
  %7940 = vmatprep.mubr.bf16.mxu0 0
  %7941 = vmatmul.mubr.bf16.gmra.mrb[0].mxu0 %v7789
  %v7942 = vpop.f32.mrb[0].mxu0
  %v7943 = vadd.f32 0.0, %v7942
  %v7944 = vpop.f32.mrb[0].mxu0
  %v7945 = vpop.f32.mrb[0].mxu0
  %v7946 = vadd.f32 0.0, %v7945
  %v7947 = vpop.f32.mrb[0].mxu0
  %7948 = vmatprep.mubr.bf16.mxu0 0
  %7949 = vmatmul.mubr.bf16.gmra.mrb[0].mxu0 %v7790
  %v7950 = vpop.f32.mrb[0].mxu0
  %v7951 = vadd.f32 0.0, %v7950
  %v7952 = vpop.f32.mrb[0].mxu0
  %v7953 = vpop.f32.mrb[0].mxu0
  %v7954 = vadd.f32 0.0, %v7953
  %v7955 = vpop.f32.mrb[0].mxu0
  %7956 = vmatprep.mubr.bf16.mxu0 0
  %7957 = vmatmul.mubr.bf16.gmra.mrb[0].mxu0 %v7791
  %v7958 = vpop.f32.mrb[0].mxu0
  %v7959 = vadd.f32 0.0, %v7958
  %v7960 = vpop.f32.mrb[0].mxu0
  %v7961 = vpop.f32.mrb[0].mxu0
  %v7962 = vadd.f32 0.0, %v7961
  %v7963 = vpop.f32.mrb[0].mxu0
  %7964 = vmatprep.mubr.bf16.mxu0 0
  %7965 = vmatmul.mubr.bf16.gmra.mrb[0].mxu0 %v7792
  %v7966 = vpop.f32.mrb[0].mxu0
  %v7967 = vadd.f32 0.0, %v7966
  %v7968 = vpop.f32.mrb[0].mxu0
  %v7969 = vpop.f32.mrb[0].mxu0
  %v7970 = vadd.f32 0.0, %v7969
  %v7971 = vpop.f32.mrb[0].mxu0
  %7972 = vmatprep.mubr.bf16.mxu0 0
  %7973 = vmatmul.mubr.bf16.gmra.mrb[0].mxu0 %v7793
  %v7974 = vpop.f32.mrb[0].mxu0
  %v7975 = vadd.f32 0.0, %v7974
  %v7976 = vpop.f32.mrb[0].mxu0
  %v7977 = vpop.f32.mrb[0].mxu0
  %v7978 = vadd.f32 0.0, %v7977
  %v7979 = vpop.f32.mrb[0].mxu0
  %7980 = vmatprep.mubr.bf16.mxu0 0
  %7981 = vmatmul.mubr.bf16.gmra.mrb[0].mxu0 %v7794
  %v7982 = vpop.f32.mrb[0].mxu0
  %v7983 = vadd.f32 0.0, %v7982
  %v7984 = vpop.f32.mrb[0].mxu0
  %v7985 = vpop.f32.mrb[0].mxu0
  %v7986 = vadd.f32 0.0, %v7985
  %v7987 = vpop.f32.mrb[0].mxu0
  %7988 = vmatprep.mubr.bf16.mxu0 0
  %7989 = vmatmul.mubr.bf16.gmra.mrb[0].mxu0 %v7795
  %v7990 = vpop.f32.mrb[0].mxu0
  %v7991 = vadd.f32 0.0, %v7990
  %v7992 = vpop.f32.mrb[0].mxu0
  %v7993 = vpop.f32.mrb[0].mxu0
  %v7994 = vadd.f32 0.0, %v7993
  %v7995 = vpop.f32.mrb[0].mxu0
  %7996 = vmatprep.mubr.bf16.mxu0 0
  %7997 = vmatmul.mubr.bf16.gmra.mrb[0].mxu0 %v7796
  %v7998 = vpop.f32.mrb[0].mxu0
  %v7999 = vadd.f32 0.0, %v7998
  %v8000 = vpop.f32.mrb[0].mxu0
  %v8001 = vpop.f32.mrb[0].mxu0
  %v8002 = vadd.f32 0.0, %v8001
  %v8003 = vpop.f32.mrb[0].mxu0
  %8004 = vmatprep.mubr.bf16.mxu0 0
  %8005 = vmatmul.mubr.bf16.gmra.mrb[0].mxu0 %v7797
  %v8006 = vpop.f32.mrb[0].mxu0
  %v8007 = vadd.f32 0.0, %v8006
  %v8008 = vpop.f32.mrb[0].mxu0
  %v8009 = vpop.f32.mrb[0].mxu0
  %v8010 = vadd.f32 0.0, %v8009
  %v8011 = vpop.f32.mrb[0].mxu0
  %8012 = vmatprep.mubr.bf16.mxu0 0
  %8013 = vmatmul.mubr.bf16.gmra.mrb[0].mxu0 %v7798
  %v8014 = vpop.f32.mrb[0].mxu0
  %v8015 = vadd.f32 0.0, %v8014
  %v8016 = vpop.f32.mrb[0].mxu0
  %v8017 = vpop.f32.mrb[0].mxu0
  %v8018 = vadd.f32 0.0, %v8017
  %v8019 = vpop.f32.mrb[0].mxu0
  %8020 = vmatprep.mubr.bf16.mxu0 0
  %8021 = vmatmul.mubr.bf16.gmra.mrb[0].mxu0 %v7799
  %v8022 = vpop.f32.mrb[0].mxu0
  %v8023 = vadd.f32 0.0, %v8022
  %v8024 = vpop.f32.mrb[0].mxu0
  %v8025 = vpop.f32.mrb[0].mxu0
  %v8026 = vadd.f32 0.0, %v8025
  %v8027 = vpop.f32.mrb[0].mxu0
  %8028 = vmatprep.mubr.bf16.mxu0 0
  %8029 = vmatmul.mubr.bf16.gmra.mrb[0].mxu0 %v7800
  %v8030 = vpop.f32.mrb[0].mxu0
  %v8031 = vadd.f32 0.0, %v8030
  %v8032 = vpop.f32.mrb[0].mxu0
  %v8033 = vpop.f32.mrb[0].mxu0
  %v8034 = vadd.f32 0.0, %v8033
  %v8035 = vpop.f32.mrb[0].mxu0
  %8036 = vmatprep.mubr.bf16.mxu0 0
  %8037 = vmatmul.mubr.bf16.gmra.mrb[0].mxu0 %v7801
  %v8038 = vpop.f32.mrb[0].mxu0
  %v8039 = vadd.f32 0.0, %v8038
  %v8040 = vpop.f32.mrb[0].mxu0
  %v8041 = vpop.f32.mrb[0].mxu0
  %v8042 = vadd.f32 0.0, %v8041
  %v8043 = vpop.f32.mrb[0].mxu0
  %8044 = vmatprep.mubr.bf16.mxu0 0
  %8045 = vmatmul.mubr.bf16.gmra.mrb[0].mxu0 %v7802
  %v8046 = vpop.f32.mrb[0].mxu0
  %v8047 = vadd.f32 0.0, %v8046
  %v8048 = vpop.f32.mrb[0].mxu0
  %v8049 = vpop.f32.mrb[0].mxu0
  %v8050 = vadd.f32 0.0, %v8049
  %v8051 = vpop.f32.mrb[0].mxu0
  %8052 = vmatprep.mubr.bf16.mxu0 0
  %8053 = vmatmul.mubr.bf16.gmra.mrb[0].mxu0 %v7803
  %v8054 = vpop.f32.mrb[0].mxu0
  %v8055 = vadd.f32 0.0, %v8054
  %v8056 = vpop.f32.mrb[0].mxu0
  %v8057 = vpop.f32.mrb[0].mxu0
  %v8058 = vadd.f32 0.0, %v8057
  %v8059 = vpop.f32.mrb[0].mxu0
  %8060 = vmatprep.mubr.bf16.mxu0 0
  %8061 = vmatmul.mubr.bf16.gmra.mrb[0].mxu0 %v7804
  %v8062 = vpop.f32.mrb[0].mxu0
  %v8063 = vadd.f32 0.0, %v8062
  %v8064 = vpop.f32.mrb[0].mxu0
  %v8065 = vpop.f32.mrb[0].mxu0
  %v8066 = vadd.f32 0.0, %v8065
  %v8067 = vpop.f32.mrb[0].mxu0
  %8068 = vmatprep.mubr.bf16.mxu0 0
  %8069 = vmatmul.mubr.bf16.gmra.mrb[0].mxu0 %v7805
  %v8070 = vpop.f32.mrb[0].mxu0
  %v8071 = vadd.f32 0.0, %v8070
  %v8072 = vpop.f32.mrb[0].mxu0
  %v8073 = vpop.f32.mrb[0].mxu0
  %v8074 = vadd.f32 0.0, %v8073
  %v8075 = vpop.f32.mrb[0].mxu0
  %8076 = vmatprep.mubr.bf16.mxu0 0
  %8077 = vmatmul.mubr.bf16.gmra.mrb[0].mxu0 %v7806
  %v8078 = vpop.f32.mrb[0].mxu0
  %v8079 = vadd.f32 0.0, %v8078
  %v8080 = vpop.f32.mrb[0].mxu0
  %v8081 = vpop.f32.mrb[0].mxu0
  %v8082 = vadd.f32 0.0, %v8081
  %v8083 = vpop.f32.mrb[0].mxu0
  %8084 = vmatprep.mubr.bf16.mxu0 0
  %8085 = vmatmul.mubr.bf16.gmra.mrb[0].mxu0 %v7807
  %v8086 = vpop.f32.mrb[0].mxu0
  %v8087 = vadd.f32 0.0, %v8086
  %v8088 = vpop.f32.mrb[0].mxu0
  %v8089 = vpop.f32.mrb[0].mxu0
  %v8090 = vadd.f32 0.0, %v8089
  %v8091 = vpop.f32.mrb[0].mxu0
  %8092 = vmatprep.mubr.bf16.mxu0 0
  %8093 = vmatmul.mubr.bf16.gmra.mrb[0].mxu0 %v7808
  %v8094 = vpop.f32.mrb[0].mxu0
  %v8095 = vadd.f32 0.0, %v8094
  %v8096 = vpop.f32.mrb[0].mxu0
  %v8097 = vpop.f32.mrb[0].mxu0
  %v8098 = vadd.f32 0.0, %v8097
  %v8099 = vpop.f32.mrb[0].mxu0
  %8100 = vmatprep.mubr.bf16.mxu0 0
  %8101 = vmatmul.mubr.bf16.gmra.mrb[0].mxu0 %v7809
  %v8102 = vpop.f32.mrb[0].mxu0
  %v8103 = vadd.f32 0.0, %v8102
  %v8104 = vpop.f32.mrb[0].mxu0
  %v8105 = vpop.f32.mrb[0].mxu0
  %v8106 = vadd.f32 0.0, %v8105
  %v8107 = vpop.f32.mrb[0].mxu0
  %8108 = vmatprep.mubr.bf16.mxu0 0
  %8109 = vmatmul.mubr.bf16.gmra.mrb[0].mxu0 %v7810
  %v8110 = vpop.f32.mrb[0].mxu0
  %v8111 = vadd.f32 0.0, %v8110
  %v8112 = vpop.f32.mrb[0].mxu0
  %v8113 = vpop.f32.mrb[0].mxu0
  %v8114 = vadd.f32 0.0, %v8113
  %v8115 = vpop.f32.mrb[0].mxu0
  %8116 = vmatprep.mubr.bf16.mxu0 0
  %8117 = vmatmul.mubr.bf16.gmra.mrb[0].mxu0 %v7811
  %v8118 = vpop.f32.mrb[0].mxu0
  %v8119 = vadd.f32 0.0, %v8118
  %v8120 = vpop.f32.mrb[0].mxu0
  %v8121 = vpop.f32.mrb[0].mxu0
  %v8122 = vadd.f32 0.0, %v8121
  %v8123 = vpop.f32.mrb[0].mxu0
  %8124 = vmatprep.mubr.bf16.mxu0 0
  %8125 = vmatmul.mubr.bf16.gmra.mrb[0].mxu0 %v7812
  %v8126 = vpop.f32.mrb[0].mxu0
  %v8127 = vadd.f32 0.0, %v8126
  %v8128 = vpop.f32.mrb[0].mxu0
  %v8129 = vpop.f32.mrb[0].mxu0
  %v8130 = vadd.f32 0.0, %v8129
  %v8131 = vpop.f32.mrb[0].mxu0
  %8132 = vmatprep.mubr.bf16.mxu0 0
  %8133 = vmatmul.mubr.bf16.gmra.mrb[0].mxu0 %v7813
  %v8134 = vpop.f32.mrb[0].mxu0
  %v8135 = vadd.f32 0.0, %v8134
  %v8136 = vpop.f32.mrb[0].mxu0
  %v8137 = vpop.f32.mrb[0].mxu0
  %v8138 = vadd.f32 0.0, %v8137
  %v8139 = vpop.f32.mrb[0].mxu0
  %8140 = vmatprep.mubr.bf16.mxu0 0
  %8141 = vmatmul.mubr.bf16.gmra.mrb[0].mxu0 %v7814
  %v8142 = vpop.f32.mrb[0].mxu0
  %v8143 = vadd.f32 0.0, %v8142
  %v8144 = vpop.f32.mrb[0].mxu0
  %v8145 = vpop.f32.mrb[0].mxu0
  %v8146 = vadd.f32 0.0, %v8145
  %v8147 = vpop.f32.mrb[0].mxu0
  %8148 = vmatprep.mubr.bf16.mxu0 0
  %8149 = vmatmul.mubr.bf16.gmra.mrb[0].mxu0 %v7815
  %v8150 = vpop.f32.mrb[0].mxu0
  %v8151 = vadd.f32 0.0, %v8150
  %v8152 = vpop.f32.mrb[0].mxu0
  %v8153 = vpop.f32.mrb[0].mxu0
  %v8154 = vadd.f32 0.0, %v8153
  %v8155 = vpop.f32.mrb[0].mxu0
  %8156 = vmatprep.mubr.bf16.mxu0 0
  %8157 = vmatmul.mubr.bf16.gmra.mrb[0].mxu0 %v7816
  %v8158 = vpop.f32.mrb[0].mxu0
  %v8159 = vadd.f32 0.0, %v8158
  %v8160 = vpop.f32.mrb[0].mxu0
  %v8161 = vpop.f32.mrb[0].mxu0
  %v8162 = vadd.f32 0.0, %v8161
  %v8163 = vpop.f32.mrb[0].mxu0
  %8164 = vmatprep.mubr.bf16.mxu0 0
  %8165 = vmatmul.mubr.bf16.gmra.mrb[0].mxu0 %v7817
  %v8166 = vpop.f32.mrb[0].mxu0
  %v8167 = vadd.f32 0.0, %v8166
  %v8168 = vpop.f32.mrb[0].mxu0
  %v8169 = vpop.f32.mrb[0].mxu0
  %v8170 = vadd.f32 0.0, %v8169
  %v8171 = vpop.f32.mrb[0].mxu0
  %8172 = vmatprep.mubr.bf16.mxu0 0
  %8173 = vmatmul.mubr.bf16.gmra.mrb[0].mxu0 %v7818
  %v8174 = vpop.f32.mrb[0].mxu0
  %v8175 = vadd.f32 0.0, %v8174
  %v8176 = vpop.f32.mrb[0].mxu0
  %v8177 = vpop.f32.mrb[0].mxu0
  %v8178 = vadd.f32 0.0, %v8177
  %v8179 = vpop.f32.mrb[0].mxu0
  %8180 = vmatprep.mubr.bf16.mxu0 0
  %8181 = vmatmul.mubr.bf16.gmra.mrb[0].mxu0 %v7819
  %v8182 = vpop.f32.mrb[0].mxu0
  %v8183 = vadd.f32 0.0, %v8182
  %v8184 = vpop.f32.mrb[0].mxu0
  %v8185 = vpop.f32.mrb[0].mxu0
  %v8186 = vadd.f32 0.0, %v8185
  %v8187 = vpop.f32.mrb[0].mxu0
  %8188 = vdwg.mxu0
  %v8189 = vadd.f32 %v7292, %v7935
  %v8190 = vadd.f32 %v7293, %v7938
  %v8191 = vadd.f32 %v7294, %v7943
  %v8192 = vadd.f32 %v7295, %v7946
  %v8193 = vadd.f32 %v7296, %v7951
  %v8194 = vadd.f32 %v7297, %v7954
  %v8195 = vadd.f32 %v7298, %v7959
  %v8196 = vadd.f32 %v7299, %v7962
  %v8197 = vadd.f32 %v7300, %v7967
  %v8198 = vadd.f32 %v7301, %v7970
  %v8199 = vadd.f32 %v7302, %v7975
  %v8200 = vadd.f32 %v7303, %v7978
  %v8201 = vadd.f32 %v7304, %v7983
  %v8202 = vadd.f32 %v7305, %v7986
  %v8203 = vadd.f32 %v7306, %v7991
  %v8204 = vadd.f32 %v7307, %v7994
  %v8205 = vadd.f32 %v7308, %v7999
  %v8206 = vadd.f32 %v7309, %v8002
  %v8207 = vadd.f32 %v7310, %v8007
  %v8208 = vadd.f32 %v7311, %v8010
  %v8209 = vadd.f32 %v7312, %v8015
  %v8210 = vadd.f32 %v7313, %v8018
  %v8211 = vadd.f32 %v7314, %v8023
  %v8212 = vadd.f32 %v7315, %v8026
  %v8213 = vadd.f32 %v7316, %v8031
  %v8214 = vadd.f32 %v7317, %v8034
  %v8215 = vadd.f32 %v7318, %v8039
  %v8216 = vadd.f32 %v7319, %v8042
  %v8217 = vadd.f32 %v7320, %v8047
  %v8218 = vadd.f32 %v7321, %v8050
  %v8219 = vadd.f32 %v7322, %v8055
  %v8220 = vadd.f32 %v7323, %v8058
  %v8221 = vadd.f32 %v7324, %v8063
  %v8222 = vadd.f32 %v7325, %v8066
  %v8223 = vadd.f32 %v7326, %v8071
  %v8224 = vadd.f32 %v7327, %v8074
  %v8225 = vadd.f32 %v7328, %v8079
  %v8226 = vadd.f32 %v7329, %v8082
  %v8227 = vadd.f32 %v7330, %v8087
  %v8228 = vadd.f32 %v7331, %v8090
  %v8229 = vadd.f32 %v7332, %v8095
  %v8230 = vadd.f32 %v7333, %v8098
  %v8231 = vadd.f32 %v7334, %v8103
  %v8232 = vadd.f32 %v7335, %v8106
  %v8233 = vadd.f32 %v7336, %v8111
  %v8234 = vadd.f32 %v7337, %v8114
  %v8235 = vadd.f32 %v7338, %v8119
  %v8236 = vadd.f32 %v7339, %v8122
  %v8237 = vadd.f32 %v7340, %v8127
  %v8238 = vadd.f32 %v7341, %v8130
  %v8239 = vadd.f32 %v7342, %v8135
  %v8240 = vadd.f32 %v7343, %v8138
  %v8241 = vadd.f32 %v7344, %v8143
  %v8242 = vadd.f32 %v7345, %v8146
  %v8243 = vadd.f32 %v7346, %v8151
  %v8244 = vadd.f32 %v7347, %v8154
  %v8245 = vadd.f32 %v7348, %v8159
  %v8246 = vadd.f32 %v7349, %v8162
  %v8247 = vadd.f32 %v7350, %v8167
  %v8248 = vadd.f32 %v7351, %v8170
  %v8249 = vadd.f32 %v7352, %v8175
  %v8250 = vadd.f32 %v7353, %v8178
  %v8251 = vadd.f32 %v7354, %v8183
  %v8252 = vadd.f32 %v7355, %v8186
  %s8253 = scalar_lea.vmem [#allocation2], 24
  %v8254 = vld [vmem:[%s8253] sm:$0xf]
  %v8255 = vld [vmem:[%s8253 + $0x4] sm:$0xf]
  %v8256 = vld [vmem:[%s8253 + $0xc] sm:$0xf]
  %v8257 = vld [vmem:[%s8253 + $0x10] sm:$0xf]
  %v8258 = vld [vmem:[%s8253 + $0x18] sm:$0xf]
  %v8259 = vld [vmem:[%s8253 + $0x1c] sm:$0xf]
  %v8260 = vld [vmem:[%s8253 + $0x24] sm:$0xf]
  %v8261 = vld [vmem:[%s8253 + $0x28] sm:$0xf]
  %v8262 = vld [vmem:[%s8253 + $0x30] sm:$0xf]
  %v8263 = vld [vmem:[%s8253 + $0x34] sm:$0xf]
  %v8264 = vld [vmem:[%s8253 + $0x3c] sm:$0xf]
  %v8265 = vld [vmem:[%s8253 + $0x40] sm:$0xf]
  %v8266 = vld [vmem:[%s8253 + $0x48] sm:$0xf]
  %v8267 = vld [vmem:[%s8253 + $0x4c] sm:$0xf]
  %v8268 = vld [vmem:[%s8253 + $0x54] sm:$0xf]
  %v8269 = vld [vmem:[%s8253 + $0x58] sm:$0xf]
  %v8270 = vld [vmem:[%s8253 + $0x60] sm:$0xf]
  %v8271 = vld [vmem:[%s8253 + $0x64] sm:$0xf]
  %v8272 = vld [vmem:[%s8253 + $0x6c] sm:$0xf]
  %v8273 = vld [vmem:[%s8253 + $0x70] sm:$0xf]
  %v8274 = vld [vmem:[%s8253 + $0x78] sm:$0xf]
  %v8275 = vld [vmem:[%s8253 + $0x7c] sm:$0xf]
  %v8276 = vld [vmem:[%s8253 + $0x84] sm:$0xf]
  %v8277 = vld [vmem:[%s8253 + $0x88] sm:$0xf]
  %v8278 = vld [vmem:[%s8253 + $0x90] sm:$0xf]
  %v8279 = vld [vmem:[%s8253 + $0x94] sm:$0xf]
  %v8280 = vld [vmem:[%s8253 + $0x9c] sm:$0xf]
  %v8281 = vld [vmem:[%s8253 + $0xa0] sm:$0xf]
  %v8282 = vld [vmem:[%s8253 + $0xa8] sm:$0xf]
  %v8283 = vld [vmem:[%s8253 + $0xac] sm:$0xf]
  %v8284 = vld [vmem:[%s8253 + $0xb4] sm:$0xf]
  %v8285 = vld [vmem:[%s8253 + $0xb8] sm:$0xf]
  %v8286 = vld [vmem:[%s8253 + $0xd8] sm:$0xf]
  %v8287 = vld [vmem:[%s8253 + $0xdc] sm:$0xf]
  %v8288 = vld [vmem:[%s8253 + $0xe4] sm:$0xf]
  %v8289 = vld [vmem:[%s8253 + $0xe8] sm:$0xf]
  %v8290 = vld [vmem:[%s8253 + $0xf0] sm:$0xf]
  %v8291 = vld [vmem:[%s8253 + $0xf4] sm:$0xf]
  %v8292 = vld [vmem:[%s8253 + $0xfc] sm:$0xf]
  %v8293 = vld [vmem:[%s8253 + $0x100] sm:$0xf]
  %v8294 = vld [vmem:[%s8253 + $0x108] sm:$0xf]
  %v8295 = vld [vmem:[%s8253 + $0x10c] sm:$0xf]
  %v8296 = vld [vmem:[%s8253 + $0x114] sm:$0xf]
  %v8297 = vld [vmem:[%s8253 + $0x118] sm:$0xf]
  %v8298 = vld [vmem:[%s8253 + $0x120] sm:$0xf]
  %v8299 = vld [vmem:[%s8253 + $0x124] sm:$0xf]
  %v8300 = vld [vmem:[%s8253 + $0x12c] sm:$0xf]
  %v8301 = vld [vmem:[%s8253 + $0x130] sm:$0xf]
  %v8302 = vld [vmem:[%s8253 + $0x138] sm:$0xf]
  %v8303 = vld [vmem:[%s8253 + $0x13c] sm:$0xf]
  %v8304 = vld [vmem:[%s8253 + $0x144] sm:$0xf]
  %v8305 = vld [vmem:[%s8253 + $0x148] sm:$0xf]
  %v8306 = vld [vmem:[%s8253 + $0x150] sm:$0xf]
  %v8307 = vld [vmem:[%s8253 + $0x154] sm:$0xf]
  %v8308 = vld [vmem:[%s8253 + $0x15c] sm:$0xf]
  %v8309 = vld [vmem:[%s8253 + $0x160] sm:$0xf]
  %v8310 = vld [vmem:[%s8253 + $0x168] sm:$0xf]
  %v8311 = vld [vmem:[%s8253 + $0x16c] sm:$0xf]
  %v8312 = vld [vmem:[%s8253 + $0x174] sm:$0xf]
  %v8313 = vld [vmem:[%s8253 + $0x178] sm:$0xf]
  %v8314 = vld [vmem:[%s8253 + $0x180] sm:$0xf]
  %v8315 = vld [vmem:[%s8253 + $0x184] sm:$0xf]
  %v8316 = vld [vmem:[%s8253 + $0x18c] sm:$0xf]
  %v8317 = vld [vmem:[%s8253 + $0x190] sm:$0xf]
  %v8318 = vld [vmem:[%s2 + $0x180] sm:$0xf]
  %v8319 = vld [vmem:[%s2 + $0x184] sm:$0xf]
  %v8320 = vld [vmem:[%s2 + $0x188] sm:$0xf]
  %v8321 = vld [vmem:[%s2 + $0x18c] sm:$0xf]
  %v8322 = vld [vmem:[%s2 + $0x190] sm:$0xf]
  %v8323 = vld [vmem:[%s2 + $0x194] sm:$0xf]
  %v8324 = vld [vmem:[%s2 + $0x198] sm:$0xf]
  %v8325 = vld [vmem:[%s2 + $0x19c] sm:$0xf]
  %v8326 = vld [vmem:[%s2 + $0x1a0] sm:$0xf]
  %v8327 = vld [vmem:[%s2 + $0x1a4] sm:$0xf]
  %v8328 = vld [vmem:[%s2 + $0x1a8] sm:$0xf]
  %v8329 = vld [vmem:[%s2 + $0x1ac] sm:$0xf]
  %v8330 = vld [vmem:[%s2 + $0x1b0] sm:$0xf]
  %v8331 = vld [vmem:[%s2 + $0x1b4] sm:$0xf]
  %v8332 = vld [vmem:[%s2 + $0x1b8] sm:$0xf]
  %v8333 = vld [vmem:[%s2 + $0x1bc] sm:$0xf]
  %v8398 = vunpack.c.l.b16 %v8254
  %v8399 = vunpack.c.l.b16 %v8255
  %v8400 = vunpack.c.l.b16 %v8256
  %v8401 = vunpack.c.l.b16 %v8257
  %v8402 = vunpack.c.l.b16 %v8258
  %v8403 = vunpack.c.l.b16 %v8259
  %v8404 = vunpack.c.l.b16 %v8260
  %v8405 = vunpack.c.l.b16 %v8261
  %v8406 = vunpack.c.l.b16 %v8262
  %v8407 = vunpack.c.l.b16 %v8263
  %v8408 = vunpack.c.l.b16 %v8264
  %v8409 = vunpack.c.l.b16 %v8265
  %v8410 = vunpack.c.l.b16 %v8266
  %v8411 = vunpack.c.l.b16 %v8267
  %v8412 = vunpack.c.l.b16 %v8268
  %v8413 = vunpack.c.l.b16 %v8269
  %v8414 = vunpack.c.l.b16 %v8270
  %v8415 = vunpack.c.l.b16 %v8271
  %v8416 = vunpack.c.l.b16 %v8272
  %v8417 = vunpack.c.l.b16 %v8273
  %v8418 = vunpack.c.l.b16 %v8274
  %v8419 = vunpack.c.l.b16 %v8275
  %v8420 = vunpack.c.l.b16 %v8276
  %v8421 = vunpack.c.l.b16 %v8277
  %v8422 = vunpack.c.l.b16 %v8278
  %v8423 = vunpack.c.l.b16 %v8279
  %v8424 = vunpack.c.l.b16 %v8280
  %v8425 = vunpack.c.l.b16 %v8281
  %v8426 = vunpack.c.l.b16 %v8282
  %v8427 = vunpack.c.l.b16 %v8283
  %v8428 = vunpack.c.l.b16 %v8284
  %v8429 = vunpack.c.l.b16 %v8285
  %v8430 = vunpack.c.l.b16 %v8286
  %v8431 = vunpack.c.l.b16 %v8287
  %v8432 = vunpack.c.l.b16 %v8288
  %v8433 = vunpack.c.l.b16 %v8289
  %v8434 = vunpack.c.l.b16 %v8290
  %v8435 = vunpack.c.l.b16 %v8291
  %v8436 = vunpack.c.l.b16 %v8292
  %v8437 = vunpack.c.l.b16 %v8293
  %v8438 = vunpack.c.l.b16 %v8294
  %v8439 = vunpack.c.l.b16 %v8295
  %v8440 = vunpack.c.l.b16 %v8296
  %v8441 = vunpack.c.l.b16 %v8297
  %v8442 = vunpack.c.l.b16 %v8298
  %v8443 = vunpack.c.l.b16 %v8299
  %v8444 = vunpack.c.l.b16 %v8300
  %v8445 = vunpack.c.l.b16 %v8301
  %v8446 = vunpack.c.l.b16 %v8302
  %v8447 = vunpack.c.l.b16 %v8303
  %v8448 = vunpack.c.l.b16 %v8304
  %v8449 = vunpack.c.l.b16 %v8305
  %v8450 = vunpack.c.l.b16 %v8306
  %v8451 = vunpack.c.l.b16 %v8307
  %v8452 = vunpack.c.l.b16 %v8308
  %v8453 = vunpack.c.l.b16 %v8309
  %v8454 = vunpack.c.l.b16 %v8310
  %v8455 = vunpack.c.l.b16 %v8311
  %v8456 = vunpack.c.l.b16 %v8312
  %v8457 = vunpack.c.l.b16 %v8313
  %v8458 = vunpack.c.l.b16 %v8314
  %v8459 = vunpack.c.l.b16 %v8315
  %v8460 = vunpack.c.l.b16 %v8316
  %v8461 = vunpack.c.l.b16 %v8317
  %v8462 = vpack.c.b16 %v8399, %v8398
  %v8463 = vpack.c.b16 %v8401, %v8400
  %v8464 = vpack.c.b16 %v8403, %v8402
  %v8465 = vpack.c.b16 %v8405, %v8404
  %v8466 = vpack.c.b16 %v8407, %v8406
  %v8467 = vpack.c.b16 %v8409, %v8408
  %v8468 = vpack.c.b16 %v8411, %v8410
  %v8469 = vpack.c.b16 %v8413, %v8412
  %v8470 = vpack.c.b16 %v8415, %v8414
  %v8471 = vpack.c.b16 %v8417, %v8416
  %v8472 = vpack.c.b16 %v8419, %v8418
  %v8473 = vpack.c.b16 %v8421, %v8420
  %v8474 = vpack.c.b16 %v8423, %v8422
  %v8475 = vpack.c.b16 %v8425, %v8424
  %v8476 = vpack.c.b16 %v8427, %v8426
  %v8477 = vpack.c.b16 %v8429, %v8428
  %v8478 = vpack.c.b16 %v8431, %v8430
  %v8479 = vpack.c.b16 %v8433, %v8432
  %v8480 = vpack.c.b16 %v8435, %v8434
  %v8481 = vpack.c.b16 %v8437, %v8436
  %v8482 = vpack.c.b16 %v8439, %v8438
  %v8483 = vpack.c.b16 %v8441, %v8440
  %v8484 = vpack.c.b16 %v8443, %v8442
  %v8485 = vpack.c.b16 %v8445, %v8444
  %v8486 = vpack.c.b16 %v8447, %v8446
  %v8487 = vpack.c.b16 %v8449, %v8448
  %v8488 = vpack.c.b16 %v8451, %v8450
  %v8489 = vpack.c.b16 %v8453, %v8452
  %v8490 = vpack.c.b16 %v8455, %v8454
  %v8491 = vpack.c.b16 %v8457, %v8456
  %v8492 = vpack.c.b16 %v8459, %v8458
  %v8493 = vpack.c.b16 %v8461, %v8460
  %v8542 = vunpack.c.l.b16 %v8318
  %v8543 = vunpack.c.l.b16 %v8319
  %v8544 = vunpack.c.l.b16 %v8320
  %v8545 = vunpack.c.l.b16 %v8321
  %v8546 = vunpack.c.l.b16 %v8322
  %v8547 = vunpack.c.l.b16 %v8323
  %v8548 = vunpack.c.l.b16 %v8324
  %v8549 = vunpack.c.l.b16 %v8325
  %v8550 = vunpack.c.l.b16 %v8326
  %v8551 = vunpack.c.l.b16 %v8327
  %v8552 = vunpack.c.l.b16 %v8328
  %v8553 = vunpack.c.l.b16 %v8329
  %v8554 = vunpack.c.l.b16 %v8330
  %v8555 = vunpack.c.l.b16 %v8331
  %v8556 = vunpack.c.l.b16 %v8332
  %v8557 = vunpack.c.l.b16 %v8333
  %v8558 = vpack.c.b16 %v8543, %v8542
  %v8559 = vpack.c.b16 %v8545, %v8544
  %v8560 = vpack.c.b16 %v8547, %v8546
  %v8561 = vpack.c.b16 %v8549, %v8548
  %v8562 = vpack.c.b16 %v8551, %v8550
  %v8563 = vpack.c.b16 %v8553, %v8552
  %v8564 = vpack.c.b16 %v8555, %v8554
  %v8565 = vpack.c.b16 %v8557, %v8556
  %8574 = vmatprep.subr.bf16.mxu0 0
  %8575 = vmatpush1.bf16.msra.mxu0 %v8558
  %8576 = vmatprep.subr.bf16.mxu0 0
  %8577 = vmatpush1.bf16.msra.mxu0 %v8559
  %8578 = vmatprep.subr.bf16.mxu0 0
  %8579 = vmatpush1.bf16.msra.mxu0 %v8560
  %8580 = vmatprep.subr.bf16.mxu0 0
  %8581 = vmatpush1.bf16.msra.mxu0 %v8561
  %8582 = vmatprep.subr.bf16.mxu0 0
  %8583 = vmatpush1.bf16.msra.mxu0 %v8562
  %8584 = vmatprep.subr.bf16.mxu0 0
  %8585 = vmatpush1.bf16.msra.mxu0 %v8563
  %8586 = vmatprep.subr.bf16.mxu0 0
  %8587 = vmatpush1.bf16.msra.mxu0 %v8564
  %8588 = vmatprep.subr.bf16.mxu0 0
  %8589 = vmatpush1.bf16.msra.mxu0 %v8565
  %8590 = vmatprep.subr.bf16.mxu0 0
  %8591 = vmatpush1.bf16.msra.mxu0 0
  %8592 = vmatprep.subr.bf16.mxu0 0
  %8593 = vmatpush1.bf16.msra.mxu0 0
  %8594 = vmatprep.subr.bf16.mxu0 0
  %8595 = vmatpush1.bf16.msra.mxu0 0
  %8596 = vmatprep.subr.bf16.mxu0 0
  %8597 = vmatpush1.bf16.msra.mxu0 0
  %8598 = vmatprep.subr.bf16.mxu0 0
  %8599 = vmatpush1.bf16.msra.mxu0 0
  %8600 = vmatprep.subr.bf16.mxu0 0
  %8601 = vmatpush1.bf16.msra.mxu0 0
  %8602 = vmatprep.subr.bf16.mxu0 0
  %8603 = vmatpush1.bf16.msra.mxu0 0
  %8604 = vmatprep.subr.bf16.mxu0 0
  %8605 = vmatpush1.bf16.msra.mxu0 0
  %8606 = vmatprep.mubr.bf16.mxu0 0
  %8607 = vmatmul.mubr.bf16.gmra.mrb[0].mxu0 %v8462
  %v8608 = vpop.f32.mrb[0].mxu0
  %v8609 = vadd.f32 0.0, %v8608
  %v8610 = vpop.f32.mrb[0].mxu0
  %v8611 = vpop.f32.mrb[0].mxu0
  %v8612 = vadd.f32 0.0, %v8611
  %v8613 = vpop.f32.mrb[0].mxu0
  %8614 = vmatprep.mubr.bf16.mxu0 0
  %8615 = vmatmul.mubr.bf16.gmra.mrb[0].mxu0 %v8463
  %v8616 = vpop.f32.mrb[0].mxu0
  %v8617 = vadd.f32 0.0, %v8616
  %v8618 = vpop.f32.mrb[0].mxu0
  %v8619 = vpop.f32.mrb[0].mxu0
  %v8620 = vadd.f32 0.0, %v8619
  %v8621 = vpop.f32.mrb[0].mxu0
  %8622 = vmatprep.mubr.bf16.mxu0 0
  %8623 = vmatmul.mubr.bf16.gmra.mrb[0].mxu0 %v8464
  %v8624 = vpop.f32.mrb[0].mxu0
  %v8625 = vadd.f32 0.0, %v8624
  %v8626 = vpop.f32.mrb[0].mxu0
  %v8627 = vpop.f32.mrb[0].mxu0
  %v8628 = vadd.f32 0.0, %v8627
  %v8629 = vpop.f32.mrb[0].mxu0
  %8630 = vmatprep.mubr.bf16.mxu0 0
  %8631 = vmatmul.mubr.bf16.gmra.mrb[0].mxu0 %v8465
  %v8632 = vpop.f32.mrb[0].mxu0
  %v8633 = vadd.f32 0.0, %v8632
  %v8634 = vpop.f32.mrb[0].mxu0
  %v8635 = vpop.f32.mrb[0].mxu0
  %v8636 = vadd.f32 0.0, %v8635
  %v8637 = vpop.f32.mrb[0].mxu0
  %8638 = vmatprep.mubr.bf16.mxu0 0
  %8639 = vmatmul.mubr.bf16.gmra.mrb[0].mxu0 %v8466
  %v8640 = vpop.f32.mrb[0].mxu0
  %v8641 = vadd.f32 0.0, %v8640
  %v8642 = vpop.f32.mrb[0].mxu0
  %v8643 = vpop.f32.mrb[0].mxu0
  %v8644 = vadd.f32 0.0, %v8643
  %v8645 = vpop.f32.mrb[0].mxu0
  %8646 = vmatprep.mubr.bf16.mxu0 0
  %8647 = vmatmul.mubr.bf16.gmra.mrb[0].mxu0 %v8467
  %v8648 = vpop.f32.mrb[0].mxu0
  %v8649 = vadd.f32 0.0, %v8648
  %v8650 = vpop.f32.mrb[0].mxu0
  %v8651 = vpop.f32.mrb[0].mxu0
  %v8652 = vadd.f32 0.0, %v8651
  %v8653 = vpop.f32.mrb[0].mxu0
  %8654 = vmatprep.mubr.bf16.mxu0 0
  %8655 = vmatmul.mubr.bf16.gmra.mrb[0].mxu0 %v8468
  %v8656 = vpop.f32.mrb[0].mxu0
  %v8657 = vadd.f32 0.0, %v8656
  %v8658 = vpop.f32.mrb[0].mxu0
  %v8659 = vpop.f32.mrb[0].mxu0
  %v8660 = vadd.f32 0.0, %v8659
  %v8661 = vpop.f32.mrb[0].mxu0
  %8662 = vmatprep.mubr.bf16.mxu0 0
  %8663 = vmatmul.mubr.bf16.gmra.mrb[0].mxu0 %v8469
  %v8664 = vpop.f32.mrb[0].mxu0
  %v8665 = vadd.f32 0.0, %v8664
  %v8666 = vpop.f32.mrb[0].mxu0
  %v8667 = vpop.f32.mrb[0].mxu0
  %v8668 = vadd.f32 0.0, %v8667
  %v8669 = vpop.f32.mrb[0].mxu0
  %8670 = vmatprep.mubr.bf16.mxu0 0
  %8671 = vmatmul.mubr.bf16.gmra.mrb[0].mxu0 %v8470
  %v8672 = vpop.f32.mrb[0].mxu0
  %v8673 = vadd.f32 0.0, %v8672
  %v8674 = vpop.f32.mrb[0].mxu0
  %v8675 = vpop.f32.mrb[0].mxu0
  %v8676 = vadd.f32 0.0, %v8675
  %v8677 = vpop.f32.mrb[0].mxu0
  %8678 = vmatprep.mubr.bf16.mxu0 0
  %8679 = vmatmul.mubr.bf16.gmra.mrb[0].mxu0 %v8471
  %v8680 = vpop.f32.mrb[0].mxu0
  %v8681 = vadd.f32 0.0, %v8680
  %v8682 = vpop.f32.mrb[0].mxu0
  %v8683 = vpop.f32.mrb[0].mxu0
  %v8684 = vadd.f32 0.0, %v8683
  %v8685 = vpop.f32.mrb[0].mxu0
  %8686 = vmatprep.mubr.bf16.mxu0 0
  %8687 = vmatmul.mubr.bf16.gmra.mrb[0].mxu0 %v8472
  %v8688 = vpop.f32.mrb[0].mxu0
  %v8689 = vadd.f32 0.0, %v8688
  %v8690 = vpop.f32.mrb[0].mxu0
  %v8691 = vpop.f32.mrb[0].mxu0
  %v8692 = vadd.f32 0.0, %v8691
  %v8693 = vpop.f32.mrb[0].mxu0
  %8694 = vmatprep.mubr.bf16.mxu0 0
  %8695 = vmatmul.mubr.bf16.gmra.mrb[0].mxu0 %v8473
  %v8696 = vpop.f32.mrb[0].mxu0
  %v8697 = vadd.f32 0.0, %v8696
  %v8698 = vpop.f32.mrb[0].mxu0
  %v8699 = vpop.f32.mrb[0].mxu0
  %v8700 = vadd.f32 0.0, %v8699
  %v8701 = vpop.f32.mrb[0].mxu0
  %8702 = vmatprep.mubr.bf16.mxu0 0
  %8703 = vmatmul.mubr.bf16.gmra.mrb[0].mxu0 %v8474
  %v8704 = vpop.f32.mrb[0].mxu0
  %v8705 = vadd.f32 0.0, %v8704
  %v8706 = vpop.f32.mrb[0].mxu0
  %v8707 = vpop.f32.mrb[0].mxu0
  %v8708 = vadd.f32 0.0, %v8707
  %v8709 = vpop.f32.mrb[0].mxu0
  %8710 = vmatprep.mubr.bf16.mxu0 0
  %8711 = vmatmul.mubr.bf16.gmra.mrb[0].mxu0 %v8475
  %v8712 = vpop.f32.mrb[0].mxu0
  %v8713 = vadd.f32 0.0, %v8712
  %v8714 = vpop.f32.mrb[0].mxu0
  %v8715 = vpop.f32.mrb[0].mxu0
  %v8716 = vadd.f32 0.0, %v8715
  %v8717 = vpop.f32.mrb[0].mxu0
  %8718 = vmatprep.mubr.bf16.mxu0 0
  %8719 = vmatmul.mubr.bf16.gmra.mrb[0].mxu0 %v8476
  %v8720 = vpop.f32.mrb[0].mxu0
  %v8721 = vadd.f32 0.0, %v8720
  %v8722 = vpop.f32.mrb[0].mxu0
  %v8723 = vpop.f32.mrb[0].mxu0
  %v8724 = vadd.f32 0.0, %v8723
  %v8725 = vpop.f32.mrb[0].mxu0
  %8726 = vmatprep.mubr.bf16.mxu0 0
  %8727 = vmatmul.mubr.bf16.gmra.mrb[0].mxu0 %v8477
  %v8728 = vpop.f32.mrb[0].mxu0
  %v8729 = vadd.f32 0.0, %v8728
  %v8730 = vpop.f32.mrb[0].mxu0
  %v8731 = vpop.f32.mrb[0].mxu0
  %v8732 = vadd.f32 0.0, %v8731
  %v8733 = vpop.f32.mrb[0].mxu0
  %8734 = vmatprep.mubr.bf16.mxu0 0
  %8735 = vmatmul.mubr.bf16.gmra.mrb[0].mxu0 %v8478
  %v8736 = vpop.f32.mrb[0].mxu0
  %v8737 = vadd.f32 0.0, %v8736
  %v8738 = vpop.f32.mrb[0].mxu0
  %v8739 = vpop.f32.mrb[0].mxu0
  %v8740 = vadd.f32 0.0, %v8739
  %v8741 = vpop.f32.mrb[0].mxu0
  %8742 = vmatprep.mubr.bf16.mxu0 0
  %8743 = vmatmul.mubr.bf16.gmra.mrb[0].mxu0 %v8479
  %v8744 = vpop.f32.mrb[0].mxu0
  %v8745 = vadd.f32 0.0, %v8744
  %v8746 = vpop.f32.mrb[0].mxu0
  %v8747 = vpop.f32.mrb[0].mxu0
  %v8748 = vadd.f32 0.0, %v8747
  %v8749 = vpop.f32.mrb[0].mxu0
  %8750 = vmatprep.mubr.bf16.mxu0 0
  %8751 = vmatmul.mubr.bf16.gmra.mrb[0].mxu0 %v8480
  %v8752 = vpop.f32.mrb[0].mxu0
  %v8753 = vadd.f32 0.0, %v8752
  %v8754 = vpop.f32.mrb[0].mxu0
  %v8755 = vpop.f32.mrb[0].mxu0
  %v8756 = vadd.f32 0.0, %v8755
  %v8757 = vpop.f32.mrb[0].mxu0
  %8758 = vmatprep.mubr.bf16.mxu0 0
  %8759 = vmatmul.mubr.bf16.gmra.mrb[0].mxu0 %v8481
  %v8760 = vpop.f32.mrb[0].mxu0
  %v8761 = vadd.f32 0.0, %v8760
  %v8762 = vpop.f32.mrb[0].mxu0
  %v8763 = vpop.f32.mrb[0].mxu0
  %v8764 = vadd.f32 0.0, %v8763
  %v8765 = vpop.f32.mrb[0].mxu0
  %8766 = vmatprep.mubr.bf16.mxu0 0
  %8767 = vmatmul.mubr.bf16.gmra.mrb[0].mxu0 %v8482
  %v8768 = vpop.f32.mrb[0].mxu0
  %v8769 = vadd.f32 0.0, %v8768
  %v8770 = vpop.f32.mrb[0].mxu0
  %v8771 = vpop.f32.mrb[0].mxu0
  %v8772 = vadd.f32 0.0, %v8771
  %v8773 = vpop.f32.mrb[0].mxu0
  %8774 = vmatprep.mubr.bf16.mxu0 0
  %8775 = vmatmul.mubr.bf16.gmra.mrb[0].mxu0 %v8483
  %v8776 = vpop.f32.mrb[0].mxu0
  %v8777 = vadd.f32 0.0, %v8776
  %v8778 = vpop.f32.mrb[0].mxu0
  %v8779 = vpop.f32.mrb[0].mxu0
  %v8780 = vadd.f32 0.0, %v8779
  %v8781 = vpop.f32.mrb[0].mxu0
  %8782 = vmatprep.mubr.bf16.mxu0 0
  %8783 = vmatmul.mubr.bf16.gmra.mrb[0].mxu0 %v8484
  %v8784 = vpop.f32.mrb[0].mxu0
  %v8785 = vadd.f32 0.0, %v8784
  %v8786 = vpop.f32.mrb[0].mxu0
  %v8787 = vpop.f32.mrb[0].mxu0
  %v8788 = vadd.f32 0.0, %v8787
  %v8789 = vpop.f32.mrb[0].mxu0
  %8790 = vmatprep.mubr.bf16.mxu0 0
  %8791 = vmatmul.mubr.bf16.gmra.mrb[0].mxu0 %v8485
  %v8792 = vpop.f32.mrb[0].mxu0
  %v8793 = vadd.f32 0.0, %v8792
  %v8794 = vpop.f32.mrb[0].mxu0
  %v8795 = vpop.f32.mrb[0].mxu0
  %v8796 = vadd.f32 0.0, %v8795
  %v8797 = vpop.f32.mrb[0].mxu0
  %8798 = vmatprep.mubr.bf16.mxu0 0
  %8799 = vmatmul.mubr.bf16.gmra.mrb[0].mxu0 %v8486
  %v8800 = vpop.f32.mrb[0].mxu0
  %v8801 = vadd.f32 0.0, %v8800
  %v8802 = vpop.f32.mrb[0].mxu0
  %v8803 = vpop.f32.mrb[0].mxu0
  %v8804 = vadd.f32 0.0, %v8803
  %v8805 = vpop.f32.mrb[0].mxu0
  %8806 = vmatprep.mubr.bf16.mxu0 0
  %8807 = vmatmul.mubr.bf16.gmra.mrb[0].mxu0 %v8487
  %v8808 = vpop.f32.mrb[0].mxu0
  %v8809 = vadd.f32 0.0, %v8808
  %v8810 = vpop.f32.mrb[0].mxu0
  %v8811 = vpop.f32.mrb[0].mxu0
  %v8812 = vadd.f32 0.0, %v8811
  %v8813 = vpop.f32.mrb[0].mxu0
  %8814 = vmatprep.mubr.bf16.mxu0 0
  %8815 = vmatmul.mubr.bf16.gmra.mrb[0].mxu0 %v8488
  %v8816 = vpop.f32.mrb[0].mxu0
  %v8817 = vadd.f32 0.0, %v8816
  %v8818 = vpop.f32.mrb[0].mxu0
  %v8819 = vpop.f32.mrb[0].mxu0
  %v8820 = vadd.f32 0.0, %v8819
  %v8821 = vpop.f32.mrb[0].mxu0
  %8822 = vmatprep.mubr.bf16.mxu0 0
  %8823 = vmatmul.mubr.bf16.gmra.mrb[0].mxu0 %v8489
  %v8824 = vpop.f32.mrb[0].mxu0
  %v8825 = vadd.f32 0.0, %v8824
  %v8826 = vpop.f32.mrb[0].mxu0
  %v8827 = vpop.f32.mrb[0].mxu0
  %v8828 = vadd.f32 0.0, %v8827
  %v8829 = vpop.f32.mrb[0].mxu0
  %8830 = vmatprep.mubr.bf16.mxu0 0
  %8831 = vmatmul.mubr.bf16.gmra.mrb[0].mxu0 %v8490
  %v8832 = vpop.f32.mrb[0].mxu0
  %v8833 = vadd.f32 0.0, %v8832
  %v8834 = vpop.f32.mrb[0].mxu0
  %v8835 = vpop.f32.mrb[0].mxu0
  %v8836 = vadd.f32 0.0, %v8835
  %v8837 = vpop.f32.mrb[0].mxu0
  %8838 = vmatprep.mubr.bf16.mxu0 0
  %8839 = vmatmul.mubr.bf16.gmra.mrb[0].mxu0 %v8491
  %v8840 = vpop.f32.mrb[0].mxu0
  %v8841 = vadd.f32 0.0, %v8840
  %v8842 = vpop.f32.mrb[0].mxu0
  %v8843 = vpop.f32.mrb[0].mxu0
  %v8844 = vadd.f32 0.0, %v8843
  %v8845 = vpop.f32.mrb[0].mxu0
  %8846 = vmatprep.mubr.bf16.mxu0 0
  %8847 = vmatmul.mubr.bf16.gmra.mrb[0].mxu0 %v8492
  %v8848 = vpop.f32.mrb[0].mxu0
  %v8849 = vadd.f32 0.0, %v8848
  %v8850 = vpop.f32.mrb[0].mxu0
  %v8851 = vpop.f32.mrb[0].mxu0
  %v8852 = vadd.f32 0.0, %v8851
  %v8853 = vpop.f32.mrb[0].mxu0
  %8854 = vmatprep.mubr.bf16.mxu0 0
  %8855 = vmatmul.mubr.bf16.gmra.mrb[0].mxu0 %v8493
  %v8856 = vpop.f32.mrb[0].mxu0
  %v8857 = vadd.f32 0.0, %v8856
  %v8858 = vpop.f32.mrb[0].mxu0
  %v8859 = vpop.f32.mrb[0].mxu0
  %v8860 = vadd.f32 0.0, %v8859
  %v8861 = vpop.f32.mrb[0].mxu0
  %8862 = vdwg.mxu0
  %v8863 = vadd.f32 %v8189, %v8609
  %v8864 = vadd.f32 %v8190, %v8612
  %v8865 = vadd.f32 %v8191, %v8617
  %v8866 = vadd.f32 %v8192, %v8620
  %v8867 = vadd.f32 %v8193, %v8625
  %v8868 = vadd.f32 %v8194, %v8628
  %v8869 = vadd.f32 %v8195, %v8633
  %v8870 = vadd.f32 %v8196, %v8636
  %v8871 = vadd.f32 %v8197, %v8641
  %v8872 = vadd.f32 %v8198, %v8644
  %v8873 = vadd.f32 %v8199, %v8649
  %v8874 = vadd.f32 %v8200, %v8652
  %v8875 = vadd.f32 %v8201, %v8657
  %v8876 = vadd.f32 %v8202, %v8660
  %v8877 = vadd.f32 %v8203, %v8665
  %v8878 = vadd.f32 %v8204, %v8668
  %v8879 = vadd.f32 %v8205, %v8673
  %v8880 = vadd.f32 %v8206, %v8676
  %v8881 = vadd.f32 %v8207, %v8681
  %v8882 = vadd.f32 %v8208, %v8684
  %v8883 = vadd.f32 %v8209, %v8689
  %v8884 = vadd.f32 %v8210, %v8692
  %v8885 = vadd.f32 %v8211, %v8697
  %v8886 = vadd.f32 %v8212, %v8700
  %v8887 = vadd.f32 %v8213, %v8705
  %v8888 = vadd.f32 %v8214, %v8708
  %v8889 = vadd.f32 %v8215, %v8713
  %v8890 = vadd.f32 %v8216, %v8716
  %v8891 = vadd.f32 %v8217, %v8721
  %v8892 = vadd.f32 %v8218, %v8724
  %v8893 = vadd.f32 %v8219, %v8729
  %v8894 = vadd.f32 %v8220, %v8732
  %v8895 = vadd.f32 %v8221, %v8737
  %v8896 = vadd.f32 %v8222, %v8740
  %v8897 = vadd.f32 %v8223, %v8745
  %v8898 = vadd.f32 %v8224, %v8748
  %v8899 = vadd.f32 %v8225, %v8753
  %v8900 = vadd.f32 %v8226, %v8756
  %v8901 = vadd.f32 %v8227, %v8761
  %v8902 = vadd.f32 %v8228, %v8764
  %v8903 = vadd.f32 %v8229, %v8769
  %v8904 = vadd.f32 %v8230, %v8772
  %v8905 = vadd.f32 %v8231, %v8777
  %v8906 = vadd.f32 %v8232, %v8780
  %v8907 = vadd.f32 %v8233, %v8785
  %v8908 = vadd.f32 %v8234, %v8788
  %v8909 = vadd.f32 %v8235, %v8793
  %v8910 = vadd.f32 %v8236, %v8796
  %v8911 = vadd.f32 %v8237, %v8801
  %v8912 = vadd.f32 %v8238, %v8804
  %v8913 = vadd.f32 %v8239, %v8809
  %v8914 = vadd.f32 %v8240, %v8812
  %v8915 = vadd.f32 %v8241, %v8817
  %v8916 = vadd.f32 %v8242, %v8820
  %v8917 = vadd.f32 %v8243, %v8825
  %v8918 = vadd.f32 %v8244, %v8828
  %v8919 = vadd.f32 %v8245, %v8833
  %v8920 = vadd.f32 %v8246, %v8836
  %v8921 = vadd.f32 %v8247, %v8841
  %v8922 = vadd.f32 %v8248, %v8844
  %v8923 = vadd.f32 %v8249, %v8849
  %v8924 = vadd.f32 %v8250, %v8852
  %v8925 = vadd.f32 %v8251, %v8857
  %v8926 = vadd.f32 %v8252, %v8860
  %v8927 = vld [vmem:[%s8253] sm:$0xf]
  %v8928 = vld [vmem:[%s8253 + $0x4] sm:$0xf]
  %v8929 = vld [vmem:[%s8253 + $0x8] sm:$0x1]
  %v8930 = vld [vmem:[%s8253 + $0xc] sm:$0xf]
  %v8931 = vld [vmem:[%s8253 + $0x10] sm:$0xf]
  %v8932 = vld [vmem:[%s8253 + $0x14] sm:$0x1]
  %v8933 = vld [vmem:[%s8253 + $0x18] sm:$0xf]
  %v8934 = vld [vmem:[%s8253 + $0x1c] sm:$0xf]
  %v8935 = vld [vmem:[%s8253 + $0x20] sm:$0x1]
  %v8936 = vld [vmem:[%s8253 + $0x24] sm:$0xf]
  %v8937 = vld [vmem:[%s8253 + $0x28] sm:$0xf]
  %v8938 = vld [vmem:[%s8253 + $0x2c] sm:$0x1]
  %v8939 = vld [vmem:[%s8253 + $0x30] sm:$0xf]
  %v8940 = vld [vmem:[%s8253 + $0x34] sm:$0xf]
  %v8941 = vld [vmem:[%s8253 + $0x38] sm:$0x1]
  %v8942 = vld [vmem:[%s8253 + $0x3c] sm:$0xf]
  %v8943 = vld [vmem:[%s8253 + $0x40] sm:$0xf]
  %v8944 = vld [vmem:[%s8253 + $0x44] sm:$0x1]
  %v8945 = vld [vmem:[%s8253 + $0x48] sm:$0xf]
  %v8946 = vld [vmem:[%s8253 + $0x4c] sm:$0xf]
  %v8947 = vld [vmem:[%s8253 + $0x50] sm:$0x1]
  %v8948 = vld [vmem:[%s8253 + $0x54] sm:$0xf]
  %v8949 = vld [vmem:[%s8253 + $0x58] sm:$0xf]
  %v8950 = vld [vmem:[%s8253 + $0x5c] sm:$0x1]
  %v8951 = vld [vmem:[%s8253 + $0x60] sm:$0xf]
  %v8952 = vld [vmem:[%s8253 + $0x64] sm:$0xf]
  %v8953 = vld [vmem:[%s8253 + $0x68] sm:$0x1]
  %v8954 = vld [vmem:[%s8253 + $0x6c] sm:$0xf]
  %v8955 = vld [vmem:[%s8253 + $0x70] sm:$0xf]
  %v8956 = vld [vmem:[%s8253 + $0x74] sm:$0x1]
  %v8957 = vld [vmem:[%s8253 + $0x78] sm:$0xf]
  %v8958 = vld [vmem:[%s8253 + $0x7c] sm:$0xf]
  %v8959 = vld [vmem:[%s8253 + $0x80] sm:$0x1]
  %v8960 = vld [vmem:[%s8253 + $0x84] sm:$0xf]
  %v8961 = vld [vmem:[%s8253 + $0x88] sm:$0xf]
  %v8962 = vld [vmem:[%s8253 + $0x8c] sm:$0x1]
  %v8963 = vld [vmem:[%s8253 + $0x90] sm:$0xf]
  %v8964 = vld [vmem:[%s8253 + $0x94] sm:$0xf]
  %v8965 = vld [vmem:[%s8253 + $0x98] sm:$0x1]
  %v8966 = vld [vmem:[%s8253 + $0x9c] sm:$0xf]
  %v8967 = vld [vmem:[%s8253 + $0xa0] sm:$0xf]
  %v8968 = vld [vmem:[%s8253 + $0xa4] sm:$0x1]
  %v8969 = vld [vmem:[%s8253 + $0xa8] sm:$0xf]
  %v8970 = vld [vmem:[%s8253 + $0xac] sm:$0xf]
  %v8971 = vld [vmem:[%s8253 + $0xb0] sm:$0x1]
  %v8972 = vld [vmem:[%s8253 + $0xb4] sm:$0xf]
  %v8973 = vld [vmem:[%s8253 + $0xb8] sm:$0xf]
  %v8974 = vld [vmem:[%s8253 + $0xbc] sm:$0x1]
  %v8975 = vld [vmem:[%s8253 + $0xd8] sm:$0xf]
  %v8976 = vld [vmem:[%s8253 + $0xdc] sm:$0xf]
  %v8977 = vld [vmem:[%s8253 + $0xe0] sm:$0x1]
  %v8978 = vld [vmem:[%s8253 + $0xe4] sm:$0xf]
  %v8979 = vld [vmem:[%s8253 + $0xe8] sm:$0xf]
  %v8980 = vld [vmem:[%s8253 + $0xec] sm:$0x1]
  %v8981 = vld [vmem:[%s8253 + $0xf0] sm:$0xf]
  %v8982 = vld [vmem:[%s8253 + $0xf4] sm:$0xf]
  %v8983 = vld [vmem:[%s8253 + $0xf8] sm:$0x1]
  %v8984 = vld [vmem:[%s8253 + $0xfc] sm:$0xf]
  %v8985 = vld [vmem:[%s8253 + $0x100] sm:$0xf]
  %v8986 = vld [vmem:[%s8253 + $0x104] sm:$0x1]
  %v8987 = vld [vmem:[%s8253 + $0x108] sm:$0xf]
  %v8988 = vld [vmem:[%s8253 + $0x10c] sm:$0xf]
  %v8989 = vld [vmem:[%s8253 + $0x110] sm:$0x1]
  %v8990 = vld [vmem:[%s8253 + $0x114] sm:$0xf]
  %v8991 = vld [vmem:[%s8253 + $0x118] sm:$0xf]
  %v8992 = vld [vmem:[%s8253 + $0x11c] sm:$0x1]
  %v8993 = vld [vmem:[%s8253 + $0x120] sm:$0xf]
  %v8994 = vld [vmem:[%s8253 + $0x124] sm:$0xf]
  %v8995 = vld [vmem:[%s8253 + $0x128] sm:$0x1]
  %v8996 = vld [vmem:[%s8253 + $0x12c] sm:$0xf]
  %v8997 = vld [vmem:[%s8253 + $0x130] sm:$0xf]
  %v8998 = vld [vmem:[%s8253 + $0x134] sm:$0x1]
  %v8999 = vld [vmem:[%s8253 + $0x138] sm:$0xf]
  %v9000 = vld [vmem:[%s8253 + $0x13c] sm:$0xf]
  %v9001 = vld [vmem:[%s8253 + $0x140] sm:$0x1]
  %v9002 = vld [vmem:[%s8253 + $0x144] sm:$0xf]
  %v9003 = vld [vmem:[%s8253 + $0x148] sm:$0xf]
  %v9004 = vld [vmem:[%s8253 + $0x14c] sm:$0x1]
  %v9005 = vld [vmem:[%s8253 + $0x150] sm:$0xf]
  %v9006 = vld [vmem:[%s8253 + $0x154] sm:$0xf]
  %v9007 = vld [vmem:[%s8253 + $0x158] sm:$0x1]
  %v9008 = vld [vmem:[%s8253 + $0x15c] sm:$0xf]
  %v9009 = vld [vmem:[%s8253 + $0x160] sm:$0xf]
  %v9010 = vld [vmem:[%s8253 + $0x164] sm:$0x1]
  %v9011 = vld [vmem:[%s8253 + $0x168] sm:$0xf]
  %v9012 = vld [vmem:[%s8253 + $0x16c] sm:$0xf]
  %v9013 = vld [vmem:[%s8253 + $0x170] sm:$0x1]
  %v9014 = vld [vmem:[%s8253 + $0x174] sm:$0xf]
  %v9015 = vld [vmem:[%s8253 + $0x178] sm:$0xf]
  %v9016 = vld [vmem:[%s8253 + $0x17c] sm:$0x1]
  %v9017 = vld [vmem:[%s8253 + $0x180] sm:$0xf]
  %v9018 = vld [vmem:[%s8253 + $0x184] sm:$0xf]
  %v9019 = vld [vmem:[%s8253 + $0x188] sm:$0x1]
  %v9020 = vld [vmem:[%s8253 + $0x18c] sm:$0xf]
  %v9021 = vld [vmem:[%s8253 + $0x190] sm:$0xf]
  %v9022 = vld [vmem:[%s8253 + $0x194] sm:$0x1]
  %v9024 = vshrl.u32 %v8927, 16
  %v9026 = vrot.slane %v9024, 4
  %v9027 = vshll.u32 %v8927, 16
  %v9029 = vrot.slane %v9027, 5
  %v9030 = vor.u32 %v9026, %v9029
  %v9031 = vrot.slane %v9030, 4
  %v9033 = vshll.u32 %v8928, 16
  %v9035 = vrot.slane %v9033, 5
  %v9036 = vsel %vm2627, %v9031, %v9035
  %v9037 = vshrl.u32 %v8928, 16
  %v9039 = vrot.slane %v9037, 4
  %v9040 = vor.u32 %v9039, %v9035
  %v9041 = vrot.slane %v9040, 4
  %v9043 = vshll.u32 %v8929, 16
  %v9045 = vrot.slane %v9043, 5
  %v9046 = vsel %vm2627, %v9041, %v9045
  %v9048 = vshrl.u32 %v8930, 16
  %v9050 = vrot.slane %v9048, 4
  %v9051 = vshll.u32 %v8930, 16
  %v9053 = vrot.slane %v9051, 5
  %v9054 = vor.u32 %v9050, %v9053
  %v9055 = vrot.slane %v9054, 4
  %v9057 = vshll.u32 %v8931, 16
  %v9059 = vrot.slane %v9057, 5
  %v9060 = vsel %vm2627, %v9055, %v9059
  %v9061 = vshrl.u32 %v8931, 16
  %v9063 = vrot.slane %v9061, 4
  %v9064 = vor.u32 %v9063, %v9059
  %v9065 = vrot.slane %v9064, 4
  %v9067 = vshll.u32 %v8932, 16
  %v9069 = vrot.slane %v9067, 5
  %v9070 = vsel %vm2627, %v9065, %v9069
  %v9072 = vshrl.u32 %v8933, 16
  %v9074 = vrot.slane %v9072, 4
  %v9075 = vshll.u32 %v8933, 16
  %v9077 = vrot.slane %v9075, 5
  %v9078 = vor.u32 %v9074, %v9077
  %v9079 = vrot.slane %v9078, 4
  %v9081 = vshll.u32 %v8934, 16
  %v9083 = vrot.slane %v9081, 5
  %v9084 = vsel %vm2627, %v9079, %v9083
  %v9085 = vshrl.u32 %v8934, 16
  %v9087 = vrot.slane %v9085, 4
  %v9088 = vor.u32 %v9087, %v9083
  %v9089 = vrot.slane %v9088, 4
  %v9091 = vshll.u32 %v8935, 16
  %v9093 = vrot.slane %v9091, 5
  %v9094 = vsel %vm2627, %v9089, %v9093
  %v9096 = vshrl.u32 %v8936, 16
  %v9098 = vrot.slane %v9096, 4
  %v9099 = vshll.u32 %v8936, 16
  %v9101 = vrot.slane %v9099, 5
  %v9102 = vor.u32 %v9098, %v9101
  %v9103 = vrot.slane %v9102, 4
  %v9105 = vshll.u32 %v8937, 16
  %v9107 = vrot.slane %v9105, 5
  %v9108 = vsel %vm2627, %v9103, %v9107
  %v9109 = vshrl.u32 %v8937, 16
  %v9111 = vrot.slane %v9109, 4
  %v9112 = vor.u32 %v9111, %v9107
  %v9113 = vrot.slane %v9112, 4
  %v9115 = vshll.u32 %v8938, 16
  %v9117 = vrot.slane %v9115, 5
  %v9118 = vsel %vm2627, %v9113, %v9117
  %v9120 = vshrl.u32 %v8939, 16
  %v9122 = vrot.slane %v9120, 4
  %v9123 = vshll.u32 %v8939, 16
  %v9125 = vrot.slane %v9123, 5
  %v9126 = vor.u32 %v9122, %v9125
  %v9127 = vrot.slane %v9126, 4
  %v9129 = vshll.u32 %v8940, 16
  %v9131 = vrot.slane %v9129, 5
  %v9132 = vsel %vm2627, %v9127, %v9131
  %v9133 = vshrl.u32 %v8940, 16
  %v9135 = vrot.slane %v9133, 4
  %v9136 = vor.u32 %v9135, %v9131
  %v9137 = vrot.slane %v9136, 4
  %v9139 = vshll.u32 %v8941, 16
  %v9141 = vrot.slane %v9139, 5
  %v9142 = vsel %vm2627, %v9137, %v9141
  %v9144 = vshrl.u32 %v8942, 16
  %v9146 = vrot.slane %v9144, 4
  %v9147 = vshll.u32 %v8942, 16
  %v9149 = vrot.slane %v9147, 5
  %v9150 = vor.u32 %v9146, %v9149
  %v9151 = vrot.slane %v9150, 4
  %v9153 = vshll.u32 %v8943, 16
  %v9155 = vrot.slane %v9153, 5
  %v9156 = vsel %vm2627, %v9151, %v9155
  %v9157 = vshrl.u32 %v8943, 16
  %v9159 = vrot.slane %v9157, 4
  %v9160 = vor.u32 %v9159, %v9155
  %v9161 = vrot.slane %v9160, 4
  %v9163 = vshll.u32 %v8944, 16
  %v9165 = vrot.slane %v9163, 5
  %v9166 = vsel %vm2627, %v9161, %v9165
  %v9168 = vshrl.u32 %v8945, 16
  %v9170 = vrot.slane %v9168, 4
  %v9171 = vshll.u32 %v8945, 16
  %v9173 = vrot.slane %v9171, 5
  %v9174 = vor.u32 %v9170, %v9173
  %v9175 = vrot.slane %v9174, 4
  %v9177 = vshll.u32 %v8946, 16
  %v9179 = vrot.slane %v9177, 5
  %v9180 = vsel %vm2627, %v9175, %v9179
  %v9181 = vshrl.u32 %v8946, 16
  %v9183 = vrot.slane %v9181, 4
  %v9184 = vor.u32 %v9183, %v9179
  %v9185 = vrot.slane %v9184, 4
  %v9187 = vshll.u32 %v8947, 16
  %v9189 = vrot.slane %v9187, 5
  %v9190 = vsel %vm2627, %v9185, %v9189
  %v9192 = vshrl.u32 %v8948, 16
  %v9194 = vrot.slane %v9192, 4
  %v9195 = vshll.u32 %v8948, 16
  %v9197 = vrot.slane %v9195, 5
  %v9198 = vor.u32 %v9194, %v9197
  %v9199 = vrot.slane %v9198, 4
  %v9201 = vshll.u32 %v8949, 16
  %v9203 = vrot.slane %v9201, 5
  %v9204 = vsel %vm2627, %v9199, %v9203
  %v9205 = vshrl.u32 %v8949, 16
  %v9207 = vrot.slane %v9205, 4
  %v9208 = vor.u32 %v9207, %v9203
  %v9209 = vrot.slane %v9208, 4
  %v9211 = vshll.u32 %v8950, 16
  %v9213 = vrot.slane %v9211, 5
  %v9214 = vsel %vm2627, %v9209, %v9213
  %v9216 = vshrl.u32 %v8951, 16
  %v9218 = vrot.slane %v9216, 4
  %v9219 = vshll.u32 %v8951, 16
  %v9221 = vrot.slane %v9219, 5
  %v9222 = vor.u32 %v9218, %v9221
  %v9223 = vrot.slane %v9222, 4
  %v9225 = vshll.u32 %v8952, 16
  %v9227 = vrot.slane %v9225, 5
  %v9228 = vsel %vm2627, %v9223, %v9227
  %v9229 = vshrl.u32 %v8952, 16
  %v9231 = vrot.slane %v9229, 4
  %v9232 = vor.u32 %v9231, %v9227
  %v9233 = vrot.slane %v9232, 4
  %v9235 = vshll.u32 %v8953, 16
  %v9237 = vrot.slane %v9235, 5
  %v9238 = vsel %vm2627, %v9233, %v9237
  %v9240 = vshrl.u32 %v8954, 16
  %v9242 = vrot.slane %v9240, 4
  %v9243 = vshll.u32 %v8954, 16
  %v9245 = vrot.slane %v9243, 5
  %v9246 = vor.u32 %v9242, %v9245
  %v9247 = vrot.slane %v9246, 4
  %v9249 = vshll.u32 %v8955, 16
  %v9251 = vrot.slane %v9249, 5
  %v9252 = vsel %vm2627, %v9247, %v9251
  %v9253 = vshrl.u32 %v8955, 16
  %v9255 = vrot.slane %v9253, 4
  %v9256 = vor.u32 %v9255, %v9251
  %v9257 = vrot.slane %v9256, 4
  %v9259 = vshll.u32 %v8956, 16
  %v9261 = vrot.slane %v9259, 5
  %v9262 = vsel %vm2627, %v9257, %v9261
  %v9264 = vshrl.u32 %v8957, 16
  %v9266 = vrot.slane %v9264, 4
  %v9267 = vshll.u32 %v8957, 16
  %v9269 = vrot.slane %v9267, 5
  %v9270 = vor.u32 %v9266, %v9269
  %v9271 = vrot.slane %v9270, 4
  %v9273 = vshll.u32 %v8958, 16
  %v9275 = vrot.slane %v9273, 5
  %v9276 = vsel %vm2627, %v9271, %v9275
  %v9277 = vshrl.u32 %v8958, 16
  %v9279 = vrot.slane %v9277, 4
  %v9280 = vor.u32 %v9279, %v9275
  %v9281 = vrot.slane %v9280, 4
  %v9283 = vshll.u32 %v8959, 16
  %v9285 = vrot.slane %v9283, 5
  %v9286 = vsel %vm2627, %v9281, %v9285
  %v9288 = vshrl.u32 %v8960, 16
  %v9290 = vrot.slane %v9288, 4
  %v9291 = vshll.u32 %v8960, 16
  %v9293 = vrot.slane %v9291, 5
  %v9294 = vor.u32 %v9290, %v9293
  %v9295 = vrot.slane %v9294, 4
  %v9297 = vshll.u32 %v8961, 16
  %v9299 = vrot.slane %v9297, 5
  %v9300 = vsel %vm2627, %v9295, %v9299
  %v9301 = vshrl.u32 %v8961, 16
  %v9303 = vrot.slane %v9301, 4
  %v9304 = vor.u32 %v9303, %v9299
  %v9305 = vrot.slane %v9304, 4
  %v9307 = vshll.u32 %v8962, 16
  %v9309 = vrot.slane %v9307, 5
  %v9310 = vsel %vm2627, %v9305, %v9309
  %v9312 = vshrl.u32 %v8963, 16
  %v9314 = vrot.slane %v9312, 4
  %v9315 = vshll.u32 %v8963, 16
  %v9317 = vrot.slane %v9315, 5
  %v9318 = vor.u32 %v9314, %v9317
  %v9319 = vrot.slane %v9318, 4
  %v9321 = vshll.u32 %v8964, 16
  %v9323 = vrot.slane %v9321, 5
  %v9324 = vsel %vm2627, %v9319, %v9323
  %v9325 = vshrl.u32 %v8964, 16
  %v9327 = vrot.slane %v9325, 4
  %v9328 = vor.u32 %v9327, %v9323
  %v9329 = vrot.slane %v9328, 4
  %v9331 = vshll.u32 %v8965, 16
  %v9333 = vrot.slane %v9331, 5
  %v9334 = vsel %vm2627, %v9329, %v9333
  %v9336 = vshrl.u32 %v8966, 16
  %v9338 = vrot.slane %v9336, 4
  %v9339 = vshll.u32 %v8966, 16
  %v9341 = vrot.slane %v9339, 5
  %v9342 = vor.u32 %v9338, %v9341
  %v9343 = vrot.slane %v9342, 4
  %v9345 = vshll.u32 %v8967, 16
  %v9347 = vrot.slane %v9345, 5
  %v9348 = vsel %vm2627, %v9343, %v9347
  %v9349 = vshrl.u32 %v8967, 16
  %v9351 = vrot.slane %v9349, 4
  %v9352 = vor.u32 %v9351, %v9347
  %v9353 = vrot.slane %v9352, 4
  %v9355 = vshll.u32 %v8968, 16
  %v9357 = vrot.slane %v9355, 5
  %v9358 = vsel %vm2627, %v9353, %v9357
  %v9360 = vshrl.u32 %v8969, 16
  %v9362 = vrot.slane %v9360, 4
  %v9363 = vshll.u32 %v8969, 16
  %v9365 = vrot.slane %v9363, 5
  %v9366 = vor.u32 %v9362, %v9365
  %v9367 = vrot.slane %v9366, 4
  %v9369 = vshll.u32 %v8970, 16
  %v9371 = vrot.slane %v9369, 5
  %v9372 = vsel %vm2627, %v9367, %v9371
  %v9373 = vshrl.u32 %v8970, 16
  %v9375 = vrot.slane %v9373, 4
  %v9376 = vor.u32 %v9375, %v9371
  %v9377 = vrot.slane %v9376, 4
  %v9379 = vshll.u32 %v8971, 16
  %v9381 = vrot.slane %v9379, 5
  %v9382 = vsel %vm2627, %v9377, %v9381
  %v9384 = vshrl.u32 %v8972, 16
  %v9386 = vrot.slane %v9384, 4
  %v9387 = vshll.u32 %v8972, 16
  %v9389 = vrot.slane %v9387, 5
  %v9390 = vor.u32 %v9386, %v9389
  %v9391 = vrot.slane %v9390, 4
  %v9393 = vshll.u32 %v8973, 16
  %v9395 = vrot.slane %v9393, 5
  %v9396 = vsel %vm2627, %v9391, %v9395
  %v9397 = vshrl.u32 %v8973, 16
  %v9399 = vrot.slane %v9397, 4
  %v9400 = vor.u32 %v9399, %v9395
  %v9401 = vrot.slane %v9400, 4
  %v9403 = vshll.u32 %v8974, 16
  %v9405 = vrot.slane %v9403, 5
  %v9406 = vsel %vm2627, %v9401, %v9405
  %v9408 = vshrl.u32 %v8975, 16
  %v9410 = vrot.slane %v9408, 4
  %v9411 = vshll.u32 %v8975, 16
  %v9413 = vrot.slane %v9411, 5
  %v9414 = vor.u32 %v9410, %v9413
  %v9415 = vrot.slane %v9414, 4
  %v9417 = vshll.u32 %v8976, 16
  %v9419 = vrot.slane %v9417, 5
  %v9420 = vsel %vm2627, %v9415, %v9419
  %v9421 = vshrl.u32 %v8976, 16
  %v9423 = vrot.slane %v9421, 4
  %v9424 = vor.u32 %v9423, %v9419
  %v9425 = vrot.slane %v9424, 4
  %v9427 = vshll.u32 %v8977, 16
  %v9429 = vrot.slane %v9427, 5
  %v9430 = vsel %vm2627, %v9425, %v9429
  %v9432 = vshrl.u32 %v8978, 16
  %v9434 = vrot.slane %v9432, 4
  %v9435 = vshll.u32 %v8978, 16
  %v9437 = vrot.slane %v9435, 5
  %v9438 = vor.u32 %v9434, %v9437
  %v9439 = vrot.slane %v9438, 4
  %v9441 = vshll.u32 %v8979, 16
  %v9443 = vrot.slane %v9441, 5
  %v9444 = vsel %vm2627, %v9439, %v9443
  %v9445 = vshrl.u32 %v8979, 16
  %v9447 = vrot.slane %v9445, 4
  %v9448 = vor.u32 %v9447, %v9443
  %v9449 = vrot.slane %v9448, 4
  %v9451 = vshll.u32 %v8980, 16
  %v9453 = vrot.slane %v9451, 5
  %v9454 = vsel %vm2627, %v9449, %v9453
  %v9456 = vshrl.u32 %v8981, 16
  %v9458 = vrot.slane %v9456, 4
  %v9459 = vshll.u32 %v8981, 16
  %v9461 = vrot.slane %v9459, 5
  %v9462 = vor.u32 %v9458, %v9461
  %v9463 = vrot.slane %v9462, 4
  %v9465 = vshll.u32 %v8982, 16
  %v9467 = vrot.slane %v9465, 5
  %v9468 = vsel %vm2627, %v9463, %v9467
  %v9469 = vshrl.u32 %v8982, 16
  %v9471 = vrot.slane %v9469, 4
  %v9472 = vor.u32 %v9471, %v9467
  %v9473 = vrot.slane %v9472, 4
  %v9475 = vshll.u32 %v8983, 16
  %v9477 = vrot.slane %v9475, 5
  %v9478 = vsel %vm2627, %v9473, %v9477
  %v9480 = vshrl.u32 %v8984, 16
  %v9482 = vrot.slane %v9480, 4
  %v9483 = vshll.u32 %v8984, 16
  %v9485 = vrot.slane %v9483, 5
  %v9486 = vor.u32 %v9482, %v9485
  %v9487 = vrot.slane %v9486, 4
  %v9489 = vshll.u32 %v8985, 16
  %v9491 = vrot.slane %v9489, 5
  %v9492 = vsel %vm2627, %v9487, %v9491
  %v9493 = vshrl.u32 %v8985, 16
  %v9495 = vrot.slane %v9493, 4
  %v9496 = vor.u32 %v9495, %v9491
  %v9497 = vrot.slane %v9496, 4
  %v9499 = vshll.u32 %v8986, 16
  %v9501 = vrot.slane %v9499, 5
  %v9502 = vsel %vm2627, %v9497, %v9501
  %v9504 = vshrl.u32 %v8987, 16
  %v9506 = vrot.slane %v9504, 4
  %v9507 = vshll.u32 %v8987, 16
  %v9509 = vrot.slane %v9507, 5
  %v9510 = vor.u32 %v9506, %v9509
  %v9511 = vrot.slane %v9510, 4
  %v9513 = vshll.u32 %v8988, 16
  %v9515 = vrot.slane %v9513, 5
  %v9516 = vsel %vm2627, %v9511, %v9515
  %v9517 = vshrl.u32 %v8988, 16
  %v9519 = vrot.slane %v9517, 4
  %v9520 = vor.u32 %v9519, %v9515
  %v9521 = vrot.slane %v9520, 4
  %v9523 = vshll.u32 %v8989, 16
  %v9525 = vrot.slane %v9523, 5
  %v9526 = vsel %vm2627, %v9521, %v9525
  %v9528 = vshrl.u32 %v8990, 16
  %v9530 = vrot.slane %v9528, 4
  %v9531 = vshll.u32 %v8990, 16
  %v9533 = vrot.slane %v9531, 5
  %v9534 = vor.u32 %v9530, %v9533
  %v9535 = vrot.slane %v9534, 4
  %v9537 = vshll.u32 %v8991, 16
  %v9539 = vrot.slane %v9537, 5
  %v9540 = vsel %vm2627, %v9535, %v9539
  %v9541 = vshrl.u32 %v8991, 16
  %v9543 = vrot.slane %v9541, 4
  %v9544 = vor.u32 %v9543, %v9539
  %v9545 = vrot.slane %v9544, 4
  %v9547 = vshll.u32 %v8992, 16
  %v9549 = vrot.slane %v9547, 5
  %v9550 = vsel %vm2627, %v9545, %v9549
  %v9552 = vshrl.u32 %v8993, 16
  %v9554 = vrot.slane %v9552, 4
  %v9555 = vshll.u32 %v8993, 16
  %v9557 = vrot.slane %v9555, 5
  %v9558 = vor.u32 %v9554, %v9557
  %v9559 = vrot.slane %v9558, 4
  %v9561 = vshll.u32 %v8994, 16
  %v9563 = vrot.slane %v9561, 5
  %v9564 = vsel %vm2627, %v9559, %v9563
  %v9565 = vshrl.u32 %v8994, 16
  %v9567 = vrot.slane %v9565, 4
  %v9568 = vor.u32 %v9567, %v9563
  %v9569 = vrot.slane %v9568, 4
  %v9571 = vshll.u32 %v8995, 16
  %v9573 = vrot.slane %v9571, 5
  %v9574 = vsel %vm2627, %v9569, %v9573
  %v9576 = vshrl.u32 %v8996, 16
  %v9578 = vrot.slane %v9576, 4
  %v9579 = vshll.u32 %v8996, 16
  %v9581 = vrot.slane %v9579, 5
  %v9582 = vor.u32 %v9578, %v9581
  %v9583 = vrot.slane %v9582, 4
  %v9585 = vshll.u32 %v8997, 16
  %v9587 = vrot.slane %v9585, 5
  %v9588 = vsel %vm2627, %v9583, %v9587
  %v9589 = vshrl.u32 %v8997, 16
  %v9591 = vrot.slane %v9589, 4
  %v9592 = vor.u32 %v9591, %v9587
  %v9593 = vrot.slane %v9592, 4
  %v9595 = vshll.u32 %v8998, 16
  %v9597 = vrot.slane %v9595, 5
  %v9598 = vsel %vm2627, %v9593, %v9597
  %v9600 = vshrl.u32 %v8999, 16
  %v9602 = vrot.slane %v9600, 4
  %v9603 = vshll.u32 %v8999, 16
  %v9605 = vrot.slane %v9603, 5
  %v9606 = vor.u32 %v9602, %v9605
  %v9607 = vrot.slane %v9606, 4
  %v9609 = vshll.u32 %v9000, 16
  %v9611 = vrot.slane %v9609, 5
  %v9612 = vsel %vm2627, %v9607, %v9611
  %v9613 = vshrl.u32 %v9000, 16
  %v9615 = vrot.slane %v9613, 4
  %v9616 = vor.u32 %v9615, %v9611
  %v9617 = vrot.slane %v9616, 4
  %v9619 = vshll.u32 %v9001, 16
  %v9621 = vrot.slane %v9619, 5
  %v9622 = vsel %vm2627, %v9617, %v9621
  %v9624 = vshrl.u32 %v9002, 16
  %v9626 = vrot.slane %v9624, 4
  %v9627 = vshll.u32 %v9002, 16
  %v9629 = vrot.slane %v9627, 5
  %v9630 = vor.u32 %v9626, %v9629
  %v9631 = vrot.slane %v9630, 4
  %v9633 = vshll.u32 %v9003, 16
  %v9635 = vrot.slane %v9633, 5
  %v9636 = vsel %vm2627, %v9631, %v9635
  %v9637 = vshrl.u32 %v9003, 16
  %v9639 = vrot.slane %v9637, 4
  %v9640 = vor.u32 %v9639, %v9635
  %v9641 = vrot.slane %v9640, 4
  %v9643 = vshll.u32 %v9004, 16
  %v9645 = vrot.slane %v9643, 5
  %v9646 = vsel %vm2627, %v9641, %v9645
  %v9648 = vshrl.u32 %v9005, 16
  %v9650 = vrot.slane %v9648, 4
  %v9651 = vshll.u32 %v9005, 16
  %v9653 = vrot.slane %v9651, 5
  %v9654 = vor.u32 %v9650, %v9653
  %v9655 = vrot.slane %v9654, 4
  %v9657 = vshll.u32 %v9006, 16
  %v9659 = vrot.slane %v9657, 5
  %v9660 = vsel %vm2627, %v9655, %v9659
  %v9661 = vshrl.u32 %v9006, 16
  %v9663 = vrot.slane %v9661, 4
  %v9664 = vor.u32 %v9663, %v9659
  %v9665 = vrot.slane %v9664, 4
  %v9667 = vshll.u32 %v9007, 16
  %v9669 = vrot.slane %v9667, 5
  %v9670 = vsel %vm2627, %v9665, %v9669
  %v9672 = vshrl.u32 %v9008, 16
  %v9674 = vrot.slane %v9672, 4
  %v9675 = vshll.u32 %v9008, 16
  %v9677 = vrot.slane %v9675, 5
  %v9678 = vor.u32 %v9674, %v9677
  %v9679 = vrot.slane %v9678, 4
  %v9681 = vshll.u32 %v9009, 16
  %v9683 = vrot.slane %v9681, 5
  %v9684 = vsel %vm2627, %v9679, %v9683
  %v9685 = vshrl.u32 %v9009, 16
  %v9687 = vrot.slane %v9685, 4
  %v9688 = vor.u32 %v9687, %v9683
  %v9689 = vrot.slane %v9688, 4
  %v9691 = vshll.u32 %v9010, 16
  %v9693 = vrot.slane %v9691, 5
  %v9694 = vsel %vm2627, %v9689, %v9693
  %v9696 = vshrl.u32 %v9011, 16
  %v9698 = vrot.slane %v9696, 4
  %v9699 = vshll.u32 %v9011, 16
  %v9701 = vrot.slane %v9699, 5
  %v9702 = vor.u32 %v9698, %v9701
  %v9703 = vrot.slane %v9702, 4
  %v9705 = vshll.u32 %v9012, 16
  %v9707 = vrot.slane %v9705, 5
  %v9708 = vsel %vm2627, %v9703, %v9707
  %v9709 = vshrl.u32 %v9012, 16
  %v9711 = vrot.slane %v9709, 4
  %v9712 = vor.u32 %v9711, %v9707
  %v9713 = vrot.slane %v9712, 4
  %v9715 = vshll.u32 %v9013, 16
  %v9717 = vrot.slane %v9715, 5
  %v9718 = vsel %vm2627, %v9713, %v9717
  %v9720 = vshrl.u32 %v9014, 16
  %v9722 = vrot.slane %v9720, 4
  %v9723 = vshll.u32 %v9014, 16
  %v9725 = vrot.slane %v9723, 5
  %v9726 = vor.u32 %v9722, %v9725
  %v9727 = vrot.slane %v9726, 4
  %v9729 = vshll.u32 %v9015, 16
  %v9731 = vrot.slane %v9729, 5
  %v9732 = vsel %vm2627, %v9727, %v9731
  %v9733 = vshrl.u32 %v9015, 16
  %v9735 = vrot.slane %v9733, 4
  %v9736 = vor.u32 %v9735, %v9731
  %v9737 = vrot.slane %v9736, 4
  %v9739 = vshll.u32 %v9016, 16
  %v9741 = vrot.slane %v9739, 5
  %v9742 = vsel %vm2627, %v9737, %v9741
  %v9744 = vshrl.u32 %v9017, 16
  %v9746 = vrot.slane %v9744, 4
  %v9747 = vshll.u32 %v9017, 16
  %v9749 = vrot.slane %v9747, 5
  %v9750 = vor.u32 %v9746, %v9749
  %v9751 = vrot.slane %v9750, 4
  %v9753 = vshll.u32 %v9018, 16
  %v9755 = vrot.slane %v9753, 5
  %v9756 = vsel %vm2627, %v9751, %v9755
  %v9757 = vshrl.u32 %v9018, 16
  %v9759 = vrot.slane %v9757, 4
  %v9760 = vor.u32 %v9759, %v9755
  %v9761 = vrot.slane %v9760, 4
  %v9763 = vshll.u32 %v9019, 16
  %v9765 = vrot.slane %v9763, 5
  %v9766 = vsel %vm2627, %v9761, %v9765
  %v9768 = vshrl.u32 %v9020, 16
  %v9770 = vrot.slane %v9768, 4
  %v9771 = vshll.u32 %v9020, 16
  %v9773 = vrot.slane %v9771, 5
  %v9774 = vor.u32 %v9770, %v9773
  %v9775 = vrot.slane %v9774, 4
  %v9777 = vshll.u32 %v9021, 16
  %v9779 = vrot.slane %v9777, 5
  %v9780 = vsel %vm2627, %v9775, %v9779
  %v9781 = vshrl.u32 %v9021, 16
  %v9783 = vrot.slane %v9781, 4
  %v9784 = vor.u32 %v9783, %v9779
  %v9785 = vrot.slane %v9784, 4
  %v9787 = vshll.u32 %v9022, 16
  %v9789 = vrot.slane %v9787, 5
  %v9790 = vsel %vm2627, %v9785, %v9789
  %v9791 = vld [vmem:[%s2 + $0x1c0] sm:$0xf]
  %v9792 = vld [vmem:[%s2 + $0x1c4] sm:$0xf]
  %v9793 = vld [vmem:[%s2 + $0x1c8] sm:$0xf]
  %v9794 = vld [vmem:[%s2 + $0x1cc] sm:$0xf]
  %v9795 = vld [vmem:[%s2 + $0x1d0] sm:$0xf]
  %v9796 = vld [vmem:[%s2 + $0x1d4] sm:$0xf]
  %v9797 = vld [vmem:[%s2 + $0x1d8] sm:$0xf]
  %v9798 = vld [vmem:[%s2 + $0x1dc] sm:$0xf]
  %v9799 = vld [vmem:[%s2 + $0x1e0] sm:$0xf]
  %v9800 = vld [vmem:[%s2 + $0x1e4] sm:$0xf]
  %v9801 = vld [vmem:[%s2 + $0x1e8] sm:$0xf]
  %v9802 = vld [vmem:[%s2 + $0x1ec] sm:$0xf]
  %v9803 = vld [vmem:[%s2 + $0x1f0] sm:$0xf]
  %v9804 = vld [vmem:[%s2 + $0x1f4] sm:$0xf]
  %v9805 = vld [vmem:[%s2 + $0x1f8] sm:$0xf]
  %v9806 = vld [vmem:[%s2 + $0x1fc] sm:$0xf]
  %v9807 = vunpack.c.l.b16 %v9036
  %v9808 = vunpack.c.l.b16 %v9046
  %v9809 = vunpack.c.l.b16 %v9060
  %v9810 = vunpack.c.l.b16 %v9070
  %v9811 = vunpack.c.l.b16 %v9084
  %v9812 = vunpack.c.l.b16 %v9094
  %v9813 = vunpack.c.l.b16 %v9108
  %v9814 = vunpack.c.l.b16 %v9118
  %v9815 = vunpack.c.l.b16 %v9132
  %v9816 = vunpack.c.l.b16 %v9142
  %v9817 = vunpack.c.l.b16 %v9156
  %v9818 = vunpack.c.l.b16 %v9166
  %v9819 = vunpack.c.l.b16 %v9180
  %v9820 = vunpack.c.l.b16 %v9190
  %v9821 = vunpack.c.l.b16 %v9204
  %v9822 = vunpack.c.l.b16 %v9214
  %v9823 = vunpack.c.l.b16 %v9228
  %v9824 = vunpack.c.l.b16 %v9238
  %v9825 = vunpack.c.l.b16 %v9252
  %v9826 = vunpack.c.l.b16 %v9262
  %v9827 = vunpack.c.l.b16 %v9276
  %v9828 = vunpack.c.l.b16 %v9286
  %v9829 = vunpack.c.l.b16 %v9300
  %v9830 = vunpack.c.l.b16 %v9310
  %v9831 = vunpack.c.l.b16 %v9324
  %v9832 = vunpack.c.l.b16 %v9334
  %v9833 = vunpack.c.l.b16 %v9348
  %v9834 = vunpack.c.l.b16 %v9358
  %v9835 = vunpack.c.l.b16 %v9372
  %v9836 = vunpack.c.l.b16 %v9382
  %v9837 = vunpack.c.l.b16 %v9396
  %v9838 = vunpack.c.l.b16 %v9406
  %v9839 = vunpack.c.l.b16 %v9420
  %v9840 = vunpack.c.l.b16 %v9430
  %v9841 = vunpack.c.l.b16 %v9444
  %v9842 = vunpack.c.l.b16 %v9454
  %v9843 = vunpack.c.l.b16 %v9468
  %v9844 = vunpack.c.l.b16 %v9478
  %v9845 = vunpack.c.l.b16 %v9492
  %v9846 = vunpack.c.l.b16 %v9502
  %v9847 = vunpack.c.l.b16 %v9516
  %v9848 = vunpack.c.l.b16 %v9526
  %v9849 = vunpack.c.l.b16 %v9540
  %v9850 = vunpack.c.l.b16 %v9550
  %v9851 = vunpack.c.l.b16 %v9564
  %v9852 = vunpack.c.l.b16 %v9574
  %v9853 = vunpack.c.l.b16 %v9588
  %v9854 = vunpack.c.l.b16 %v9598
  %v9855 = vunpack.c.l.b16 %v9612
  %v9856 = vunpack.c.l.b16 %v9622
  %v9857 = vunpack.c.l.b16 %v9636
  %v9858 = vunpack.c.l.b16 %v9646
  %v9859 = vunpack.c.l.b16 %v9660
  %v9860 = vunpack.c.l.b16 %v9670
  %v9861 = vunpack.c.l.b16 %v9684
  %v9862 = vunpack.c.l.b16 %v9694
  %v9863 = vunpack.c.l.b16 %v9708
  %v9864 = vunpack.c.l.b16 %v9718
  %v9865 = vunpack.c.l.b16 %v9732
  %v9866 = vunpack.c.l.b16 %v9742
  %v9867 = vunpack.c.l.b16 %v9756
  %v9868 = vunpack.c.l.b16 %v9766
  %v9869 = vunpack.c.l.b16 %v9780
  %v9870 = vunpack.c.l.b16 %v9790
  %v9871 = vpack.c.b16 %v9808, %v9807
  %v9872 = vpack.c.b16 %v9810, %v9809
  %v9873 = vpack.c.b16 %v9812, %v9811
  %v9874 = vpack.c.b16 %v9814, %v9813
  %v9875 = vpack.c.b16 %v9816, %v9815
  %v9876 = vpack.c.b16 %v9818, %v9817
  %v9877 = vpack.c.b16 %v9820, %v9819
  %v9878 = vpack.c.b16 %v9822, %v9821
  %v9879 = vpack.c.b16 %v9824, %v9823
  %v9880 = vpack.c.b16 %v9826, %v9825
  %v9881 = vpack.c.b16 %v9828, %v9827
  %v9882 = vpack.c.b16 %v9830, %v9829
  %v9883 = vpack.c.b16 %v9832, %v9831
  %v9884 = vpack.c.b16 %v9834, %v9833
  %v9885 = vpack.c.b16 %v9836, %v9835
  %v9886 = vpack.c.b16 %v9838, %v9837
  %v9887 = vpack.c.b16 %v9840, %v9839
  %v9888 = vpack.c.b16 %v9842, %v9841
  %v9889 = vpack.c.b16 %v9844, %v9843
  %v9890 = vpack.c.b16 %v9846, %v9845
  %v9891 = vpack.c.b16 %v9848, %v9847
  %v9892 = vpack.c.b16 %v9850, %v9849
  %v9893 = vpack.c.b16 %v9852, %v9851
  %v9894 = vpack.c.b16 %v9854, %v9853
  %v9895 = vpack.c.b16 %v9856, %v9855
  %v9896 = vpack.c.b16 %v9858, %v9857
  %v9897 = vpack.c.b16 %v9860, %v9859
  %v9898 = vpack.c.b16 %v9862, %v9861
  %v9899 = vpack.c.b16 %v9864, %v9863
  %v9900 = vpack.c.b16 %v9866, %v9865
  %v9901 = vpack.c.b16 %v9868, %v9867
  %v9902 = vpack.c.b16 %v9870, %v9869
  %v9951 = vunpack.c.l.b16 %v9791
  %v9952 = vunpack.c.l.b16 %v9792
  %v9953 = vunpack.c.l.b16 %v9793
  %v9954 = vunpack.c.l.b16 %v9794
  %v9955 = vunpack.c.l.b16 %v9795
  %v9956 = vunpack.c.l.b16 %v9796
  %v9957 = vunpack.c.l.b16 %v9797
  %v9958 = vunpack.c.l.b16 %v9798
  %v9959 = vunpack.c.l.b16 %v9799
  %v9960 = vunpack.c.l.b16 %v9800
  %v9961 = vunpack.c.l.b16 %v9801
  %v9962 = vunpack.c.l.b16 %v9802
  %v9963 = vunpack.c.l.b16 %v9803
  %v9964 = vunpack.c.l.b16 %v9804
  %v9965 = vunpack.c.l.b16 %v9805
  %v9966 = vunpack.c.l.b16 %v9806
  %v9967 = vpack.c.b16 %v9952, %v9951
  %v9968 = vpack.c.b16 %v9954, %v9953
  %v9969 = vpack.c.b16 %v9956, %v9955
  %v9970 = vpack.c.b16 %v9958, %v9957
  %v9971 = vpack.c.b16 %v9960, %v9959
  %v9972 = vpack.c.b16 %v9962, %v9961
  %v9973 = vpack.c.b16 %v9964, %v9963
  %v9974 = vpack.c.b16 %v9966, %v9965
  %9983 = vmatprep.subr.bf16.mxu0 0
  %9984 = vmatpush1.bf16.msra.mxu0 %v9967
  %9985 = vmatprep.subr.bf16.mxu0 0
  %9986 = vmatpush1.bf16.msra.mxu0 %v9968
  %9987 = vmatprep.subr.bf16.mxu0 0
  %9988 = vmatpush1.bf16.msra.mxu0 %v9969
  %9989 = vmatprep.subr.bf16.mxu0 0
  %9990 = vmatpush1.bf16.msra.mxu0 %v9970
  %9991 = vmatprep.subr.bf16.mxu0 0
  %9992 = vmatpush1.bf16.msra.mxu0 %v9971
  %9993 = vmatprep.subr.bf16.mxu0 0
  %9994 = vmatpush1.bf16.msra.mxu0 %v9972
  %9995 = vmatprep.subr.bf16.mxu0 0
  %9996 = vmatpush1.bf16.msra.mxu0 %v9973
  %9997 = vmatprep.subr.bf16.mxu0 0
  %9998 = vmatpush1.bf16.msra.mxu0 %v9974
  %9999 = vmatprep.subr.bf16.mxu0 0
  %10000 = vmatpush1.bf16.msra.mxu0 0
  %10001 = vmatprep.subr.bf16.mxu0 0
  %10002 = vmatpush1.bf16.msra.mxu0 0
  %10003 = vmatprep.subr.bf16.mxu0 0
  %10004 = vmatpush1.bf16.msra.mxu0 0
  %10005 = vmatprep.subr.bf16.mxu0 0
  %10006 = vmatpush1.bf16.msra.mxu0 0
  %10007 = vmatprep.subr.bf16.mxu0 0
  %10008 = vmatpush1.bf16.msra.mxu0 0
  %10009 = vmatprep.subr.bf16.mxu0 0
  %10010 = vmatpush1.bf16.msra.mxu0 0
  %10011 = vmatprep.subr.bf16.mxu0 0
  %10012 = vmatpush1.bf16.msra.mxu0 0
  %10013 = vmatprep.subr.bf16.mxu0 0
  %10014 = vmatpush1.bf16.msra.mxu0 0
  %10015 = vmatprep.mubr.bf16.mxu0 0
  %10016 = vmatmul.mubr.bf16.gmra.mrb[0].mxu0 %v9871
  %v10017 = vpop.f32.mrb[0].mxu0
  %v10018 = vadd.f32 0.0, %v10017
  %v10019 = vpop.f32.mrb[0].mxu0
  %v10020 = vpop.f32.mrb[0].mxu0
  %v10021 = vadd.f32 0.0, %v10020
  %v10022 = vpop.f32.mrb[0].mxu0
  %10023 = vmatprep.mubr.bf16.mxu0 0
  %10024 = vmatmul.mubr.bf16.gmra.mrb[0].mxu0 %v9872
  %v10025 = vpop.f32.mrb[0].mxu0
  %v10026 = vadd.f32 0.0, %v10025
  %v10027 = vpop.f32.mrb[0].mxu0
  %v10028 = vpop.f32.mrb[0].mxu0
  %v10029 = vadd.f32 0.0, %v10028
  %v10030 = vpop.f32.mrb[0].mxu0
  %10031 = vmatprep.mubr.bf16.mxu0 0
  %10032 = vmatmul.mubr.bf16.gmra.mrb[0].mxu0 %v9873
  %v10033 = vpop.f32.mrb[0].mxu0
  %v10034 = vadd.f32 0.0, %v10033
  %v10035 = vpop.f32.mrb[0].mxu0
  %v10036 = vpop.f32.mrb[0].mxu0
  %v10037 = vadd.f32 0.0, %v10036
  %v10038 = vpop.f32.mrb[0].mxu0
  %10039 = vmatprep.mubr.bf16.mxu0 0
  %10040 = vmatmul.mubr.bf16.gmra.mrb[0].mxu0 %v9874
  %v10041 = vpop.f32.mrb[0].mxu0
  %v10042 = vadd.f32 0.0, %v10041
  %v10043 = vpop.f32.mrb[0].mxu0
  %v10044 = vpop.f32.mrb[0].mxu0
  %v10045 = vadd.f32 0.0, %v10044
  %v10046 = vpop.f32.mrb[0].mxu0
  %10047 = vmatprep.mubr.bf16.mxu0 0
  %10048 = vmatmul.mubr.bf16.gmra.mrb[0].mxu0 %v9875
  %v10049 = vpop.f32.mrb[0].mxu0
  %v10050 = vadd.f32 0.0, %v10049
  %v10051 = vpop.f32.mrb[0].mxu0
  %v10052 = vpop.f32.mrb[0].mxu0
  %v10053 = vadd.f32 0.0, %v10052
  %v10054 = vpop.f32.mrb[0].mxu0
  %10055 = vmatprep.mubr.bf16.mxu0 0
  %10056 = vmatmul.mubr.bf16.gmra.mrb[0].mxu0 %v9876
  %v10057 = vpop.f32.mrb[0].mxu0
  %v10058 = vadd.f32 0.0, %v10057
  %v10059 = vpop.f32.mrb[0].mxu0
  %v10060 = vpop.f32.mrb[0].mxu0
  %v10061 = vadd.f32 0.0, %v10060
  %v10062 = vpop.f32.mrb[0].mxu0
  %10063 = vmatprep.mubr.bf16.mxu0 0
  %10064 = vmatmul.mubr.bf16.gmra.mrb[0].mxu0 %v9877
  %v10065 = vpop.f32.mrb[0].mxu0
  %v10066 = vadd.f32 0.0, %v10065
  %v10067 = vpop.f32.mrb[0].mxu0
  %v10068 = vpop.f32.mrb[0].mxu0
  %v10069 = vadd.f32 0.0, %v10068
  %v10070 = vpop.f32.mrb[0].mxu0
  %10071 = vmatprep.mubr.bf16.mxu0 0
  %10072 = vmatmul.mubr.bf16.gmra.mrb[0].mxu0 %v9878
  %v10073 = vpop.f32.mrb[0].mxu0
  %v10074 = vadd.f32 0.0, %v10073
  %v10075 = vpop.f32.mrb[0].mxu0
  %v10076 = vpop.f32.mrb[0].mxu0
  %v10077 = vadd.f32 0.0, %v10076
  %v10078 = vpop.f32.mrb[0].mxu0
  %10079 = vmatprep.mubr.bf16.mxu0 0
  %10080 = vmatmul.mubr.bf16.gmra.mrb[0].mxu0 %v9879
  %v10081 = vpop.f32.mrb[0].mxu0
  %v10082 = vadd.f32 0.0, %v10081
  %v10083 = vpop.f32.mrb[0].mxu0
  %v10084 = vpop.f32.mrb[0].mxu0
  %v10085 = vadd.f32 0.0, %v10084
  %v10086 = vpop.f32.mrb[0].mxu0
  %10087 = vmatprep.mubr.bf16.mxu0 0
  %10088 = vmatmul.mubr.bf16.gmra.mrb[0].mxu0 %v9880
  %v10089 = vpop.f32.mrb[0].mxu0
  %v10090 = vadd.f32 0.0, %v10089
  %v10091 = vpop.f32.mrb[0].mxu0
  %v10092 = vpop.f32.mrb[0].mxu0
  %v10093 = vadd.f32 0.0, %v10092
  %v10094 = vpop.f32.mrb[0].mxu0
  %10095 = vmatprep.mubr.bf16.mxu0 0
  %10096 = vmatmul.mubr.bf16.gmra.mrb[0].mxu0 %v9881
  %v10097 = vpop.f32.mrb[0].mxu0
  %v10098 = vadd.f32 0.0, %v10097
  %v10099 = vpop.f32.mrb[0].mxu0
  %v10100 = vpop.f32.mrb[0].mxu0
  %v10101 = vadd.f32 0.0, %v10100
  %v10102 = vpop.f32.mrb[0].mxu0
  %10103 = vmatprep.mubr.bf16.mxu0 0
  %10104 = vmatmul.mubr.bf16.gmra.mrb[0].mxu0 %v9882
  %v10105 = vpop.f32.mrb[0].mxu0
  %v10106 = vadd.f32 0.0, %v10105
  %v10107 = vpop.f32.mrb[0].mxu0
  %v10108 = vpop.f32.mrb[0].mxu0
  %v10109 = vadd.f32 0.0, %v10108
  %v10110 = vpop.f32.mrb[0].mxu0
  %10111 = vmatprep.mubr.bf16.mxu0 0
  %10112 = vmatmul.mubr.bf16.gmra.mrb[0].mxu0 %v9883
  %v10113 = vpop.f32.mrb[0].mxu0
  %v10114 = vadd.f32 0.0, %v10113
  %v10115 = vpop.f32.mrb[0].mxu0
  %v10116 = vpop.f32.mrb[0].mxu0
  %v10117 = vadd.f32 0.0, %v10116
  %v10118 = vpop.f32.mrb[0].mxu0
  %10119 = vmatprep.mubr.bf16.mxu0 0
  %10120 = vmatmul.mubr.bf16.gmra.mrb[0].mxu0 %v9884
  %v10121 = vpop.f32.mrb[0].mxu0
  %v10122 = vadd.f32 0.0, %v10121
  %v10123 = vpop.f32.mrb[0].mxu0
  %v10124 = vpop.f32.mrb[0].mxu0
  %v10125 = vadd.f32 0.0, %v10124
  %v10126 = vpop.f32.mrb[0].mxu0
  %10127 = vmatprep.mubr.bf16.mxu0 0
  %10128 = vmatmul.mubr.bf16.gmra.mrb[0].mxu0 %v9885
  %v10129 = vpop.f32.mrb[0].mxu0
  %v10130 = vadd.f32 0.0, %v10129
  %v10131 = vpop.f32.mrb[0].mxu0
  %v10132 = vpop.f32.mrb[0].mxu0
  %v10133 = vadd.f32 0.0, %v10132
  %v10134 = vpop.f32.mrb[0].mxu0
  %10135 = vmatprep.mubr.bf16.mxu0 0
  %10136 = vmatmul.mubr.bf16.gmra.mrb[0].mxu0 %v9886
  %v10137 = vpop.f32.mrb[0].mxu0
  %v10138 = vadd.f32 0.0, %v10137
  %v10139 = vpop.f32.mrb[0].mxu0
  %v10140 = vpop.f32.mrb[0].mxu0
  %v10141 = vadd.f32 0.0, %v10140
  %v10142 = vpop.f32.mrb[0].mxu0
  %10143 = vmatprep.mubr.bf16.mxu0 0
  %10144 = vmatmul.mubr.bf16.gmra.mrb[0].mxu0 %v9887
  %v10145 = vpop.f32.mrb[0].mxu0
  %v10146 = vadd.f32 0.0, %v10145
  %v10147 = vpop.f32.mrb[0].mxu0
  %v10148 = vpop.f32.mrb[0].mxu0
  %v10149 = vadd.f32 0.0, %v10148
  %v10150 = vpop.f32.mrb[0].mxu0
  %10151 = vmatprep.mubr.bf16.mxu0 0
  %10152 = vmatmul.mubr.bf16.gmra.mrb[0].mxu0 %v9888
  %v10153 = vpop.f32.mrb[0].mxu0
  %v10154 = vadd.f32 0.0, %v10153
  %v10155 = vpop.f32.mrb[0].mxu0
  %v10156 = vpop.f32.mrb[0].mxu0
  %v10157 = vadd.f32 0.0, %v10156
  %v10158 = vpop.f32.mrb[0].mxu0
  %10159 = vmatprep.mubr.bf16.mxu0 0
  %10160 = vmatmul.mubr.bf16.gmra.mrb[0].mxu0 %v9889
  %v10161 = vpop.f32.mrb[0].mxu0
  %v10162 = vadd.f32 0.0, %v10161
  %v10163 = vpop.f32.mrb[0].mxu0
  %v10164 = vpop.f32.mrb[0].mxu0
  %v10165 = vadd.f32 0.0, %v10164
  %v10166 = vpop.f32.mrb[0].mxu0
  %10167 = vmatprep.mubr.bf16.mxu0 0
  %10168 = vmatmul.mubr.bf16.gmra.mrb[0].mxu0 %v9890
  %v10169 = vpop.f32.mrb[0].mxu0
  %v10170 = vadd.f32 0.0, %v10169
  %v10171 = vpop.f32.mrb[0].mxu0
  %v10172 = vpop.f32.mrb[0].mxu0
  %v10173 = vadd.f32 0.0, %v10172
  %v10174 = vpop.f32.mrb[0].mxu0
  %10175 = vmatprep.mubr.bf16.mxu0 0
  %10176 = vmatmul.mubr.bf16.gmra.mrb[0].mxu0 %v9891
  %v10177 = vpop.f32.mrb[0].mxu0
  %v10178 = vadd.f32 0.0, %v10177
  %v10179 = vpop.f32.mrb[0].mxu0
  %v10180 = vpop.f32.mrb[0].mxu0
  %v10181 = vadd.f32 0.0, %v10180
  %v10182 = vpop.f32.mrb[0].mxu0
  %10183 = vmatprep.mubr.bf16.mxu0 0
  %10184 = vmatmul.mubr.bf16.gmra.mrb[0].mxu0 %v9892
  %v10185 = vpop.f32.mrb[0].mxu0
  %v10186 = vadd.f32 0.0, %v10185
  %v10187 = vpop.f32.mrb[0].mxu0
  %v10188 = vpop.f32.mrb[0].mxu0
  %v10189 = vadd.f32 0.0, %v10188
  %v10190 = vpop.f32.mrb[0].mxu0
  %10191 = vmatprep.mubr.bf16.mxu0 0
  %10192 = vmatmul.mubr.bf16.gmra.mrb[0].mxu0 %v9893
  %v10193 = vpop.f32.mrb[0].mxu0
  %v10194 = vadd.f32 0.0, %v10193
  %v10195 = vpop.f32.mrb[0].mxu0
  %v10196 = vpop.f32.mrb[0].mxu0
  %v10197 = vadd.f32 0.0, %v10196
  %v10198 = vpop.f32.mrb[0].mxu0
  %10199 = vmatprep.mubr.bf16.mxu0 0
  %10200 = vmatmul.mubr.bf16.gmra.mrb[0].mxu0 %v9894
  %v10201 = vpop.f32.mrb[0].mxu0
  %v10202 = vadd.f32 0.0, %v10201
  %v10203 = vpop.f32.mrb[0].mxu0
  %v10204 = vpop.f32.mrb[0].mxu0
  %v10205 = vadd.f32 0.0, %v10204
  %v10206 = vpop.f32.mrb[0].mxu0
  %10207 = vmatprep.mubr.bf16.mxu0 0
  %10208 = vmatmul.mubr.bf16.gmra.mrb[0].mxu0 %v9895
  %v10209 = vpop.f32.mrb[0].mxu0
  %v10210 = vadd.f32 0.0, %v10209
  %v10211 = vpop.f32.mrb[0].mxu0
  %v10212 = vpop.f32.mrb[0].mxu0
  %v10213 = vadd.f32 0.0, %v10212
  %v10214 = vpop.f32.mrb[0].mxu0
  %10215 = vmatprep.mubr.bf16.mxu0 0
  %10216 = vmatmul.mubr.bf16.gmra.mrb[0].mxu0 %v9896
  %v10217 = vpop.f32.mrb[0].mxu0
  %v10218 = vadd.f32 0.0, %v10217
  %v10219 = vpop.f32.mrb[0].mxu0
  %v10220 = vpop.f32.mrb[0].mxu0
  %v10221 = vadd.f32 0.0, %v10220
  %v10222 = vpop.f32.mrb[0].mxu0
  %10223 = vmatprep.mubr.bf16.mxu0 0
  %10224 = vmatmul.mubr.bf16.gmra.mrb[0].mxu0 %v9897
  %v10225 = vpop.f32.mrb[0].mxu0
  %v10226 = vadd.f32 0.0, %v10225
  %v10227 = vpop.f32.mrb[0].mxu0
  %v10228 = vpop.f32.mrb[0].mxu0
  %v10229 = vadd.f32 0.0, %v10228
  %v10230 = vpop.f32.mrb[0].mxu0
  %10231 = vmatprep.mubr.bf16.mxu0 0
  %10232 = vmatmul.mubr.bf16.gmra.mrb[0].mxu0 %v9898
  %v10233 = vpop.f32.mrb[0].mxu0
  %v10234 = vadd.f32 0.0, %v10233
  %v10235 = vpop.f32.mrb[0].mxu0
  %v10236 = vpop.f32.mrb[0].mxu0
  %v10237 = vadd.f32 0.0, %v10236
  %v10238 = vpop.f32.mrb[0].mxu0
  %10239 = vmatprep.mubr.bf16.mxu0 0
  %10240 = vmatmul.mubr.bf16.gmra.mrb[0].mxu0 %v9899
  %v10241 = vpop.f32.mrb[0].mxu0
  %v10242 = vadd.f32 0.0, %v10241
  %v10243 = vpop.f32.mrb[0].mxu0
  %v10244 = vpop.f32.mrb[0].mxu0
  %v10245 = vadd.f32 0.0, %v10244
  %v10246 = vpop.f32.mrb[0].mxu0
  %10247 = vmatprep.mubr.bf16.mxu0 0
  %10248 = vmatmul.mubr.bf16.gmra.mrb[0].mxu0 %v9900
  %v10249 = vpop.f32.mrb[0].mxu0
  %v10250 = vadd.f32 0.0, %v10249
  %v10251 = vpop.f32.mrb[0].mxu0
  %v10252 = vpop.f32.mrb[0].mxu0
  %v10253 = vadd.f32 0.0, %v10252
  %v10254 = vpop.f32.mrb[0].mxu0
  %10255 = vmatprep.mubr.bf16.mxu0 0
  %10256 = vmatmul.mubr.bf16.gmra.mrb[0].mxu0 %v9901
  %v10257 = vpop.f32.mrb[0].mxu0
  %v10258 = vadd.f32 0.0, %v10257
  %v10259 = vpop.f32.mrb[0].mxu0
  %v10260 = vpop.f32.mrb[0].mxu0
  %v10261 = vadd.f32 0.0, %v10260
  %v10262 = vpop.f32.mrb[0].mxu0
  %10263 = vmatprep.mubr.bf16.mxu0 0
  %10264 = vmatmul.mubr.bf16.gmra.mrb[0].mxu0 %v9902
  %v10265 = vpop.f32.mrb[0].mxu0
  %v10266 = vadd.f32 0.0, %v10265
  %v10267 = vpop.f32.mrb[0].mxu0
  %v10268 = vpop.f32.mrb[0].mxu0
  %v10269 = vadd.f32 0.0, %v10268
  %v10270 = vpop.f32.mrb[0].mxu0
  %10271 = vdwg.mxu0
  %v10272 = vadd.f32 %v8863, %v10018
  %v10273 = vadd.f32 %v8864, %v10021
  %v10274 = vadd.f32 %v8865, %v10026
  %v10275 = vadd.f32 %v8866, %v10029
  %v10276 = vadd.f32 %v8867, %v10034
  %v10277 = vadd.f32 %v8868, %v10037
  %v10278 = vadd.f32 %v8869, %v10042
  %v10279 = vadd.f32 %v8870, %v10045
  %v10280 = vadd.f32 %v8871, %v10050
  %v10281 = vadd.f32 %v8872, %v10053
  %v10282 = vadd.f32 %v8873, %v10058
  %v10283 = vadd.f32 %v8874, %v10061
  %v10284 = vadd.f32 %v8875, %v10066
  %v10285 = vadd.f32 %v8876, %v10069
  %v10286 = vadd.f32 %v8877, %v10074
  %v10287 = vadd.f32 %v8878, %v10077
  %v10288 = vadd.f32 %v8879, %v10082
  %v10289 = vadd.f32 %v8880, %v10085
  %v10290 = vadd.f32 %v8881, %v10090
  %v10291 = vadd.f32 %v8882, %v10093
  %v10292 = vadd.f32 %v8883, %v10098
  %v10293 = vadd.f32 %v8884, %v10101
  %v10294 = vadd.f32 %v8885, %v10106
  %v10295 = vadd.f32 %v8886, %v10109
  %v10296 = vadd.f32 %v8887, %v10114
  %v10297 = vadd.f32 %v8888, %v10117
  %v10298 = vadd.f32 %v8889, %v10122
  %v10299 = vadd.f32 %v8890, %v10125
  %v10300 = vadd.f32 %v8891, %v10130
  %v10301 = vadd.f32 %v8892, %v10133
  %v10302 = vadd.f32 %v8893, %v10138
  %v10303 = vadd.f32 %v8894, %v10141
  %v10304 = vadd.f32 %v8895, %v10146
  %v10305 = vadd.f32 %v8896, %v10149
  %v10306 = vadd.f32 %v8897, %v10154
  %v10307 = vadd.f32 %v8898, %v10157
  %v10308 = vadd.f32 %v8899, %v10162
  %v10309 = vadd.f32 %v8900, %v10165
  %v10310 = vadd.f32 %v8901, %v10170
  %v10311 = vadd.f32 %v8902, %v10173
  %v10312 = vadd.f32 %v8903, %v10178
  %v10313 = vadd.f32 %v8904, %v10181
  %v10314 = vadd.f32 %v8905, %v10186
  %v10315 = vadd.f32 %v8906, %v10189
  %v10316 = vadd.f32 %v8907, %v10194
  %v10317 = vadd.f32 %v8908, %v10197
  %v10318 = vadd.f32 %v8909, %v10202
  %v10319 = vadd.f32 %v8910, %v10205
  %v10320 = vadd.f32 %v8911, %v10210
  %v10321 = vadd.f32 %v8912, %v10213
  %v10322 = vadd.f32 %v8913, %v10218
  %v10323 = vadd.f32 %v8914, %v10221
  %v10324 = vadd.f32 %v8915, %v10226
  %v10325 = vadd.f32 %v8916, %v10229
  %v10326 = vadd.f32 %v8917, %v10234
  %v10327 = vadd.f32 %v8918, %v10237
  %v10328 = vadd.f32 %v8919, %v10242
  %v10329 = vadd.f32 %v8920, %v10245
  %v10330 = vadd.f32 %v8921, %v10250
  %v10331 = vadd.f32 %v8922, %v10253
  %v10332 = vadd.f32 %v8923, %v10258
  %v10333 = vadd.f32 %v8924, %v10261
  %v10334 = vadd.f32 %v8925, %v10266
  %v10335 = vadd.f32 %v8926, %v10269
  %v10336 = vld [vmem:[%s8253] sm:$0xe]
  %v10337 = vld [vmem:[%s8253 + $0xc] sm:$0xe]
  %v10338 = vld [vmem:[%s8253 + $0x18] sm:$0xe]
  %v10339 = vld [vmem:[%s8253 + $0x24] sm:$0xe]
  %v10340 = vld [vmem:[%s8253 + $0x30] sm:$0xe]
  %v10341 = vld [vmem:[%s8253 + $0x3c] sm:$0xe]
  %v10342 = vld [vmem:[%s8253 + $0x48] sm:$0xe]
  %v10343 = vld [vmem:[%s8253 + $0x54] sm:$0xe]
  %v10344 = vld [vmem:[%s8253 + $0x60] sm:$0xe]
  %v10345 = vld [vmem:[%s8253 + $0x6c] sm:$0xe]
  %v10346 = vld [vmem:[%s8253 + $0x78] sm:$0xe]
  %v10347 = vld [vmem:[%s8253 + $0x84] sm:$0xe]
  %v10348 = vld [vmem:[%s8253 + $0x90] sm:$0xe]
  %v10349 = vld [vmem:[%s8253 + $0x9c] sm:$0xe]
  %v10350 = vld [vmem:[%s8253 + $0xa8] sm:$0xe]
  %v10351 = vld [vmem:[%s8253 + $0xb4] sm:$0xe]
  %v10352 = vld [vmem:[%s8253 + $0xd8] sm:$0xe]
  %v10353 = vld [vmem:[%s8253 + $0xe4] sm:$0xe]
  %v10354 = vld [vmem:[%s8253 + $0xf0] sm:$0xe]
  %v10355 = vld [vmem:[%s8253 + $0xfc] sm:$0xe]
  %v10356 = vld [vmem:[%s8253 + $0x108] sm:$0xe]
  %v10357 = vld [vmem:[%s8253 + $0x114] sm:$0xe]
  %v10358 = vld [vmem:[%s8253 + $0x120] sm:$0xe]
  %v10359 = vld [vmem:[%s8253 + $0x12c] sm:$0xe]
  %v10360 = vld [vmem:[%s8253 + $0x138] sm:$0xe]
  %v10361 = vld [vmem:[%s8253 + $0x144] sm:$0xe]
  %v10362 = vld [vmem:[%s8253 + $0x150] sm:$0xe]
  %v10363 = vld [vmem:[%s8253 + $0x15c] sm:$0xe]
  %v10364 = vld [vmem:[%s8253 + $0x168] sm:$0xe]
  %v10365 = vld [vmem:[%s8253 + $0x174] sm:$0xe]
  %v10366 = vld [vmem:[%s8253 + $0x180] sm:$0xe]
  %v10367 = vld [vmem:[%s8253 + $0x18c] sm:$0xe]
  %v10464 = vrot.slane %v10336, 5
  %v10465 = vrot.slane %v10464, 4
  %v10466 = vrot.slane %v8928, 5
  %v10467 = vsel %vm4504, %v10465, %v10466
  %v10468 = vrot.slane %v10466, 4
  %v10469 = vrot.slane %v8929, 5
  %v10470 = vsel %vm4504, %v10468, %v10469
  %v10471 = vrot.slane %v10337, 5
  %v10472 = vrot.slane %v10471, 4
  %v10473 = vrot.slane %v8931, 5
  %v10474 = vsel %vm4504, %v10472, %v10473
  %v10475 = vrot.slane %v10473, 4
  %v10476 = vrot.slane %v8932, 5
  %v10477 = vsel %vm4504, %v10475, %v10476
  %v10478 = vrot.slane %v10338, 5
  %v10479 = vrot.slane %v10478, 4
  %v10480 = vrot.slane %v8934, 5
  %v10481 = vsel %vm4504, %v10479, %v10480
  %v10482 = vrot.slane %v10480, 4
  %v10483 = vrot.slane %v8935, 5
  %v10484 = vsel %vm4504, %v10482, %v10483
  %v10485 = vrot.slane %v10339, 5
  %v10486 = vrot.slane %v10485, 4
  %v10487 = vrot.slane %v8937, 5
  %v10488 = vsel %vm4504, %v10486, %v10487
  %v10489 = vrot.slane %v10487, 4
  %v10490 = vrot.slane %v8938, 5
  %v10491 = vsel %vm4504, %v10489, %v10490
  %v10492 = vrot.slane %v10340, 5
  %v10493 = vrot.slane %v10492, 4
  %v10494 = vrot.slane %v8940, 5
  %v10495 = vsel %vm4504, %v10493, %v10494
  %v10496 = vrot.slane %v10494, 4
  %v10497 = vrot.slane %v8941, 5
  %v10498 = vsel %vm4504, %v10496, %v10497
  %v10499 = vrot.slane %v10341, 5
  %v10500 = vrot.slane %v10499, 4
  %v10501 = vrot.slane %v8943, 5
  %v10502 = vsel %vm4504, %v10500, %v10501
  %v10503 = vrot.slane %v10501, 4
  %v10504 = vrot.slane %v8944, 5
  %v10505 = vsel %vm4504, %v10503, %v10504
  %v10506 = vrot.slane %v10342, 5
  %v10507 = vrot.slane %v10506, 4
  %v10508 = vrot.slane %v8946, 5
  %v10509 = vsel %vm4504, %v10507, %v10508
  %v10510 = vrot.slane %v10508, 4
  %v10511 = vrot.slane %v8947, 5
  %v10512 = vsel %vm4504, %v10510, %v10511
  %v10513 = vrot.slane %v10343, 5
  %v10514 = vrot.slane %v10513, 4
  %v10515 = vrot.slane %v8949, 5
  %v10516 = vsel %vm4504, %v10514, %v10515
  %v10517 = vrot.slane %v10515, 4
  %v10518 = vrot.slane %v8950, 5
  %v10519 = vsel %vm4504, %v10517, %v10518
  %v10520 = vrot.slane %v10344, 5
  %v10521 = vrot.slane %v10520, 4
  %v10522 = vrot.slane %v8952, 5
  %v10523 = vsel %vm4504, %v10521, %v10522
  %v10524 = vrot.slane %v10522, 4
  %v10525 = vrot.slane %v8953, 5
  %v10526 = vsel %vm4504, %v10524, %v10525
  %v10527 = vrot.slane %v10345, 5
  %v10528 = vrot.slane %v10527, 4
  %v10529 = vrot.slane %v8955, 5
  %v10530 = vsel %vm4504, %v10528, %v10529
  %v10531 = vrot.slane %v10529, 4
  %v10532 = vrot.slane %v8956, 5
  %v10533 = vsel %vm4504, %v10531, %v10532
  %v10534 = vrot.slane %v10346, 5
  %v10535 = vrot.slane %v10534, 4
  %v10536 = vrot.slane %v8958, 5
  %v10537 = vsel %vm4504, %v10535, %v10536
  %v10538 = vrot.slane %v10536, 4
  %v10539 = vrot.slane %v8959, 5
  %v10540 = vsel %vm4504, %v10538, %v10539
  %v10541 = vrot.slane %v10347, 5
  %v10542 = vrot.slane %v10541, 4
  %v10543 = vrot.slane %v8961, 5
  %v10544 = vsel %vm4504, %v10542, %v10543
  %v10545 = vrot.slane %v10543, 4
  %v10546 = vrot.slane %v8962, 5
  %v10547 = vsel %vm4504, %v10545, %v10546
  %v10548 = vrot.slane %v10348, 5
  %v10549 = vrot.slane %v10548, 4
  %v10550 = vrot.slane %v8964, 5
  %v10551 = vsel %vm4504, %v10549, %v10550
  %v10552 = vrot.slane %v10550, 4
  %v10553 = vrot.slane %v8965, 5
  %v10554 = vsel %vm4504, %v10552, %v10553
  %v10555 = vrot.slane %v10349, 5
  %v10556 = vrot.slane %v10555, 4
  %v10557 = vrot.slane %v8967, 5
  %v10558 = vsel %vm4504, %v10556, %v10557
  %v10559 = vrot.slane %v10557, 4
  %v10560 = vrot.slane %v8968, 5
  %v10561 = vsel %vm4504, %v10559, %v10560
  %v10562 = vrot.slane %v10350, 5
  %v10563 = vrot.slane %v10562, 4
  %v10564 = vrot.slane %v8970, 5
  %v10565 = vsel %vm4504, %v10563, %v10564
  %v10566 = vrot.slane %v10564, 4
  %v10567 = vrot.slane %v8971, 5
  %v10568 = vsel %vm4504, %v10566, %v10567
  %v10569 = vrot.slane %v10351, 5
  %v10570 = vrot.slane %v10569, 4
  %v10571 = vrot.slane %v8973, 5
  %v10572 = vsel %vm4504, %v10570, %v10571
  %v10573 = vrot.slane %v10571, 4
  %v10574 = vrot.slane %v8974, 5
  %v10575 = vsel %vm4504, %v10573, %v10574
  %v10576 = vrot.slane %v10352, 5
  %v10577 = vrot.slane %v10576, 4
  %v10578 = vrot.slane %v8976, 5
  %v10579 = vsel %vm4504, %v10577, %v10578
  %v10580 = vrot.slane %v10578, 4
  %v10581 = vrot.slane %v8977, 5
  %v10582 = vsel %vm4504, %v10580, %v10581
  %v10583 = vrot.slane %v10353, 5
  %v10584 = vrot.slane %v10583, 4
  %v10585 = vrot.slane %v8979, 5
  %v10586 = vsel %vm4504, %v10584, %v10585
  %v10587 = vrot.slane %v10585, 4
  %v10588 = vrot.slane %v8980, 5
  %v10589 = vsel %vm4504, %v10587, %v10588
  %v10590 = vrot.slane %v10354, 5
  %v10591 = vrot.slane %v10590, 4
  %v10592 = vrot.slane %v8982, 5
  %v10593 = vsel %vm4504, %v10591, %v10592
  %v10594 = vrot.slane %v10592, 4
  %v10595 = vrot.slane %v8983, 5
  %v10596 = vsel %vm4504, %v10594, %v10595
  %v10597 = vrot.slane %v10355, 5
  %v10598 = vrot.slane %v10597, 4
  %v10599 = vrot.slane %v8985, 5
  %v10600 = vsel %vm4504, %v10598, %v10599
  %v10601 = vrot.slane %v10599, 4
  %v10602 = vrot.slane %v8986, 5
  %v10603 = vsel %vm4504, %v10601, %v10602
  %v10604 = vrot.slane %v10356, 5
  %v10605 = vrot.slane %v10604, 4
  %v10606 = vrot.slane %v8988, 5
  %v10607 = vsel %vm4504, %v10605, %v10606
  %v10608 = vrot.slane %v10606, 4
  %v10609 = vrot.slane %v8989, 5
  %v10610 = vsel %vm4504, %v10608, %v10609
  %v10611 = vrot.slane %v10357, 5
  %v10612 = vrot.slane %v10611, 4
  %v10613 = vrot.slane %v8991, 5
  %v10614 = vsel %vm4504, %v10612, %v10613
  %v10615 = vrot.slane %v10613, 4
  %v10616 = vrot.slane %v8992, 5
  %v10617 = vsel %vm4504, %v10615, %v10616
  %v10618 = vrot.slane %v10358, 5
  %v10619 = vrot.slane %v10618, 4
  %v10620 = vrot.slane %v8994, 5
  %v10621 = vsel %vm4504, %v10619, %v10620
  %v10622 = vrot.slane %v10620, 4
  %v10623 = vrot.slane %v8995, 5
  %v10624 = vsel %vm4504, %v10622, %v10623
  %v10625 = vrot.slane %v10359, 5
  %v10626 = vrot.slane %v10625, 4
  %v10627 = vrot.slane %v8997, 5
  %v10628 = vsel %vm4504, %v10626, %v10627
  %v10629 = vrot.slane %v10627, 4
  %v10630 = vrot.slane %v8998, 5
  %v10631 = vsel %vm4504, %v10629, %v10630
  %v10632 = vrot.slane %v10360, 5
  %v10633 = vrot.slane %v10632, 4
  %v10634 = vrot.slane %v9000, 5
  %v10635 = vsel %vm4504, %v10633, %v10634
  %v10636 = vrot.slane %v10634, 4
  %v10637 = vrot.slane %v9001, 5
  %v10638 = vsel %vm4504, %v10636, %v10637
  %v10639 = vrot.slane %v10361, 5
  %v10640 = vrot.slane %v10639, 4
  %v10641 = vrot.slane %v9003, 5
  %v10642 = vsel %vm4504, %v10640, %v10641
  %v10643 = vrot.slane %v10641, 4
  %v10644 = vrot.slane %v9004, 5
  %v10645 = vsel %vm4504, %v10643, %v10644
  %v10646 = vrot.slane %v10362, 5
  %v10647 = vrot.slane %v10646, 4
  %v10648 = vrot.slane %v9006, 5
  %v10649 = vsel %vm4504, %v10647, %v10648
  %v10650 = vrot.slane %v10648, 4
  %v10651 = vrot.slane %v9007, 5
  %v10652 = vsel %vm4504, %v10650, %v10651
  %v10653 = vrot.slane %v10363, 5
  %v10654 = vrot.slane %v10653, 4
  %v10655 = vrot.slane %v9009, 5
  %v10656 = vsel %vm4504, %v10654, %v10655
  %v10657 = vrot.slane %v10655, 4
  %v10658 = vrot.slane %v9010, 5
  %v10659 = vsel %vm4504, %v10657, %v10658
  %v10660 = vrot.slane %v10364, 5
  %v10661 = vrot.slane %v10660, 4
  %v10662 = vrot.slane %v9012, 5
  %v10663 = vsel %vm4504, %v10661, %v10662
  %v10664 = vrot.slane %v10662, 4
  %v10665 = vrot.slane %v9013, 5
  %v10666 = vsel %vm4504, %v10664, %v10665
  %v10667 = vrot.slane %v10365, 5
  %v10668 = vrot.slane %v10667, 4
  %v10669 = vrot.slane %v9015, 5
  %v10670 = vsel %vm4504, %v10668, %v10669
  %v10671 = vrot.slane %v10669, 4
  %v10672 = vrot.slane %v9016, 5
  %v10673 = vsel %vm4504, %v10671, %v10672
  %v10674 = vrot.slane %v10366, 5
  %v10675 = vrot.slane %v10674, 4
  %v10676 = vrot.slane %v9018, 5
  %v10677 = vsel %vm4504, %v10675, %v10676
  %v10678 = vrot.slane %v10676, 4
  %v10679 = vrot.slane %v9019, 5
  %v10680 = vsel %vm4504, %v10678, %v10679
  %v10681 = vrot.slane %v10367, 5
  %v10682 = vrot.slane %v10681, 4
  %v10683 = vrot.slane %v9021, 5
  %v10684 = vsel %vm4504, %v10682, %v10683
  %v10685 = vrot.slane %v10683, 4
  %v10686 = vrot.slane %v9022, 5
  %v10687 = vsel %vm4504, %v10685, %v10686
  %v10688 = vld [vmem:[%s2 + $0x200] sm:$0xf]
  %v10689 = vld [vmem:[%s2 + $0x204] sm:$0xf]
  %v10690 = vld [vmem:[%s2 + $0x208] sm:$0xf]
  %v10691 = vld [vmem:[%s2 + $0x20c] sm:$0xf]
  %v10692 = vld [vmem:[%s2 + $0x210] sm:$0xf]
  %v10693 = vld [vmem:[%s2 + $0x214] sm:$0xf]
  %v10694 = vld [vmem:[%s2 + $0x218] sm:$0xf]
  %v10695 = vld [vmem:[%s2 + $0x21c] sm:$0xf]
  %v10696 = vld [vmem:[%s2 + $0x220] sm:$0xf]
  %v10697 = vld [vmem:[%s2 + $0x224] sm:$0xf]
  %v10698 = vld [vmem:[%s2 + $0x228] sm:$0xf]
  %v10699 = vld [vmem:[%s2 + $0x22c] sm:$0xf]
  %v10700 = vld [vmem:[%s2 + $0x230] sm:$0xf]
  %v10701 = vld [vmem:[%s2 + $0x234] sm:$0xf]
  %v10702 = vld [vmem:[%s2 + $0x238] sm:$0xf]
  %v10703 = vld [vmem:[%s2 + $0x23c] sm:$0xf]
  %v10704 = vunpack.c.l.b16 %v10467
  %v10705 = vunpack.c.l.b16 %v10470
  %v10706 = vunpack.c.l.b16 %v10474
  %v10707 = vunpack.c.l.b16 %v10477
  %v10708 = vunpack.c.l.b16 %v10481
  %v10709 = vunpack.c.l.b16 %v10484
  %v10710 = vunpack.c.l.b16 %v10488
  %v10711 = vunpack.c.l.b16 %v10491
  %v10712 = vunpack.c.l.b16 %v10495
  %v10713 = vunpack.c.l.b16 %v10498
  %v10714 = vunpack.c.l.b16 %v10502
  %v10715 = vunpack.c.l.b16 %v10505
  %v10716 = vunpack.c.l.b16 %v10509
  %v10717 = vunpack.c.l.b16 %v10512
  %v10718 = vunpack.c.l.b16 %v10516
  %v10719 = vunpack.c.l.b16 %v10519
  %v10720 = vunpack.c.l.b16 %v10523
  %v10721 = vunpack.c.l.b16 %v10526
  %v10722 = vunpack.c.l.b16 %v10530
  %v10723 = vunpack.c.l.b16 %v10533
  %v10724 = vunpack.c.l.b16 %v10537
  %v10725 = vunpack.c.l.b16 %v10540
  %v10726 = vunpack.c.l.b16 %v10544
  %v10727 = vunpack.c.l.b16 %v10547
  %v10728 = vunpack.c.l.b16 %v10551
  %v10729 = vunpack.c.l.b16 %v10554
  %v10730 = vunpack.c.l.b16 %v10558
  %v10731 = vunpack.c.l.b16 %v10561
  %v10732 = vunpack.c.l.b16 %v10565
  %v10733 = vunpack.c.l.b16 %v10568
  %v10734 = vunpack.c.l.b16 %v10572
  %v10735 = vunpack.c.l.b16 %v10575
  %v10736 = vunpack.c.l.b16 %v10579
  %v10737 = vunpack.c.l.b16 %v10582
  %v10738 = vunpack.c.l.b16 %v10586
  %v10739 = vunpack.c.l.b16 %v10589
  %v10740 = vunpack.c.l.b16 %v10593
  %v10741 = vunpack.c.l.b16 %v10596
  %v10742 = vunpack.c.l.b16 %v10600
  %v10743 = vunpack.c.l.b16 %v10603
  %v10744 = vunpack.c.l.b16 %v10607
  %v10745 = vunpack.c.l.b16 %v10610
  %v10746 = vunpack.c.l.b16 %v10614
  %v10747 = vunpack.c.l.b16 %v10617
  %v10748 = vunpack.c.l.b16 %v10621
  %v10749 = vunpack.c.l.b16 %v10624
  %v10750 = vunpack.c.l.b16 %v10628
  %v10751 = vunpack.c.l.b16 %v10631
  %v10752 = vunpack.c.l.b16 %v10635
  %v10753 = vunpack.c.l.b16 %v10638
  %v10754 = vunpack.c.l.b16 %v10642
  %v10755 = vunpack.c.l.b16 %v10645
  %v10756 = vunpack.c.l.b16 %v10649
  %v10757 = vunpack.c.l.b16 %v10652
  %v10758 = vunpack.c.l.b16 %v10656
  %v10759 = vunpack.c.l.b16 %v10659
  %v10760 = vunpack.c.l.b16 %v10663
  %v10761 = vunpack.c.l.b16 %v10666
  %v10762 = vunpack.c.l.b16 %v10670
  %v10763 = vunpack.c.l.b16 %v10673
  %v10764 = vunpack.c.l.b16 %v10677
  %v10765 = vunpack.c.l.b16 %v10680
  %v10766 = vunpack.c.l.b16 %v10684
  %v10767 = vunpack.c.l.b16 %v10687
  %v10768 = vpack.c.b16 %v10705, %v10704
  %v10769 = vpack.c.b16 %v10707, %v10706
  %v10770 = vpack.c.b16 %v10709, %v10708
  %v10771 = vpack.c.b16 %v10711, %v10710
  %v10772 = vpack.c.b16 %v10713, %v10712
  %v10773 = vpack.c.b16 %v10715, %v10714
  %v10774 = vpack.c.b16 %v10717, %v10716
  %v10775 = vpack.c.b16 %v10719, %v10718
  %v10776 = vpack.c.b16 %v10721, %v10720
  %v10777 = vpack.c.b16 %v10723, %v10722
  %v10778 = vpack.c.b16 %v10725, %v10724
  %v10779 = vpack.c.b16 %v10727, %v10726
  %v10780 = vpack.c.b16 %v10729, %v10728
  %v10781 = vpack.c.b16 %v10731, %v10730
  %v10782 = vpack.c.b16 %v10733, %v10732
  %v10783 = vpack.c.b16 %v10735, %v10734
  %v10784 = vpack.c.b16 %v10737, %v10736
  %v10785 = vpack.c.b16 %v10739, %v10738
  %v10786 = vpack.c.b16 %v10741, %v10740
  %v10787 = vpack.c.b16 %v10743, %v10742
  %v10788 = vpack.c.b16 %v10745, %v10744
  %v10789 = vpack.c.b16 %v10747, %v10746
  %v10790 = vpack.c.b16 %v10749, %v10748
  %v10791 = vpack.c.b16 %v10751, %v10750
  %v10792 = vpack.c.b16 %v10753, %v10752
  %v10793 = vpack.c.b16 %v10755, %v10754
  %v10794 = vpack.c.b16 %v10757, %v10756
  %v10795 = vpack.c.b16 %v10759, %v10758
  %v10796 = vpack.c.b16 %v10761, %v10760
  %v10797 = vpack.c.b16 %v10763, %v10762
  %v10798 = vpack.c.b16 %v10765, %v10764
  %v10799 = vpack.c.b16 %v10767, %v10766
  %v10848 = vunpack.c.l.b16 %v10688
  %v10849 = vunpack.c.l.b16 %v10689
  %v10850 = vunpack.c.l.b16 %v10690
  %v10851 = vunpack.c.l.b16 %v10691
  %v10852 = vunpack.c.l.b16 %v10692
  %v10853 = vunpack.c.l.b16 %v10693
  %v10854 = vunpack.c.l.b16 %v10694
  %v10855 = vunpack.c.l.b16 %v10695
  %v10856 = vunpack.c.l.b16 %v10696
  %v10857 = vunpack.c.l.b16 %v10697
  %v10858 = vunpack.c.l.b16 %v10698
  %v10859 = vunpack.c.l.b16 %v10699
  %v10860 = vunpack.c.l.b16 %v10700
  %v10861 = vunpack.c.l.b16 %v10701
  %v10862 = vunpack.c.l.b16 %v10702
  %v10863 = vunpack.c.l.b16 %v10703
  %v10864 = vpack.c.b16 %v10849, %v10848
  %v10865 = vpack.c.b16 %v10851, %v10850
  %v10866 = vpack.c.b16 %v10853, %v10852
  %v10867 = vpack.c.b16 %v10855, %v10854
  %v10868 = vpack.c.b16 %v10857, %v10856
  %v10869 = vpack.c.b16 %v10859, %v10858
  %v10870 = vpack.c.b16 %v10861, %v10860
  %v10871 = vpack.c.b16 %v10863, %v10862
  %10880 = vmatprep.subr.bf16.mxu0 0
  %10881 = vmatpush1.bf16.msra.mxu0 %v10864
  %10882 = vmatprep.subr.bf16.mxu0 0
  %10883 = vmatpush1.bf16.msra.mxu0 %v10865
  %10884 = vmatprep.subr.bf16.mxu0 0
  %10885 = vmatpush1.bf16.msra.mxu0 %v10866
  %10886 = vmatprep.subr.bf16.mxu0 0
  %10887 = vmatpush1.bf16.msra.mxu0 %v10867
  %10888 = vmatprep.subr.bf16.mxu0 0
  %10889 = vmatpush1.bf16.msra.mxu0 %v10868
  %10890 = vmatprep.subr.bf16.mxu0 0
  %10891 = vmatpush1.bf16.msra.mxu0 %v10869
  %10892 = vmatprep.subr.bf16.mxu0 0
  %10893 = vmatpush1.bf16.msra.mxu0 %v10870
  %10894 = vmatprep.subr.bf16.mxu0 0
  %10895 = vmatpush1.bf16.msra.mxu0 %v10871
  %10896 = vmatprep.subr.bf16.mxu0 0
  %10897 = vmatpush1.bf16.msra.mxu0 0
  %10898 = vmatprep.subr.bf16.mxu0 0
  %10899 = vmatpush1.bf16.msra.mxu0 0
  %10900 = vmatprep.subr.bf16.mxu0 0
  %10901 = vmatpush1.bf16.msra.mxu0 0
  %10902 = vmatprep.subr.bf16.mxu0 0
  %10903 = vmatpush1.bf16.msra.mxu0 0
  %10904 = vmatprep.subr.bf16.mxu0 0
  %10905 = vmatpush1.bf16.msra.mxu0 0
  %10906 = vmatprep.subr.bf16.mxu0 0
  %10907 = vmatpush1.bf16.msra.mxu0 0
  %10908 = vmatprep.subr.bf16.mxu0 0
  %10909 = vmatpush1.bf16.msra.mxu0 0
  %10910 = vmatprep.subr.bf16.mxu0 0
  %10911 = vmatpush1.bf16.msra.mxu0 0
  %10912 = vmatprep.mubr.bf16.mxu0 0
  %10913 = vmatmul.mubr.bf16.gmra.mrb[0].mxu0 %v10768
  %v10914 = vpop.f32.mrb[0].mxu0
  %v10915 = vadd.f32 0.0, %v10914
  %v10916 = vpop.f32.mrb[0].mxu0
  %v10917 = vpop.f32.mrb[0].mxu0
  %v10918 = vadd.f32 0.0, %v10917
  %v10919 = vpop.f32.mrb[0].mxu0
  %10920 = vmatprep.mubr.bf16.mxu0 0
  %10921 = vmatmul.mubr.bf16.gmra.mrb[0].mxu0 %v10769
  %v10922 = vpop.f32.mrb[0].mxu0
  %v10923 = vadd.f32 0.0, %v10922
  %v10924 = vpop.f32.mrb[0].mxu0
  %v10925 = vpop.f32.mrb[0].mxu0
  %v10926 = vadd.f32 0.0, %v10925
  %v10927 = vpop.f32.mrb[0].mxu0
  %10928 = vmatprep.mubr.bf16.mxu0 0
  %10929 = vmatmul.mubr.bf16.gmra.mrb[0].mxu0 %v10770
  %v10930 = vpop.f32.mrb[0].mxu0
  %v10931 = vadd.f32 0.0, %v10930
  %v10932 = vpop.f32.mrb[0].mxu0
  %v10933 = vpop.f32.mrb[0].mxu0
  %v10934 = vadd.f32 0.0, %v10933
  %v10935 = vpop.f32.mrb[0].mxu0
  %10936 = vmatprep.mubr.bf16.mxu0 0
  %10937 = vmatmul.mubr.bf16.gmra.mrb[0].mxu0 %v10771
  %v10938 = vpop.f32.mrb[0].mxu0
  %v10939 = vadd.f32 0.0, %v10938
  %v10940 = vpop.f32.mrb[0].mxu0
  %v10941 = vpop.f32.mrb[0].mxu0
  %v10942 = vadd.f32 0.0, %v10941
  %v10943 = vpop.f32.mrb[0].mxu0
  %10944 = vmatprep.mubr.bf16.mxu0 0
  %10945 = vmatmul.mubr.bf16.gmra.mrb[0].mxu0 %v10772
  %v10946 = vpop.f32.mrb[0].mxu0
  %v10947 = vadd.f32 0.0, %v10946
  %v10948 = vpop.f32.mrb[0].mxu0
  %v10949 = vpop.f32.mrb[0].mxu0
  %v10950 = vadd.f32 0.0, %v10949
  %v10951 = vpop.f32.mrb[0].mxu0
  %10952 = vmatprep.mubr.bf16.mxu0 0
  %10953 = vmatmul.mubr.bf16.gmra.mrb[0].mxu0 %v10773
  %v10954 = vpop.f32.mrb[0].mxu0
  %v10955 = vadd.f32 0.0, %v10954
  %v10956 = vpop.f32.mrb[0].mxu0
  %v10957 = vpop.f32.mrb[0].mxu0
  %v10958 = vadd.f32 0.0, %v10957
  %v10959 = vpop.f32.mrb[0].mxu0
  %10960 = vmatprep.mubr.bf16.mxu0 0
  %10961 = vmatmul.mubr.bf16.gmra.mrb[0].mxu0 %v10774
  %v10962 = vpop.f32.mrb[0].mxu0
  %v10963 = vadd.f32 0.0, %v10962
  %v10964 = vpop.f32.mrb[0].mxu0
  %v10965 = vpop.f32.mrb[0].mxu0
  %v10966 = vadd.f32 0.0, %v10965
  %v10967 = vpop.f32.mrb[0].mxu0
  %10968 = vmatprep.mubr.bf16.mxu0 0
  %10969 = vmatmul.mubr.bf16.gmra.mrb[0].mxu0 %v10775
  %v10970 = vpop.f32.mrb[0].mxu0
  %v10971 = vadd.f32 0.0, %v10970
  %v10972 = vpop.f32.mrb[0].mxu0
  %v10973 = vpop.f32.mrb[0].mxu0
  %v10974 = vadd.f32 0.0, %v10973
  %v10975 = vpop.f32.mrb[0].mxu0
  %10976 = vmatprep.mubr.bf16.mxu0 0
  %10977 = vmatmul.mubr.bf16.gmra.mrb[0].mxu0 %v10776
  %v10978 = vpop.f32.mrb[0].mxu0
  %v10979 = vadd.f32 0.0, %v10978
  %v10980 = vpop.f32.mrb[0].mxu0
  %v10981 = vpop.f32.mrb[0].mxu0
  %v10982 = vadd.f32 0.0, %v10981
  %v10983 = vpop.f32.mrb[0].mxu0
  %10984 = vmatprep.mubr.bf16.mxu0 0
  %10985 = vmatmul.mubr.bf16.gmra.mrb[0].mxu0 %v10777
  %v10986 = vpop.f32.mrb[0].mxu0
  %v10987 = vadd.f32 0.0, %v10986
  %v10988 = vpop.f32.mrb[0].mxu0
  %v10989 = vpop.f32.mrb[0].mxu0
  %v10990 = vadd.f32 0.0, %v10989
  %v10991 = vpop.f32.mrb[0].mxu0
  %10992 = vmatprep.mubr.bf16.mxu0 0
  %10993 = vmatmul.mubr.bf16.gmra.mrb[0].mxu0 %v10778
  %v10994 = vpop.f32.mrb[0].mxu0
  %v10995 = vadd.f32 0.0, %v10994
  %v10996 = vpop.f32.mrb[0].mxu0
  %v10997 = vpop.f32.mrb[0].mxu0
  %v10998 = vadd.f32 0.0, %v10997
  %v10999 = vpop.f32.mrb[0].mxu0
  %11000 = vmatprep.mubr.bf16.mxu0 0
  %11001 = vmatmul.mubr.bf16.gmra.mrb[0].mxu0 %v10779
  %v11002 = vpop.f32.mrb[0].mxu0
  %v11003 = vadd.f32 0.0, %v11002
  %v11004 = vpop.f32.mrb[0].mxu0
  %v11005 = vpop.f32.mrb[0].mxu0
  %v11006 = vadd.f32 0.0, %v11005
  %v11007 = vpop.f32.mrb[0].mxu0
  %11008 = vmatprep.mubr.bf16.mxu0 0
  %11009 = vmatmul.mubr.bf16.gmra.mrb[0].mxu0 %v10780
  %v11010 = vpop.f32.mrb[0].mxu0
  %v11011 = vadd.f32 0.0, %v11010
  %v11012 = vpop.f32.mrb[0].mxu0
  %v11013 = vpop.f32.mrb[0].mxu0
  %v11014 = vadd.f32 0.0, %v11013
  %v11015 = vpop.f32.mrb[0].mxu0
  %11016 = vmatprep.mubr.bf16.mxu0 0
  %11017 = vmatmul.mubr.bf16.gmra.mrb[0].mxu0 %v10781
  %v11018 = vpop.f32.mrb[0].mxu0
  %v11019 = vadd.f32 0.0, %v11018
  %v11020 = vpop.f32.mrb[0].mxu0
  %v11021 = vpop.f32.mrb[0].mxu0
  %v11022 = vadd.f32 0.0, %v11021
  %v11023 = vpop.f32.mrb[0].mxu0
  %11024 = vmatprep.mubr.bf16.mxu0 0
  %11025 = vmatmul.mubr.bf16.gmra.mrb[0].mxu0 %v10782
  %v11026 = vpop.f32.mrb[0].mxu0
  %v11027 = vadd.f32 0.0, %v11026
  %v11028 = vpop.f32.mrb[0].mxu0
  %v11029 = vpop.f32.mrb[0].mxu0
  %v11030 = vadd.f32 0.0, %v11029
  %v11031 = vpop.f32.mrb[0].mxu0
  %11032 = vmatprep.mubr.bf16.mxu0 0
  %11033 = vmatmul.mubr.bf16.gmra.mrb[0].mxu0 %v10783
  %v11034 = vpop.f32.mrb[0].mxu0
  %v11035 = vadd.f32 0.0, %v11034
  %v11036 = vpop.f32.mrb[0].mxu0
  %v11037 = vpop.f32.mrb[0].mxu0
  %v11038 = vadd.f32 0.0, %v11037
  %v11039 = vpop.f32.mrb[0].mxu0
  %11040 = vmatprep.mubr.bf16.mxu0 0
  %11041 = vmatmul.mubr.bf16.gmra.mrb[0].mxu0 %v10784
  %v11042 = vpop.f32.mrb[0].mxu0
  %v11043 = vadd.f32 0.0, %v11042
  %v11044 = vpop.f32.mrb[0].mxu0
  %v11045 = vpop.f32.mrb[0].mxu0
  %v11046 = vadd.f32 0.0, %v11045
  %v11047 = vpop.f32.mrb[0].mxu0
  %11048 = vmatprep.mubr.bf16.mxu0 0
  %11049 = vmatmul.mubr.bf16.gmra.mrb[0].mxu0 %v10785
  %v11050 = vpop.f32.mrb[0].mxu0
  %v11051 = vadd.f32 0.0, %v11050
  %v11052 = vpop.f32.mrb[0].mxu0
  %v11053 = vpop.f32.mrb[0].mxu0
  %v11054 = vadd.f32 0.0, %v11053
  %v11055 = vpop.f32.mrb[0].mxu0
  %11056 = vmatprep.mubr.bf16.mxu0 0
  %11057 = vmatmul.mubr.bf16.gmra.mrb[0].mxu0 %v10786
  %v11058 = vpop.f32.mrb[0].mxu0
  %v11059 = vadd.f32 0.0, %v11058
  %v11060 = vpop.f32.mrb[0].mxu0
  %v11061 = vpop.f32.mrb[0].mxu0
  %v11062 = vadd.f32 0.0, %v11061
  %v11063 = vpop.f32.mrb[0].mxu0
  %11064 = vmatprep.mubr.bf16.mxu0 0
  %11065 = vmatmul.mubr.bf16.gmra.mrb[0].mxu0 %v10787
  %v11066 = vpop.f32.mrb[0].mxu0
  %v11067 = vadd.f32 0.0, %v11066
  %v11068 = vpop.f32.mrb[0].mxu0
  %v11069 = vpop.f32.mrb[0].mxu0
  %v11070 = vadd.f32 0.0, %v11069
  %v11071 = vpop.f32.mrb[0].mxu0
  %11072 = vmatprep.mubr.bf16.mxu0 0
  %11073 = vmatmul.mubr.bf16.gmra.mrb[0].mxu0 %v10788
  %v11074 = vpop.f32.mrb[0].mxu0
  %v11075 = vadd.f32 0.0, %v11074
  %v11076 = vpop.f32.mrb[0].mxu0
  %v11077 = vpop.f32.mrb[0].mxu0
  %v11078 = vadd.f32 0.0, %v11077
  %v11079 = vpop.f32.mrb[0].mxu0
  %11080 = vmatprep.mubr.bf16.mxu0 0
  %11081 = vmatmul.mubr.bf16.gmra.mrb[0].mxu0 %v10789
  %v11082 = vpop.f32.mrb[0].mxu0
  %v11083 = vadd.f32 0.0, %v11082
  %v11084 = vpop.f32.mrb[0].mxu0
  %v11085 = vpop.f32.mrb[0].mxu0
  %v11086 = vadd.f32 0.0, %v11085
  %v11087 = vpop.f32.mrb[0].mxu0
  %11088 = vmatprep.mubr.bf16.mxu0 0
  %11089 = vmatmul.mubr.bf16.gmra.mrb[0].mxu0 %v10790
  %v11090 = vpop.f32.mrb[0].mxu0
  %v11091 = vadd.f32 0.0, %v11090
  %v11092 = vpop.f32.mrb[0].mxu0
  %v11093 = vpop.f32.mrb[0].mxu0
  %v11094 = vadd.f32 0.0, %v11093
  %v11095 = vpop.f32.mrb[0].mxu0
  %11096 = vmatprep.mubr.bf16.mxu0 0
  %11097 = vmatmul.mubr.bf16.gmra.mrb[0].mxu0 %v10791
  %v11098 = vpop.f32.mrb[0].mxu0
  %v11099 = vadd.f32 0.0, %v11098
  %v11100 = vpop.f32.mrb[0].mxu0
  %v11101 = vpop.f32.mrb[0].mxu0
  %v11102 = vadd.f32 0.0, %v11101
  %v11103 = vpop.f32.mrb[0].mxu0
  %11104 = vmatprep.mubr.bf16.mxu0 0
  %11105 = vmatmul.mubr.bf16.gmra.mrb[0].mxu0 %v10792
  %v11106 = vpop.f32.mrb[0].mxu0
  %v11107 = vadd.f32 0.0, %v11106
  %v11108 = vpop.f32.mrb[0].mxu0
  %v11109 = vpop.f32.mrb[0].mxu0
  %v11110 = vadd.f32 0.0, %v11109
  %v11111 = vpop.f32.mrb[0].mxu0
  %11112 = vmatprep.mubr.bf16.mxu0 0
  %11113 = vmatmul.mubr.bf16.gmra.mrb[0].mxu0 %v10793
  %v11114 = vpop.f32.mrb[0].mxu0
  %v11115 = vadd.f32 0.0, %v11114
  %v11116 = vpop.f32.mrb[0].mxu0
  %v11117 = vpop.f32.mrb[0].mxu0
  %v11118 = vadd.f32 0.0, %v11117
  %v11119 = vpop.f32.mrb[0].mxu0
  %11120 = vmatprep.mubr.bf16.mxu0 0
  %11121 = vmatmul.mubr.bf16.gmra.mrb[0].mxu0 %v10794
  %v11122 = vpop.f32.mrb[0].mxu0
  %v11123 = vadd.f32 0.0, %v11122
  %v11124 = vpop.f32.mrb[0].mxu0
  %v11125 = vpop.f32.mrb[0].mxu0
  %v11126 = vadd.f32 0.0, %v11125
  %v11127 = vpop.f32.mrb[0].mxu0
  %11128 = vmatprep.mubr.bf16.mxu0 0
  %11129 = vmatmul.mubr.bf16.gmra.mrb[0].mxu0 %v10795
  %v11130 = vpop.f32.mrb[0].mxu0
  %v11131 = vadd.f32 0.0, %v11130
  %v11132 = vpop.f32.mrb[0].mxu0
  %v11133 = vpop.f32.mrb[0].mxu0
  %v11134 = vadd.f32 0.0, %v11133
  %v11135 = vpop.f32.mrb[0].mxu0
  %11136 = vmatprep.mubr.bf16.mxu0 0
  %11137 = vmatmul.mubr.bf16.gmra.mrb[0].mxu0 %v10796
  %v11138 = vpop.f32.mrb[0].mxu0
  %v11139 = vadd.f32 0.0, %v11138
  %v11140 = vpop.f32.mrb[0].mxu0
  %v11141 = vpop.f32.mrb[0].mxu0
  %v11142 = vadd.f32 0.0, %v11141
  %v11143 = vpop.f32.mrb[0].mxu0
  %11144 = vmatprep.mubr.bf16.mxu0 0
  %11145 = vmatmul.mubr.bf16.gmra.mrb[0].mxu0 %v10797
  %v11146 = vpop.f32.mrb[0].mxu0
  %v11147 = vadd.f32 0.0, %v11146
  %v11148 = vpop.f32.mrb[0].mxu0
  %v11149 = vpop.f32.mrb[0].mxu0
  %v11150 = vadd.f32 0.0, %v11149
  %v11151 = vpop.f32.mrb[0].mxu0
  %11152 = vmatprep.mubr.bf16.mxu0 0
  %11153 = vmatmul.mubr.bf16.gmra.mrb[0].mxu0 %v10798
  %v11154 = vpop.f32.mrb[0].mxu0
  %v11155 = vadd.f32 0.0, %v11154
  %v11156 = vpop.f32.mrb[0].mxu0
  %v11157 = vpop.f32.mrb[0].mxu0
  %v11158 = vadd.f32 0.0, %v11157
  %v11159 = vpop.f32.mrb[0].mxu0
  %11160 = vmatprep.mubr.bf16.mxu0 0
  %11161 = vmatmul.mubr.bf16.gmra.mrb[0].mxu0 %v10799
  %v11162 = vpop.f32.mrb[0].mxu0
  %v11163 = vadd.f32 0.0, %v11162
  %v11164 = vpop.f32.mrb[0].mxu0
  %v11165 = vpop.f32.mrb[0].mxu0
  %v11166 = vadd.f32 0.0, %v11165
  %v11167 = vpop.f32.mrb[0].mxu0
  %11168 = vdwg.mxu0
  %v11169 = vadd.f32 %v10272, %v10915
  %v11170 = vadd.f32 %v10273, %v10918
  %v11171 = vadd.f32 %v10274, %v10923
  %v11172 = vadd.f32 %v10275, %v10926
  %v11173 = vadd.f32 %v10276, %v10931
  %v11174 = vadd.f32 %v10277, %v10934
  %v11175 = vadd.f32 %v10278, %v10939
  %v11176 = vadd.f32 %v10279, %v10942
  %v11177 = vadd.f32 %v10280, %v10947
  %v11178 = vadd.f32 %v10281, %v10950
  %v11179 = vadd.f32 %v10282, %v10955
  %v11180 = vadd.f32 %v10283, %v10958
  %v11181 = vadd.f32 %v10284, %v10963
  %v11182 = vadd.f32 %v10285, %v10966
  %v11183 = vadd.f32 %v10286, %v10971
  %v11184 = vadd.f32 %v10287, %v10974
  %v11185 = vadd.f32 %v10288, %v10979
  %v11186 = vadd.f32 %v10289, %v10982
  %v11187 = vadd.f32 %v10290, %v10987
  %v11188 = vadd.f32 %v10291, %v10990
  %v11189 = vadd.f32 %v10292, %v10995
  %v11190 = vadd.f32 %v10293, %v10998
  %v11191 = vadd.f32 %v10294, %v11003
  %v11192 = vadd.f32 %v10295, %v11006
  %v11193 = vadd.f32 %v10296, %v11011
  %v11194 = vadd.f32 %v10297, %v11014
  %v11195 = vadd.f32 %v10298, %v11019
  %v11196 = vadd.f32 %v10299, %v11022
  %v11197 = vadd.f32 %v10300, %v11027
  %v11198 = vadd.f32 %v10301, %v11030
  %v11199 = vadd.f32 %v10302, %v11035
  %v11200 = vadd.f32 %v10303, %v11038
  %v11201 = vadd.f32 %v10304, %v11043
  %v11202 = vadd.f32 %v10305, %v11046
  %v11203 = vadd.f32 %v10306, %v11051
  %v11204 = vadd.f32 %v10307, %v11054
  %v11205 = vadd.f32 %v10308, %v11059
  %v11206 = vadd.f32 %v10309, %v11062
  %v11207 = vadd.f32 %v10310, %v11067
  %v11208 = vadd.f32 %v10311, %v11070
  %v11209 = vadd.f32 %v10312, %v11075
  %v11210 = vadd.f32 %v10313, %v11078
  %v11211 = vadd.f32 %v10314, %v11083
  %v11212 = vadd.f32 %v10315, %v11086
  %v11213 = vadd.f32 %v10316, %v11091
  %v11214 = vadd.f32 %v10317, %v11094
  %v11215 = vadd.f32 %v10318, %v11099
  %v11216 = vadd.f32 %v10319, %v11102
  %v11217 = vadd.f32 %v10320, %v11107
  %v11218 = vadd.f32 %v10321, %v11110
  %v11219 = vadd.f32 %v10322, %v11115
  %v11220 = vadd.f32 %v10323, %v11118
  %v11221 = vadd.f32 %v10324, %v11123
  %v11222 = vadd.f32 %v10325, %v11126
  %v11223 = vadd.f32 %v10326, %v11131
  %v11224 = vadd.f32 %v10327, %v11134
  %v11225 = vadd.f32 %v10328, %v11139
  %v11226 = vadd.f32 %v10329, %v11142
  %v11227 = vadd.f32 %v10330, %v11147
  %v11228 = vadd.f32 %v10331, %v11150
  %v11229 = vadd.f32 %v10332, %v11155
  %v11230 = vadd.f32 %v10333, %v11158
  %v11231 = vadd.f32 %v10334, %v11163
  %v11232 = vadd.f32 %v10335, %v11166
  %v11233 = vadd.f32 %v11169, %v11170
  %v11234 = vadd.f32 %v11233, %v11171
  %v11235 = vadd.f32 %v11234, %v11172
  %v11236 = vadd.f32 %v11235, %v11173
  %v11237 = vadd.f32 %v11236, %v11174
  %v11238 = vadd.f32 %v11237, %v11175
  %v11239 = vadd.f32 %v11238, %v11176
  %v11240 = vadd.f32 %v11239, %v11177
  %v11241 = vadd.f32 %v11240, %v11178
  %v11242 = vadd.f32 %v11241, %v11179
  %v11243 = vadd.f32 %v11242, %v11180
  %v11244 = vadd.f32 %v11243, %v11181
  %v11245 = vadd.f32 %v11244, %v11182
  %v11246 = vadd.f32 %v11245, %v11183
  %v11247 = vadd.f32 %v11246, %v11184
  %v11248 = vadd.f32 %v11247, %v11185
  %v11249 = vadd.f32 %v11248, %v11186
  %v11250 = vadd.f32 %v11249, %v11187
  %v11251 = vadd.f32 %v11250, %v11188
  %v11252 = vadd.f32 %v11251, %v11189
  %v11253 = vadd.f32 %v11252, %v11190
  %v11254 = vadd.f32 %v11253, %v11191
  %v11255 = vadd.f32 %v11254, %v11192
  %v11256 = vadd.f32 %v11255, %v11193
  %v11257 = vadd.f32 %v11256, %v11194
  %v11258 = vadd.f32 %v11257, %v11195
  %v11259 = vadd.f32 %v11258, %v11196
  %v11260 = vadd.f32 %v11259, %v11197
  %v11261 = vadd.f32 %v11260, %v11198
  %v11262 = vadd.f32 %v11261, %v11199
  %v11263 = vadd.f32 %v11262, %v11200
  %v11264 = vadd.f32 %v11263, %v11201
  %v11265 = vadd.f32 %v11264, %v11202
  %v11266 = vadd.f32 %v11265, %v11203
  %v11267 = vadd.f32 %v11266, %v11204
  %v11268 = vadd.f32 %v11267, %v11205
  %v11269 = vadd.f32 %v11268, %v11206
  %v11270 = vadd.f32 %v11269, %v11207
  %v11271 = vadd.f32 %v11270, %v11208
  %v11272 = vadd.f32 %v11271, %v11209
  %v11273 = vadd.f32 %v11272, %v11210
  %v11274 = vadd.f32 %v11273, %v11211
  %v11275 = vadd.f32 %v11274, %v11212
  %v11276 = vadd.f32 %v11275, %v11213
  %v11277 = vadd.f32 %v11276, %v11214
  %v11278 = vadd.f32 %v11277, %v11215
  %v11279 = vadd.f32 %v11278, %v11216
  %v11280 = vadd.f32 %v11279, %v11217
  %v11281 = vadd.f32 %v11280, %v11218
  %v11282 = vadd.f32 %v11281, %v11219
  %v11283 = vadd.f32 %v11282, %v11220
  %v11284 = vadd.f32 %v11283, %v11221
  %v11285 = vadd.f32 %v11284, %v11222
  %v11286 = vadd.f32 %v11285, %v11223
  %v11287 = vadd.f32 %v11286, %v11224
  %v11288 = vadd.f32 %v11287, %v11225
  %v11289 = vadd.f32 %v11288, %v11226
  %v11290 = vadd.f32 %v11289, %v11227
  %v11291 = vadd.f32 %v11290, %v11228
  %v11292 = vadd.f32 %v11291, %v11229
  %v11293 = vadd.f32 %v11292, %v11230
  %v11294 = vadd.f32 %v11293, %v11231
  %v11295 = vadd.f32 %v11294, %v11232
  %v11296 = vrot.slane %v11295, 4
  %v11297 = vadd.f32 %v11295, %v11296
  %v11298 = vrot.slane %v11297, 2
  %v11299 = vadd.f32 %v11297, %v11298
  %v11300 = vrot.slane %v11299, 1
  %v11301 = vadd.f32 %v11299, %v11300
  %v11302 = vmul.f32 %v11301, %v545
  %v11303 = vsub.f32 %v11169, %v11302
  %v11304 = vsub.f32 %v11170, %v11302
  %v11305 = vsub.f32 %v11171, %v11302
  %v11306 = vsub.f32 %v11172, %v11302
  %v11307 = vsub.f32 %v11173, %v11302
  %v11308 = vsub.f32 %v11174, %v11302
  %v11309 = vsub.f32 %v11175, %v11302
  %v11310 = vsub.f32 %v11176, %v11302
  %v11311 = vsub.f32 %v11177, %v11302
  %v11312 = vsub.f32 %v11178, %v11302
  %v11313 = vsub.f32 %v11179, %v11302
  %v11314 = vsub.f32 %v11180, %v11302
  %v11315 = vsub.f32 %v11181, %v11302
  %v11316 = vsub.f32 %v11182, %v11302
  %v11317 = vsub.f32 %v11183, %v11302
  %v11318 = vsub.f32 %v11184, %v11302
  %v11319 = vsub.f32 %v11185, %v11302
  %v11320 = vsub.f32 %v11186, %v11302
  %v11321 = vsub.f32 %v11187, %v11302
  %v11322 = vsub.f32 %v11188, %v11302
  %v11323 = vsub.f32 %v11189, %v11302
  %v11324 = vsub.f32 %v11190, %v11302
  %v11325 = vsub.f32 %v11191, %v11302
  %v11326 = vsub.f32 %v11192, %v11302
  %v11327 = vsub.f32 %v11193, %v11302
  %v11328 = vsub.f32 %v11194, %v11302
  %v11329 = vsub.f32 %v11195, %v11302
  %v11330 = vsub.f32 %v11196, %v11302
  %v11331 = vsub.f32 %v11197, %v11302
  %v11332 = vsub.f32 %v11198, %v11302
  %v11333 = vsub.f32 %v11199, %v11302
  %v11334 = vsub.f32 %v11200, %v11302
  %v11335 = vsub.f32 %v11201, %v11302
  %v11336 = vsub.f32 %v11202, %v11302
  %v11337 = vsub.f32 %v11203, %v11302
  %v11338 = vsub.f32 %v11204, %v11302
  %v11339 = vsub.f32 %v11205, %v11302
  %v11340 = vsub.f32 %v11206, %v11302
  %v11341 = vsub.f32 %v11207, %v11302
  %v11342 = vsub.f32 %v11208, %v11302
  %v11343 = vsub.f32 %v11209, %v11302
  %v11344 = vsub.f32 %v11210, %v11302
  %v11345 = vsub.f32 %v11211, %v11302
  %v11346 = vsub.f32 %v11212, %v11302
  %v11347 = vsub.f32 %v11213, %v11302
  %v11348 = vsub.f32 %v11214, %v11302
  %v11349 = vsub.f32 %v11215, %v11302
  %v11350 = vsub.f32 %v11216, %v11302
  %v11351 = vsub.f32 %v11217, %v11302
  %v11352 = vsub.f32 %v11218, %v11302
  %v11353 = vsub.f32 %v11219, %v11302
  %v11354 = vsub.f32 %v11220, %v11302
  %v11355 = vsub.f32 %v11221, %v11302
  %v11356 = vsub.f32 %v11222, %v11302
  %v11357 = vsub.f32 %v11223, %v11302
  %v11358 = vsub.f32 %v11224, %v11302
  %v11359 = vsub.f32 %v11225, %v11302
  %v11360 = vsub.f32 %v11226, %v11302
  %v11361 = vsub.f32 %v11227, %v11302
  %v11362 = vsub.f32 %v11228, %v11302
  %v11363 = vsub.f32 %v11229, %v11302
  %v11364 = vsub.f32 %v11230, %v11302
  %v11365 = vsub.f32 %v11231, %v11302
  %v11366 = vsub.f32 %v11232, %v11302
  %v11367 = vmul.f32 %v11303, %v11303
  %v11368 = vmul.f32 %v11304, %v11304
  %v11369 = vmul.f32 %v11305, %v11305
  %v11370 = vmul.f32 %v11306, %v11306
  %v11371 = vmul.f32 %v11307, %v11307
  %v11372 = vmul.f32 %v11308, %v11308
  %v11373 = vmul.f32 %v11309, %v11309
  %v11374 = vmul.f32 %v11310, %v11310
  %v11375 = vmul.f32 %v11311, %v11311
  %v11376 = vmul.f32 %v11312, %v11312
  %v11377 = vmul.f32 %v11313, %v11313
  %v11378 = vmul.f32 %v11314, %v11314
  %v11379 = vmul.f32 %v11315, %v11315
  %v11380 = vmul.f32 %v11316, %v11316
  %v11381 = vmul.f32 %v11317, %v11317
  %v11382 = vmul.f32 %v11318, %v11318
  %v11383 = vmul.f32 %v11319, %v11319
  %v11384 = vmul.f32 %v11320, %v11320
  %v11385 = vmul.f32 %v11321, %v11321
  %v11386 = vmul.f32 %v11322, %v11322
  %v11387 = vmul.f32 %v11323, %v11323
  %v11388 = vmul.f32 %v11324, %v11324
  %v11389 = vmul.f32 %v11325, %v11325
  %v11390 = vmul.f32 %v11326, %v11326
  %v11391 = vmul.f32 %v11327, %v11327
  %v11392 = vmul.f32 %v11328, %v11328
  %v11393 = vmul.f32 %v11329, %v11329
  %v11394 = vmul.f32 %v11330, %v11330
  %v11395 = vmul.f32 %v11331, %v11331
  %v11396 = vmul.f32 %v11332, %v11332
  %v11397 = vmul.f32 %v11333, %v11333
  %v11398 = vmul.f32 %v11334, %v11334
  %v11399 = vmul.f32 %v11335, %v11335
  %v11400 = vmul.f32 %v11336, %v11336
  %v11401 = vmul.f32 %v11337, %v11337
  %v11402 = vmul.f32 %v11338, %v11338
  %v11403 = vmul.f32 %v11339, %v11339
  %v11404 = vmul.f32 %v11340, %v11340
  %v11405 = vmul.f32 %v11341, %v11341
  %v11406 = vmul.f32 %v11342, %v11342
  %v11407 = vmul.f32 %v11343, %v11343
  %v11408 = vmul.f32 %v11344, %v11344
  %v11409 = vmul.f32 %v11345, %v11345
  %v11410 = vmul.f32 %v11346, %v11346
  %v11411 = vmul.f32 %v11347, %v11347
  %v11412 = vmul.f32 %v11348, %v11348
  %v11413 = vmul.f32 %v11349, %v11349
  %v11414 = vmul.f32 %v11350, %v11350
  %v11415 = vmul.f32 %v11351, %v11351
  %v11416 = vmul.f32 %v11352, %v11352
  %v11417 = vmul.f32 %v11353, %v11353
  %v11418 = vmul.f32 %v11354, %v11354
  %v11419 = vmul.f32 %v11355, %v11355
  %v11420 = vmul.f32 %v11356, %v11356
  %v11421 = vmul.f32 %v11357, %v11357
  %v11422 = vmul.f32 %v11358, %v11358
  %v11423 = vmul.f32 %v11359, %v11359
  %v11424 = vmul.f32 %v11360, %v11360
  %v11425 = vmul.f32 %v11361, %v11361
  %v11426 = vmul.f32 %v11362, %v11362
  %v11427 = vmul.f32 %v11363, %v11363
  %v11428 = vmul.f32 %v11364, %v11364
  %v11429 = vmul.f32 %v11365, %v11365
  %v11430 = vmul.f32 %v11366, %v11366
  %v11431 = vadd.f32 %v11367, %v11368
  %v11432 = vadd.f32 %v11431, %v11369
  %v11433 = vadd.f32 %v11432, %v11370
  %v11434 = vadd.f32 %v11433, %v11371
  %v11435 = vadd.f32 %v11434, %v11372
  %v11436 = vadd.f32 %v11435, %v11373
  %v11437 = vadd.f32 %v11436, %v11374
  %v11438 = vadd.f32 %v11437, %v11375
  %v11439 = vadd.f32 %v11438, %v11376
  %v11440 = vadd.f32 %v11439, %v11377
  %v11441 = vadd.f32 %v11440, %v11378
  %v11442 = vadd.f32 %v11441, %v11379
  %v11443 = vadd.f32 %v11442, %v11380
  %v11444 = vadd.f32 %v11443, %v11381
  %v11445 = vadd.f32 %v11444, %v11382
  %v11446 = vadd.f32 %v11445, %v11383
  %v11447 = vadd.f32 %v11446, %v11384
  %v11448 = vadd.f32 %v11447, %v11385
  %v11449 = vadd.f32 %v11448, %v11386
  %v11450 = vadd.f32 %v11449, %v11387
  %v11451 = vadd.f32 %v11450, %v11388
  %v11452 = vadd.f32 %v11451, %v11389
  %v11453 = vadd.f32 %v11452, %v11390
  %v11454 = vadd.f32 %v11453, %v11391
  %v11455 = vadd.f32 %v11454, %v11392
  %v11456 = vadd.f32 %v11455, %v11393
  %v11457 = vadd.f32 %v11456, %v11394
  %v11458 = vadd.f32 %v11457, %v11395
  %v11459 = vadd.f32 %v11458, %v11396
  %v11460 = vadd.f32 %v11459, %v11397
  %v11461 = vadd.f32 %v11460, %v11398
  %v11462 = vadd.f32 %v11461, %v11399
  %v11463 = vadd.f32 %v11462, %v11400
  %v11464 = vadd.f32 %v11463, %v11401
  %v11465 = vadd.f32 %v11464, %v11402
  %v11466 = vadd.f32 %v11465, %v11403
  %v11467 = vadd.f32 %v11466, %v11404
  %v11468 = vadd.f32 %v11467, %v11405
  %v11469 = vadd.f32 %v11468, %v11406
  %v11470 = vadd.f32 %v11469, %v11407
  %v11471 = vadd.f32 %v11470, %v11408
  %v11472 = vadd.f32 %v11471, %v11409
  %v11473 = vadd.f32 %v11472, %v11410
  %v11474 = vadd.f32 %v11473, %v11411
  %v11475 = vadd.f32 %v11474, %v11412
  %v11476 = vadd.f32 %v11475, %v11413
  %v11477 = vadd.f32 %v11476, %v11414
  %v11478 = vadd.f32 %v11477, %v11415
  %v11479 = vadd.f32 %v11478, %v11416
  %v11480 = vadd.f32 %v11479, %v11417
  %v11481 = vadd.f32 %v11480, %v11418
  %v11482 = vadd.f32 %v11481, %v11419
  %v11483 = vadd.f32 %v11482, %v11420
  %v11484 = vadd.f32 %v11483, %v11421
  %v11485 = vadd.f32 %v11484, %v11422
  %v11486 = vadd.f32 %v11485, %v11423
  %v11487 = vadd.f32 %v11486, %v11424
  %v11488 = vadd.f32 %v11487, %v11425
  %v11489 = vadd.f32 %v11488, %v11426
  %v11490 = vadd.f32 %v11489, %v11427
  %v11491 = vadd.f32 %v11490, %v11428
  %v11492 = vadd.f32 %v11491, %v11429
  %v11493 = vadd.f32 %v11492, %v11430
  %v11494 = vrot.slane %v11493, 4
  %v11495 = vadd.f32 %v11493, %v11494
  %v11496 = vrot.slane %v11495, 2
  %v11497 = vadd.f32 %v11495, %v11496
  %v11498 = vrot.slane %v11497, 1
  %v11499 = vadd.f32 %v11497, %v11498
  %v11500 = vmul.f32 %v11499, %v545
  %v11501 = vld [vmem:[%s5] sm:$0x1]
  %v11502 = vadd.f32 %v11500, 1e-05
  %v11503 = vrsqrt.pop %v11502
  %v11504 = vmul.f32 %v11501, %v11503
  %v11505 = vld [vmem:[%s6] sm:$0x1]
  %v11506 = vmul.f32 %v11302, %v11504
  %v11507 = vsub.f32 %v11505, %v11506
  %v11509 = vlaneseq
  %v11510 = vshrl.u32 %v11509, 7
  %v11511 = vsub.s32 0, %v11510
  %v11512 = vrot.slane %v11504, %v11511
  %v11514 = vmul.f32 %v11169, %v11512
  %v11515 = vmul.f32 %v11170, %v11512
  %v11516 = vmul.f32 %v11171, %v11512
  %v11517 = vmul.f32 %v11172, %v11512
  %v11518 = vmul.f32 %v11173, %v11512
  %v11519 = vmul.f32 %v11174, %v11512
  %v11520 = vmul.f32 %v11175, %v11512
  %v11521 = vmul.f32 %v11176, %v11512
  %v11522 = vmul.f32 %v11177, %v11512
  %v11523 = vmul.f32 %v11178, %v11512
  %v11524 = vmul.f32 %v11179, %v11512
  %v11525 = vmul.f32 %v11180, %v11512
  %v11526 = vmul.f32 %v11181, %v11512
  %v11527 = vmul.f32 %v11182, %v11512
  %v11528 = vmul.f32 %v11183, %v11512
  %v11529 = vmul.f32 %v11184, %v11512
  %v11530 = vmul.f32 %v11185, %v11512
  %v11531 = vmul.f32 %v11186, %v11512
  %v11532 = vmul.f32 %v11187, %v11512
  %v11533 = vmul.f32 %v11188, %v11512
  %v11534 = vmul.f32 %v11189, %v11512
  %v11535 = vmul.f32 %v11190, %v11512
  %v11536 = vmul.f32 %v11191, %v11512
  %v11537 = vmul.f32 %v11192, %v11512
  %v11538 = vmul.f32 %v11193, %v11512
  %v11539 = vmul.f32 %v11194, %v11512
  %v11540 = vmul.f32 %v11195, %v11512
  %v11541 = vmul.f32 %v11196, %v11512
  %v11542 = vmul.f32 %v11197, %v11512
  %v11543 = vmul.f32 %v11198, %v11512
  %v11544 = vmul.f32 %v11199, %v11512
  %v11545 = vmul.f32 %v11200, %v11512
  %v11546 = vmul.f32 %v11201, %v11512
  %v11547 = vmul.f32 %v11202, %v11512
  %v11548 = vmul.f32 %v11203, %v11512
  %v11549 = vmul.f32 %v11204, %v11512
  %v11550 = vmul.f32 %v11205, %v11512
  %v11551 = vmul.f32 %v11206, %v11512
  %v11552 = vmul.f32 %v11207, %v11512
  %v11553 = vmul.f32 %v11208, %v11512
  %v11554 = vmul.f32 %v11209, %v11512
  %v11555 = vmul.f32 %v11210, %v11512
  %v11556 = vmul.f32 %v11211, %v11512
  %v11557 = vmul.f32 %v11212, %v11512
  %v11558 = vmul.f32 %v11213, %v11512
  %v11559 = vmul.f32 %v11214, %v11512
  %v11560 = vmul.f32 %v11215, %v11512
  %v11561 = vmul.f32 %v11216, %v11512
  %v11562 = vmul.f32 %v11217, %v11512
  %v11563 = vmul.f32 %v11218, %v11512
  %v11564 = vmul.f32 %v11219, %v11512
  %v11565 = vmul.f32 %v11220, %v11512
  %v11566 = vmul.f32 %v11221, %v11512
  %v11567 = vmul.f32 %v11222, %v11512
  %v11568 = vmul.f32 %v11223, %v11512
  %v11569 = vmul.f32 %v11224, %v11512
  %v11570 = vmul.f32 %v11225, %v11512
  %v11571 = vmul.f32 %v11226, %v11512
  %v11572 = vmul.f32 %v11227, %v11512
  %v11573 = vmul.f32 %v11228, %v11512
  %v11574 = vmul.f32 %v11229, %v11512
  %v11575 = vmul.f32 %v11230, %v11512
  %v11576 = vmul.f32 %v11231, %v11512
  %v11577 = vmul.f32 %v11232, %v11512
  %v11579 = vlaneseq
  %v11580 = vshrl.u32 %v11579, 7
  %v11581 = vsub.s32 0, %v11580
  %v11582 = vrot.slane %v11507, %v11581
  %v11584 = vadd.f32 %v11514, %v11582
  %v11585 = vadd.f32 %v11515, %v11582
  %v11586 = vadd.f32 %v11516, %v11582
  %v11587 = vadd.f32 %v11517, %v11582
  %v11588 = vadd.f32 %v11518, %v11582
  %v11589 = vadd.f32 %v11519, %v11582
  %v11590 = vadd.f32 %v11520, %v11582
  %v11591 = vadd.f32 %v11521, %v11582
  %v11592 = vadd.f32 %v11522, %v11582
  %v11593 = vadd.f32 %v11523, %v11582
  %v11594 = vadd.f32 %v11524, %v11582
  %v11595 = vadd.f32 %v11525, %v11582
  %v11596 = vadd.f32 %v11526, %v11582
  %v11597 = vadd.f32 %v11527, %v11582
  %v11598 = vadd.f32 %v11528, %v11582
  %v11599 = vadd.f32 %v11529, %v11582
  %v11600 = vadd.f32 %v11530, %v11582
  %v11601 = vadd.f32 %v11531, %v11582
  %v11602 = vadd.f32 %v11532, %v11582
  %v11603 = vadd.f32 %v11533, %v11582
  %v11604 = vadd.f32 %v11534, %v11582
  %v11605 = vadd.f32 %v11535, %v11582
  %v11606 = vadd.f32 %v11536, %v11582
  %v11607 = vadd.f32 %v11537, %v11582
  %v11608 = vadd.f32 %v11538, %v11582
  %v11609 = vadd.f32 %v11539, %v11582
  %v11610 = vadd.f32 %v11540, %v11582
  %v11611 = vadd.f32 %v11541, %v11582
  %v11612 = vadd.f32 %v11542, %v11582
  %v11613 = vadd.f32 %v11543, %v11582
  %v11614 = vadd.f32 %v11544, %v11582
  %v11615 = vadd.f32 %v11545, %v11582
  %v11616 = vadd.f32 %v11546, %v11582
  %v11617 = vadd.f32 %v11547, %v11582
  %v11618 = vadd.f32 %v11548, %v11582
  %v11619 = vadd.f32 %v11549, %v11582
  %v11620 = vadd.f32 %v11550, %v11582
  %v11621 = vadd.f32 %v11551, %v11582
  %v11622 = vadd.f32 %v11552, %v11582
  %v11623 = vadd.f32 %v11553, %v11582
  %v11624 = vadd.f32 %v11554, %v11582
  %v11625 = vadd.f32 %v11555, %v11582
  %v11626 = vadd.f32 %v11556, %v11582
  %v11627 = vadd.f32 %v11557, %v11582
  %v11628 = vadd.f32 %v11558, %v11582
  %v11629 = vadd.f32 %v11559, %v11582
  %v11630 = vadd.f32 %v11560, %v11582
  %v11631 = vadd.f32 %v11561, %v11582
  %v11632 = vadd.f32 %v11562, %v11582
  %v11633 = vadd.f32 %v11563, %v11582
  %v11634 = vadd.f32 %v11564, %v11582
  %v11635 = vadd.f32 %v11565, %v11582
  %v11636 = vadd.f32 %v11566, %v11582
  %v11637 = vadd.f32 %v11567, %v11582
  %v11638 = vadd.f32 %v11568, %v11582
  %v11639 = vadd.f32 %v11569, %v11582
  %v11640 = vadd.f32 %v11570, %v11582
  %v11641 = vadd.f32 %v11571, %v11582
  %v11642 = vadd.f32 %v11572, %v11582
  %v11643 = vadd.f32 %v11573, %v11582
  %v11644 = vadd.f32 %v11574, %v11582
  %v11645 = vadd.f32 %v11575, %v11582
  %v11646 = vadd.f32 %v11576, %v11582
  %v11647 = vadd.f32 %v11577, %v11582
  %v11648 = vsub.f32 0.0, %v11584
  %v11649 = vsub.f32 0.0, %v11585
  %v11650 = vsub.f32 0.0, %v11586
  %v11651 = vsub.f32 0.0, %v11587
  %v11652 = vsub.f32 0.0, %v11588
  %v11653 = vsub.f32 0.0, %v11589
  %v11654 = vsub.f32 0.0, %v11590
  %v11655 = vsub.f32 0.0, %v11591
  %v11656 = vsub.f32 0.0, %v11592
  %v11657 = vsub.f32 0.0, %v11593
  %v11658 = vsub.f32 0.0, %v11594
  %v11659 = vsub.f32 0.0, %v11595
  %v11660 = vsub.f32 0.0, %v11596
  %v11661 = vsub.f32 0.0, %v11597
  %v11662 = vsub.f32 0.0, %v11598
  %v11663 = vsub.f32 0.0, %v11599
  %v11664 = vsub.f32 0.0, %v11600
  %v11665 = vsub.f32 0.0, %v11601
  %v11666 = vsub.f32 0.0, %v11602
  %v11667 = vsub.f32 0.0, %v11603
  %v11668 = vsub.f32 0.0, %v11604
  %v11669 = vsub.f32 0.0, %v11605
  %v11670 = vsub.f32 0.0, %v11606
  %v11671 = vsub.f32 0.0, %v11607
  %v11672 = vsub.f32 0.0, %v11608
  %v11673 = vsub.f32 0.0, %v11609
  %v11674 = vsub.f32 0.0, %v11610
  %v11675 = vsub.f32 0.0, %v11611
  %v11676 = vsub.f32 0.0, %v11612
  %v11677 = vsub.f32 0.0, %v11613
  %v11678 = vsub.f32 0.0, %v11614
  %v11679 = vsub.f32 0.0, %v11615
  %v11680 = vsub.f32 0.0, %v11616
  %v11681 = vsub.f32 0.0, %v11617
  %v11682 = vsub.f32 0.0, %v11618
  %v11683 = vsub.f32 0.0, %v11619
  %v11684 = vsub.f32 0.0, %v11620
  %v11685 = vsub.f32 0.0, %v11621
  %v11686 = vsub.f32 0.0, %v11622
  %v11687 = vsub.f32 0.0, %v11623
  %v11688 = vsub.f32 0.0, %v11624
  %v11689 = vsub.f32 0.0, %v11625
  %v11690 = vsub.f32 0.0, %v11626
  %v11691 = vsub.f32 0.0, %v11627
  %v11692 = vsub.f32 0.0, %v11628
  %v11693 = vsub.f32 0.0, %v11629
  %v11694 = vsub.f32 0.0, %v11630
  %v11695 = vsub.f32 0.0, %v11631
  %v11696 = vsub.f32 0.0, %v11632
  %v11697 = vsub.f32 0.0, %v11633
  %v11698 = vsub.f32 0.0, %v11634
  %v11699 = vsub.f32 0.0, %v11635
  %v11700 = vsub.f32 0.0, %v11636
  %v11701 = vsub.f32 0.0, %v11637
  %v11702 = vsub.f32 0.0, %v11638
  %v11703 = vsub.f32 0.0, %v11639
  %v11704 = vsub.f32 0.0, %v11640
  %v11705 = vsub.f32 0.0, %v11641
  %v11706 = vsub.f32 0.0, %v11642
  %v11707 = vsub.f32 0.0, %v11643
  %v11708 = vsub.f32 0.0, %v11644
  %v11709 = vsub.f32 0.0, %v11645
  %v11710 = vsub.f32 0.0, %v11646
  %v11711 = vsub.f32 0.0, %v11647
  %v11712 = vmul.f32 %v11648, 1.442695
  %v11713 = vpow.pop %v11712
  %v11714 = vmul.f32 %v11649, 1.442695
  %v11715 = vpow.pop %v11714
  %v11716 = vmul.f32 %v11650, 1.442695
  %v11717 = vpow.pop %v11716
  %v11718 = vmul.f32 %v11651, 1.442695
  %v11719 = vpow.pop %v11718
  %v11720 = vmul.f32 %v11652, 1.442695
  %v11721 = vpow.pop %v11720
  %v11722 = vmul.f32 %v11653, 1.442695
  %v11723 = vpow.pop %v11722
  %v11724 = vmul.f32 %v11654, 1.442695
  %v11725 = vpow.pop %v11724
  %v11726 = vmul.f32 %v11655, 1.442695
  %v11727 = vpow.pop %v11726
  %v11728 = vmul.f32 %v11656, 1.442695
  %v11729 = vpow.pop %v11728
  %v11730 = vmul.f32 %v11657, 1.442695
  %v11731 = vpow.pop %v11730
  %v11732 = vmul.f32 %v11658, 1.442695
  %v11733 = vpow.pop %v11732
  %v11734 = vmul.f32 %v11659, 1.442695
  %v11735 = vpow.pop %v11734
  %v11736 = vmul.f32 %v11660, 1.442695
  %v11737 = vpow.pop %v11736
  %v11738 = vmul.f32 %v11661, 1.442695
  %v11739 = vpow.pop %v11738
  %v11740 = vmul.f32 %v11662, 1.442695
  %v11741 = vpow.pop %v11740
  %v11742 = vmul.f32 %v11663, 1.442695
  %v11743 = vpow.pop %v11742
  %v11744 = vmul.f32 %v11664, 1.442695
  %v11745 = vpow.pop %v11744
  %v11746 = vmul.f32 %v11665, 1.442695
  %v11747 = vpow.pop %v11746
  %v11748 = vmul.f32 %v11666, 1.442695
  %v11749 = vpow.pop %v11748
  %v11750 = vmul.f32 %v11667, 1.442695
  %v11751 = vpow.pop %v11750
  %v11752 = vmul.f32 %v11668, 1.442695
  %v11753 = vpow.pop %v11752
  %v11754 = vmul.f32 %v11669, 1.442695
  %v11755 = vpow.pop %v11754
  %v11756 = vmul.f32 %v11670, 1.442695
  %v11757 = vpow.pop %v11756
  %v11758 = vmul.f32 %v11671, 1.442695
  %v11759 = vpow.pop %v11758
  %v11760 = vmul.f32 %v11672, 1.442695
  %v11761 = vpow.pop %v11760
  %v11762 = vmul.f32 %v11673, 1.442695
  %v11763 = vpow.pop %v11762
  %v11764 = vmul.f32 %v11674, 1.442695
  %v11765 = vpow.pop %v11764
  %v11766 = vmul.f32 %v11675, 1.442695
  %v11767 = vpow.pop %v11766
  %v11768 = vmul.f32 %v11676, 1.442695
  %v11769 = vpow.pop %v11768
  %v11770 = vmul.f32 %v11677, 1.442695
  %v11771 = vpow.pop %v11770
  %v11772 = vmul.f32 %v11678, 1.442695
  %v11773 = vpow.pop %v11772
  %v11774 = vmul.f32 %v11679, 1.442695
  %v11775 = vpow.pop %v11774
  %v11776 = vmul.f32 %v11680, 1.442695
  %v11777 = vpow.pop %v11776
  %v11778 = vmul.f32 %v11681, 1.442695
  %v11779 = vpow.pop %v11778
  %v11780 = vmul.f32 %v11682, 1.442695
  %v11781 = vpow.pop %v11780
  %v11782 = vmul.f32 %v11683, 1.442695
  %v11783 = vpow.pop %v11782
  %v11784 = vmul.f32 %v11684, 1.442695
  %v11785 = vpow.pop %v11784
  %v11786 = vmul.f32 %v11685, 1.442695
  %v11787 = vpow.pop %v11786
  %v11788 = vmul.f32 %v11686, 1.442695
  %v11789 = vpow.pop %v11788
  %v11790 = vmul.f32 %v11687, 1.442695
  %v11791 = vpow.pop %v11790
  %v11792 = vmul.f32 %v11688, 1.442695
  %v11793 = vpow.pop %v11792
  %v11794 = vmul.f32 %v11689, 1.442695
  %v11795 = vpow.pop %v11794
  %v11796 = vmul.f32 %v11690, 1.442695
  %v11797 = vpow.pop %v11796
  %v11798 = vmul.f32 %v11691, 1.442695
  %v11799 = vpow.pop %v11798
  %v11800 = vmul.f32 %v11692, 1.442695
  %v11801 = vpow.pop %v11800
  %v11802 = vmul.f32 %v11693, 1.442695
  %v11803 = vpow.pop %v11802
  %v11804 = vmul.f32 %v11694, 1.442695
  %v11805 = vpow.pop %v11804
  %v11806 = vmul.f32 %v11695, 1.442695
  %v11807 = vpow.pop %v11806
  %v11808 = vmul.f32 %v11696, 1.442695
  %v11809 = vpow.pop %v11808
  %v11810 = vmul.f32 %v11697, 1.442695
  %v11811 = vpow.pop %v11810
  %v11812 = vmul.f32 %v11698, 1.442695
  %v11813 = vpow.pop %v11812
  %v11814 = vmul.f32 %v11699, 1.442695
  %v11815 = vpow.pop %v11814
  %v11816 = vmul.f32 %v11700, 1.442695
  %v11817 = vpow.pop %v11816
  %v11818 = vmul.f32 %v11701, 1.442695
  %v11819 = vpow.pop %v11818
  %v11820 = vmul.f32 %v11702, 1.442695
  %v11821 = vpow.pop %v11820
  %v11822 = vmul.f32 %v11703, 1.442695
  %v11823 = vpow.pop %v11822
  %v11824 = vmul.f32 %v11704, 1.442695
  %v11825 = vpow.pop %v11824
  %v11826 = vmul.f32 %v11705, 1.442695
  %v11827 = vpow.pop %v11826
  %v11828 = vmul.f32 %v11706, 1.442695
  %v11829 = vpow.pop %v11828
  %v11830 = vmul.f32 %v11707, 1.442695
  %v11831 = vpow.pop %v11830
  %v11832 = vmul.f32 %v11708, 1.442695
  %v11833 = vpow.pop %v11832
  %v11834 = vmul.f32 %v11709, 1.442695
  %v11835 = vpow.pop %v11834
  %v11836 = vmul.f32 %v11710, 1.442695
  %v11837 = vpow.pop %v11836
  %v11838 = vmul.f32 %v11711, 1.442695
  %v11839 = vpow.pop %v11838
  %v11840 = vadd.f32 %v11713, 1.0
  %v11841 = vadd.f32 %v11715, 1.0
  %v11842 = vadd.f32 %v11717, 1.0
  %v11843 = vadd.f32 %v11719, 1.0
  %v11844 = vadd.f32 %v11721, 1.0
  %v11845 = vadd.f32 %v11723, 1.0
  %v11846 = vadd.f32 %v11725, 1.0
  %v11847 = vadd.f32 %v11727, 1.0
  %v11848 = vadd.f32 %v11729, 1.0
  %v11849 = vadd.f32 %v11731, 1.0
  %v11850 = vadd.f32 %v11733, 1.0
  %v11851 = vadd.f32 %v11735, 1.0
  %v11852 = vadd.f32 %v11737, 1.0
  %v11853 = vadd.f32 %v11739, 1.0
  %v11854 = vadd.f32 %v11741, 1.0
  %v11855 = vadd.f32 %v11743, 1.0
  %v11856 = vadd.f32 %v11745, 1.0
  %v11857 = vadd.f32 %v11747, 1.0
  %v11858 = vadd.f32 %v11749, 1.0
  %v11859 = vadd.f32 %v11751, 1.0
  %v11860 = vadd.f32 %v11753, 1.0
  %v11861 = vadd.f32 %v11755, 1.0
  %v11862 = vadd.f32 %v11757, 1.0
  %v11863 = vadd.f32 %v11759, 1.0
  %v11864 = vadd.f32 %v11761, 1.0
  %v11865 = vadd.f32 %v11763, 1.0
  %v11866 = vadd.f32 %v11765, 1.0
  %v11867 = vadd.f32 %v11767, 1.0
  %v11868 = vadd.f32 %v11769, 1.0
  %v11869 = vadd.f32 %v11771, 1.0
  %v11870 = vadd.f32 %v11773, 1.0
  %v11871 = vadd.f32 %v11775, 1.0
  %v11872 = vadd.f32 %v11777, 1.0
  %v11873 = vadd.f32 %v11779, 1.0
  %v11874 = vadd.f32 %v11781, 1.0
  %v11875 = vadd.f32 %v11783, 1.0
  %v11876 = vadd.f32 %v11785, 1.0
  %v11877 = vadd.f32 %v11787, 1.0
  %v11878 = vadd.f32 %v11789, 1.0
  %v11879 = vadd.f32 %v11791, 1.0
  %v11880 = vadd.f32 %v11793, 1.0
  %v11881 = vadd.f32 %v11795, 1.0
  %v11882 = vadd.f32 %v11797, 1.0
  %v11883 = vadd.f32 %v11799, 1.0
  %v11884 = vadd.f32 %v11801, 1.0
  %v11885 = vadd.f32 %v11803, 1.0
  %v11886 = vadd.f32 %v11805, 1.0
  %v11887 = vadd.f32 %v11807, 1.0
  %v11888 = vadd.f32 %v11809, 1.0
  %v11889 = vadd.f32 %v11811, 1.0
  %v11890 = vadd.f32 %v11813, 1.0
  %v11891 = vadd.f32 %v11815, 1.0
  %v11892 = vadd.f32 %v11817, 1.0
  %v11893 = vadd.f32 %v11819, 1.0
  %v11894 = vadd.f32 %v11821, 1.0
  %v11895 = vadd.f32 %v11823, 1.0
  %v11896 = vadd.f32 %v11825, 1.0
  %v11897 = vadd.f32 %v11827, 1.0
  %v11898 = vadd.f32 %v11829, 1.0
  %v11899 = vadd.f32 %v11831, 1.0
  %v11900 = vadd.f32 %v11833, 1.0
  %v11901 = vadd.f32 %v11835, 1.0
  %v11902 = vadd.f32 %v11837, 1.0
  %v11903 = vadd.f32 %v11839, 1.0
  %v11904 = vrcp.pop %v11840
  %v11905 = vmul.f32 1.0, %v11904
  %v11906 = vrcp.pop %v11841
  %v11907 = vmul.f32 1.0, %v11906
  %v11908 = vrcp.pop %v11842
  %v11909 = vmul.f32 1.0, %v11908
  %v11910 = vrcp.pop %v11843
  %v11911 = vmul.f32 1.0, %v11910
  %v11912 = vrcp.pop %v11844
  %v11913 = vmul.f32 1.0, %v11912
  %v11914 = vrcp.pop %v11845
  %v11915 = vmul.f32 1.0, %v11914
  %v11916 = vrcp.pop %v11846
  %v11917 = vmul.f32 1.0, %v11916
  %v11918 = vrcp.pop %v11847
  %v11919 = vmul.f32 1.0, %v11918
  %v11920 = vrcp.pop %v11848
  %v11921 = vmul.f32 1.0, %v11920
  %v11922 = vrcp.pop %v11849
  %v11923 = vmul.f32 1.0, %v11922
  %v11924 = vrcp.pop %v11850
  %v11925 = vmul.f32 1.0, %v11924
  %v11926 = vrcp.pop %v11851
  %v11927 = vmul.f32 1.0, %v11926
  %v11928 = vrcp.pop %v11852
  %v11929 = vmul.f32 1.0, %v11928
  %v11930 = vrcp.pop %v11853
  %v11931 = vmul.f32 1.0, %v11930
  %v11932 = vrcp.pop %v11854
  %v11933 = vmul.f32 1.0, %v11932
  %v11934 = vrcp.pop %v11855
  %v11935 = vmul.f32 1.0, %v11934
  %v11936 = vrcp.pop %v11856
  %v11937 = vmul.f32 1.0, %v11936
  %v11938 = vrcp.pop %v11857
  %v11939 = vmul.f32 1.0, %v11938
  %v11940 = vrcp.pop %v11858
  %v11941 = vmul.f32 1.0, %v11940
  %v11942 = vrcp.pop %v11859
  %v11943 = vmul.f32 1.0, %v11942
  %v11944 = vrcp.pop %v11860
  %v11945 = vmul.f32 1.0, %v11944
  %v11946 = vrcp.pop %v11861
  %v11947 = vmul.f32 1.0, %v11946
  %v11948 = vrcp.pop %v11862
  %v11949 = vmul.f32 1.0, %v11948
  %v11950 = vrcp.pop %v11863
  %v11951 = vmul.f32 1.0, %v11950
  %v11952 = vrcp.pop %v11864
  %v11953 = vmul.f32 1.0, %v11952
  %v11954 = vrcp.pop %v11865
  %v11955 = vmul.f32 1.0, %v11954
  %v11956 = vrcp.pop %v11866
  %v11957 = vmul.f32 1.0, %v11956
  %v11958 = vrcp.pop %v11867
  %v11959 = vmul.f32 1.0, %v11958
  %v11960 = vrcp.pop %v11868
  %v11961 = vmul.f32 1.0, %v11960
  %v11962 = vrcp.pop %v11869
  %v11963 = vmul.f32 1.0, %v11962
  %v11964 = vrcp.pop %v11870
  %v11965 = vmul.f32 1.0, %v11964
  %v11966 = vrcp.pop %v11871
  %v11967 = vmul.f32 1.0, %v11966
  %v11968 = vrcp.pop %v11872
  %v11969 = vmul.f32 1.0, %v11968
  %v11970 = vrcp.pop %v11873
  %v11971 = vmul.f32 1.0, %v11970
  %v11972 = vrcp.pop %v11874
  %v11973 = vmul.f32 1.0, %v11972
  %v11974 = vrcp.pop %v11875
  %v11975 = vmul.f32 1.0, %v11974
  %v11976 = vrcp.pop %v11876
  %v11977 = vmul.f32 1.0, %v11976
  %v11978 = vrcp.pop %v11877
  %v11979 = vmul.f32 1.0, %v11978
  %v11980 = vrcp.pop %v11878
  %v11981 = vmul.f32 1.0, %v11980
  %v11982 = vrcp.pop %v11879
  %v11983 = vmul.f32 1.0, %v11982
  %v11984 = vrcp.pop %v11880
  %v11985 = vmul.f32 1.0, %v11984
  %v11986 = vrcp.pop %v11881
  %v11987 = vmul.f32 1.0, %v11986
  %v11988 = vrcp.pop %v11882
  %v11989 = vmul.f32 1.0, %v11988
  %v11990 = vrcp.pop %v11883
  %v11991 = vmul.f32 1.0, %v11990
  %v11992 = vrcp.pop %v11884
  %v11993 = vmul.f32 1.0, %v11992
  %v11994 = vrcp.pop %v11885
  %v11995 = vmul.f32 1.0, %v11994
  %v11996 = vrcp.pop %v11886
  %v11997 = vmul.f32 1.0, %v11996
  %v11998 = vrcp.pop %v11887
  %v11999 = vmul.f32 1.0, %v11998
  %v12000 = vrcp.pop %v11888
  %v12001 = vmul.f32 1.0, %v12000
  %v12002 = vrcp.pop %v11889
  %v12003 = vmul.f32 1.0, %v12002
  %v12004 = vrcp.pop %v11890
  %v12005 = vmul.f32 1.0, %v12004
  %v12006 = vrcp.pop %v11891
  %v12007 = vmul.f32 1.0, %v12006
  %v12008 = vrcp.pop %v11892
  %v12009 = vmul.f32 1.0, %v12008
  %v12010 = vrcp.pop %v11893
  %v12011 = vmul.f32 1.0, %v12010
  %v12012 = vrcp.pop %v11894
  %v12013 = vmul.f32 1.0, %v12012
  %v12014 = vrcp.pop %v11895
  %v12015 = vmul.f32 1.0, %v12014
  %v12016 = vrcp.pop %v11896
  %v12017 = vmul.f32 1.0, %v12016
  %v12018 = vrcp.pop %v11897
  %v12019 = vmul.f32 1.0, %v12018
  %v12020 = vrcp.pop %v11898
  %v12021 = vmul.f32 1.0, %v12020
  %v12022 = vrcp.pop %v11899
  %v12023 = vmul.f32 1.0, %v12022
  %v12024 = vrcp.pop %v11900
  %v12025 = vmul.f32 1.0, %v12024
  %v12026 = vrcp.pop %v11901
  %v12027 = vmul.f32 1.0, %v12026
  %v12028 = vrcp.pop %v11902
  %v12029 = vmul.f32 1.0, %v12028
  %v12030 = vrcp.pop %v11903
  %v12031 = vmul.f32 1.0, %v12030
  %v12032 = vmul.f32 %v11584, %v11905
  %v12033 = vmul.f32 %v11585, %v11907
  %v12034 = vmul.f32 %v11586, %v11909
  %v12035 = vmul.f32 %v11587, %v11911
  %v12036 = vmul.f32 %v11588, %v11913
  %v12037 = vmul.f32 %v11589, %v11915
  %v12038 = vmul.f32 %v11590, %v11917
  %v12039 = vmul.f32 %v11591, %v11919
  %v12040 = vmul.f32 %v11592, %v11921
  %v12041 = vmul.f32 %v11593, %v11923
  %v12042 = vmul.f32 %v11594, %v11925
  %v12043 = vmul.f32 %v11595, %v11927
  %v12044 = vmul.f32 %v11596, %v11929
  %v12045 = vmul.f32 %v11597, %v11931
  %v12046 = vmul.f32 %v11598, %v11933
  %v12047 = vmul.f32 %v11599, %v11935
  %v12048 = vmul.f32 %v11600, %v11937
  %v12049 = vmul.f32 %v11601, %v11939
  %v12050 = vmul.f32 %v11602, %v11941
  %v12051 = vmul.f32 %v11603, %v11943
  %v12052 = vmul.f32 %v11604, %v11945
  %v12053 = vmul.f32 %v11605, %v11947
  %v12054 = vmul.f32 %v11606, %v11949
  %v12055 = vmul.f32 %v11607, %v11951
  %v12056 = vmul.f32 %v11608, %v11953
  %v12057 = vmul.f32 %v11609, %v11955
  %v12058 = vmul.f32 %v11610, %v11957
  %v12059 = vmul.f32 %v11611, %v11959
  %v12060 = vmul.f32 %v11612, %v11961
  %v12061 = vmul.f32 %v11613, %v11963
  %v12062 = vmul.f32 %v11614, %v11965
  %v12063 = vmul.f32 %v11615, %v11967
  %v12064 = vmul.f32 %v11616, %v11969
  %v12065 = vmul.f32 %v11617, %v11971
  %v12066 = vmul.f32 %v11618, %v11973
  %v12067 = vmul.f32 %v11619, %v11975
  %v12068 = vmul.f32 %v11620, %v11977
  %v12069 = vmul.f32 %v11621, %v11979
  %v12070 = vmul.f32 %v11622, %v11981
  %v12071 = vmul.f32 %v11623, %v11983
  %v12072 = vmul.f32 %v11624, %v11985
  %v12073 = vmul.f32 %v11625, %v11987
  %v12074 = vmul.f32 %v11626, %v11989
  %v12075 = vmul.f32 %v11627, %v11991
  %v12076 = vmul.f32 %v11628, %v11993
  %v12077 = vmul.f32 %v11629, %v11995
  %v12078 = vmul.f32 %v11630, %v11997
  %v12079 = vmul.f32 %v11631, %v11999
  %v12080 = vmul.f32 %v11632, %v12001
  %v12081 = vmul.f32 %v11633, %v12003
  %v12082 = vmul.f32 %v11634, %v12005
  %v12083 = vmul.f32 %v11635, %v12007
  %v12084 = vmul.f32 %v11636, %v12009
  %v12085 = vmul.f32 %v11637, %v12011
  %v12086 = vmul.f32 %v11638, %v12013
  %v12087 = vmul.f32 %v11639, %v12015
  %v12088 = vmul.f32 %v11640, %v12017
  %v12089 = vmul.f32 %v11641, %v12019
  %v12090 = vmul.f32 %v11642, %v12021
  %v12091 = vmul.f32 %v11643, %v12023
  %v12092 = vmul.f32 %v11644, %v12025
  %v12093 = vmul.f32 %v11645, %v12027
  %v12094 = vmul.f32 %v11646, %v12029
  %v12095 = vmul.f32 %v11647, %v12031
  %v12096 = vadd.f32 %v12032, %v27
  %v12097 = vadd.f32 %v12033, %v28
  %v12098 = vadd.f32 %v12034, %v29
  %v12099 = vadd.f32 %v12035, %v30
  %v12100 = vadd.f32 %v12036, %v31
  %v12101 = vadd.f32 %v12037, %v32
  %v12102 = vadd.f32 %v12038, %v33
  %v12103 = vadd.f32 %v12039, %v34
  %v12104 = vadd.f32 %v12040, %v35
  %v12105 = vadd.f32 %v12041, %v36
  %v12106 = vadd.f32 %v12042, %v37
  %v12107 = vadd.f32 %v12043, %v38
  %v12108 = vadd.f32 %v12044, %v39
  %v12109 = vadd.f32 %v12045, %v40
  %v12110 = vadd.f32 %v12046, %v41
  %v12111 = vadd.f32 %v12047, %v42
  %v12112 = vadd.f32 %v12048, %v43
  %v12113 = vadd.f32 %v12049, %v44
  %v12114 = vadd.f32 %v12050, %v45
  %v12115 = vadd.f32 %v12051, %v46
  %v12116 = vadd.f32 %v12052, %v47
  %v12117 = vadd.f32 %v12053, %v48
  %v12118 = vadd.f32 %v12054, %v49
  %v12119 = vadd.f32 %v12055, %v50
  %v12120 = vadd.f32 %v12056, %v51
  %v12121 = vadd.f32 %v12057, %v52
  %v12122 = vadd.f32 %v12058, %v53
  %v12123 = vadd.f32 %v12059, %v54
  %v12124 = vadd.f32 %v12060, %v55
  %v12125 = vadd.f32 %v12061, %v56
  %v12126 = vadd.f32 %v12062, %v57
  %v12127 = vadd.f32 %v12063, %v58
  %v12128 = vadd.f32 %v12064, %v59
  %v12129 = vadd.f32 %v12065, %v60
  %v12130 = vadd.f32 %v12066, %v61
  %v12131 = vadd.f32 %v12067, %v62
  %v12132 = vadd.f32 %v12068, %v63
  %v12133 = vadd.f32 %v12069, %v64
  %v12134 = vadd.f32 %v12070, %v65
  %v12135 = vadd.f32 %v12071, %v66
  %v12136 = vadd.f32 %v12072, %v67
  %v12137 = vadd.f32 %v12073, %v68
  %v12138 = vadd.f32 %v12074, %v69
  %v12139 = vadd.f32 %v12075, %v70
  %v12140 = vadd.f32 %v12076, %v71
  %v12141 = vadd.f32 %v12077, %v72
  %v12142 = vadd.f32 %v12078, %v73
  %v12143 = vadd.f32 %v12079, %v74
  %v12144 = vadd.f32 %v12080, %v75
  %v12145 = vadd.f32 %v12081, %v76
  %v12146 = vadd.f32 %v12082, %v77
  %v12147 = vadd.f32 %v12083, %v78
  %v12148 = vadd.f32 %v12084, %v79
  %v12149 = vadd.f32 %v12085, %v80
  %v12150 = vadd.f32 %v12086, %v81
  %v12151 = vadd.f32 %v12087, %v82
  %v12152 = vadd.f32 %v12088, %v83
  %v12153 = vadd.f32 %v12089, %v84
  %v12154 = vadd.f32 %v12090, %v85
  %v12155 = vadd.f32 %v12091, %v86
  %v12156 = vadd.f32 %v12092, %v87
  %v12157 = vadd.f32 %v12093, %v88
  %v12158 = vadd.f32 %v12094, %v89
  %v12159 = vadd.f32 %v12095, %v90
  %12160 = vst [vmem:[%s7] sm:$0xff] %v12096
  %12161 = vst [vmem:[%s7 + $0x8] sm:$0xff] %v12097
  %12162 = vst [vmem:[%s7 + $0x10] sm:$0xff] %v12098
  %12163 = vst [vmem:[%s7 + $0x18] sm:$0xff] %v12099
  %12164 = vst [vmem:[%s7 + $0x20] sm:$0xff] %v12100
  %12165 = vst [vmem:[%s7 + $0x28] sm:$0xff] %v12101
  %12166 = vst [vmem:[%s7 + $0x30] sm:$0xff] %v12102
  %12167 = vst [vmem:[%s7 + $0x38] sm:$0xff] %v12103
  %12168 = vst [vmem:[%s7 + $0x40] sm:$0xff] %v12104
  %12169 = vst [vmem:[%s7 + $0x48] sm:$0xff] %v12105
  %12170 = vst [vmem:[%s7 + $0x50] sm:$0xff] %v12106
  %12171 = vst [vmem:[%s7 + $0x58] sm:$0xff] %v12107
  %12172 = vst [vmem:[%s7 + $0x60] sm:$0xff] %v12108
  %12173 = vst [vmem:[%s7 + $0x68] sm:$0xff] %v12109
  %12174 = vst [vmem:[%s7 + $0x70] sm:$0xff] %v12110
  %12175 = vst [vmem:[%s7 + $0x78] sm:$0xff] %v12111
  %12176 = vst [vmem:[%s7 + $0x80] sm:$0xff] %v12112
  %12177 = vst [vmem:[%s7 + $0x88] sm:$0xff] %v12113
  %12178 = vst [vmem:[%s7 + $0x90] sm:$0xff] %v12114
  %12179 = vst [vmem:[%s7 + $0x98] sm:$0xff] %v12115
  %12180 = vst [vmem:[%s7 + $0xa0] sm:$0xff] %v12116
  %12181 = vst [vmem:[%s7 + $0xa8] sm:$0xff] %v12117
  %12182 = vst [vmem:[%s7 + $0xb0] sm:$0xff] %v12118
  %12183 = vst [vmem:[%s7 + $0xb8] sm:$0xff] %v12119
  %12184 = vst [vmem:[%s7 + $0xc0] sm:$0xff] %v12120
  %12185 = vst [vmem:[%s7 + $0xc8] sm:$0xff] %v12121
  %12186 = vst [vmem:[%s7 + $0xd0] sm:$0xff] %v12122
  %12187 = vst [vmem:[%s7 + $0xd8] sm:$0xff] %v12123
  %12188 = vst [vmem:[%s7 + $0xe0] sm:$0xff] %v12124
  %12189 = vst [vmem:[%s7 + $0xe8] sm:$0xff] %v12125
  %12190 = vst [vmem:[%s7 + $0xf0] sm:$0xff] %v12126
  %12191 = vst [vmem:[%s7 + $0xf8] sm:$0xff] %v12127
  %12192 = vst [vmem:[%s7 + $0x100] sm:$0xff] %v12128
  %12193 = vst [vmem:[%s7 + $0x108] sm:$0xff] %v12129
  %12194 = vst [vmem:[%s7 + $0x110] sm:$0xff] %v12130
  %12195 = vst [vmem:[%s7 + $0x118] sm:$0xff] %v12131
  %12196 = vst [vmem:[%s7 + $0x120] sm:$0xff] %v12132
  %12197 = vst [vmem:[%s7 + $0x128] sm:$0xff] %v12133
  %12198 = vst [vmem:[%s7 + $0x130] sm:$0xff] %v12134
  %12199 = vst [vmem:[%s7 + $0x138] sm:$0xff] %v12135
  %12200 = vst [vmem:[%s7 + $0x140] sm:$0xff] %v12136
  %12201 = vst [vmem:[%s7 + $0x148] sm:$0xff] %v12137
  %12202 = vst [vmem:[%s7 + $0x150] sm:$0xff] %v12138
  %12203 = vst [vmem:[%s7 + $0x158] sm:$0xff] %v12139
  %12204 = vst [vmem:[%s7 + $0x160] sm:$0xff] %v12140
  %12205 = vst [vmem:[%s7 + $0x168] sm:$0xff] %v12141
  %12206 = vst [vmem:[%s7 + $0x170] sm:$0xff] %v12142
  %12207 = vst [vmem:[%s7 + $0x178] sm:$0xff] %v12143
  %12208 = vst [vmem:[%s7 + $0x180] sm:$0xff] %v12144
  %12209 = vst [vmem:[%s7 + $0x188] sm:$0xff] %v12145
  %12210 = vst [vmem:[%s7 + $0x190] sm:$0xff] %v12146
  %12211 = vst [vmem:[%s7 + $0x198] sm:$0xff] %v12147
  %12212 = vst [vmem:[%s7 + $0x1a0] sm:$0xff] %v12148
  %12213 = vst [vmem:[%s7 + $0x1a8] sm:$0xff] %v12149
  %12214 = vst [vmem:[%s7 + $0x1b0] sm:$0xff] %v12150
  %12215 = vst [vmem:[%s7 + $0x1b8] sm:$0xff] %v12151
  %12216 = vst [vmem:[%s7 + $0x1c0] sm:$0xff] %v12152
  %12217 = vst [vmem:[%s7 + $0x1c8] sm:$0xff] %v12153
  %12218 = vst [vmem:[%s7 + $0x1d0] sm:$0xff] %v12154
  %12219 = vst [vmem:[%s7 + $0x1d8] sm:$0xff] %v12155
  %12220 = vst [vmem:[%s7 + $0x1e0] sm:$0xff] %v12156
  %12221 = vst [vmem:[%s7 + $0x1e8] sm:$0xff] %v12157
  %12222 = vst [vmem:[%s7 + $0x1f0] sm:$0xff] %v12158
  %12223 = vst [vmem:[%s7 + $0x1f8] sm:$0xff] %v12159
  // Predicated region
  $region30: #{residual_forward.1} parent=0 // pred_check
    _
  $region31: #{residual_forward.1} parent=0 // pred_check_branch
    %12225 = sbr.rel (0) target = $region33
  $region32: #{residual_forward.1} parent=0 // pred_region
    _
  $region33: #{residual_forward.1} parent=0 // pred_fallthru
    _
  // Predicated region
  $region34: #{residual_forward.1} parent=0 // pred_check
    _
  $region35: #{residual_forward.1} parent=0 // pred_check_branch
    %12227 = sbr.rel (0) target = $region37
  $region36: #{residual_forward.1} parent=0 // pred_region
    _
  $region37: #{residual_forward.1} parent=0 // pred_fallthru
    _

</llo_original>
